<compile_context>
chip_gen: v7x
topology: tpu7x:2x2x1
jax: 0.10.0
libtpu: 0.0.40
codegen_flags: <defaults>
</compile_context>

<pallas_src>
import functools

import jax
import jax.numpy as jnp
from jax import lax
from jax.experimental import pallas as pl
from jax.experimental.pallas import tpu as pltpu

EPS = 1e-5


def _vmem_budget_and_tile():
    """Generation-aware defaults: 128-MiB-VMEM chips (v5e/v6e) take bigger
    tiles + a higher scoped limit; v7x (64 MiB/TC) stays at 1024 / 48 MiB."""
    cap = 64 << 20
    try:
        cap = int(pltpu.get_tpu_info().vmem_capacity_bytes)
    except Exception:
        pass
    if cap >= (100 << 20):          # v5e / v6e
        return 96 << 20, 2048
    return 48 << 20, 1024           # v7x (or unknown): stay well under 64 MiB


# --------------------------------------------------------------------------- #
# small shared helpers                                                         #
# --------------------------------------------------------------------------- #
def _bn_relu(h, gamma, beta):
    """Training-mode BatchNorm (biased batch stats over axis 0) + ReLU, f32."""
    mean = jnp.mean(h, axis=0, keepdims=True)
    var = jnp.mean(jnp.square(h - mean), axis=0, keepdims=True)
    return jnp.maximum((h - mean) * lax.rsqrt(var + EPS) * gamma + beta, 0.0)


def _conv1_vpu(x, w1, b1, k):
    """1x1 conv with K=k(=3) as k broadcast FMAs on the VPU (K=3 on the MXU is ~97% padding)."""
    z = x[:, 0:1] * w1[0:1, :]
    for j in range(1, k):
        z = z + x[:, j:j + 1] * w1[j:j + 1, :]
    return z + b1


# --------------------------------------------------------------------------- #
# pass 2: flattened global reduction for BN2 statistics                        #
# grid = (n_par "parallel", tiles "arbitrary")                                 #
# --------------------------------------------------------------------------- #
def _conv2_stats_kernel(k, n_rows, tile_rows, tiles_per_par, masked,
                        x_ref, w1_ref, b1_ref, a1_ref, c1_ref,
                        w2_ref, b2_ref, s_ref, q_ref):
    p = pl.program_id(0)
    t = pl.program_id(1)

    @pl.when(t == 0)
    def _():
        s_ref[...] = jnp.zeros(s_ref.shape, s_ref.dtype)
        q_ref[...] = jnp.zeros(q_ref.shape, q_ref.dtype)

    z1 = _conv1_vpu(x_ref[...], w1_ref[...], b1_ref[...], k)
    h1 = jnp.maximum(z1 * a1_ref[...] + c1_ref[...], 0.0)
    z2 = jnp.dot(h1.astype(w2_ref.dtype), w2_ref[...],
                 preferred_element_type=jnp.float32) + b2_ref[...]   # (tile_rows, 128) f32

    def _accum(z):
        s_ref[...] += jnp.sum(z, axis=0, keepdims=True)
        q_ref[...] += jnp.sum(z * z, axis=0, keepdims=True)

    if masked:
        row0 = (p * tiles_per_par + t) * tile_rows        # first global row of this tile
        has_pad = row0 + tile_rows > n_rows               # only tiles past the data need masks

        @pl.when(has_pad)
        def _():
            row = row0 + lax.broadcasted_iota(jnp.int32, (tile_rows, 1), 0)
            _accum(jnp.where(row < n_rows, z2, 0.0))

        @pl.when(jnp.logical_not(has_pad))
        def _():
            _accum(z2)
    else:
        _accum(z2)


# --------------------------------------------------------------------------- #
# pass 3: per-batch streaming conv3 stats + max/min of pre-BN conv3            #
# grid = (batch "parallel", point-tile "arbitrary")                            #
# --------------------------------------------------------------------------- #
def _conv3_stats_max_kernel(k, n_valid, tile_n, masked,
                            x_ref, w1_ref, b1_ref, a1_ref, c1_ref,
                            w2_ref, b2_ref, a2_ref, c2_ref, w3_ref, b3_ref,
                            s_ref, q_ref, mx_ref, mn_ref):
    t = pl.program_id(1)

    @pl.when(t == 0)
    def _():
        s_ref[...] = jnp.zeros(s_ref.shape, s_ref.dtype)
        q_ref[...] = jnp.zeros(q_ref.shape, q_ref.dtype)
        mx_ref[...] = jnp.full(mx_ref.shape, -jnp.inf, mx_ref.dtype)
        mn_ref[...] = jnp.full(mn_ref.shape, jnp.inf, mn_ref.dtype)

    z1 = _conv1_vpu(x_ref[...], w1_ref[...], b1_ref[...], k)
    h1 = jnp.maximum(z1 * a1_ref[...] + c1_ref[...], 0.0)
    z2 = jnp.dot(h1.astype(w2_ref.dtype), w2_ref[...],
                 preferred_element_type=jnp.float32) + b2_ref[...]
    h2 = jnp.maximum(z2 * a2_ref[...] + c2_ref[...], 0.0)
    z3 = jnp.dot(h2.astype(w3_ref.dtype), w3_ref[...],
                 preferred_element_type=jnp.float32) + b3_ref[...]   # (tile_n, 1024) f32

    def _accum(zs, zh, zl):
        s_ref[...] += jnp.sum(zs, axis=0, keepdims=True)
        q_ref[...] += jnp.sum(zs * zs, axis=0, keepdims=True)
        mx_ref[...] = jnp.maximum(mx_ref[...], jnp.max(zh, axis=0, keepdims=True))
        mn_ref[...] = jnp.minimum(mn_ref[...], jnp.min(zl, axis=0, keepdims=True))

    if masked:
        is_tail = t == pl.num_programs(1) - 1              # padding lives only in the last tile

        @pl.when(is_tail)
        def _():
            row = t * tile_n + lax.broadcasted_iota(jnp.int32, (tile_n, 1), 0)
            m = row < n_valid
            _accum(jnp.where(m, z3, 0.0),
                   jnp.where(m, z3, -jnp.inf),
                   jnp.where(m, z3, jnp.inf))

        @pl.when(jnp.logical_not(is_tail))
        def _():
            _accum(z3, z3, z3)
    else:
        _accum(z3, z3, z3)


# --------------------------------------------------------------------------- #
# head kernel (rows == batch, latency-bound, one small launch)                 #
# --------------------------------------------------------------------------- #
def _head_kernel(mx_ref, mn_ref, a3_ref, c3_ref,
                 w4_ref, b4_ref, g4_ref, be4_ref,
                 w5_ref, b5_ref, g5_ref, be5_ref,
                 w6_ref, b6_ref, iden_ref, out_ref):
    a3 = a3_ref[...]
    # max_n relu(a*z + c) == relu(a * (max_n z if a >= 0 else min_n z) + c)
    feat = jnp.maximum(
        jnp.where(a3 >= 0.0, mx_ref[...] * a3, mn_ref[...] * a3) + c3_ref[...], 0.0)
    h = jnp.dot(feat.astype(w4_ref.dtype), w4_ref[...],
                preferred_element_type=jnp.float32) + b4_ref[...]
    h = _bn_relu(h, g4_ref[...], be4_ref[...])
    h = jnp.dot(h.astype(w5_ref.dtype), w5_ref[...],
                preferred_element_type=jnp.float32) + b5_ref[...]
    h = _bn_relu(h, g5_ref[...], be5_ref[...])
    out_ref[...] = (jnp.dot(h, w6_ref[...], preferred_element_type=jnp.float32)
                    + b6_ref[...] + iden_ref[...])


# --------------------------------------------------------------------------- #
# wrapper                                                                      #
# --------------------------------------------------------------------------- #
def init_params(key, k=3):
    dims = [(k, 64), (64, 128), (128, 1024), (1024, 512), (512, 256), (256, k * k)]
    params = {}
    for idx, (cin, cout) in enumerate(dims, start=1):
        key, kw, kb, kg, kbe = jax.random.split(key, 5)
        params[f"w{idx}"] = 0.1 * jax.random.normal(kw, (cin, cout), jnp.float32)
        params[f"b{idx}"] = 0.01 * jax.random.normal(kb, (1, cout), jnp.float32)
        params[f"g{idx}"] = 1.0 + 0.1 * jax.random.normal(kg, (1, cout), jnp.float32)
        params[f"be{idx}"] = 0.1 * jax.random.normal(kbe, (1, cout), jnp.float32)
    return params


def _finalize_affine(s, q, gamma, beta, count):
    """Partial (G,1,C) sums -> training-mode BN affine y = a*z + c (biased var)."""
    mean = jnp.sum(s, axis=0) / count                                # (1, C)
    var = jnp.maximum(jnp.sum(q, axis=0) / count - mean * mean, 0.0)
    a = gamma * lax.rsqrt(var + EPS)
    return a, beta - mean * a


def _bn1_affine_analytic(xf, w1, b1, gamma, beta):
    """BN1 training-mode affine derived analytically: conv1 is linear, so
    mean1 = mean(x) @ w1 + b1 and var1_c = w1[:,c]^T Cov(x) w1[:,c]."""
    count = xf.shape[0]
    mean_x = jnp.mean(xf, axis=0, keepdims=True)                     # (1, k)
    sec_x = jnp.dot(xf.T, xf, preferred_element_type=jnp.float32,
                    precision=lax.Precision.HIGHEST) / count         # (k, k)
    cov_x = sec_x - mean_x.T @ mean_x
    mean1 = mean_x @ w1 + b1                                         # (1, 64)
    var1 = jnp.maximum(jnp.sum(w1 * (cov_x @ w1), axis=0, keepdims=True), 0.0)
    a = gamma * lax.rsqrt(var1 + EPS)
    return a, beta - mean1 * a


def transform3d_forward(x_ncw, params, k=3, tile_n=None, tile_rows=None,
                        matmul_dtype=jnp.bfloat16):
    """x_ncw: (B, k, N) float32 (PyTorch NCW). Returns (B, k, k)."""
    B, kin, N = x_ncw.shape
    assert kin == k
    vmem_limit, auto_tile_n = _vmem_budget_and_tile()
    if tile_n is None:
        tile_n = auto_tile_n
    if tile_rows is None:
        tile_rows = 4096
    count = float(B * N)

    x = jnp.transpose(x_ncw, (0, 2, 1))                              # (B, N, k)
    xf = x.reshape(B * N, k)                                         # (B*N, k)

    w1, b1 = params["w1"], params["b1"]                              # conv1 stays f32 (VPU)
    w2, b2 = params["w2"].astype(matmul_dtype), params["b2"]
    w3, b3 = params["w3"].astype(matmul_dtype), params["b3"]

    # ---- BN1 affine analytically from x's moments (no kernel pass) ------- #
    a1, c1 = _bn1_affine_analytic(xf, w1, b1, params["g1"], params["be1"])

    cp = pltpu.CompilerParams(
        dimension_semantics=("parallel", "arbitrary"),               # leading axis -> megacore
        vmem_limit_bytes=vmem_limit)
    # TODO(synk): if a v7x profile shows one TensorCore idle on pass 3, switch
    # the leading axis to pltpu.CORE_PARALLEL / pl.core_map.

    def full_spec(arr):  # resident (constant index_map) weight / coefficient blocks
        return pl.BlockSpec(arr.shape, lambda p, t: (0,) * arr.ndim)

    # ---- pass 2: flattened conv1 -> bn1/relu -> conv2 -> global BN2 stats - #
    rows = B * N
    t2 = pl.cdiv(rows, tile_rows)
    n_par = 2 if t2 >= 2 else 1                                      # 2-way split for v7x megacore
    tiles_per_par = pl.cdiv(t2, n_par)
    rows_pad = n_par * tiles_per_par * tile_rows
    masked2 = rows_pad != rows
    x2 = jnp.pad(xf, ((0, rows_pad - rows), (0, 0))) if masked2 else xf

    x2_spec = pl.BlockSpec((tile_rows, k), lambda p, t: (p * tiles_per_par + t, 0))
    acc2_spec = pl.BlockSpec((None, 1, 128), lambda p, t: (p, 0, 0))
    acc2_shape = jax.ShapeDtypeStruct((n_par, 1, 128), jnp.float32)

    s2, q2 = pl.pallas_call(
        functools.partial(_conv2_stats_kernel, k, rows, tile_rows,
                          tiles_per_par, masked2),
        grid_spec=pltpu.PrefetchScalarGridSpec(
            num_scalar_prefetch=0, grid=(n_par, tiles_per_par),
            in_specs=[x2_spec, full_spec(w1), full_spec(b1), full_spec(a1),
                      full_spec(c1), full_spec(w2), full_spec(b2)],
            out_specs=(acc2_spec, acc2_spec)),
        out_shape=(acc2_shape, acc2_shape),
        compiler_params=cp,
        cost_estimate=pl.CostEstimate(
            flops=int(2 * rows_pad * (k * 64 + 64 * 128)),
            transcendentals=0,
            bytes_accessed=int(x2.size * 4 + w2.size * 2 + n_par * 2 * 128 * 4)),
    )(x2, w1, b1, a1, c1, w2, b2)
    a2, c2 = _finalize_affine(s2, q2, params["g2"], params["be2"], count)

    # ---- pass 3: per-batch conv3 stats + max/min of pre-BN conv3 --------- #
    nt = pl.cdiv(N, tile_n)
    n_pad = nt * tile_n
    masked3 = n_pad != N
    x3 = jnp.pad(x, ((0, 0), (0, n_pad - N), (0, 0))) if masked3 else x

    x3_spec = pl.BlockSpec((None, tile_n, k), lambda b, t: (b, t, 0))
    acc3_spec = pl.BlockSpec((None, 1, 1024), lambda b, t: (b, 0, 0))
    acc3_shape = jax.ShapeDtypeStruct((B, 1, 1024), jnp.float32)

    s3, q3, mx3, mn3 = pl.pallas_call(
        functools.partial(_conv3_stats_max_kernel, k, N, tile_n, masked3),
        grid_spec=pltpu.PrefetchScalarGridSpec(
            num_scalar_prefetch=0, grid=(B, nt),
            in_specs=[x3_spec, full_spec(w1), full_spec(b1), full_spec(a1),
                      full_spec(c1), full_spec(w2), full_spec(b2),
                      full_spec(a2), full_spec(c2), full_spec(w3), full_spec(b3)],
            out_specs=tuple(acc3_spec for _ in range(4))),
        out_shape=tuple(acc3_shape for _ in range(4)),
        compiler_params=cp,
        cost_estimate=pl.CostEstimate(
            flops=int(2 * B * n_pad * (k * 64 + 64 * 128 + 128 * 1024)),
            transcendentals=0,
            bytes_accessed=int(x3.size * 4 + (w2.size + w3.size) * 2
                               + 4 * B * 1024 * 4)),
    )(x3, w1, b1, a1, c1, w2, b2, a2, c2, w3, b3)
    a3, c3 = _finalize_affine(s3, q3, params["g3"], params["be3"], count)
    # TODO(synk): at production B*N consider a shifted/Welford combine for the
    # conv3 channel variance (E[z^2]-E[z]^2 cancellation hardening).

    # ---- head: bn3/relu/max finalization + fc1/bn4 + fc2/bn5 + fc3 + I --- #
    iden = jnp.eye(k, dtype=jnp.float32).reshape(1, k * k)
    vmem = pl.BlockSpec(memory_space=pltpu.MemorySpace.VMEM)
    head_args = (mx3[:, 0, :], mn3[:, 0, :], a3, c3,
                 params["w4"].astype(matmul_dtype), params["b4"],
                 params["g4"], params["be4"],
                 params["w5"].astype(matmul_dtype), params["b5"],
                 params["g5"], params["be5"],
                 params["w6"], params["b6"], iden)
    out = pl.pallas_call(
        _head_kernel,
        out_shape=jax.ShapeDtypeStruct((B, k * k), jnp.float32),
        in_specs=[vmem] * len(head_args),
        out_specs=vmem,
        compiler_params=pltpu.CompilerParams(vmem_limit_bytes=vmem_limit),
    )(*head_args)
    return out.reshape(B, k, k)


def transform3d_reference(x_ncw, params, k=3, matmul_dtype=jnp.float32):
    """Pure-JAX reference of the PyTorch forward (training-mode BN).

    matmul_dtype=float32 reproduces the PyTorch module's f32 semantics exactly;
    bfloat16 mirrors the kernel's mixed-precision MXU matmuls (f32 accumulate).
    """
    B, _, N = x_ncw.shape

    def mm(h, w):
        return jnp.dot(h.astype(matmul_dtype), w.astype(matmul_dtype),
                       preferred_element_type=jnp.float32)

    h = jnp.transpose(x_ncw, (0, 2, 1)).reshape(B * N, k)
    h = _bn_relu(h @ params["w1"] + params["b1"], params["g1"], params["be1"])
    h = _bn_relu(mm(h, params["w2"]) + params["b2"], params["g2"], params["be2"])
    h = _bn_relu(mm(h, params["w3"]) + params["b3"], params["g3"], params["be3"])
    feat = jnp.max(h.reshape(B, N, 1024), axis=1)
    h = _bn_relu(mm(feat, params["w4"]) + params["b4"], params["g4"], params["be4"])
    h = _bn_relu(mm(h, params["w5"]) + params["b5"], params["g5"], params["be5"])
    h = h @ params["w6"] + params["b6"] + jnp.eye(k, dtype=jnp.float32).reshape(1, k * k)
    return h.reshape(B, k, k)


if __name__ == "__main__":
    k = 3
    B, N = 4, 400            # PyTorch x: (4, 3, 400)
    key = jax.random.PRNGKey(0)
    key_x, key_p = jax.random.split(key)
    x = jax.random.normal(key_x, (B, k, N), jnp.float32)
    params = init_params(key_p, k=k)

    # Small explicit tiles so multi-tile accumulation AND the tail-masked /
    # unmasked fast paths of both streaming passes are exercised.  Leaving
    # tile_n / tile_rows as None picks production defaults (generation-aware
    # tile_n + vmem limit, tile_rows=4096).
    fwd = jax.jit(functools.partial(transform3d_forward, k=k, tile_n=128,
                                    tile_rows=256, matmul_dtype=jnp.bfloat16))
    out = jax.block_until_ready(fwd(x, params))
    assert out.shape == (B, k, k)

    # Precision-matched reference (same bf16 matmul operands, f32 accumulation);
    # pass matmul_dtype=jnp.float32 to both for exact PyTorch-f32 semantics.
    ref = transform3d_reference(x, params, k=k, matmul_dtype=jnp.bfloat16)
    assert jnp.allclose(out, ref, rtol=1e-2, atol=1e-2), "mismatch vs reference"

    # TODO(synk): BatchNorm running-stat updates (training-time side effects)
    # are not reproduced; they do not affect the forward output.
    print("KERNEL_OK")
</pallas_src>

<mosaic_0001>
module attributes {stable_mosaic.version = 11 : i64} {
  func.func @_conv2_stats_kernel(%arg0: i32, %arg1: i32, %arg2: memref<256x3xf32, #tpu.memory_space<vmem>>, %arg3: memref<3x64xf32, #tpu.memory_space<vmem>>, %arg4: memref<1x64xf32, #tpu.memory_space<vmem>>, %arg5: memref<1x64xf32, #tpu.memory_space<vmem>>, %arg6: memref<1x64xf32, #tpu.memory_space<vmem>>, %arg7: memref<64x128xbf16, #tpu.memory_space<vmem>>, %arg8: memref<1x128xf32, #tpu.memory_space<vmem>>, %arg9: memref<1x1x128xf32, #tpu.memory_space<vmem>>, %arg10: memref<1x1x128xf32, #tpu.memory_space<vmem>>) attributes {dimension_semantics = [#tpu.dimension_semantics<parallel>, #tpu.dimension_semantics<arbitrary>], iteration_bounds = array<i64: 2, 4>, scalar_prefetch = 0 : i64, scratch_operands = 0 : i64, tpu.core_type = #tpu.core_type<tc>, window_params = [{transform_indices = @transform_0, window_bounds = array<i64: 256, 3>}, {pipeline_mode = #tpu.pipeline_mode<synchronous>, transform_indices = @transform_1, window_bounds = array<i64: 3, 64>}, {pipeline_mode = #tpu.pipeline_mode<synchronous>, transform_indices = @transform_2, window_bounds = array<i64: 1, 64>}, {pipeline_mode = #tpu.pipeline_mode<synchronous>, transform_indices = @transform_3, window_bounds = array<i64: 1, 64>}, {pipeline_mode = #tpu.pipeline_mode<synchronous>, transform_indices = @transform_4, window_bounds = array<i64: 1, 64>}, {pipeline_mode = #tpu.pipeline_mode<synchronous>, transform_indices = @transform_5, window_bounds = array<i64: 64, 128>}, {pipeline_mode = #tpu.pipeline_mode<synchronous>, transform_indices = @transform_6, window_bounds = array<i64: 1, 128>}, {transform_indices = @transform_7, window_bounds = array<i64: 1, 1, 128>}, {transform_indices = @transform_8, window_bounds = array<i64: 1, 1, 128>}]} {
    %c0_i32 = arith.constant 0 : i32
    %0 = arith.cmpi eq, %arg1, %c0_i32 : i32
    %1 = arith.extui %0 : i1 to i32
    %c0_i32_0 = arith.constant 0 : i32
    %2 = arith.cmpi ne, %1, %c0_i32_0 : i32
    scf.if %2 {
      %cst_18 = arith.constant 0.000000e+00 : f32
      %49 = vector.broadcast %cst_18 : f32 to vector<1x128xf32>
      %c0_19 = arith.constant 0 : index
      %c0_20 = arith.constant 0 : index
      %c0_21 = arith.constant 0 : index
      %50 = vector.load %arg9[%c0_19, %c0_20, %c0_21] : memref<1x1x128xf32, #tpu.memory_space<vmem>>, vector<1x1x128xf32>
      %51 = vector.shape_cast %50 : vector<1x1x128xf32> to vector<1x128xf32>
      %52 = vector.shape_cast %49 : vector<1x128xf32> to vector<1x1x128xf32>
      tpu.vector_store %arg9[%c0_19, %c0_20, %c0_21], %52 {strides = array<i32>} : memref<1x1x128xf32, #tpu.memory_space<vmem>>, vector<1x1x128xf32>,
      %cst_22 = arith.constant 0.000000e+00 : f32
      %53 = vector.broadcast %cst_22 : f32 to vector<1x128xf32>
      %c0_23 = arith.constant 0 : index
      %c0_24 = arith.constant 0 : index
      %c0_25 = arith.constant 0 : index
      %54 = vector.load %arg10[%c0_23, %c0_24, %c0_25] : memref<1x1x128xf32, #tpu.memory_space<vmem>>, vector<1x1x128xf32>
      %55 = vector.shape_cast %54 : vector<1x1x128xf32> to vector<1x128xf32>
      %56 = vector.shape_cast %53 : vector<1x128xf32> to vector<1x1x128xf32>
      tpu.vector_store %arg10[%c0_23, %c0_24, %c0_25], %56 {strides = array<i32>} : memref<1x1x128xf32, #tpu.memory_space<vmem>>, vector<1x1x128xf32>,
    } else {
    }
    %c0 = arith.constant 0 : index
    %c0_1 = arith.constant 0 : index
    %3 = vector.load %arg2[%c0, %c0_1] : memref<256x3xf32, #tpu.memory_space<vmem>>, vector<256x3xf32>
    %c0_2 = arith.constant 0 : index
    %c0_3 = arith.constant 0 : index
    %4 = vector.load %arg3[%c0_2, %c0_3] : memref<3x64xf32, #tpu.memory_space<vmem>>, vector<3x64xf32>
    %c0_4 = arith.constant 0 : index
    %c0_5 = arith.constant 0 : index
    %5 = vector.load %arg4[%c0_4, %c0_5] : memref<1x64xf32, #tpu.memory_space<vmem>>, vector<1x64xf32>
    %6 = vector.extract_strided_slice %3 {offsets = [0, 0], sizes = [256, 1], strides = [1, 1]} : vector<256x3xf32> to vector<256x1xf32>
    %7 = vector.extract_strided_slice %4 {offsets = [0, 0], sizes = [1, 64], strides = [1, 1]} : vector<3x64xf32> to vector<1x64xf32>
    %8 = vector.broadcast %6 : vector<256x1xf32> to vector<256x64xf32>
    %9 = vector.broadcast %7 : vector<1x64xf32> to vector<256x64xf32>
    %10 = arith.mulf %8, %9 : vector<256x64xf32>
    %11 = vector.extract_strided_slice %3 {offsets = [0, 1], sizes = [256, 1], strides = [1, 1]} : vector<256x3xf32> to vector<256x1xf32>
    %12 = vector.extract_strided_slice %4 {offsets = [1, 0], sizes = [1, 64], strides = [1, 1]} : vector<3x64xf32> to vector<1x64xf32>
    %13 = vector.broadcast %11 : vector<256x1xf32> to vector<256x64xf32>
    %14 = vector.broadcast %12 : vector<1x64xf32> to vector<256x64xf32>
    %15 = arith.mulf %13, %14 : vector<256x64xf32>
    %16 = arith.addf %10, %15 : vector<256x64xf32>
    %17 = vector.extract_strided_slice %3 {offsets = [0, 2], sizes = [256, 1], strides = [1, 1]} : vector<256x3xf32> to vector<256x1xf32>
    %18 = vector.extract_strided_slice %4 {offsets = [2, 0], sizes = [1, 64], strides = [1, 1]} : vector<3x64xf32> to vector<1x64xf32>
    %19 = vector.broadcast %17 : vector<256x1xf32> to vector<256x64xf32>
    %20 = vector.broadcast %18 : vector<1x64xf32> to vector<256x64xf32>
    %21 = arith.mulf %19, %20 : vector<256x64xf32>
    %22 = arith.addf %16, %21 : vector<256x64xf32>
    %23 = vector.broadcast %5 : vector<1x64xf32> to vector<256x64xf32>
    %24 = arith.addf %22, %23 : vector<256x64xf32>
    %c0_6 = arith.constant 0 : index
    %c0_7 = arith.constant 0 : index
    %25 = vector.load %arg5[%c0_6, %c0_7] : memref<1x64xf32, #tpu.memory_space<vmem>>, vector<1x64xf32>
    %26 = vector.broadcast %25 : vector<1x64xf32> to vector<256x64xf32>
    %27 = arith.mulf %24, %26 : vector<256x64xf32>
    %c0_8 = arith.constant 0 : index
    %c0_9 = arith.constant 0 : index
    %28 = vector.load %arg6[%c0_8, %c0_9] : memref<1x64xf32, #tpu.memory_space<vmem>>, vector<1x64xf32>
    %29 = vector.broadcast %28 : vector<1x64xf32> to vector<256x64xf32>
    %30 = arith.addf %27, %29 : vector<256x64xf32>
    %cst = arith.constant 0.000000e+00 : f32
    %31 = vector.broadcast %cst : f32 to vector<256x64xf32>
    %32 = arith.maximumf %30, %31 : vector<256x64xf32>
    %33 = arith.truncf %32 : vector<256x64xf32> to vector<256x64xbf16>
    %c0_10 = arith.constant 0 : index
    %c0_11 = arith.constant 0 : index
    %34 = vector.load %arg7[%c0_10, %c0_11] : memref<64x128xbf16, #tpu.memory_space<vmem>>, vector<64x128xbf16>
    %cst_12 = arith.constant dense<0.000000e+00> : vector<256x128xf32>
    %35 = tpu.matmul %33, %34, %cst_12 {dimension_numbers = #tpu.dot_dimension_numbers<[1], [0], [0], [1], [0, 0, 1, 1], [], []>} : vector<256x64xbf16>, vector<64x128xbf16>, vector<256x128xf32> -> vector<256x128xf32>
    %c0_13 = arith.constant 0 : index
    %c0_14 = arith.constant 0 : index
    %36 = vector.load %arg8[%c0_13, %c0_14] : memref<1x128xf32, #tpu.memory_space<vmem>>, vector<1x128xf32>
    %37 = vector.broadcast %36 : vector<1x128xf32> to vector<256x128xf32>
    %38 = arith.addf %35, %37 : vector<256x128xf32>
    %c4_i32 = arith.constant 4 : i32
    %39 = arith.muli %arg0, %c4_i32 : i32
    %40 = arith.addi %39, %arg1 : i32
    %c256_i32 = arith.constant 256 : i32
    %41 = arith.muli %40, %c256_i32 : i32
    %c256_i32_15 = arith.constant 256 : i32
    %42 = arith.addi %41, %c256_i32_15 : i32
    %c1600_i32 = arith.constant 1600 : i32
    %43 = arith.cmpi sgt, %42, %c1600_i32 : i32
    %44 = arith.extui %43 : i1 to i32
    %c0_i32_16 = arith.constant 0 : i32
    %45 = arith.cmpi ne, %44, %c0_i32_16 : i32
    scf.if %45 {
      %49 = tpu.iota {dimensions = array<i32: 0>} : vector<256x1xi32>
      %50 = vector.broadcast %41 : i32 to vector<256x1xi32>
      %51 = arith.addi %50, %49 : vector<256x1xi32>
      %c1600_i32_18 = arith.constant 1600 : i32
      %52 = vector.broadcast %c1600_i32_18 : i32 to vector<256x1xi32>
      %53 = arith.cmpi slt, %51, %52 : vector<256x1xi32>
      %cst_19 = arith.constant 0.000000e+00 : f32
      %54 = vector.shape_cast %53 : vector<256x1xi1> to vector<256x1xi1>
      %55 = vector.broadcast %54 : vector<256x1xi1> to vector<256x128xi1>
      %56 = vector.broadcast %cst_19 : f32 to vector<256x128xf32>
      %57 = arith.select %55, %38, %56 : vector<256x128xi1>, vector<256x128xf32>
      %c0_20 = arith.constant 0 : index
      %c0_21 = arith.constant 0 : index
      %c0_22 = arith.constant 0 : index
      %58 = vector.load %arg9[%c0_20, %c0_21, %c0_22] : memref<1x1x128xf32, #tpu.memory_space<vmem>>, vector<1x1x128xf32>
      %59 = vector.shape_cast %58 : vector<1x1x128xf32> to vector<1x128xf32>
      %cst_23 = arith.constant dense<0.000000e+00> : vector<128xf32>
      %60 = vector.multi_reduction <add>, %57, %cst_23 [0] : vector<256x128xf32> to vector<128xf32>
      %61 = vector.shape_cast %60 : vector<128xf32> to vector<1x128xf32>
      %62 = arith.addf %59, %61 : vector<1x128xf32>
      %c0_24 = arith.constant 0 : index
      %c0_25 = arith.constant 0 : index
      %c0_26 = arith.constant 0 : index
      %63 = vector.load %arg9[%c0_24, %c0_25, %c0_26] : memref<1x1x128xf32, #tpu.memory_space<vmem>>, vector<1x1x128xf32>
      %64 = vector.shape_cast %63 : vector<1x1x128xf32> to vector<1x128xf32>
      %65 = vector.shape_cast %62 : vector<1x128xf32> to vector<1x1x128xf32>
      tpu.vector_store %arg9[%c0_24, %c0_25, %c0_26], %65 {strides = array<i32>} : memref<1x1x128xf32, #tpu.memory_space<vmem>>, vector<1x1x128xf32>,
      %c0_27 = arith.constant 0 : index
      %c0_28 = arith.constant 0 : index
      %c0_29 = arith.constant 0 : index
      %66 = vector.load %arg10[%c0_27, %c0_28, %c0_29] : memref<1x1x128xf32, #tpu.memory_space<vmem>>, vector<1x1x128xf32>
      %67 = vector.shape_cast %66 : vector<1x1x128xf32> to vector<1x128xf32>
      %68 = arith.mulf %57, %57 : vector<256x128xf32>
      %cst_30 = arith.constant dense<0.000000e+00> : vector<128xf32>
      %69 = vector.multi_reduction <add>, %68, %cst_30 [0] : vector<256x128xf32> to vector<128xf32>
      %70 = vector.shape_cast %69 : vector<128xf32> to vector<1x128xf32>
      %71 = arith.addf %67, %70 : vector<1x128xf32>
      %c0_31 = arith.constant 0 : index
      %c0_32 = arith.constant 0 : index
      %c0_33 = arith.constant 0 : index
      %72 = vector.load %arg10[%c0_31, %c0_32, %c0_33] : memref<1x1x128xf32, #tpu.memory_space<vmem>>, vector<1x1x128xf32>
      %73 = vector.shape_cast %72 : vector<1x1x128xf32> to vector<1x128xf32>
      %74 = vector.shape_cast %71 : vector<1x128xf32> to vector<1x1x128xf32>
      tpu.vector_store %arg10[%c0_31, %c0_32, %c0_33], %74 {strides = array<i32>} : memref<1x1x128xf32, #tpu.memory_space<vmem>>, vector<1x1x128xf32>,
    } else {
    }
    %true = arith.constant true
    %46 = arith.xori %43, %true : i1
    %47 = arith.extui %46 : i1 to i32
    %c0_i32_17 = arith.constant 0 : i32
    %48 = arith.cmpi ne, %47, %c0_i32_17 : i32
    scf.if %48 {
      %c0_18 = arith.constant 0 : index
      %c0_19 = arith.constant 0 : index
      %c0_20 = arith.constant 0 : index
      %49 = vector.load %arg9[%c0_18, %c0_19, %c0_20] : memref<1x1x128xf32, #tpu.memory_space<vmem>>, vector<1x1x128xf32>
      %50 = vector.shape_cast %49 : vector<1x1x128xf32> to vector<1x128xf32>
      %cst_21 = arith.constant dense<0.000000e+00> : vector<128xf32>
      %51 = vector.multi_reduction <add>, %38, %cst_21 [0] : vector<256x128xf32> to vector<128xf32>
      %52 = vector.shape_cast %51 : vector<128xf32> to vector<1x128xf32>
      %53 = arith.addf %50, %52 : vector<1x128xf32>
      %c0_22 = arith.constant 0 : index
      %c0_23 = arith.constant 0 : index
      %c0_24 = arith.constant 0 : index
      %54 = vector.load %arg9[%c0_22, %c0_23, %c0_24] : memref<1x1x128xf32, #tpu.memory_space<vmem>>, vector<1x1x128xf32>
      %55 = vector.shape_cast %54 : vector<1x1x128xf32> to vector<1x128xf32>
      %56 = vector.shape_cast %53 : vector<1x128xf32> to vector<1x1x128xf32>
      tpu.vector_store %arg9[%c0_22, %c0_23, %c0_24], %56 {strides = array<i32>} : memref<1x1x128xf32, #tpu.memory_space<vmem>>, vector<1x1x128xf32>,
      %c0_25 = arith.constant 0 : index
      %c0_26 = arith.constant 0 : index
      %c0_27 = arith.constant 0 : index
      %57 = vector.load %arg10[%c0_25, %c0_26, %c0_27] : memref<1x1x128xf32, #tpu.memory_space<vmem>>, vector<1x1x128xf32>
      %58 = vector.shape_cast %57 : vector<1x1x128xf32> to vector<1x128xf32>
      %59 = arith.mulf %38, %38 : vector<256x128xf32>
      %cst_28 = arith.constant dense<0.000000e+00> : vector<128xf32>
      %60 = vector.multi_reduction <add>, %59, %cst_28 [0] : vector<256x128xf32> to vector<128xf32>
      %61 = vector.shape_cast %60 : vector<128xf32> to vector<1x128xf32>
      %62 = arith.addf %58, %61 : vector<1x128xf32>
      %c0_29 = arith.constant 0 : index
      %c0_30 = arith.constant 0 : index
      %c0_31 = arith.constant 0 : index
      %63 = vector.load %arg10[%c0_29, %c0_30, %c0_31] : memref<1x1x128xf32, #tpu.memory_space<vmem>>, vector<1x1x128xf32>
      %64 = vector.shape_cast %63 : vector<1x1x128xf32> to vector<1x128xf32>
      %65 = vector.shape_cast %62 : vector<1x128xf32> to vector<1x1x128xf32>
      tpu.vector_store %arg10[%c0_29, %c0_30, %c0_31], %65 {strides = array<i32>} : memref<1x1x128xf32, #tpu.memory_space<vmem>>, vector<1x1x128xf32>,
    } else {
    }
    return
  }
  func.func @transform_0(%arg0: i32, %arg1: i32) -> (i32, i32) {
    %c4_i32 = arith.constant 4 : i32
    %0 = arith.muli %arg0, %c4_i32 : i32
    %1 = arith.addi %0, %arg1 : i32
    %c0_i32 = arith.constant 0 : i32
    %c0_i32_0 = arith.constant 0 : i32
    return %1, %c0_i32 : i32, i32
  }
  func.func @transform_1(%arg0: i32, %arg1: i32) -> (i32, i32) {
    %c0_i32 = arith.constant 0 : i32
    %c0_i32_0 = arith.constant 0 : i32
    %c0_i32_1 = arith.constant 0 : i32
    return %c0_i32, %c0_i32_0 : i32, i32
  }
  func.func @transform_2(%arg0: i32, %arg1: i32) -> (i32, i32) {
    %c0_i32 = arith.constant 0 : i32
    %c0_i32_0 = arith.constant 0 : i32
    %c0_i32_1 = arith.constant 0 : i32
    return %c0_i32, %c0_i32_0 : i32, i32
  }
  func.func @transform_3(%arg0: i32, %arg1: i32) -> (i32, i32) {
    %c0_i32 = arith.constant 0 : i32
    %c0_i32_0 = arith.constant 0 : i32
    %c0_i32_1 = arith.constant 0 : i32
    return %c0_i32, %c0_i32_0 : i32, i32
  }
  func.func @transform_4(%arg0: i32, %arg1: i32) -> (i32, i32) {
    %c0_i32 = arith.constant 0 : i32
    %c0_i32_0 = arith.constant 0 : i32
    %c0_i32_1 = arith.constant 0 : i32
    return %c0_i32, %c0_i32_0 : i32, i32
  }
  func.func @transform_5(%arg0: i32, %arg1: i32) -> (i32, i32) {
    %c0_i32 = arith.constant 0 : i32
    %c0_i32_0 = arith.constant 0 : i32
    %c0_i32_1 = arith.constant 0 : i32
    return %c0_i32, %c0_i32_0 : i32, i32
  }
  func.func @transform_6(%arg0: i32, %arg1: i32) -> (i32, i32) {
    %c0_i32 = arith.constant 0 : i32
    %c0_i32_0 = arith.constant 0 : i32
    %c0_i32_1 = arith.constant 0 : i32
    return %c0_i32, %c0_i32_0 : i32, i32
  }
  func.func @transform_7(%arg0: i32, %arg1: i32) -> (i32, i32, i32) {
    %c0_i32 = arith.constant 0 : i32
    %c0_i32_0 = arith.constant 0 : i32
    %c0_i32_1 = arith.constant 0 : i32
    return %arg0, %c0_i32, %c0_i32_0 : i32, i32, i32
  }
  func.func @transform_8(%arg0: i32, %arg1: i32) -> (i32, i32, i32) {
    %c0_i32 = arith.constant 0 : i32
    %c0_i32_0 = arith.constant 0 : i32
    %c0_i32_1 = arith.constant 0 : i32
    return %arg0, %c0_i32, %c0_i32_0 : i32, i32, i32
  }
}

module attributes {stable_mosaic.version = 11 : i64} {
  func.func @_conv3_stats_max_kernel(%arg0: i32, %arg1: i32, %arg2: memref<1x128x3xf32, #tpu.memory_space<vmem>>, %arg3: memref<3x64xf32, #tpu.memory_space<vmem>>, %arg4: memref<1x64xf32, #tpu.memory_space<vmem>>, %arg5: memref<1x64xf32, #tpu.memory_space<vmem>>, %arg6: memref<1x64xf32, #tpu.memory_space<vmem>>, %arg7: memref<64x128xbf16, #tpu.memory_space<vmem>>, %arg8: memref<1x128xf32, #tpu.memory_space<vmem>>, %arg9: memref<1x128xf32, #tpu.memory_space<vmem>>, %arg10: memref<1x128xf32, #tpu.memory_space<vmem>>, %arg11: memref<128x1024xbf16, #tpu.memory_space<vmem>>, %arg12: memref<1x1024xf32, #tpu.memory_space<vmem>>, %arg13: memref<1x1x1024xf32, #tpu.memory_space<vmem>>, %arg14: memref<1x1x1024xf32, #tpu.memory_space<vmem>>, %arg15: memref<1x1x1024xf32, #tpu.memory_space<vmem>>, %arg16: memref<1x1x1024xf32, #tpu.memory_space<vmem>>) attributes {dimension_semantics = [#tpu.dimension_semantics<parallel>, #tpu.dimension_semantics<arbitrary>], iteration_bounds = array<i64: 4, 4>, scalar_prefetch = 0 : i64, scratch_operands = 0 : i64, tpu.core_type = #tpu.core_type<tc>, window_params = [{transform_indices = @transform_0, window_bounds = array<i64: 1, 128, 3>}, {pipeline_mode = #tpu.pipeline_mode<synchronous>, transform_indices = @transform_1, window_bounds = array<i64: 3, 64>}, {pipeline_mode = #tpu.pipeline_mode<synchronous>, transform_indices = @transform_2, window_bounds = array<i64: 1, 64>}, {pipeline_mode = #tpu.pipeline_mode<synchronous>, transform_indices = @transform_3, window_bounds = array<i64: 1, 64>}, {pipeline_mode = #tpu.pipeline_mode<synchronous>, transform_indices = @transform_4, window_bounds = array<i64: 1, 64>}, {pipeline_mode = #tpu.pipeline_mode<synchronous>, transform_indices = @transform_5, window_bounds = array<i64: 64, 128>}, {pipeline_mode = #tpu.pipeline_mode<synchronous>, transform_indices = @transform_6, window_bounds = array<i64: 1, 128>}, {pipeline_mode = #tpu.pipeline_mode<synchronous>, transform_indices = @transform_7, window_bounds = array<i64: 1, 128>}, {pipeline_mode = #tpu.pipeline_mode<synchronous>, transform_indices = @transform_8, window_bounds = array<i64: 1, 128>}, {pipeline_mode = #tpu.pipeline_mode<synchronous>, transform_indices = @transform_9, window_bounds = array<i64: 128, 1024>}, {pipeline_mode = #tpu.pipeline_mode<synchronous>, transform_indices = @transform_10, window_bounds = array<i64: 1, 1024>}, {transform_indices = @transform_11, window_bounds = array<i64: 1, 1, 1024>}, {transform_indices = @transform_12, window_bounds = array<i64: 1, 1, 1024>}, {transform_indices = @transform_13, window_bounds = array<i64: 1, 1, 1024>}, {transform_indices = @transform_14, window_bounds = array<i64: 1, 1, 1024>}]} {
    %c0_i32 = arith.constant 0 : i32
    %0 = arith.cmpi eq, %arg1, %c0_i32 : i32
    %1 = arith.extui %0 : i1 to i32
    %c0_i32_0 = arith.constant 0 : i32
    %2 = arith.cmpi ne, %1, %c0_i32_0 : i32
    scf.if %2 {
      %cst_28 = arith.constant 0.000000e+00 : f32
      %60 = vector.broadcast %cst_28 : f32 to vector<1x1024xf32>
      %c0_29 = arith.constant 0 : index
      %c0_30 = arith.constant 0 : index
      %c0_31 = arith.constant 0 : index
      %61 = vector.load %arg13[%c0_29, %c0_30, %c0_31] : memref<1x1x1024xf32, #tpu.memory_space<vmem>>, vector<1x1x1024xf32>
      %62 = vector.shape_cast %61 : vector<1x1x1024xf32> to vector<1x1024xf32>
      %63 = vector.shape_cast %60 : vector<1x1024xf32> to vector<1x1x1024xf32>
      tpu.vector_store %arg13[%c0_29, %c0_30, %c0_31], %63 {strides = array<i32>} : memref<1x1x1024xf32, #tpu.memory_space<vmem>>, vector<1x1x1024xf32>,
      %cst_32 = arith.constant 0.000000e+00 : f32
      %64 = vector.broadcast %cst_32 : f32 to vector<1x1024xf32>
      %c0_33 = arith.constant 0 : index
      %c0_34 = arith.constant 0 : index
      %c0_35 = arith.constant 0 : index
      %65 = vector.load %arg14[%c0_33, %c0_34, %c0_35] : memref<1x1x1024xf32, #tpu.memory_space<vmem>>, vector<1x1x1024xf32>
      %66 = vector.shape_cast %65 : vector<1x1x1024xf32> to vector<1x1024xf32>
      %67 = vector.shape_cast %64 : vector<1x1024xf32> to vector<1x1x1024xf32>
      tpu.vector_store %arg14[%c0_33, %c0_34, %c0_35], %67 {strides = array<i32>} : memref<1x1x1024xf32, #tpu.memory_space<vmem>>, vector<1x1x1024xf32>,
      %cst_36 = arith.constant 0xFF800000 : f32
      %68 = vector.broadcast %cst_36 : f32 to vector<1x1024xf32>
      %c0_37 = arith.constant 0 : index
      %c0_38 = arith.constant 0 : index
      %c0_39 = arith.constant 0 : index
      %69 = vector.load %arg15[%c0_37, %c0_38, %c0_39] : memref<1x1x1024xf32, #tpu.memory_space<vmem>>, vector<1x1x1024xf32>
      %70 = vector.shape_cast %69 : vector<1x1x1024xf32> to vector<1x1024xf32>
      %71 = vector.shape_cast %68 : vector<1x1024xf32> to vector<1x1x1024xf32>
      tpu.vector_store %arg15[%c0_37, %c0_38, %c0_39], %71 {strides = array<i32>} : memref<1x1x1024xf32, #tpu.memory_space<vmem>>, vector<1x1x1024xf32>,
      %cst_40 = arith.constant 0x7F800000 : f32
      %72 = vector.broadcast %cst_40 : f32 to vector<1x1024xf32>
      %c0_41 = arith.constant 0 : index
      %c0_42 = arith.constant 0 : index
      %c0_43 = arith.constant 0 : index
      %73 = vector.load %arg16[%c0_41, %c0_42, %c0_43] : memref<1x1x1024xf32, #tpu.memory_space<vmem>>, vector<1x1x1024xf32>
      %74 = vector.shape_cast %73 : vector<1x1x1024xf32> to vector<1x1024xf32>
      %75 = vector.shape_cast %72 : vector<1x1024xf32> to vector<1x1x1024xf32>
      tpu.vector_store %arg16[%c0_41, %c0_42, %c0_43], %75 {strides = array<i32>} : memref<1x1x1024xf32, #tpu.memory_space<vmem>>, vector<1x1x1024xf32>,
    } else {
    }
    %c0 = arith.constant 0 : index
    %c0_1 = arith.constant 0 : index
    %c0_2 = arith.constant 0 : index
    %3 = vector.load %arg2[%c0, %c0_1, %c0_2] : memref<1x128x3xf32, #tpu.memory_space<vmem>>, vector<1x128x3xf32>
    %4 = vector.shape_cast %3 : vector<1x128x3xf32> to vector<128x3xf32>
    %c0_3 = arith.constant 0 : index
    %c0_4 = arith.constant 0 : index
    %5 = vector.load %arg3[%c0_3, %c0_4] : memref<3x64xf32, #tpu.memory_space<vmem>>, vector<3x64xf32>
    %c0_5 = arith.constant 0 : index
    %c0_6 = arith.constant 0 : index
    %6 = vector.load %arg4[%c0_5, %c0_6] : memref<1x64xf32, #tpu.memory_space<vmem>>, vector<1x64xf32>
    %7 = vector.extract_strided_slice %4 {offsets = [0, 0], sizes = [128, 1], strides = [1, 1]} : vector<128x3xf32> to vector<128x1xf32>
    %8 = vector.extract_strided_slice %5 {offsets = [0, 0], sizes = [1, 64], strides = [1, 1]} : vector<3x64xf32> to vector<1x64xf32>
    %9 = vector.broadcast %7 : vector<128x1xf32> to vector<128x64xf32>
    %10 = vector.broadcast %8 : vector<1x64xf32> to vector<128x64xf32>
    %11 = arith.mulf %9, %10 : vector<128x64xf32>
    %12 = vector.extract_strided_slice %4 {offsets = [0, 1], sizes = [128, 1], strides = [1, 1]} : vector<128x3xf32> to vector<128x1xf32>
    %13 = vector.extract_strided_slice %5 {offsets = [1, 0], sizes = [1, 64], strides = [1, 1]} : vector<3x64xf32> to vector<1x64xf32>
    %14 = vector.broadcast %12 : vector<128x1xf32> to vector<128x64xf32>
    %15 = vector.broadcast %13 : vector<1x64xf32> to vector<128x64xf32>
    %16 = arith.mulf %14, %15 : vector<128x64xf32>
    %17 = arith.addf %11, %16 : vector<128x64xf32>
    %18 = vector.extract_strided_slice %4 {offsets = [0, 2], sizes = [128, 1], strides = [1, 1]} : vector<128x3xf32> to vector<128x1xf32>
    %19 = vector.extract_strided_slice %5 {offsets = [2, 0], sizes = [1, 64], strides = [1, 1]} : vector<3x64xf32> to vector<1x64xf32>
    %20 = vector.broadcast %18 : vector<128x1xf32> to vector<128x64xf32>
    %21 = vector.broadcast %19 : vector<1x64xf32> to vector<128x64xf32>
    %22 = arith.mulf %20, %21 : vector<128x64xf32>
    %23 = arith.addf %17, %22 : vector<128x64xf32>
    %24 = vector.broadcast %6 : vector<1x64xf32> to vector<128x64xf32>
    %25 = arith.addf %23, %24 : vector<128x64xf32>
    %c0_7 = arith.constant 0 : index
    %c0_8 = arith.constant 0 : index
    %26 = vector.load %arg5[%c0_7, %c0_8] : memref<1x64xf32, #tpu.memory_space<vmem>>, vector<1x64xf32>
    %27 = vector.broadcast %26 : vector<1x64xf32> to vector<128x64xf32>
    %28 = arith.mulf %25, %27 : vector<128x64xf32>
    %c0_9 = arith.constant 0 : index
    %c0_10 = arith.constant 0 : index
    %29 = vector.load %arg6[%c0_9, %c0_10] : memref<1x64xf32, #tpu.memory_space<vmem>>, vector<1x64xf32>
    %30 = vector.broadcast %29 : vector<1x64xf32> to vector<128x64xf32>
    %31 = arith.addf %28, %30 : vector<128x64xf32>
    %cst = arith.constant 0.000000e+00 : f32
    %32 = vector.broadcast %cst : f32 to vector<128x64xf32>
    %33 = arith.maximumf %31, %32 : vector<128x64xf32>
    %34 = arith.truncf %33 : vector<128x64xf32> to vector<128x64xbf16>
    %c0_11 = arith.constant 0 : index
    %c0_12 = arith.constant 0 : index
    %35 = vector.load %arg7[%c0_11, %c0_12] : memref<64x128xbf16, #tpu.memory_space<vmem>>, vector<64x128xbf16>
    %cst_13 = arith.constant dense<0.000000e+00> : vector<128x128xf32>
    %36 = tpu.matmul %34, %35, %cst_13 {dimension_numbers = #tpu.dot_dimension_numbers<[1], [0], [0], [1], [0, 0, 1, 1], [], []>} : vector<128x64xbf16>, vector<64x128xbf16>, vector<128x128xf32> -> vector<128x128xf32>
    %c0_14 = arith.constant 0 : index
    %c0_15 = arith.constant 0 : index
    %37 = vector.load %arg8[%c0_14, %c0_15] : memref<1x128xf32, #tpu.memory_space<vmem>>, vector<1x128xf32>
    %38 = vector.broadcast %37 : vector<1x128xf32> to vector<128x128xf32>
    %39 = arith.addf %36, %38 : vector<128x128xf32>
    %c0_16 = arith.constant 0 : index
    %c0_17 = arith.constant 0 : index
    %40 = vector.load %arg9[%c0_16, %c0_17] : memref<1x128xf32, #tpu.memory_space<vmem>>, vector<1x128xf32>
    %41 = vector.broadcast %40 : vector<1x128xf32> to vector<128x128xf32>
    %42 = arith.mulf %39, %41 : vector<128x128xf32>
    %c0_18 = arith.constant 0 : index
    %c0_19 = arith.constant 0 : index
    %43 = vector.load %arg10[%c0_18, %c0_19] : memref<1x128xf32, #tpu.memory_space<vmem>>, vector<1x128xf32>
    %44 = vector.broadcast %43 : vector<1x128xf32> to vector<128x128xf32>
    %45 = arith.addf %42, %44 : vector<128x128xf32>
    %cst_20 = arith.constant 0.000000e+00 : f32
    %46 = vector.broadcast %cst_20 : f32 to vector<128x128xf32>
    %47 = arith.maximumf %45, %46 : vector<128x128xf32>
    %48 = arith.truncf %47 : vector<128x128xf32> to vector<128x128xbf16>
    %c0_21 = arith.constant 0 : index
    %c0_22 = arith.constant 0 : index
    %49 = vector.load %arg11[%c0_21, %c0_22] : memref<128x1024xbf16, #tpu.memory_space<vmem>>, vector<128x1024xbf16>
    %cst_23 = arith.constant dense<0.000000e+00> : vector<128x1024xf32>
    %50 = tpu.matmul %48, %49, %cst_23 {dimension_numbers = #tpu.dot_dimension_numbers<[1], [0], [0], [1], [0, 0, 1, 1], [], []>} : vector<128x128xbf16>, vector<128x1024xbf16>, vector<128x1024xf32> -> vector<128x1024xf32>
    %c0_24 = arith.constant 0 : index
    %c0_25 = arith.constant 0 : index
    %51 = vector.load %arg12[%c0_24, %c0_25] : memref<1x1024xf32, #tpu.memory_space<vmem>>, vector<1x1024xf32>
    %52 = vector.broadcast %51 : vector<1x1024xf32> to vector<128x1024xf32>
    %53 = arith.addf %50, %52 : vector<128x1024xf32>
    %c3_i32 = arith.constant 3 : i32
    %54 = arith.cmpi eq, %arg1, %c3_i32 : i32
    %55 = arith.extui %54 : i1 to i32
    %c0_i32_26 = arith.constant 0 : i32
    %56 = arith.cmpi ne, %55, %c0_i32_26 : i32
    scf.if %56 {
      %c128_i32 = arith.constant 128 : i32
      %60 = arith.muli %arg1, %c128_i32 : i32
      %61 = tpu.iota {dimensions = array<i32: 0>} : vector<128x1xi32>
      %62 = vector.broadcast %60 : i32 to vector<128x1xi32>
      %63 = arith.addi %62, %61 : vector<128x1xi32>
      %c400_i32 = arith.constant 400 : i32
      %64 = vector.broadcast %c400_i32 : i32 to vector<128x1xi32>
      %65 = arith.cmpi slt, %63, %64 : vector<128x1xi32>
      %cst_28 = arith.constant 0.000000e+00 : f32
      %66 = vector.shape_cast %65 : vector<128x1xi1> to vector<128x1xi1>
      %67 = vector.broadcast %66 : vector<128x1xi1> to vector<128x1024xi1>
      %68 = vector.broadcast %cst_28 : f32 to vector<128x1024xf32>
      %69 = arith.select %67, %53, %68 : vector<128x1024xi1>, vector<128x1024xf32>
      %cst_29 = arith.constant 0xFF800000 : f32
      %70 = vector.shape_cast %65 : vector<128x1xi1> to vector<128x1xi1>
      %71 = vector.broadcast %70 : vector<128x1xi1> to vector<128x1024xi1>
      %72 = vector.broadcast %cst_29 : f32 to vector<128x1024xf32>
      %73 = arith.select %71, %53, %72 : vector<128x1024xi1>, vector<128x1024xf32>
      %cst_30 = arith.constant 0x7F800000 : f32
      %74 = vector.shape_cast %65 : vector<128x1xi1> to vector<128x1xi1>
      %75 = vector.broadcast %74 : vector<128x1xi1> to vector<128x1024xi1>
      %76 = vector.broadcast %cst_30 : f32 to vector<128x1024xf32>
      %77 = arith.select %75, %53, %76 : vector<128x1024xi1>, vector<128x1024xf32>
      %c0_31 = arith.constant 0 : index
      %c0_32 = arith.constant 0 : index
      %c0_33 = arith.constant 0 : index
      %78 = vector.load %arg13[%c0_31, %c0_32, %c0_33] : memref<1x1x1024xf32, #tpu.memory_space<vmem>>, vector<1x1x1024xf32>
      %79 = vector.shape_cast %78 : vector<1x1x1024xf32> to vector<1x1024xf32>
      %cst_34 = arith.constant dense<0.000000e+00> : vector<1024xf32>
      %80 = vector.multi_reduction <add>, %69, %cst_34 [0] : vector<128x1024xf32> to vector<1024xf32>
      %81 = vector.shape_cast %80 : vector<1024xf32> to vector<1x1024xf32>
      %82 = arith.addf %79, %81 : vector<1x1024xf32>
      %c0_35 = arith.constant 0 : index
      %c0_36 = arith.constant 0 : index
      %c0_37 = arith.constant 0 : index
      %83 = vector.load %arg13[%c0_35, %c0_36, %c0_37] : memref<1x1x1024xf32, #tpu.memory_space<vmem>>, vector<1x1x1024xf32>
      %84 = vector.shape_cast %83 : vector<1x1x1024xf32> to vector<1x1024xf32>
      %85 = vector.shape_cast %82 : vector<1x1024xf32> to vector<1x1x1024xf32>
      tpu.vector_store %arg13[%c0_35, %c0_36, %c0_37], %85 {strides = array<i32>} : memref<1x1x1024xf32, #tpu.memory_space<vmem>>, vector<1x1x1024xf32>,
      %c0_38 = arith.constant 0 : index
      %c0_39 = arith.constant 0 : index
      %c0_40 = arith.constant 0 : index
      %86 = vector.load %arg14[%c0_38, %c0_39, %c0_40] : memref<1x1x1024xf32, #tpu.memory_space<vmem>>, vector<1x1x1024xf32>
      %87 = vector.shape_cast %86 : vector<1x1x1024xf32> to vector<1x1024xf32>
      %88 = arith.mulf %69, %69 : vector<128x1024xf32>
      %cst_41 = arith.constant dense<0.000000e+00> : vector<1024xf32>
      %89 = vector.multi_reduction <add>, %88, %cst_41 [0] : vector<128x1024xf32> to vector<1024xf32>
      %90 = vector.shape_cast %89 : vector<1024xf32> to vector<1x1024xf32>
      %91 = arith.addf %87, %90 : vector<1x1024xf32>
      %c0_42 = arith.constant 0 : index
      %c0_43 = arith.constant 0 : index
      %c0_44 = arith.constant 0 : index
      %92 = vector.load %arg14[%c0_42, %c0_43, %c0_44] : memref<1x1x1024xf32, #tpu.memory_space<vmem>>, vector<1x1x1024xf32>
      %93 = vector.shape_cast %92 : vector<1x1x1024xf32> to vector<1x1024xf32>
      %94 = vector.shape_cast %91 : vector<1x1024xf32> to vector<1x1x1024xf32>
      tpu.vector_store %arg14[%c0_42, %c0_43, %c0_44], %94 {strides = array<i32>} : memref<1x1x1024xf32, #tpu.memory_space<vmem>>, vector<1x1x1024xf32>,
      %c0_45 = arith.constant 0 : index
      %c0_46 = arith.constant 0 : index
      %c0_47 = arith.constant 0 : index
      %95 = vector.load %arg15[%c0_45, %c0_46, %c0_47] : memref<1x1x1024xf32, #tpu.memory_space<vmem>>, vector<1x1x1024xf32>
      %96 = vector.shape_cast %95 : vector<1x1x1024xf32> to vector<1x1024xf32>
      %cst_48 = arith.constant dense<0xFF800000> : vector<1024xf32>
      %97 = vector.multi_reduction <maximumf>, %73, %cst_48 [0] : vector<128x1024xf32> to vector<1024xf32>
      %98 = vector.shape_cast %97 : vector<1024xf32> to vector<1x1024xf32>
      %99 = arith.maximumf %96, %98 : vector<1x1024xf32>
      %c0_49 = arith.constant 0 : index
      %c0_50 = arith.constant 0 : index
      %c0_51 = arith.constant 0 : index
      %100 = vector.load %arg15[%c0_49, %c0_50, %c0_51] : memref<1x1x1024xf32, #tpu.memory_space<vmem>>, vector<1x1x1024xf32>
      %101 = vector.shape_cast %100 : vector<1x1x1024xf32> to vector<1x1024xf32>
      %102 = vector.shape_cast %99 : vector<1x1024xf32> to vector<1x1x1024xf32>
      tpu.vector_store %arg15[%c0_49, %c0_50, %c0_51], %102 {strides = array<i32>} : memref<1x1x1024xf32, #tpu.memory_space<vmem>>, vector<1x1x1024xf32>,
      %c0_52 = arith.constant 0 : index
      %c0_53 = arith.constant 0 : index
      %c0_54 = arith.constant 0 : index
      %103 = vector.load %arg16[%c0_52, %c0_53, %c0_54] : memref<1x1x1024xf32, #tpu.memory_space<vmem>>, vector<1x1x1024xf32>
      %104 = vector.shape_cast %103 : vector<1x1x1024xf32> to vector<1x1024xf32>
      %cst_55 = arith.constant dense<0x7F800000> : vector<1024xf32>
      %105 = vector.multi_reduction <minimumf>, %77, %cst_55 [0] : vector<128x1024xf32> to vector<1024xf32>
      %106 = vector.shape_cast %105 : vector<1024xf32> to vector<1x1024xf32>
      %107 = arith.minimumf %104, %106 : vector<1x1024xf32>
      %c0_56 = arith.constant 0 : index
      %c0_57 = arith.constant 0 : index
      %c0_58 = arith.constant 0 : index
      %108 = vector.load %arg16[%c0_56, %c0_57, %c0_58] : memref<1x1x1024xf32, #tpu.memory_space<vmem>>, vector<1x1x1024xf32>
      %109 = vector.shape_cast %108 : vector<1x1x1024xf32> to vector<1x1024xf32>
      %110 = vector.shape_cast %107 : vector<1x1024xf32> to vector<1x1x1024xf32>
      tpu.vector_store %arg16[%c0_56, %c0_57, %c0_58], %110 {strides = array<i32>} : memref<1x1x1024xf32, #tpu.memory_space<vmem>>, vector<1x1x1024xf32>,
    } else {
    }
    %true = arith.constant true
    %57 = arith.xori %54, %true : i1
    %58 = arith.extui %57 : i1 to i32
    %c0_i32_27 = arith.constant 0 : i32
    %59 = arith.cmpi ne, %58, %c0_i32_27 : i32
    scf.if %59 {
      %c0_28 = arith.constant 0 : index
      %c0_29 = arith.constant 0 : index
      %c0_30 = arith.constant 0 : index
      %60 = vector.load %arg13[%c0_28, %c0_29, %c0_30] : memref<1x1x1024xf32, #tpu.memory_space<vmem>>, vector<1x1x1024xf32>
      %61 = vector.shape_cast %60 : vector<1x1x1024xf32> to vector<1x1024xf32>
      %cst_31 = arith.constant dense<0.000000e+00> : vector<1024xf32>
      %62 = vector.multi_reduction <add>, %53, %cst_31 [0] : vector<128x1024xf32> to vector<1024xf32>
      %63 = vector.shape_cast %62 : vector<1024xf32> to vector<1x1024xf32>
      %64 = arith.addf %61, %63 : vector<1x1024xf32>
      %c0_32 = arith.constant 0 : index
      %c0_33 = arith.constant 0 : index
      %c0_34 = arith.constant 0 : index
      %65 = vector.load %arg13[%c0_32, %c0_33, %c0_34] : memref<1x1x1024xf32, #tpu.memory_space<vmem>>, vector<1x1x1024xf32>
      %66 = vector.shape_cast %65 : vector<1x1x1024xf32> to vector<1x1024xf32>
      %67 = vector.shape_cast %64 : vector<1x1024xf32> to vector<1x1x1024xf32>
      tpu.vector_store %arg13[%c0_32, %c0_33, %c0_34], %67 {strides = array<i32>} : memref<1x1x1024xf32, #tpu.memory_space<vmem>>, vector<1x1x1024xf32>,
      %c0_35 = arith.constant 0 : index
      %c0_36 = arith.constant 0 : index
      %c0_37 = arith.constant 0 : index
      %68 = vector.load %arg14[%c0_35, %c0_36, %c0_37] : memref<1x1x1024xf32, #tpu.memory_space<vmem>>, vector<1x1x1024xf32>
      %69 = vector.shape_cast %68 : vector<1x1x1024xf32> to vector<1x1024xf32>
      %70 = arith.mulf %53, %53 : vector<128x1024xf32>
      %cst_38 = arith.constant dense<0.000000e+00> : vector<1024xf32>
      %71 = vector.multi_reduction <add>, %70, %cst_38 [0] : vector<128x1024xf32> to vector<1024xf32>
      %72 = vector.shape_cast %71 : vector<1024xf32> to vector<1x1024xf32>
      %73 = arith.addf %69, %72 : vector<1x1024xf32>
      %c0_39 = arith.constant 0 : index
      %c0_40 = arith.constant 0 : index
      %c0_41 = arith.constant 0 : index
      %74 = vector.load %arg14[%c0_39, %c0_40, %c0_41] : memref<1x1x1024xf32, #tpu.memory_space<vmem>>, vector<1x1x1024xf32>
      %75 = vector.shape_cast %74 : vector<1x1x1024xf32> to vector<1x1024xf32>
      %76 = vector.shape_cast %73 : vector<1x1024xf32> to vector<1x1x1024xf32>
      tpu.vector_store %arg14[%c0_39, %c0_40, %c0_41], %76 {strides = array<i32>} : memref<1x1x1024xf32, #tpu.memory_space<vmem>>, vector<1x1x1024xf32>,
      %c0_42 = arith.constant 0 : index
      %c0_43 = arith.constant 0 : index
      %c0_44 = arith.constant 0 : index
      %77 = vector.load %arg15[%c0_42, %c0_43, %c0_44] : memref<1x1x1024xf32, #tpu.memory_space<vmem>>, vector<1x1x1024xf32>
      %78 = vector.shape_cast %77 : vector<1x1x1024xf32> to vector<1x1024xf32>
      %cst_45 = arith.constant dense<0xFF800000> : vector<1024xf32>
      %79 = vector.multi_reduction <maximumf>, %53, %cst_45 [0] : vector<128x1024xf32> to vector<1024xf32>
      %80 = vector.shape_cast %79 : vector<1024xf32> to vector<1x1024xf32>
      %81 = arith.maximumf %78, %80 : vector<1x1024xf32>
      %c0_46 = arith.constant 0 : index
      %c0_47 = arith.constant 0 : index
      %c0_48 = arith.constant 0 : index
      %82 = vector.load %arg15[%c0_46, %c0_47, %c0_48] : memref<1x1x1024xf32, #tpu.memory_space<vmem>>, vector<1x1x1024xf32>
      %83 = vector.shape_cast %82 : vector<1x1x1024xf32> to vector<1x1024xf32>
      %84 = vector.shape_cast %81 : vector<1x1024xf32> to vector<1x1x1024xf32>
      tpu.vector_store %arg15[%c0_46, %c0_47, %c0_48], %84 {strides = array<i32>} : memref<1x1x1024xf32, #tpu.memory_space<vmem>>, vector<1x1x1024xf32>,
      %c0_49 = arith.constant 0 : index
      %c0_50 = arith.constant 0 : index
      %c0_51 = arith.constant 0 : index
      %85 = vector.load %arg16[%c0_49, %c0_50, %c0_51] : memref<1x1x1024xf32, #tpu.memory_space<vmem>>, vector<1x1x1024xf32>
      %86 = vector.shape_cast %85 : vector<1x1x1024xf32> to vector<1x1024xf32>
      %cst_52 = arith.constant dense<0x7F800000> : vector<1024xf32>
      %87 = vector.multi_reduction <minimumf>, %53, %cst_52 [0] : vector<128x1024xf32> to vector<1024xf32>
      %88 = vector.shape_cast %87 : vector<1024xf32> to vector<1x1024xf32>
      %89 = arith.minimumf %86, %88 : vector<1x1024xf32>
      %c0_53 = arith.constant 0 : index
      %c0_54 = arith.constant 0 : index
      %c0_55 = arith.constant 0 : index
      %90 = vector.load %arg16[%c0_53, %c0_54, %c0_55] : memref<1x1x1024xf32, #tpu.memory_space<vmem>>, vector<1x1x1024xf32>
      %91 = vector.shape_cast %90 : vector<1x1x1024xf32> to vector<1x1024xf32>
      %92 = vector.shape_cast %89 : vector<1x1024xf32> to vector<1x1x1024xf32>
      tpu.vector_store %arg16[%c0_53, %c0_54, %c0_55], %92 {strides = array<i32>} : memref<1x1x1024xf32, #tpu.memory_space<vmem>>, vector<1x1x1024xf32>,
    } else {
    }
    return
  }
  func.func @transform_0(%arg0: i32, %arg1: i32) -> (i32, i32, i32) {
    %c0_i32 = arith.constant 0 : i32
    %c0_i32_0 = arith.constant 0 : i32
    return %arg0, %arg1, %c0_i32 : i32, i32, i32
  }
  func.func @transform_1(%arg0: i32, %arg1: i32) -> (i32, i32) {
    %c0_i32 = arith.constant 0 : i32
    %c0_i32_0 = arith.constant 0 : i32
    %c0_i32_1 = arith.constant 0 : i32
    return %c0_i32, %c0_i32_0 : i32, i32
  }
  func.func @transform_2(%arg0: i32, %arg1: i32) -> (i32, i32) {
    %c0_i32 = arith.constant 0 : i32
    %c0_i32_0 = arith.constant 0 : i32
    %c0_i32_1 = arith.constant 0 : i32
    return %c0_i32, %c0_i32_0 : i32, i32
  }
  func.func @transform_3(%arg0: i32, %arg1: i32) -> (i32, i32) {
    %c0_i32 = arith.constant 0 : i32
    %c0_i32_0 = arith.constant 0 : i32
    %c0_i32_1 = arith.constant 0 : i32
    return %c0_i32, %c0_i32_0 : i32, i32
  }
  func.func @transform_4(%arg0: i32, %arg1: i32) -> (i32, i32) {
    %c0_i32 = arith.constant 0 : i32
    %c0_i32_0 = arith.constant 0 : i32
    %c0_i32_1 = arith.constant 0 : i32
    return %c0_i32, %c0_i32_0 : i32, i32
  }
  func.func @transform_5(%arg0: i32, %arg1: i32) -> (i32, i32) {
    %c0_i32 = arith.constant 0 : i32
    %c0_i32_0 = arith.constant 0 : i32
    %c0_i32_1 = arith.constant 0 : i32
    return %c0_i32, %c0_i32_0 : i32, i32
  }
  func.func @transform_6(%arg0: i32, %arg1: i32) -> (i32, i32) {
    %c0_i32 = arith.constant 0 : i32
    %c0_i32_0 = arith.constant 0 : i32
    %c0_i32_1 = arith.constant 0 : i32
    return %c0_i32, %c0_i32_0 : i32, i32
  }
  func.func @transform_7(%arg0: i32, %arg1: i32) -> (i32, i32) {
    %c0_i32 = arith.constant 0 : i32
    %c0_i32_0 = arith.constant 0 : i32
    %c0_i32_1 = arith.constant 0 : i32
    return %c0_i32, %c0_i32_0 : i32, i32
  }
  func.func @transform_8(%arg0: i32, %arg1: i32) -> (i32, i32) {
    %c0_i32 = arith.constant 0 : i32
    %c0_i32_0 = arith.constant 0 : i32
    %c0_i32_1 = arith.constant 0 : i32
    return %c0_i32, %c0_i32_0 : i32, i32
  }
  func.func @transform_9(%arg0: i32, %arg1: i32) -> (i32, i32) {
    %c0_i32 = arith.constant 0 : i32
    %c0_i32_0 = arith.constant 0 : i32
    %c0_i32_1 = arith.constant 0 : i32
    return %c0_i32, %c0_i32_0 : i32, i32
  }
  func.func @transform_10(%arg0: i32, %arg1: i32) -> (i32, i32) {
    %c0_i32 = arith.constant 0 : i32
    %c0_i32_0 = arith.constant 0 : i32
    %c0_i32_1 = arith.constant 0 : i32
    return %c0_i32, %c0_i32_0 : i32, i32
  }
  func.func @transform_11(%arg0: i32, %arg1: i32) -> (i32, i32, i32) {
    %c0_i32 = arith.constant 0 : i32
    %c0_i32_0 = arith.constant 0 : i32
    %c0_i32_1 = arith.constant 0 : i32
    return %arg0, %c0_i32, %c0_i32_0 : i32, i32, i32
  }
  func.func @transform_12(%arg0: i32, %arg1: i32) -> (i32, i32, i32) {
    %c0_i32 = arith.constant 0 : i32
    %c0_i32_0 = arith.constant 0 : i32
    %c0_i32_1 = arith.constant 0 : i32
    return %arg0, %c0_i32, %c0_i32_0 : i32, i32, i32
  }
  func.func @transform_13(%arg0: i32, %arg1: i32) -> (i32, i32, i32) {
    %c0_i32 = arith.constant 0 : i32
    %c0_i32_0 = arith.constant 0 : i32
    %c0_i32_1 = arith.constant 0 : i32
    return %arg0, %c0_i32, %c0_i32_0 : i32, i32, i32
  }
  func.func @transform_14(%arg0: i32, %arg1: i32) -> (i32, i32, i32) {
    %c0_i32 = arith.constant 0 : i32
    %c0_i32_0 = arith.constant 0 : i32
    %c0_i32_1 = arith.constant 0 : i32
    return %arg0, %c0_i32, %c0_i32_0 : i32, i32, i32
  }
}

module attributes {stable_mosaic.version = 11 : i64} {
  func.func @_head_kernel(%arg0: memref<4x1024xf32, #tpu.memory_space<vmem>>, %arg1: memref<4x1024xf32, #tpu.memory_space<vmem>>, %arg2: memref<1x1024xf32, #tpu.memory_space<vmem>>, %arg3: memref<1x1024xf32, #tpu.memory_space<vmem>>, %arg4: memref<1024x512xbf16, #tpu.memory_space<vmem>>, %arg5: memref<1x512xf32, #tpu.memory_space<vmem>>, %arg6: memref<1x512xf32, #tpu.memory_space<vmem>>, %arg7: memref<1x512xf32, #tpu.memory_space<vmem>>, %arg8: memref<512x256xbf16, #tpu.memory_space<vmem>>, %arg9: memref<1x256xf32, #tpu.memory_space<vmem>>, %arg10: memref<1x256xf32, #tpu.memory_space<vmem>>, %arg11: memref<1x256xf32, #tpu.memory_space<vmem>>, %arg12: memref<256x9xf32, #tpu.memory_space<vmem>>, %arg13: memref<1x9xf32, #tpu.memory_space<vmem>>, %arg14: memref<1x9xf32, #tpu.memory_space<vmem>>, %arg15: memref<4x9xf32, #tpu.memory_space<vmem>>) attributes {dimension_semantics = [], scalar_prefetch = 0 : i64, scratch_operands = 0 : i64, tpu.core_type = #tpu.core_type<tc>} {
    %c0 = arith.constant 0 : index
    %c0_0 = arith.constant 0 : index
    %0 = vector.load %arg2[%c0, %c0_0] : memref<1x1024xf32, #tpu.memory_space<vmem>>, vector<1x1024xf32>
    %cst = arith.constant 0.000000e+00 : f32
    %1 = vector.broadcast %cst : f32 to vector<1x1024xf32>
    %2 = arith.cmpf oge, %0, %1 : vector<1x1024xf32>
    %c0_1 = arith.constant 0 : index
    %c0_2 = arith.constant 0 : index
    %3 = vector.load %arg0[%c0_1, %c0_2] : memref<4x1024xf32, #tpu.memory_space<vmem>>, vector<4x1024xf32>
    %4 = vector.broadcast %0 : vector<1x1024xf32> to vector<4x1024xf32>
    %5 = arith.mulf %3, %4 : vector<4x1024xf32>
    %c0_3 = arith.constant 0 : index
    %c0_4 = arith.constant 0 : index
    %6 = vector.load %arg1[%c0_3, %c0_4] : memref<4x1024xf32, #tpu.memory_space<vmem>>, vector<4x1024xf32>
    %7 = vector.broadcast %0 : vector<1x1024xf32> to vector<4x1024xf32>
    %8 = arith.mulf %6, %7 : vector<4x1024xf32>
    %9 = vector.shape_cast %2 : vector<1x1024xi1> to vector<1x1024xi1>
    %10 = vector.broadcast %9 : vector<1x1024xi1> to vector<4x1024xi1>
    %11 = arith.select %10, %5, %8 : vector<4x1024xi1>, vector<4x1024xf32>
    %c0_5 = arith.constant 0 : index
    %c0_6 = arith.constant 0 : index
    %12 = vector.load %arg3[%c0_5, %c0_6] : memref<1x1024xf32, #tpu.memory_space<vmem>>, vector<1x1024xf32>
    %13 = vector.broadcast %12 : vector<1x1024xf32> to vector<4x1024xf32>
    %14 = arith.addf %11, %13 : vector<4x1024xf32>
    %cst_7 = arith.constant 0.000000e+00 : f32
    %15 = vector.broadcast %cst_7 : f32 to vector<4x1024xf32>
    %16 = arith.maximumf %14, %15 : vector<4x1024xf32>
    %17 = arith.truncf %16 : vector<4x1024xf32> to vector<4x1024xbf16>
    %c0_8 = arith.constant 0 : index
    %c0_9 = arith.constant 0 : index
    %18 = vector.load %arg4[%c0_8, %c0_9] : memref<1024x512xbf16, #tpu.memory_space<vmem>>, vector<1024x512xbf16>
    %cst_10 = arith.constant dense<0.000000e+00> : vector<4x512xf32>
    %19 = tpu.matmul %17, %18, %cst_10 {dimension_numbers = #tpu.dot_dimension_numbers<[1], [0], [0], [1], [0, 0, 1, 1], [], []>} : vector<4x1024xbf16>, vector<1024x512xbf16>, vector<4x512xf32> -> vector<4x512xf32>
    %c0_11 = arith.constant 0 : index
    %c0_12 = arith.constant 0 : index
    %20 = vector.load %arg5[%c0_11, %c0_12] : memref<1x512xf32, #tpu.memory_space<vmem>>, vector<1x512xf32>
    %21 = vector.broadcast %20 : vector<1x512xf32> to vector<4x512xf32>
    %22 = arith.addf %19, %21 : vector<4x512xf32>
    %c0_13 = arith.constant 0 : index
    %c0_14 = arith.constant 0 : index
    %23 = vector.load %arg6[%c0_13, %c0_14] : memref<1x512xf32, #tpu.memory_space<vmem>>, vector<1x512xf32>
    %c0_15 = arith.constant 0 : index
    %c0_16 = arith.constant 0 : index
    %24 = vector.load %arg7[%c0_15, %c0_16] : memref<1x512xf32, #tpu.memory_space<vmem>>, vector<1x512xf32>
    %cst_17 = arith.constant dense<0.000000e+00> : vector<512xf32>
    %25 = vector.multi_reduction <add>, %22, %cst_17 [0] : vector<4x512xf32> to vector<512xf32>
    %26 = vector.shape_cast %25 : vector<512xf32> to vector<1x512xf32>
    %cst_18 = arith.constant 4.000000e+00 : f32
    %27 = vector.broadcast %cst_18 : f32 to vector<1x512xf32>
    %28 = arith.divf %26, %27 : vector<1x512xf32>
    %29 = vector.broadcast %28 : vector<1x512xf32> to vector<4x512xf32>
    %30 = arith.subf %22, %29 : vector<4x512xf32>
    %31 = arith.mulf %30, %30 : vector<4x512xf32>
    %cst_19 = arith.constant dense<0.000000e+00> : vector<512xf32>
    %32 = vector.multi_reduction <add>, %31, %cst_19 [0] : vector<4x512xf32> to vector<512xf32>
    %33 = vector.shape_cast %32 : vector<512xf32> to vector<1x512xf32>
    %cst_20 = arith.constant 4.000000e+00 : f32
    %34 = vector.broadcast %cst_20 : f32 to vector<1x512xf32>
    %35 = arith.divf %33, %34 : vector<1x512xf32>
    %36 = vector.broadcast %28 : vector<1x512xf32> to vector<4x512xf32>
    %37 = arith.subf %22, %36 : vector<4x512xf32>
    %cst_21 = arith.constant 9.99999974E-6 : f32
    %38 = vector.broadcast %cst_21 : f32 to vector<1x512xf32>
    %39 = arith.addf %35, %38 : vector<1x512xf32>
    %40 = math.rsqrt %39 : vector<1x512xf32>
    %41 = vector.broadcast %40 : vector<1x512xf32> to vector<4x512xf32>
    %42 = arith.mulf %37, %41 : vector<4x512xf32>
    %43 = vector.broadcast %23 : vector<1x512xf32> to vector<4x512xf32>
    %44 = arith.mulf %42, %43 : vector<4x512xf32>
    %45 = vector.broadcast %24 : vector<1x512xf32> to vector<4x512xf32>
    %46 = arith.addf %44, %45 : vector<4x512xf32>
    %cst_22 = arith.constant 0.000000e+00 : f32
    %47 = vector.broadcast %cst_22 : f32 to vector<4x512xf32>
    %48 = arith.maximumf %46, %47 : vector<4x512xf32>
    %49 = arith.truncf %48 : vector<4x512xf32> to vector<4x512xbf16>
    %c0_23 = arith.constant 0 : index
    %c0_24 = arith.constant 0 : index
    %50 = vector.load %arg8[%c0_23, %c0_24] : memref<512x256xbf16, #tpu.memory_space<vmem>>, vector<512x256xbf16>
    %cst_25 = arith.constant dense<0.000000e+00> : vector<4x256xf32>
    %51 = tpu.matmul %49, %50, %cst_25 {dimension_numbers = #tpu.dot_dimension_numbers<[1], [0], [0], [1], [0, 0, 1, 1], [], []>} : vector<4x512xbf16>, vector<512x256xbf16>, vector<4x256xf32> -> vector<4x256xf32>
    %c0_26 = arith.constant 0 : index
    %c0_27 = arith.constant 0 : index
    %52 = vector.load %arg9[%c0_26, %c0_27] : memref<1x256xf32, #tpu.memory_space<vmem>>, vector<1x256xf32>
    %53 = vector.broadcast %52 : vector<1x256xf32> to vector<4x256xf32>
    %54 = arith.addf %51, %53 : vector<4x256xf32>
    %c0_28 = arith.constant 0 : index
    %c0_29 = arith.constant 0 : index
    %55 = vector.load %arg10[%c0_28, %c0_29] : memref<1x256xf32, #tpu.memory_space<vmem>>, vector<1x256xf32>
    %c0_30 = arith.constant 0 : index
    %c0_31 = arith.constant 0 : index
    %56 = vector.load %arg11[%c0_30, %c0_31] : memref<1x256xf32, #tpu.memory_space<vmem>>, vector<1x256xf32>
    %cst_32 = arith.constant dense<0.000000e+00> : vector<256xf32>
    %57 = vector.multi_reduction <add>, %54, %cst_32 [0] : vector<4x256xf32> to vector<256xf32>
    %58 = vector.shape_cast %57 : vector<256xf32> to vector<1x256xf32>
    %cst_33 = arith.constant 4.000000e+00 : f32
    %59 = vector.broadcast %cst_33 : f32 to vector<1x256xf32>
    %60 = arith.divf %58, %59 : vector<1x256xf32>
    %61 = vector.broadcast %60 : vector<1x256xf32> to vector<4x256xf32>
    %62 = arith.subf %54, %61 : vector<4x256xf32>
    %63 = arith.mulf %62, %62 : vector<4x256xf32>
    %cst_34 = arith.constant dense<0.000000e+00> : vector<256xf32>
    %64 = vector.multi_reduction <add>, %63, %cst_34 [0] : vector<4x256xf32> to vector<256xf32>
    %65 = vector.shape_cast %64 : vector<256xf32> to vector<1x256xf32>
    %cst_35 = arith.constant 4.000000e+00 : f32
    %66 = vector.broadcast %cst_35 : f32 to vector<1x256xf32>
    %67 = arith.divf %65, %66 : vector<1x256xf32>
    %68 = vector.broadcast %60 : vector<1x256xf32> to vector<4x256xf32>
    %69 = arith.subf %54, %68 : vector<4x256xf32>
    %cst_36 = arith.constant 9.99999974E-6 : f32
    %70 = vector.broadcast %cst_36 : f32 to vector<1x256xf32>
    %71 = arith.addf %67, %70 : vector<1x256xf32>
    %72 = math.rsqrt %71 : vector<1x256xf32>
    %73 = vector.broadcast %72 : vector<1x256xf32> to vector<4x256xf32>
    %74 = arith.mulf %69, %73 : vector<4x256xf32>
    %75 = vector.broadcast %55 : vector<1x256xf32> to vector<4x256xf32>
    %76 = arith.mulf %74, %75 : vector<4x256xf32>
    %77 = vector.broadcast %56 : vector<1x256xf32> to vector<4x256xf32>
    %78 = arith.addf %76, %77 : vector<4x256xf32>
    %cst_37 = arith.constant 0.000000e+00 : f32
    %79 = vector.broadcast %cst_37 : f32 to vector<4x256xf32>
    %80 = arith.maximumf %78, %79 : vector<4x256xf32>
    %c0_38 = arith.constant 0 : index
    %c0_39 = arith.constant 0 : index
    %81 = vector.load %arg12[%c0_38, %c0_39] : memref<256x9xf32, #tpu.memory_space<vmem>>, vector<256x9xf32>
    %cst_40 = arith.constant dense<0.000000e+00> : vector<4x9xf32>
    %82 = tpu.matmul %80, %81, %cst_40 {dimension_numbers = #tpu.dot_dimension_numbers<[1], [0], [0], [1], [0, 0, 1, 1], [], []>} : vector<4x256xf32>, vector<256x9xf32>, vector<4x9xf32> -> vector<4x9xf32>
    %c0_41 = arith.constant 0 : index
    %c0_42 = arith.constant 0 : index
    %83 = vector.load %arg13[%c0_41, %c0_42] : memref<1x9xf32, #tpu.memory_space<vmem>>, vector<1x9xf32>
    %84 = vector.broadcast %83 : vector<1x9xf32> to vector<4x9xf32>
    %85 = arith.addf %82, %84 : vector<4x9xf32>
    %c0_43 = arith.constant 0 : index
    %c0_44 = arith.constant 0 : index
    %86 = vector.load %arg14[%c0_43, %c0_44] : memref<1x9xf32, #tpu.memory_space<vmem>>, vector<1x9xf32>
    %87 = vector.broadcast %86 : vector<1x9xf32> to vector<4x9xf32>
    %88 = arith.addf %85, %87 : vector<4x9xf32>
    %c0_45 = arith.constant 0 : index
    %c0_46 = arith.constant 0 : index
    %89 = vector.load %arg15[%c0_45, %c0_46] : memref<4x9xf32, #tpu.memory_space<vmem>>, vector<4x9xf32>
    tpu.vector_store %arg15[%c0_45, %c0_46], %88 {strides = array<i32>} : memref<4x9xf32, #tpu.memory_space<vmem>>, vector<4x9xf32>,
    return
  }
}

</mosaic_0001>

<llo_original>
// kernel: transform3d_forward.3
$region0: #{transform3d_forward.3}
  #allocation0 [shape = 'u32[]', space=smem, size = 0x4, offset = 0x4, fixed_abs, tag = 'smem constant byte address 0x4 - core index']
  #allocation1 [shape = 'u32[144,128]{1,0:T(1,128)}', space=vmem, size = 0x12000, scoped, tag = 'internal scratch']
  %s0 = inlined_call_operand.vmem [shape: f32[2048,3], index: 0, kind: input, shape index: {}]
  %s1 = inlined_call_operand.vmem [shape: f32[3,64], index: 1, kind: input, shape index: {}]
  %s2 = inlined_call_operand.vmem [shape: f32[1,64], index: 2, kind: input, shape index: {}]
  %s3 = inlined_call_operand.vmem [shape: f32[1,64], index: 3, kind: input, shape index: {}]
  %s4 = inlined_call_operand.vmem [shape: f32[1,64], index: 4, kind: input, shape index: {}]
  %s5 = inlined_call_operand.vmem [shape: bf16[64,128], index: 5, kind: input, shape index: {}]
  %s6 = inlined_call_operand.vmem [shape: f32[1,128], index: 6, kind: input, shape index: {}]
  %s7 = inlined_call_operand.vmem [shape: f32[2,1,128], index: 7, kind: output, shape index: {0}]
  %s8 = inlined_call_operand.vmem [shape: f32[2,1,128], index: 8, kind: output, shape index: {1}]
  %9 = xla_tuple %s7, %s8
  %s10 = sld [smem:[#allocation0]]
  $region81: #{transform3d_forward.3} parent=0
    _
  %s12 = ssub.s32 1, %s10
  %s13 = scalar_select 0, %s12, %s10
  loop: start=0, step=1, limit=10
  $region2: #{transform3d_forward.3} parent=0 // loop_pre_header
    _
  $region3: #{transform3d_forward.3} parent=0 // loop_header
    %s15 = sphi 0, %s19
    %p16 = scmp.ge.s32.totalorder %s15, 10
    %s22 = sphi 0, %s34
    %s23 = sphi 0, %s30
    %s24 = sphi 0, %s22
    %s25 = sphi 0, %s23
    %s26 = sphi 0, %s24
    %s27 = sphi 0, %s25
    %s41 = sphi 0, %s43
    %s44 = sphi 0, %s41
    %s45 = sphi 0, %s44
    %s61 = sphi 0, %s45
    %s65 = sphi 0, %s65
    %s67 = sphi 0, %s65
    %s68 = sphi 0, %s67
    %s82 = sphi 0, %s68
    %s86 = sphi 0, %s86
    %s88 = sphi 0, %s86
    %s89 = sphi 0, %s88
    %s103 = sphi 0, %s89
    %s107 = sphi 0, %s107
    %s109 = sphi 0, %s107
    %s110 = sphi 0, %s109
    %s124 = sphi 0, %s110
    %s128 = sphi 0, %s128
    %s130 = sphi 0, %s128
    %s131 = sphi 0, %s130
    %s145 = sphi 0, %s131
    %s149 = sphi 0, %s149
    %s151 = sphi 0, %s149
    %s152 = sphi 0, %s151
    %s166 = sphi 0, %s152
    %s170 = sphi 0, %s170
    %s172 = sphi 0, %s170
    %s173 = sphi 0, %s172
    %s187 = sphi 0, %s173
    %s193 = sphi 0, %s195
    %s196 = sphi 0, %s193
    %s197 = sphi 0, %s196
    %s213 = sphi 0, %s197
    %s219 = sphi 0, %s221
    %s222 = sphi 0, %s219
    %s223 = sphi 0, %s222
    %s239 = sphi 0, %s223
  $region4: #{transform3d_forward.3} parent=0 // loop_header_branch
    %18 = sbr.rel (%p16) target = $region8
  $region5: #{transform3d_forward.3} parent=0 // loop_body
    %s20 = ssub.s32 %s15, 1
    %s21 = ssub.s32 %s15, 2
    %s28 = sadd.s32 1, %s23
    %p29 = scmp.ge.s32.totalorder %s28, 4
    %s30 = scalar_select %p29, 0, %s28
    %s31 = sadd.s32 1, %s22
    %s32 = scalar_select %p29, %s31, %s22
    %p33 = scmp.ge.s32.totalorder %s32, 2
    %s34 = scalar_select %p33, 0, %s32
    %s35 = smul.u32 %s22, 4
    %s36 = sadd.s32 %s35, %s23
    %s37 = smul.u32 %s34, 4
    %s38 = sadd.s32 %s37, %s30
    %s39 = ssub.s32 %s36, %s38
    %p40 = scmp.eq.s32.totalorder %s39, 0
    %s42 = sadd.s32 %s41, 1
    %s43 = scalar_select %p40, %s41, %s42
    %p46 = pneg %p40
    %p47 = scmp.eq.s32.totalorder %s15, 7
    %p48 = por %p46, %p47
    %p49 = scmp.ne.s32.totalorder %s41, %s44
    %p50 = scmp.eq.s32.totalorder %s15, 0
    %p51 = por %p49, %p50
    %p52 = scmp.ne.s32.totalorder %s41, %s44
    %p53 = scmp.eq.s32.totalorder %s20, 7
    %p54 = por %p52, %p53
    %p55 = scmp.ne.s32.totalorder %s44, %s45
    %p56 = scmp.eq.s32.totalorder %s20, 0
    %p57 = por %p55, %p56
    %p58 = scmp.ne.s32.totalorder %s44, %s45
    %p59 = scmp.eq.s32.totalorder %s21, 7
    %p60 = por %p58, %p59
    %p62 = scmp.ne.s32.totalorder %s45, %s61
    %p63 = scmp.eq.s32.totalorder %s21, 0
    %p64 = por %p62, %p63
    %s66 = sadd.s32 %s65, 1
    %p69 = scmp.eq.s32.totalorder %s15, 7
    %p70 = scmp.ne.s32.totalorder %s65, %s67
    %p71 = scmp.eq.s32.totalorder %s15, 0
    %p72 = por %p70, %p71
    %p73 = scmp.ne.s32.totalorder %s65, %s67
    %p74 = scmp.eq.s32.totalorder %s20, 7
    %p75 = por %p73, %p74
    %p76 = scmp.ne.s32.totalorder %s67, %s68
    %p77 = scmp.eq.s32.totalorder %s20, 0
    %p78 = por %p76, %p77
    %p79 = scmp.ne.s32.totalorder %s67, %s68
    %p80 = scmp.eq.s32.totalorder %s21, 7
    %p81 = por %p79, %p80
    %p83 = scmp.ne.s32.totalorder %s68, %s82
    %p84 = scmp.eq.s32.totalorder %s21, 0
    %p85 = por %p83, %p84
    %s87 = sadd.s32 %s86, 1
    %p90 = scmp.eq.s32.totalorder %s15, 7
    %p91 = scmp.ne.s32.totalorder %s86, %s88
    %p92 = scmp.eq.s32.totalorder %s15, 0
    %p93 = por %p91, %p92
    %p94 = scmp.ne.s32.totalorder %s86, %s88
    %p95 = scmp.eq.s32.totalorder %s20, 7
    %p96 = por %p94, %p95
    %p97 = scmp.ne.s32.totalorder %s88, %s89
    %p98 = scmp.eq.s32.totalorder %s20, 0
    %p99 = por %p97, %p98
    %p100 = scmp.ne.s32.totalorder %s88, %s89
    %p101 = scmp.eq.s32.totalorder %s21, 7
    %p102 = por %p100, %p101
    %p104 = scmp.ne.s32.totalorder %s89, %s103
    %p105 = scmp.eq.s32.totalorder %s21, 0
    %p106 = por %p104, %p105
    %s108 = sadd.s32 %s107, 1
    %p111 = scmp.eq.s32.totalorder %s15, 7
    %p112 = scmp.ne.s32.totalorder %s107, %s109
    %p113 = scmp.eq.s32.totalorder %s15, 0
    %p114 = por %p112, %p113
    %p115 = scmp.ne.s32.totalorder %s107, %s109
    %p116 = scmp.eq.s32.totalorder %s20, 7
    %p117 = por %p115, %p116
    %p118 = scmp.ne.s32.totalorder %s109, %s110
    %p119 = scmp.eq.s32.totalorder %s20, 0
    %p120 = por %p118, %p119
    %p121 = scmp.ne.s32.totalorder %s109, %s110
    %p122 = scmp.eq.s32.totalorder %s21, 7
    %p123 = por %p121, %p122
    %p125 = scmp.ne.s32.totalorder %s110, %s124
    %p126 = scmp.eq.s32.totalorder %s21, 0
    %p127 = por %p125, %p126
    %s129 = sadd.s32 %s128, 1
    %p132 = scmp.eq.s32.totalorder %s15, 7
    %p133 = scmp.ne.s32.totalorder %s128, %s130
    %p134 = scmp.eq.s32.totalorder %s15, 0
    %p135 = por %p133, %p134
    %p136 = scmp.ne.s32.totalorder %s128, %s130
    %p137 = scmp.eq.s32.totalorder %s20, 7
    %p138 = por %p136, %p137
    %p139 = scmp.ne.s32.totalorder %s130, %s131
    %p140 = scmp.eq.s32.totalorder %s20, 0
    %p141 = por %p139, %p140
    %p142 = scmp.ne.s32.totalorder %s130, %s131
    %p143 = scmp.eq.s32.totalorder %s21, 7
    %p144 = por %p142, %p143
    %p146 = scmp.ne.s32.totalorder %s131, %s145
    %p147 = scmp.eq.s32.totalorder %s21, 0
    %p148 = por %p146, %p147
    %s150 = sadd.s32 %s149, 1
    %p153 = scmp.eq.s32.totalorder %s15, 7
    %p154 = scmp.ne.s32.totalorder %s149, %s151
    %p155 = scmp.eq.s32.totalorder %s15, 0
    %p156 = por %p154, %p155
    %p157 = scmp.ne.s32.totalorder %s149, %s151
    %p158 = scmp.eq.s32.totalorder %s20, 7
    %p159 = por %p157, %p158
    %p160 = scmp.ne.s32.totalorder %s151, %s152
    %p161 = scmp.eq.s32.totalorder %s20, 0
    %p162 = por %p160, %p161
    %p163 = scmp.ne.s32.totalorder %s151, %s152
    %p164 = scmp.eq.s32.totalorder %s21, 7
    %p165 = por %p163, %p164
    %p167 = scmp.ne.s32.totalorder %s152, %s166
    %p168 = scmp.eq.s32.totalorder %s21, 0
    %p169 = por %p167, %p168
    %s171 = sadd.s32 %s170, 1
    %p174 = scmp.eq.s32.totalorder %s15, 7
    %p175 = scmp.ne.s32.totalorder %s170, %s172
    %p176 = scmp.eq.s32.totalorder %s15, 0
    %p177 = por %p175, %p176
    %p178 = scmp.ne.s32.totalorder %s170, %s172
    %p179 = scmp.eq.s32.totalorder %s20, 7
    %p180 = por %p178, %p179
    %p181 = scmp.ne.s32.totalorder %s172, %s173
    %p182 = scmp.eq.s32.totalorder %s20, 0
    %p183 = por %p181, %p182
    %p184 = scmp.ne.s32.totalorder %s172, %s173
    %p185 = scmp.eq.s32.totalorder %s21, 7
    %p186 = por %p184, %p185
    %p188 = scmp.ne.s32.totalorder %s173, %s187
    %p189 = scmp.eq.s32.totalorder %s21, 0
    %p190 = por %p188, %p189
    %s191 = ssub.s32 %s22, %s34
    %p192 = scmp.eq.s32.totalorder %s191, 0
    %s194 = sadd.s32 %s193, 1
    %s195 = scalar_select %p192, %s193, %s194
    %p198 = pneg %p192
    %p199 = scmp.eq.s32.totalorder %s15, 7
    %p200 = por %p198, %p199
    %p201 = scmp.ne.s32.totalorder %s193, %s196
    %p202 = scmp.eq.s32.totalorder %s15, 0
    %p203 = por %p201, %p202
    %p204 = scmp.ne.s32.totalorder %s193, %s196
    %p205 = scmp.eq.s32.totalorder %s20, 7
    %p206 = por %p204, %p205
    %p207 = scmp.ne.s32.totalorder %s196, %s197
    %p208 = scmp.eq.s32.totalorder %s20, 0
    %p209 = por %p207, %p208
    %p210 = scmp.ne.s32.totalorder %s196, %s197
    %p211 = scmp.eq.s32.totalorder %s21, 7
    %p212 = por %p210, %p211
    %p214 = scmp.ne.s32.totalorder %s197, %s213
    %p215 = scmp.eq.s32.totalorder %s21, 0
    %p216 = por %p214, %p215
    %s217 = ssub.s32 %s22, %s34
    %p218 = scmp.eq.s32.totalorder %s217, 0
    %s220 = sadd.s32 %s219, 1
    %s221 = scalar_select %p218, %s219, %s220
    %p224 = pneg %p218
    %p225 = scmp.eq.s32.totalorder %s15, 7
    %p226 = por %p224, %p225
    %p227 = scmp.ne.s32.totalorder %s219, %s222
    %p228 = scmp.eq.s32.totalorder %s15, 0
    %p229 = por %p227, %p228
    %p230 = scmp.ne.s32.totalorder %s219, %s222
    %p231 = scmp.eq.s32.totalorder %s20, 7
    %p232 = por %p230, %p231
    %p233 = scmp.ne.s32.totalorder %s222, %s223
    %p234 = scmp.eq.s32.totalorder %s20, 0
    %p235 = por %p233, %p234
    %p236 = scmp.ne.s32.totalorder %s222, %s223
    %p237 = scmp.eq.s32.totalorder %s21, 7
    %p238 = por %p236, %p237
    %p240 = scmp.ne.s32.totalorder %s223, %s239
    %p241 = scmp.eq.s32.totalorder %s21, 0
    %p242 = por %p240, %p241
    %p243 = scmp.le.s32.totalorder 1, %s15
    %p244 = scmp.lt.s32.totalorder %s15, 9
    %p245 = pnand %p243, %p244
    %p246 = pneg %p245
    // Predicated region
    $region9: #{transform3d_forward.3} parent=5 // pred_check
      _
    $region10: #{transform3d_forward.3} parent=5 // pred_check_branch
      %248 = sbr.rel (%p245) target = $region12
    $region11: #{transform3d_forward.3} parent=5 // pred_region
      %s249 = ssub.s32 %s15, 1
      // Predicated region
      $region13: #{transform3d_forward.3} parent=11 // pred_check
        %p250 = pneg %p78
      $region14: #{transform3d_forward.3} parent=11 // pred_check_branch
        %252 = sbr.rel (%p250) target = $region16
      $region15: #{transform3d_forward.3} parent=11 // pred_region
        _
      $region16: #{transform3d_forward.3} parent=11 // pred_fallthru
        _
      // Predicated region
      $region17: #{transform3d_forward.3} parent=11 // pred_check
        %p253 = pneg %p99
      $region18: #{transform3d_forward.3} parent=11 // pred_check_branch
        %255 = sbr.rel (%p253) target = $region20
      $region19: #{transform3d_forward.3} parent=11 // pred_region
        _
      $region20: #{transform3d_forward.3} parent=11 // pred_fallthru
        _
      // Predicated region
      $region21: #{transform3d_forward.3} parent=11 // pred_check
        %p256 = pneg %p120
      $region22: #{transform3d_forward.3} parent=11 // pred_check_branch
        %258 = sbr.rel (%p256) target = $region24
      $region23: #{transform3d_forward.3} parent=11 // pred_region
        _
      $region24: #{transform3d_forward.3} parent=11 // pred_fallthru
        _
      // Predicated region
      $region25: #{transform3d_forward.3} parent=11 // pred_check
        %p259 = pneg %p141
      $region26: #{transform3d_forward.3} parent=11 // pred_check_branch
        %261 = sbr.rel (%p259) target = $region28
      $region27: #{transform3d_forward.3} parent=11 // pred_region
        _
      $region28: #{transform3d_forward.3} parent=11 // pred_fallthru
        _
      // Predicated region
      $region29: #{transform3d_forward.3} parent=11 // pred_check
        %p262 = pneg %p162
      $region30: #{transform3d_forward.3} parent=11 // pred_check_branch
        %264 = sbr.rel (%p262) target = $region32
      $region31: #{transform3d_forward.3} parent=11 // pred_region
        _
      $region32: #{transform3d_forward.3} parent=11 // pred_fallthru
        _
      // Predicated region
      $region33: #{transform3d_forward.3} parent=11 // pred_check
        %p265 = pneg %p183
      $region34: #{transform3d_forward.3} parent=11 // pred_check_branch
        %267 = sbr.rel (%p265) target = $region36
      $region35: #{transform3d_forward.3} parent=11 // pred_region
        _
      $region36: #{transform3d_forward.3} parent=11 // pred_fallthru
        _
    $region12: #{transform3d_forward.3} parent=5 // pred_fallthru
      _
    %p268 = scmp.lt.s32.totalorder %s15, 8
    // Predicated region
    $region37: #{transform3d_forward.3} parent=5 // pred_check
      %p269 = pneg %p268
    $region38: #{transform3d_forward.3} parent=5 // pred_check_branch
      %271 = sbr.rel (%p269) target = $region40
    $region39: #{transform3d_forward.3} parent=5 // pred_region
      // Predicated region
      $region41: #{transform3d_forward.3} parent=39 // pred_check
        %p272 = pneg %p51
      $region42: #{transform3d_forward.3} parent=39 // pred_check_branch
        %274 = sbr.rel (%p272) target = $region44
      $region43: #{transform3d_forward.3} parent=39 // pred_region
        %s275 = smul.u32 %s22, 4
        %s276 = sadd.s32 %s275, %s23
        %s277 = smul.u32 32, %s276
        %p278 = scmp.lt.s32.totalorder %s277, 255
        %s279 = scalar_select %p278, %s277, 255
        %s280 = smul.addr %s279, 8
        %s281 = scalar_lea.vmem %s0, %s280
        %s282 = smul.u32 %s22, 4
        %s283 = sadd.s32 %s282, %s23
        %s284 = smul.u32 32, %s283
      $region44: #{transform3d_forward.3} parent=39 // pred_fallthru
        _
    $region40: #{transform3d_forward.3} parent=5 // pred_fallthru
      _
    %p285 = scmp.le.s32.totalorder 1, %s15
    %p286 = scmp.lt.s32.totalorder %s15, 9
    %p287 = pnand %p285, %p286
    %p288 = pneg %p287
    // Predicated region
    $region45: #{transform3d_forward.3} parent=5 // pred_check
      _
    $region46: #{transform3d_forward.3} parent=5 // pred_check_branch
      %290 = sbr.rel (%p287) target = $region48
    $region47: #{transform3d_forward.3} parent=5 // pred_region
      %s291 = ssub.s32 %s15, 1
      %s292 = smul.u32 %s24, 4
      %s293 = sadd.s32 %s292, %s25
      %s294 = smul.u32 32, %s293
      %p295 = scmp.lt.s32.totalorder %s294, 255
      %s296 = scalar_select %p295, %s294, 255
      %s297 = smul.addr %s296, 8
      %s298 = scalar_lea.vmem %s0, %s297
      %p299 = pneg %p57
      %p300 = pneg %p54
      %p301 = pneg %p78
      %p302 = pneg %p75
      %p303 = pneg %p99
      %p304 = pneg %p96
      %p305 = pneg %p120
      %p306 = pneg %p117
      %p307 = pneg %p141
      %p308 = pneg %p138
      %p309 = pneg %p162
      %p310 = pneg %p159
      %p311 = pneg %p183
      %p312 = pneg %p180
      %p313 = pneg %p209
      %p314 = pneg %p206
      %p315 = scmp.lt.s32.totalorder %s24, 1
      %s316 = scalar_select %p315, %s24, 1
      %s317 = scalar_lea.vmem %s7, %s316
      %p318 = pneg %p235
      %p319 = pneg %p232
      %p320 = scmp.lt.s32.totalorder %s24, 1
      %s321 = scalar_select %p320, %s24, 1
      %s322 = scalar_lea.vmem %s8, %s321
      %s323 = smul.u32 %s24, 4
      %s324 = sadd.s32 %s323, %s25
      %s325 = smul.u32 32, %s324
      %p326 = scmp.lt.s32.totalorder %s325, 255
      %s327 = scalar_select %p326, %s325, 255
      %s328 = smul.addr %s327, 8
      %s329 = scalar_lea.vmem %s0, %s328
      %s330 = smul.u32 %s24, 4
      %s331 = sadd.s32 %s330, %s25
      %s332 = smul.u32 32, %s331
      %p333 = scmp.lt.s32.totalorder %s24, 1
      %s334 = scalar_select %p333, %s24, 1
      %s335 = scalar_lea.vmem %s7, %s334
      %p336 = scmp.lt.s32.totalorder %s24, 1
      %s337 = scalar_select %p336, %s24, 1
      %s338 = scalar_lea.vmem %s8, %s337
      %p340 = scmp.eq.s32.totalorder %s25, 0
      // Predicated region
      $region49: #{transform3d_forward.3} parent=47 // pred_check
        %p341 = pneg %p340
      $region50: #{transform3d_forward.3} parent=47 // pred_check_branch
        %343 = sbr.rel (%p341) target = $region52
      $region51: #{transform3d_forward.3} parent=47 // pred_region
        %344 = vst [vmem:[%s335] sm:$0x1] 0.0
        %345 = vst [vmem:[%s338] sm:$0x1] 0.0
      $region52: #{transform3d_forward.3} parent=47 // pred_fallthru
        _
      %v346 = vld [vmem:[%s329] sm:$0xff]
      %v347 = vld [vmem:[%s329 + $0x8] sm:$0xff]
      %v348 = vld [vmem:[%s329 + $0x10] sm:$0xff]
      %v349 = vld [vmem:[%s329 + $0x18] sm:$0xff]
      %v350 = vld [vmem:[%s329 + $0x20] sm:$0xff]
      %v351 = vld [vmem:[%s329 + $0x28] sm:$0xff]
      %v352 = vld [vmem:[%s329 + $0x30] sm:$0xff]
      %v353 = vld [vmem:[%s329 + $0x38] sm:$0xff]
      %v354 = vld [vmem:[%s329 + $0x40] sm:$0xff]
      %v355 = vld [vmem:[%s329 + $0x48] sm:$0xff]
      %v356 = vld [vmem:[%s329 + $0x50] sm:$0xff]
      %v357 = vld [vmem:[%s329 + $0x58] sm:$0xff]
      %v358 = vld [vmem:[%s329 + $0x60] sm:$0xff]
      %v359 = vld [vmem:[%s329 + $0x68] sm:$0xff]
      %v360 = vld [vmem:[%s329 + $0x70] sm:$0xff]
      %v361 = vld [vmem:[%s329 + $0x78] sm:$0xff]
      %v362 = vld [vmem:[%s329 + $0x80] sm:$0xff]
      %v363 = vld [vmem:[%s329 + $0x88] sm:$0xff]
      %v364 = vld [vmem:[%s329 + $0x90] sm:$0xff]
      %v365 = vld [vmem:[%s329 + $0x98] sm:$0xff]
      %v366 = vld [vmem:[%s329 + $0xa0] sm:$0xff]
      %v367 = vld [vmem:[%s329 + $0xa8] sm:$0xff]
      %v368 = vld [vmem:[%s329 + $0xb0] sm:$0xff]
      %v369 = vld [vmem:[%s329 + $0xb8] sm:$0xff]
      %v370 = vld [vmem:[%s329 + $0xc0] sm:$0xff]
      %v371 = vld [vmem:[%s329 + $0xc8] sm:$0xff]
      %v372 = vld [vmem:[%s329 + $0xd0] sm:$0xff]
      %v373 = vld [vmem:[%s329 + $0xd8] sm:$0xff]
      %v374 = vld [vmem:[%s329 + $0xe0] sm:$0xff]
      %v375 = vld [vmem:[%s329 + $0xe8] sm:$0xff]
      %v376 = vld [vmem:[%s329 + $0xf0] sm:$0xff]
      %v377 = vld [vmem:[%s329 + $0xf8] sm:$0xff]
      %v378 = vld [vmem:[%s1] sm:$0x7]
      %v379 = vld [vmem:[%s2] sm:$0x1]
      %381 = vset.pattern.permute.xlu0 0
      %382 = vperm.xlu0 %381, %v346
      %v383 = vpop.permute.xlu0 %382
      %386 = vset.pattern.permute.xlu0 0
      %387 = vperm.xlu0 %386, %v347
      %v388 = vpop.permute.xlu0 %387
      %391 = vset.pattern.permute.xlu0 0
      %392 = vperm.xlu0 %391, %v348
      %v393 = vpop.permute.xlu0 %392
      %396 = vset.pattern.permute.xlu0 0
      %397 = vperm.xlu0 %396, %v349
      %v398 = vpop.permute.xlu0 %397
      %401 = vset.pattern.permute.xlu0 0
      %402 = vperm.xlu0 %401, %v350
      %v403 = vpop.permute.xlu0 %402
      %406 = vset.pattern.permute.xlu0 0
      %407 = vperm.xlu0 %406, %v351
      %v408 = vpop.permute.xlu0 %407
      %411 = vset.pattern.permute.xlu0 0
      %412 = vperm.xlu0 %411, %v352
      %v413 = vpop.permute.xlu0 %412
      %416 = vset.pattern.permute.xlu0 0
      %417 = vperm.xlu0 %416, %v353
      %v418 = vpop.permute.xlu0 %417
      %421 = vset.pattern.permute.xlu0 0
      %422 = vperm.xlu0 %421, %v354
      %v423 = vpop.permute.xlu0 %422
      %426 = vset.pattern.permute.xlu0 0
      %427 = vperm.xlu0 %426, %v355
      %v428 = vpop.permute.xlu0 %427
      %431 = vset.pattern.permute.xlu0 0
      %432 = vperm.xlu0 %431, %v356
      %v433 = vpop.permute.xlu0 %432
      %436 = vset.pattern.permute.xlu0 0
      %437 = vperm.xlu0 %436, %v357
      %v438 = vpop.permute.xlu0 %437
      %441 = vset.pattern.permute.xlu0 0
      %442 = vperm.xlu0 %441, %v358
      %v443 = vpop.permute.xlu0 %442
      %446 = vset.pattern.permute.xlu0 0
      %447 = vperm.xlu0 %446, %v359
      %v448 = vpop.permute.xlu0 %447
      %451 = vset.pattern.permute.xlu0 0
      %452 = vperm.xlu0 %451, %v360
      %v453 = vpop.permute.xlu0 %452
      %456 = vset.pattern.permute.xlu0 0
      %457 = vperm.xlu0 %456, %v361
      %v458 = vpop.permute.xlu0 %457
      %461 = vset.pattern.permute.xlu0 0
      %462 = vperm.xlu0 %461, %v362
      %v463 = vpop.permute.xlu0 %462
      %466 = vset.pattern.permute.xlu0 0
      %467 = vperm.xlu0 %466, %v363
      %v468 = vpop.permute.xlu0 %467
      %471 = vset.pattern.permute.xlu0 0
      %472 = vperm.xlu0 %471, %v364
      %v473 = vpop.permute.xlu0 %472
      %476 = vset.pattern.permute.xlu0 0
      %477 = vperm.xlu0 %476, %v365
      %v478 = vpop.permute.xlu0 %477
      %481 = vset.pattern.permute.xlu0 0
      %482 = vperm.xlu0 %481, %v366
      %v483 = vpop.permute.xlu0 %482
      %486 = vset.pattern.permute.xlu0 0
      %487 = vperm.xlu0 %486, %v367
      %v488 = vpop.permute.xlu0 %487
      %491 = vset.pattern.permute.xlu0 0
      %492 = vperm.xlu0 %491, %v368
      %v493 = vpop.permute.xlu0 %492
      %496 = vset.pattern.permute.xlu0 0
      %497 = vperm.xlu0 %496, %v369
      %v498 = vpop.permute.xlu0 %497
      %501 = vset.pattern.permute.xlu0 0
      %502 = vperm.xlu0 %501, %v370
      %v503 = vpop.permute.xlu0 %502
      %506 = vset.pattern.permute.xlu0 0
      %507 = vperm.xlu0 %506, %v371
      %v508 = vpop.permute.xlu0 %507
      %511 = vset.pattern.permute.xlu0 0
      %512 = vperm.xlu0 %511, %v372
      %v513 = vpop.permute.xlu0 %512
      %516 = vset.pattern.permute.xlu0 0
      %517 = vperm.xlu0 %516, %v373
      %v518 = vpop.permute.xlu0 %517
      %521 = vset.pattern.permute.xlu0 0
      %522 = vperm.xlu0 %521, %v374
      %v523 = vpop.permute.xlu0 %522
      %526 = vset.pattern.permute.xlu0 0
      %527 = vperm.xlu0 %526, %v375
      %v528 = vpop.permute.xlu0 %527
      %531 = vset.pattern.permute.xlu0 0
      %532 = vperm.xlu0 %531, %v376
      %v533 = vpop.permute.xlu0 %532
      %536 = vset.pattern.permute.xlu0 0
      %537 = vperm.xlu0 %536, %v377
      %v538 = vpop.permute.xlu0 %537
      %v540 = vlaneseq
      %v541 = vshrl.u32 %v540, 7
      %v542 = vsub.s32 0, %v541
      %v543 = vrot.slane %v378, %v542
      %v544 = vmul.f32 %v383, %v543
      %v545 = vmul.f32 %v388, %v543
      %v546 = vmul.f32 %v393, %v543
      %v547 = vmul.f32 %v398, %v543
      %v548 = vmul.f32 %v403, %v543
      %v549 = vmul.f32 %v408, %v543
      %v550 = vmul.f32 %v413, %v543
      %v551 = vmul.f32 %v418, %v543
      %v552 = vmul.f32 %v423, %v543
      %v553 = vmul.f32 %v428, %v543
      %v554 = vmul.f32 %v433, %v543
      %v555 = vmul.f32 %v438, %v543
      %v556 = vmul.f32 %v443, %v543
      %v557 = vmul.f32 %v448, %v543
      %v558 = vmul.f32 %v453, %v543
      %v559 = vmul.f32 %v458, %v543
      %v560 = vmul.f32 %v463, %v543
      %v561 = vmul.f32 %v468, %v543
      %v562 = vmul.f32 %v473, %v543
      %v563 = vmul.f32 %v478, %v543
      %v564 = vmul.f32 %v483, %v543
      %v565 = vmul.f32 %v488, %v543
      %v566 = vmul.f32 %v493, %v543
      %v567 = vmul.f32 %v498, %v543
      %v568 = vmul.f32 %v503, %v543
      %v569 = vmul.f32 %v508, %v543
      %v570 = vmul.f32 %v513, %v543
      %v571 = vmul.f32 %v518, %v543
      %v572 = vmul.f32 %v523, %v543
      %v573 = vmul.f32 %v528, %v543
      %v574 = vmul.f32 %v533, %v543
      %v575 = vmul.f32 %v538, %v543
      %576 = vset.pattern.permute.xlu0 1
      %577 = vperm.xlu0 %576, %v346
      %v578 = vpop.permute.xlu0 %577
      %580 = vset.pattern.permute.xlu0 1
      %581 = vperm.xlu0 %580, %v347
      %v582 = vpop.permute.xlu0 %581
      %584 = vset.pattern.permute.xlu0 1
      %585 = vperm.xlu0 %584, %v348
      %v586 = vpop.permute.xlu0 %585
      %588 = vset.pattern.permute.xlu0 1
      %589 = vperm.xlu0 %588, %v349
      %v590 = vpop.permute.xlu0 %589
      %592 = vset.pattern.permute.xlu0 1
      %593 = vperm.xlu0 %592, %v350
      %v594 = vpop.permute.xlu0 %593
      %596 = vset.pattern.permute.xlu0 1
      %597 = vperm.xlu0 %596, %v351
      %v598 = vpop.permute.xlu0 %597
      %600 = vset.pattern.permute.xlu0 1
      %601 = vperm.xlu0 %600, %v352
      %v602 = vpop.permute.xlu0 %601
      %604 = vset.pattern.permute.xlu0 1
      %605 = vperm.xlu0 %604, %v353
      %v606 = vpop.permute.xlu0 %605
      %608 = vset.pattern.permute.xlu0 1
      %609 = vperm.xlu0 %608, %v354
      %v610 = vpop.permute.xlu0 %609
      %612 = vset.pattern.permute.xlu0 1
      %613 = vperm.xlu0 %612, %v355
      %v614 = vpop.permute.xlu0 %613
      %616 = vset.pattern.permute.xlu0 1
      %617 = vperm.xlu0 %616, %v356
      %v618 = vpop.permute.xlu0 %617
      %620 = vset.pattern.permute.xlu0 1
      %621 = vperm.xlu0 %620, %v357
      %v622 = vpop.permute.xlu0 %621
      %624 = vset.pattern.permute.xlu0 1
      %625 = vperm.xlu0 %624, %v358
      %v626 = vpop.permute.xlu0 %625
      %628 = vset.pattern.permute.xlu0 1
      %629 = vperm.xlu0 %628, %v359
      %v630 = vpop.permute.xlu0 %629
      %632 = vset.pattern.permute.xlu0 1
      %633 = vperm.xlu0 %632, %v360
      %v634 = vpop.permute.xlu0 %633
      %636 = vset.pattern.permute.xlu0 1
      %637 = vperm.xlu0 %636, %v361
      %v638 = vpop.permute.xlu0 %637
      %640 = vset.pattern.permute.xlu0 1
      %641 = vperm.xlu0 %640, %v362
      %v642 = vpop.permute.xlu0 %641
      %644 = vset.pattern.permute.xlu0 1
      %645 = vperm.xlu0 %644, %v363
      %v646 = vpop.permute.xlu0 %645
      %648 = vset.pattern.permute.xlu0 1
      %649 = vperm.xlu0 %648, %v364
      %v650 = vpop.permute.xlu0 %649
      %652 = vset.pattern.permute.xlu0 1
      %653 = vperm.xlu0 %652, %v365
      %v654 = vpop.permute.xlu0 %653
      %656 = vset.pattern.permute.xlu0 1
      %657 = vperm.xlu0 %656, %v366
      %v658 = vpop.permute.xlu0 %657
      %660 = vset.pattern.permute.xlu0 1
      %661 = vperm.xlu0 %660, %v367
      %v662 = vpop.permute.xlu0 %661
      %664 = vset.pattern.permute.xlu0 1
      %665 = vperm.xlu0 %664, %v368
      %v666 = vpop.permute.xlu0 %665
      %668 = vset.pattern.permute.xlu0 1
      %669 = vperm.xlu0 %668, %v369
      %v670 = vpop.permute.xlu0 %669
      %672 = vset.pattern.permute.xlu0 1
      %673 = vperm.xlu0 %672, %v370
      %v674 = vpop.permute.xlu0 %673
      %676 = vset.pattern.permute.xlu0 1
      %677 = vperm.xlu0 %676, %v371
      %v678 = vpop.permute.xlu0 %677
      %680 = vset.pattern.permute.xlu0 1
      %681 = vperm.xlu0 %680, %v372
      %v682 = vpop.permute.xlu0 %681
      %684 = vset.pattern.permute.xlu0 1
      %685 = vperm.xlu0 %684, %v373
      %v686 = vpop.permute.xlu0 %685
      %688 = vset.pattern.permute.xlu0 1
      %689 = vperm.xlu0 %688, %v374
      %v690 = vpop.permute.xlu0 %689
      %692 = vset.pattern.permute.xlu0 1
      %693 = vperm.xlu0 %692, %v375
      %v694 = vpop.permute.xlu0 %693
      %696 = vset.pattern.permute.xlu0 1
      %697 = vperm.xlu0 %696, %v376
      %v698 = vpop.permute.xlu0 %697
      %700 = vset.pattern.permute.xlu0 1
      %701 = vperm.xlu0 %700, %v377
      %v702 = vpop.permute.xlu0 %701
      %v704 = vlaneseq
      %v705 = vshrl.u32 %v704, 7
      %v706 = vsub.s32 1, %v705
      %v707 = vrot.slane %v378, %v706
      %v708 = vmul.f32 %v578, %v707
      %v709 = vmul.f32 %v582, %v707
      %v710 = vmul.f32 %v586, %v707
      %v711 = vmul.f32 %v590, %v707
      %v712 = vmul.f32 %v594, %v707
      %v713 = vmul.f32 %v598, %v707
      %v714 = vmul.f32 %v602, %v707
      %v715 = vmul.f32 %v606, %v707
      %v716 = vmul.f32 %v610, %v707
      %v717 = vmul.f32 %v614, %v707
      %v718 = vmul.f32 %v618, %v707
      %v719 = vmul.f32 %v622, %v707
      %v720 = vmul.f32 %v626, %v707
      %v721 = vmul.f32 %v630, %v707
      %v722 = vmul.f32 %v634, %v707
      %v723 = vmul.f32 %v638, %v707
      %v724 = vmul.f32 %v642, %v707
      %v725 = vmul.f32 %v646, %v707
      %v726 = vmul.f32 %v650, %v707
      %v727 = vmul.f32 %v654, %v707
      %v728 = vmul.f32 %v658, %v707
      %v729 = vmul.f32 %v662, %v707
      %v730 = vmul.f32 %v666, %v707
      %v731 = vmul.f32 %v670, %v707
      %v732 = vmul.f32 %v674, %v707
      %v733 = vmul.f32 %v678, %v707
      %v734 = vmul.f32 %v682, %v707
      %v735 = vmul.f32 %v686, %v707
      %v736 = vmul.f32 %v690, %v707
      %v737 = vmul.f32 %v694, %v707
      %v738 = vmul.f32 %v698, %v707
      %v739 = vmul.f32 %v702, %v707
      %v740 = vadd.f32 %v544, %v708
      %v741 = vadd.f32 %v545, %v709
      %v742 = vadd.f32 %v546, %v710
      %v743 = vadd.f32 %v547, %v711
      %v744 = vadd.f32 %v548, %v712
      %v745 = vadd.f32 %v549, %v713
      %v746 = vadd.f32 %v550, %v714
      %v747 = vadd.f32 %v551, %v715
      %v748 = vadd.f32 %v552, %v716
      %v749 = vadd.f32 %v553, %v717
      %v750 = vadd.f32 %v554, %v718
      %v751 = vadd.f32 %v555, %v719
      %v752 = vadd.f32 %v556, %v720
      %v753 = vadd.f32 %v557, %v721
      %v754 = vadd.f32 %v558, %v722
      %v755 = vadd.f32 %v559, %v723
      %v756 = vadd.f32 %v560, %v724
      %v757 = vadd.f32 %v561, %v725
      %v758 = vadd.f32 %v562, %v726
      %v759 = vadd.f32 %v563, %v727
      %v760 = vadd.f32 %v564, %v728
      %v761 = vadd.f32 %v565, %v729
      %v762 = vadd.f32 %v566, %v730
      %v763 = vadd.f32 %v567, %v731
      %v764 = vadd.f32 %v568, %v732
      %v765 = vadd.f32 %v569, %v733
      %v766 = vadd.f32 %v570, %v734
      %v767 = vadd.f32 %v571, %v735
      %v768 = vadd.f32 %v572, %v736
      %v769 = vadd.f32 %v573, %v737
      %v770 = vadd.f32 %v574, %v738
      %v771 = vadd.f32 %v575, %v739
      %772 = vset.pattern.permute.xlu0 2
      %773 = vperm.xlu0 %772, %v346
      %v774 = vpop.permute.xlu0 %773
      %776 = vset.pattern.permute.xlu0 2
      %777 = vperm.xlu0 %776, %v347
      %v778 = vpop.permute.xlu0 %777
      %780 = vset.pattern.permute.xlu0 2
      %781 = vperm.xlu0 %780, %v348
      %v782 = vpop.permute.xlu0 %781
      %784 = vset.pattern.permute.xlu0 2
      %785 = vperm.xlu0 %784, %v349
      %v786 = vpop.permute.xlu0 %785
      %788 = vset.pattern.permute.xlu0 2
      %789 = vperm.xlu0 %788, %v350
      %v790 = vpop.permute.xlu0 %789
      %792 = vset.pattern.permute.xlu0 2
      %793 = vperm.xlu0 %792, %v351
      %v794 = vpop.permute.xlu0 %793
      %796 = vset.pattern.permute.xlu0 2
      %797 = vperm.xlu0 %796, %v352
      %v798 = vpop.permute.xlu0 %797
      %800 = vset.pattern.permute.xlu0 2
      %801 = vperm.xlu0 %800, %v353
      %v802 = vpop.permute.xlu0 %801
      %804 = vset.pattern.permute.xlu0 2
      %805 = vperm.xlu0 %804, %v354
      %v806 = vpop.permute.xlu0 %805
      %808 = vset.pattern.permute.xlu0 2
      %809 = vperm.xlu0 %808, %v355
      %v810 = vpop.permute.xlu0 %809
      %812 = vset.pattern.permute.xlu0 2
      %813 = vperm.xlu0 %812, %v356
      %v814 = vpop.permute.xlu0 %813
      %816 = vset.pattern.permute.xlu0 2
      %817 = vperm.xlu0 %816, %v357
      %v818 = vpop.permute.xlu0 %817
      %820 = vset.pattern.permute.xlu0 2
      %821 = vperm.xlu0 %820, %v358
      %v822 = vpop.permute.xlu0 %821
      %824 = vset.pattern.permute.xlu0 2
      %825 = vperm.xlu0 %824, %v359
      %v826 = vpop.permute.xlu0 %825
      %828 = vset.pattern.permute.xlu0 2
      %829 = vperm.xlu0 %828, %v360
      %v830 = vpop.permute.xlu0 %829
      %832 = vset.pattern.permute.xlu0 2
      %833 = vperm.xlu0 %832, %v361
      %v834 = vpop.permute.xlu0 %833
      %836 = vset.pattern.permute.xlu0 2
      %837 = vperm.xlu0 %836, %v362
      %v838 = vpop.permute.xlu0 %837
      %840 = vset.pattern.permute.xlu0 2
      %841 = vperm.xlu0 %840, %v363
      %v842 = vpop.permute.xlu0 %841
      %844 = vset.pattern.permute.xlu0 2
      %845 = vperm.xlu0 %844, %v364
      %v846 = vpop.permute.xlu0 %845
      %848 = vset.pattern.permute.xlu0 2
      %849 = vperm.xlu0 %848, %v365
      %v850 = vpop.permute.xlu0 %849
      %852 = vset.pattern.permute.xlu0 2
      %853 = vperm.xlu0 %852, %v366
      %v854 = vpop.permute.xlu0 %853
      %856 = vset.pattern.permute.xlu0 2
      %857 = vperm.xlu0 %856, %v367
      %v858 = vpop.permute.xlu0 %857
      %860 = vset.pattern.permute.xlu0 2
      %861 = vperm.xlu0 %860, %v368
      %v862 = vpop.permute.xlu0 %861
      %864 = vset.pattern.permute.xlu0 2
      %865 = vperm.xlu0 %864, %v369
      %v866 = vpop.permute.xlu0 %865
      %868 = vset.pattern.permute.xlu0 2
      %869 = vperm.xlu0 %868, %v370
      %v870 = vpop.permute.xlu0 %869
      %872 = vset.pattern.permute.xlu0 2
      %873 = vperm.xlu0 %872, %v371
      %v874 = vpop.permute.xlu0 %873
      %876 = vset.pattern.permute.xlu0 2
      %877 = vperm.xlu0 %876, %v372
      %v878 = vpop.permute.xlu0 %877
      %880 = vset.pattern.permute.xlu0 2
      %881 = vperm.xlu0 %880, %v373
      %v882 = vpop.permute.xlu0 %881
      %884 = vset.pattern.permute.xlu0 2
      %885 = vperm.xlu0 %884, %v374
      %v886 = vpop.permute.xlu0 %885
      %888 = vset.pattern.permute.xlu0 2
      %889 = vperm.xlu0 %888, %v375
      %v890 = vpop.permute.xlu0 %889
      %892 = vset.pattern.permute.xlu0 2
      %893 = vperm.xlu0 %892, %v376
      %v894 = vpop.permute.xlu0 %893
      %896 = vset.pattern.permute.xlu0 2
      %897 = vperm.xlu0 %896, %v377
      %v898 = vpop.permute.xlu0 %897
      %v900 = vlaneseq
      %v901 = vshrl.u32 %v900, 7
      %v902 = vsub.s32 2, %v901
      %v903 = vrot.slane %v378, %v902
      %v904 = vmul.f32 %v774, %v903
      %v905 = vmul.f32 %v778, %v903
      %v906 = vmul.f32 %v782, %v903
      %v907 = vmul.f32 %v786, %v903
      %v908 = vmul.f32 %v790, %v903
      %v909 = vmul.f32 %v794, %v903
      %v910 = vmul.f32 %v798, %v903
      %v911 = vmul.f32 %v802, %v903
      %v912 = vmul.f32 %v806, %v903
      %v913 = vmul.f32 %v810, %v903
      %v914 = vmul.f32 %v814, %v903
      %v915 = vmul.f32 %v818, %v903
      %v916 = vmul.f32 %v822, %v903
      %v917 = vmul.f32 %v826, %v903
      %v918 = vmul.f32 %v830, %v903
      %v919 = vmul.f32 %v834, %v903
      %v920 = vmul.f32 %v838, %v903
      %v921 = vmul.f32 %v842, %v903
      %v922 = vmul.f32 %v846, %v903
      %v923 = vmul.f32 %v850, %v903
      %v924 = vmul.f32 %v854, %v903
      %v925 = vmul.f32 %v858, %v903
      %v926 = vmul.f32 %v862, %v903
      %v927 = vmul.f32 %v866, %v903
      %v928 = vmul.f32 %v870, %v903
      %v929 = vmul.f32 %v874, %v903
      %v930 = vmul.f32 %v878, %v903
      %v931 = vmul.f32 %v882, %v903
      %v932 = vmul.f32 %v886, %v903
      %v933 = vmul.f32 %v890, %v903
      %v934 = vmul.f32 %v894, %v903
      %v935 = vmul.f32 %v898, %v903
      %v936 = vadd.f32 %v740, %v904
      %v937 = vadd.f32 %v741, %v905
      %v938 = vadd.f32 %v742, %v906
      %v939 = vadd.f32 %v743, %v907
      %v940 = vadd.f32 %v744, %v908
      %v941 = vadd.f32 %v745, %v909
      %v942 = vadd.f32 %v746, %v910
      %v943 = vadd.f32 %v747, %v911
      %v944 = vadd.f32 %v748, %v912
      %v945 = vadd.f32 %v749, %v913
      %v946 = vadd.f32 %v750, %v914
      %v947 = vadd.f32 %v751, %v915
      %v948 = vadd.f32 %v752, %v916
      %v949 = vadd.f32 %v753, %v917
      %v950 = vadd.f32 %v754, %v918
      %v951 = vadd.f32 %v755, %v919
      %v952 = vadd.f32 %v756, %v920
      %v953 = vadd.f32 %v757, %v921
      %v954 = vadd.f32 %v758, %v922
      %v955 = vadd.f32 %v759, %v923
      %v956 = vadd.f32 %v760, %v924
      %v957 = vadd.f32 %v761, %v925
      %v958 = vadd.f32 %v762, %v926
      %v959 = vadd.f32 %v763, %v927
      %v960 = vadd.f32 %v764, %v928
      %v961 = vadd.f32 %v765, %v929
      %v962 = vadd.f32 %v766, %v930
      %v963 = vadd.f32 %v767, %v931
      %v964 = vadd.f32 %v768, %v932
      %v965 = vadd.f32 %v769, %v933
      %v966 = vadd.f32 %v770, %v934
      %v967 = vadd.f32 %v771, %v935
      %v969 = vlaneseq
      %v970 = vshrl.u32 %v969, 7
      %v971 = vsub.s32 0, %v970
      %v972 = vrot.slane %v379, %v971
      %v974 = vadd.f32 %v936, %v972
      %v975 = vadd.f32 %v937, %v972
      %v976 = vadd.f32 %v938, %v972
      %v977 = vadd.f32 %v939, %v972
      %v978 = vadd.f32 %v940, %v972
      %v979 = vadd.f32 %v941, %v972
      %v980 = vadd.f32 %v942, %v972
      %v981 = vadd.f32 %v943, %v972
      %v982 = vadd.f32 %v944, %v972
      %v983 = vadd.f32 %v945, %v972
      %v984 = vadd.f32 %v946, %v972
      %v985 = vadd.f32 %v947, %v972
      %v986 = vadd.f32 %v948, %v972
      %v987 = vadd.f32 %v949, %v972
      %v988 = vadd.f32 %v950, %v972
      %v989 = vadd.f32 %v951, %v972
      %v990 = vadd.f32 %v952, %v972
      %v991 = vadd.f32 %v953, %v972
      %v992 = vadd.f32 %v954, %v972
      %v993 = vadd.f32 %v955, %v972
      %v994 = vadd.f32 %v956, %v972
      %v995 = vadd.f32 %v957, %v972
      %v996 = vadd.f32 %v958, %v972
      %v997 = vadd.f32 %v959, %v972
      %v998 = vadd.f32 %v960, %v972
      %v999 = vadd.f32 %v961, %v972
      %v1000 = vadd.f32 %v962, %v972
      %v1001 = vadd.f32 %v963, %v972
      %v1002 = vadd.f32 %v964, %v972
      %v1003 = vadd.f32 %v965, %v972
      %v1004 = vadd.f32 %v966, %v972
      %v1005 = vadd.f32 %v967, %v972
      %v1006 = vld [vmem:[%s3] sm:$0x1]
      %v1008 = vlaneseq
      %v1009 = vshrl.u32 %v1008, 7
      %v1010 = vsub.s32 0, %v1009
      %v1011 = vrot.slane %v1006, %v1010
      %v1013 = vmul.f32 %v974, %v1011
      %v1014 = vmul.f32 %v975, %v1011
      %v1015 = vmul.f32 %v976, %v1011
      %v1016 = vmul.f32 %v977, %v1011
      %v1017 = vmul.f32 %v978, %v1011
      %v1018 = vmul.f32 %v979, %v1011
      %v1019 = vmul.f32 %v980, %v1011
      %v1020 = vmul.f32 %v981, %v1011
      %v1021 = vmul.f32 %v982, %v1011
      %v1022 = vmul.f32 %v983, %v1011
      %v1023 = vmul.f32 %v984, %v1011
      %v1024 = vmul.f32 %v985, %v1011
      %v1025 = vmul.f32 %v986, %v1011
      %v1026 = vmul.f32 %v987, %v1011
      %v1027 = vmul.f32 %v988, %v1011
      %v1028 = vmul.f32 %v989, %v1011
      %v1029 = vmul.f32 %v990, %v1011
      %v1030 = vmul.f32 %v991, %v1011
      %v1031 = vmul.f32 %v992, %v1011
      %v1032 = vmul.f32 %v993, %v1011
      %v1033 = vmul.f32 %v994, %v1011
      %v1034 = vmul.f32 %v995, %v1011
      %v1035 = vmul.f32 %v996, %v1011
      %v1036 = vmul.f32 %v997, %v1011
      %v1037 = vmul.f32 %v998, %v1011
      %v1038 = vmul.f32 %v999, %v1011
      %v1039 = vmul.f32 %v1000, %v1011
      %v1040 = vmul.f32 %v1001, %v1011
      %v1041 = vmul.f32 %v1002, %v1011
      %v1042 = vmul.f32 %v1003, %v1011
      %v1043 = vmul.f32 %v1004, %v1011
      %v1044 = vmul.f32 %v1005, %v1011
      %v1045 = vld [vmem:[%s4] sm:$0x1]
      %v1047 = vlaneseq
      %v1048 = vshrl.u32 %v1047, 7
      %v1049 = vsub.s32 0, %v1048
      %v1050 = vrot.slane %v1045, %v1049
      %v1052 = vadd.f32 %v1013, %v1050
      %v1053 = vadd.f32 %v1014, %v1050
      %v1054 = vadd.f32 %v1015, %v1050
      %v1055 = vadd.f32 %v1016, %v1050
      %v1056 = vadd.f32 %v1017, %v1050
      %v1057 = vadd.f32 %v1018, %v1050
      %v1058 = vadd.f32 %v1019, %v1050
      %v1059 = vadd.f32 %v1020, %v1050
      %v1060 = vadd.f32 %v1021, %v1050
      %v1061 = vadd.f32 %v1022, %v1050
      %v1062 = vadd.f32 %v1023, %v1050
      %v1063 = vadd.f32 %v1024, %v1050
      %v1064 = vadd.f32 %v1025, %v1050
      %v1065 = vadd.f32 %v1026, %v1050
      %v1066 = vadd.f32 %v1027, %v1050
      %v1067 = vadd.f32 %v1028, %v1050
      %v1068 = vadd.f32 %v1029, %v1050
      %v1069 = vadd.f32 %v1030, %v1050
      %v1070 = vadd.f32 %v1031, %v1050
      %v1071 = vadd.f32 %v1032, %v1050
      %v1072 = vadd.f32 %v1033, %v1050
      %v1073 = vadd.f32 %v1034, %v1050
      %v1074 = vadd.f32 %v1035, %v1050
      %v1075 = vadd.f32 %v1036, %v1050
      %v1076 = vadd.f32 %v1037, %v1050
      %v1077 = vadd.f32 %v1038, %v1050
      %v1078 = vadd.f32 %v1039, %v1050
      %v1079 = vadd.f32 %v1040, %v1050
      %v1080 = vadd.f32 %v1041, %v1050
      %v1081 = vadd.f32 %v1042, %v1050
      %v1082 = vadd.f32 %v1043, %v1050
      %v1083 = vadd.f32 %v1044, %v1050
      %v1084 = vmax.f32 %v1052, 0.0
      %v1085 = vmax.f32 %v1053, 0.0
      %v1086 = vmax.f32 %v1054, 0.0
      %v1087 = vmax.f32 %v1055, 0.0
      %v1088 = vmax.f32 %v1056, 0.0
      %v1089 = vmax.f32 %v1057, 0.0
      %v1090 = vmax.f32 %v1058, 0.0
      %v1091 = vmax.f32 %v1059, 0.0
      %v1092 = vmax.f32 %v1060, 0.0
      %v1093 = vmax.f32 %v1061, 0.0
      %v1094 = vmax.f32 %v1062, 0.0
      %v1095 = vmax.f32 %v1063, 0.0
      %v1096 = vmax.f32 %v1064, 0.0
      %v1097 = vmax.f32 %v1065, 0.0
      %v1098 = vmax.f32 %v1066, 0.0
      %v1099 = vmax.f32 %v1067, 0.0
      %v1100 = vmax.f32 %v1068, 0.0
      %v1101 = vmax.f32 %v1069, 0.0
      %v1102 = vmax.f32 %v1070, 0.0
      %v1103 = vmax.f32 %v1071, 0.0
      %v1104 = vmax.f32 %v1072, 0.0
      %v1105 = vmax.f32 %v1073, 0.0
      %v1106 = vmax.f32 %v1074, 0.0
      %v1107 = vmax.f32 %v1075, 0.0
      %v1108 = vmax.f32 %v1076, 0.0
      %v1109 = vmax.f32 %v1077, 0.0
      %v1110 = vmax.f32 %v1078, 0.0
      %v1111 = vmax.f32 %v1079, 0.0
      %v1112 = vmax.f32 %v1080, 0.0
      %v1113 = vmax.f32 %v1081, 0.0
      %v1114 = vmax.f32 %v1082, 0.0
      %v1115 = vmax.f32 %v1083, 0.0
      %v1116 = vpack.c.bf16 %v1085, %v1084
      %v1117 = vpack.c.bf16 %v1087, %v1086
      %v1118 = vpack.c.bf16 %v1089, %v1088
      %v1119 = vpack.c.bf16 %v1091, %v1090
      %v1120 = vpack.c.bf16 %v1093, %v1092
      %v1121 = vpack.c.bf16 %v1095, %v1094
      %v1122 = vpack.c.bf16 %v1097, %v1096
      %v1123 = vpack.c.bf16 %v1099, %v1098
      %v1124 = vpack.c.bf16 %v1101, %v1100
      %v1125 = vpack.c.bf16 %v1103, %v1102
      %v1126 = vpack.c.bf16 %v1105, %v1104
      %v1127 = vpack.c.bf16 %v1107, %v1106
      %v1128 = vpack.c.bf16 %v1109, %v1108
      %v1129 = vpack.c.bf16 %v1111, %v1110
      %v1130 = vpack.c.bf16 %v1113, %v1112
      %v1131 = vpack.c.bf16 %v1115, %v1114
      %v1132 = vld [vmem:[%s5] sm:$0xf]
      %v1133 = vld [vmem:[%s5 + $0x4] sm:$0xf]
      %v1134 = vld [vmem:[%s5 + $0x8] sm:$0xf]
      %v1135 = vld [vmem:[%s5 + $0xc] sm:$0xf]
      %v1136 = vld [vmem:[%s5 + $0x10] sm:$0xf]
      %v1137 = vld [vmem:[%s5 + $0x14] sm:$0xf]
      %v1138 = vld [vmem:[%s5 + $0x18] sm:$0xf]
      %v1139 = vld [vmem:[%s5 + $0x1c] sm:$0xf]
      %v1140 = vld [vmem:[%s6] sm:$0x1]
      %v1142 = vlaneseq
      %v1143 = vshrl.u32 %v1142, 7
      %v1144 = vsub.s32 0, %v1143
      %v1145 = vrot.slane %v1140, %v1144
      %v1155 = vunpack.c.l.b16 %v1132
      %v1156 = vunpack.c.l.b16 %v1133
      %v1157 = vunpack.c.l.b16 %v1134
      %v1158 = vunpack.c.l.b16 %v1135
      %v1159 = vunpack.c.l.b16 %v1136
      %v1160 = vunpack.c.l.b16 %v1137
      %v1161 = vunpack.c.l.b16 %v1138
      %v1162 = vunpack.c.l.b16 %v1139
      %v1163 = vpack.c.b16 %v1156, %v1155
      %v1164 = vpack.c.b16 %v1158, %v1157
      %v1165 = vpack.c.b16 %v1160, %v1159
      %v1166 = vpack.c.b16 %v1162, %v1161
      %vm1171 = vcmask 523264
      %v1173 = vsel %vm1171, %v1116, 0
      %v1176 = vsel %vm1171, %v1117, 0
      %v1179 = vsel %vm1171, %v1118, 0
      %v1182 = vsel %vm1171, %v1119, 0
      %v1185 = vsel %vm1171, %v1120, 0
      %v1188 = vsel %vm1171, %v1121, 0
      %v1191 = vsel %vm1171, %v1122, 0
      %v1194 = vsel %vm1171, %v1123, 0
      %v1197 = vsel %vm1171, %v1124, 0
      %v1200 = vsel %vm1171, %v1125, 0
      %v1203 = vsel %vm1171, %v1126, 0
      %v1206 = vsel %vm1171, %v1127, 0
      %v1209 = vsel %vm1171, %v1128, 0
      %v1212 = vsel %vm1171, %v1129, 0
      %v1215 = vsel %vm1171, %v1130, 0
      %v1218 = vsel %vm1171, %v1131, 0
      %1220 = vmatprep.subr.bf16.mxu0 0
      %1221 = vmatpush1.bf16.msra.mxu0 %v1163
      %1222 = vmatprep.subr.bf16.mxu0 0
      %1223 = vmatpush1.bf16.msra.mxu0 %v1164
      %1224 = vmatprep.subr.bf16.mxu0 0
      %1225 = vmatpush1.bf16.msra.mxu0 %v1165
      %1226 = vmatprep.subr.bf16.mxu0 0
      %1227 = vmatpush1.bf16.msra.mxu0 %v1166
      %1228 = vmatprep.subr.bf16.mxu0 0
      %1229 = vmatpush1.bf16.msra.mxu0 0
      %1230 = vmatprep.subr.bf16.mxu0 0
      %1231 = vmatpush1.bf16.msra.mxu0 0
      %1232 = vmatprep.subr.bf16.mxu0 0
      %1233 = vmatpush1.bf16.msra.mxu0 0
      %1234 = vmatprep.subr.bf16.mxu0 0
      %1235 = vmatpush1.bf16.msra.mxu0 0
      %1236 = vmatprep.subr.bf16.mxu0 0
      %1237 = vmatpush1.bf16.msra.mxu0 0
      %1238 = vmatprep.subr.bf16.mxu0 0
      %1239 = vmatpush1.bf16.msra.mxu0 0
      %1240 = vmatprep.subr.bf16.mxu0 0
      %1241 = vmatpush1.bf16.msra.mxu0 0
      %1242 = vmatprep.subr.bf16.mxu0 0
      %1243 = vmatpush1.bf16.msra.mxu0 0
      %1244 = vmatprep.subr.bf16.mxu0 0
      %1245 = vmatpush1.bf16.msra.mxu0 0
      %1246 = vmatprep.subr.bf16.mxu0 0
      %1247 = vmatpush1.bf16.msra.mxu0 0
      %1248 = vmatprep.subr.bf16.mxu0 0
      %1249 = vmatpush1.bf16.msra.mxu0 0
      %1250 = vmatprep.subr.bf16.mxu0 0
      %1251 = vmatpush1.bf16.msra.mxu0 0
      %1252 = vmatprep.mubr.bf16.mxu0 0
      %1253 = vmatmul.mubr.bf16.gmra.mrb[0].mxu0 %v1173
      %v1254 = vpop.f32.mrb[0].mxu0
      %v1255 = vadd.f32 %v1145, %v1254
      %v1256 = vpop.f32.mrb[0].mxu0
      %v1257 = vpop.f32.mrb[0].mxu0
      %v1258 = vadd.f32 %v1145, %v1257
      %v1259 = vpop.f32.mrb[0].mxu0
      %1260 = vmatprep.mubr.bf16.mxu0 0
      %1261 = vmatmul.mubr.bf16.gmra.mrb[0].mxu0 %v1176
      %v1262 = vpop.f32.mrb[0].mxu0
      %v1263 = vadd.f32 %v1145, %v1262
      %v1264 = vpop.f32.mrb[0].mxu0
      %v1265 = vpop.f32.mrb[0].mxu0
      %v1266 = vadd.f32 %v1145, %v1265
      %v1267 = vpop.f32.mrb[0].mxu0
      %1268 = vmatprep.mubr.bf16.mxu0 0
      %1269 = vmatmul.mubr.bf16.gmra.mrb[0].mxu0 %v1179
      %v1270 = vpop.f32.mrb[0].mxu0
      %v1271 = vadd.f32 %v1145, %v1270
      %v1272 = vpop.f32.mrb[0].mxu0
      %v1273 = vpop.f32.mrb[0].mxu0
      %v1274 = vadd.f32 %v1145, %v1273
      %v1275 = vpop.f32.mrb[0].mxu0
      %1276 = vmatprep.mubr.bf16.mxu0 0
      %1277 = vmatmul.mubr.bf16.gmra.mrb[0].mxu0 %v1182
      %v1278 = vpop.f32.mrb[0].mxu0
      %v1279 = vadd.f32 %v1145, %v1278
      %v1280 = vpop.f32.mrb[0].mxu0
      %v1281 = vpop.f32.mrb[0].mxu0
      %v1282 = vadd.f32 %v1145, %v1281
      %v1283 = vpop.f32.mrb[0].mxu0
      %1284 = vmatprep.mubr.bf16.mxu0 0
      %1285 = vmatmul.mubr.bf16.gmra.mrb[0].mxu0 %v1185
      %v1286 = vpop.f32.mrb[0].mxu0
      %v1287 = vadd.f32 %v1145, %v1286
      %v1288 = vpop.f32.mrb[0].mxu0
      %v1289 = vpop.f32.mrb[0].mxu0
      %v1290 = vadd.f32 %v1145, %v1289
      %v1291 = vpop.f32.mrb[0].mxu0
      %1292 = vmatprep.mubr.bf16.mxu0 0
      %1293 = vmatmul.mubr.bf16.gmra.mrb[0].mxu0 %v1188
      %v1294 = vpop.f32.mrb[0].mxu0
      %v1295 = vadd.f32 %v1145, %v1294
      %v1296 = vpop.f32.mrb[0].mxu0
      %v1297 = vpop.f32.mrb[0].mxu0
      %v1298 = vadd.f32 %v1145, %v1297
      %v1299 = vpop.f32.mrb[0].mxu0
      %1300 = vmatprep.mubr.bf16.mxu0 0
      %1301 = vmatmul.mubr.bf16.gmra.mrb[0].mxu0 %v1191
      %v1302 = vpop.f32.mrb[0].mxu0
      %v1303 = vadd.f32 %v1145, %v1302
      %v1304 = vpop.f32.mrb[0].mxu0
      %v1305 = vpop.f32.mrb[0].mxu0
      %v1306 = vadd.f32 %v1145, %v1305
      %v1307 = vpop.f32.mrb[0].mxu0
      %1308 = vmatprep.mubr.bf16.mxu0 0
      %1309 = vmatmul.mubr.bf16.gmra.mrb[0].mxu0 %v1194
      %v1310 = vpop.f32.mrb[0].mxu0
      %v1311 = vadd.f32 %v1145, %v1310
      %v1312 = vpop.f32.mrb[0].mxu0
      %v1313 = vpop.f32.mrb[0].mxu0
      %v1314 = vadd.f32 %v1145, %v1313
      %v1315 = vpop.f32.mrb[0].mxu0
      %1316 = vmatprep.mubr.bf16.mxu0 0
      %1317 = vmatmul.mubr.bf16.gmra.mrb[0].mxu0 %v1197
      %v1318 = vpop.f32.mrb[0].mxu0
      %v1319 = vadd.f32 %v1145, %v1318
      %v1320 = vpop.f32.mrb[0].mxu0
      %v1321 = vpop.f32.mrb[0].mxu0
      %v1322 = vadd.f32 %v1145, %v1321
      %v1323 = vpop.f32.mrb[0].mxu0
      %1324 = vmatprep.mubr.bf16.mxu0 0
      %1325 = vmatmul.mubr.bf16.gmra.mrb[0].mxu0 %v1200
      %v1326 = vpop.f32.mrb[0].mxu0
      %v1327 = vadd.f32 %v1145, %v1326
      %v1328 = vpop.f32.mrb[0].mxu0
      %v1329 = vpop.f32.mrb[0].mxu0
      %v1330 = vadd.f32 %v1145, %v1329
      %v1331 = vpop.f32.mrb[0].mxu0
      %1332 = vmatprep.mubr.bf16.mxu0 0
      %1333 = vmatmul.mubr.bf16.gmra.mrb[0].mxu0 %v1203
      %v1334 = vpop.f32.mrb[0].mxu0
      %v1335 = vadd.f32 %v1145, %v1334
      %v1336 = vpop.f32.mrb[0].mxu0
      %v1337 = vpop.f32.mrb[0].mxu0
      %v1338 = vadd.f32 %v1145, %v1337
      %v1339 = vpop.f32.mrb[0].mxu0
      %1340 = vmatprep.mubr.bf16.mxu0 0
      %1341 = vmatmul.mubr.bf16.gmra.mrb[0].mxu0 %v1206
      %v1342 = vpop.f32.mrb[0].mxu0
      %v1343 = vadd.f32 %v1145, %v1342
      %v1344 = vpop.f32.mrb[0].mxu0
      %v1345 = vpop.f32.mrb[0].mxu0
      %v1346 = vadd.f32 %v1145, %v1345
      %v1347 = vpop.f32.mrb[0].mxu0
      %1348 = vmatprep.mubr.bf16.mxu0 0
      %1349 = vmatmul.mubr.bf16.gmra.mrb[0].mxu0 %v1209
      %v1350 = vpop.f32.mrb[0].mxu0
      %v1351 = vadd.f32 %v1145, %v1350
      %v1352 = vpop.f32.mrb[0].mxu0
      %v1353 = vpop.f32.mrb[0].mxu0
      %v1354 = vadd.f32 %v1145, %v1353
      %v1355 = vpop.f32.mrb[0].mxu0
      %1356 = vmatprep.mubr.bf16.mxu0 0
      %1357 = vmatmul.mubr.bf16.gmra.mrb[0].mxu0 %v1212
      %v1358 = vpop.f32.mrb[0].mxu0
      %v1359 = vadd.f32 %v1145, %v1358
      %v1360 = vpop.f32.mrb[0].mxu0
      %v1361 = vpop.f32.mrb[0].mxu0
      %v1362 = vadd.f32 %v1145, %v1361
      %v1363 = vpop.f32.mrb[0].mxu0
      %1364 = vmatprep.mubr.bf16.mxu0 0
      %1365 = vmatmul.mubr.bf16.gmra.mrb[0].mxu0 %v1215
      %v1366 = vpop.f32.mrb[0].mxu0
      %v1367 = vadd.f32 %v1145, %v1366
      %v1368 = vpop.f32.mrb[0].mxu0
      %v1369 = vpop.f32.mrb[0].mxu0
      %v1370 = vadd.f32 %v1145, %v1369
      %v1371 = vpop.f32.mrb[0].mxu0
      %1372 = vmatprep.mubr.bf16.mxu0 0
      %1373 = vmatmul.mubr.bf16.gmra.mrb[0].mxu0 %v1218
      %v1374 = vpop.f32.mrb[0].mxu0
      %v1375 = vadd.f32 %v1145, %v1374
      %v1376 = vpop.f32.mrb[0].mxu0
      %v1377 = vpop.f32.mrb[0].mxu0
      %v1378 = vadd.f32 %v1145, %v1377
      %v1379 = vpop.f32.mrb[0].mxu0
      %1380 = vdwg.mxu0
      %s1381 = smul.u32 %s24, 4
      %s1382 = sadd.s32 %s1381, %s25
      %s1383 = smul.u32 %s1382, 256
      %s1384 = sadd.s32 %s1383, 256
      %p1385 = scmp.gt.s32.totalorder %s1384, 1600
      // Predicated region
      $region53: #{transform3d_forward.3} parent=47 // pred_check
        %p1386 = pneg %p1385
      $region54: #{transform3d_forward.3} parent=47 // pred_check_branch
        %1388 = sbr.rel (%p1386) target = $region56
      $region55: #{transform3d_forward.3} parent=47 // pred_region
        %v1389 = vlaneseq
        %v1390 = vshrl.u32 %v1389, 7
        %v1391 = vadd.s32 %v1390, 8
        %v1392 = vadd.s32 %v1390, 16
        %v1393 = vadd.s32 %v1390, 24
        %v1394 = vadd.s32 %v1390, 32
        %v1395 = vadd.s32 %v1390, 40
        %v1396 = vadd.s32 %v1390, 48
        %v1397 = vadd.s32 %v1390, 56
        %v1398 = vadd.s32 %v1390, 64
        %v1399 = vadd.s32 %v1390, 72
        %v1400 = vadd.s32 %v1390, 80
        %v1401 = vadd.s32 %v1390, 88
        %v1402 = vadd.s32 %v1390, 96
        %v1403 = vadd.s32 %v1390, 104
        %v1404 = vadd.s32 %v1390, 112
        %v1405 = vadd.s32 %v1390, 120
        %v1406 = vadd.s32 %v1390, 128
        %v1407 = vadd.s32 %v1390, 136
        %v1408 = vadd.s32 %v1390, 144
        %v1409 = vadd.s32 %v1390, 152
        %v1410 = vadd.s32 %v1390, 160
        %v1411 = vadd.s32 %v1390, 168
        %v1412 = vadd.s32 %v1390, 176
        %v1413 = vadd.s32 %v1390, 184
        %v1414 = vadd.s32 %v1390, 192
        %v1415 = vadd.s32 %v1390, 200
        %v1416 = vadd.s32 %v1390, 208
        %v1417 = vadd.s32 %v1390, 216
        %v1418 = vadd.s32 %v1390, 224
        %v1419 = vadd.s32 %v1390, 232
        %v1420 = vadd.s32 %v1390, 240
        %v1421 = vadd.s32 %v1390, 248
        %v1422 = vstv %s1383
        %v1423 = vadd.s32 %v1422, %v1390
        %v1424 = vadd.s32 %v1422, %v1391
        %v1425 = vadd.s32 %v1422, %v1392
        %v1426 = vadd.s32 %v1422, %v1393
        %v1427 = vadd.s32 %v1422, %v1394
        %v1428 = vadd.s32 %v1422, %v1395
        %v1429 = vadd.s32 %v1422, %v1396
        %v1430 = vadd.s32 %v1422, %v1397
        %v1431 = vadd.s32 %v1422, %v1398
        %v1432 = vadd.s32 %v1422, %v1399
        %v1433 = vadd.s32 %v1422, %v1400
        %v1434 = vadd.s32 %v1422, %v1401
        %v1435 = vadd.s32 %v1422, %v1402
        %v1436 = vadd.s32 %v1422, %v1403
        %v1437 = vadd.s32 %v1422, %v1404
        %v1438 = vadd.s32 %v1422, %v1405
        %v1439 = vadd.s32 %v1422, %v1406
        %v1440 = vadd.s32 %v1422, %v1407
        %v1441 = vadd.s32 %v1422, %v1408
        %v1442 = vadd.s32 %v1422, %v1409
        %v1443 = vadd.s32 %v1422, %v1410
        %v1444 = vadd.s32 %v1422, %v1411
        %v1445 = vadd.s32 %v1422, %v1412
        %v1446 = vadd.s32 %v1422, %v1413
        %v1447 = vadd.s32 %v1422, %v1414
        %v1448 = vadd.s32 %v1422, %v1415
        %v1449 = vadd.s32 %v1422, %v1416
        %v1450 = vadd.s32 %v1422, %v1417
        %v1451 = vadd.s32 %v1422, %v1418
        %v1452 = vadd.s32 %v1422, %v1419
        %v1453 = vadd.s32 %v1422, %v1420
        %v1454 = vadd.s32 %v1422, %v1421
        %vm1455 = vcmp.lt.s32.totalorder %v1423, 1600
        %vm1456 = vcmp.lt.s32.totalorder %v1424, 1600
        %vm1457 = vcmp.lt.s32.totalorder %v1425, 1600
        %vm1458 = vcmp.lt.s32.totalorder %v1426, 1600
        %vm1459 = vcmp.lt.s32.totalorder %v1427, 1600
        %vm1460 = vcmp.lt.s32.totalorder %v1428, 1600
        %vm1461 = vcmp.lt.s32.totalorder %v1429, 1600
        %vm1462 = vcmp.lt.s32.totalorder %v1430, 1600
        %vm1463 = vcmp.lt.s32.totalorder %v1431, 1600
        %vm1464 = vcmp.lt.s32.totalorder %v1432, 1600
        %vm1465 = vcmp.lt.s32.totalorder %v1433, 1600
        %vm1466 = vcmp.lt.s32.totalorder %v1434, 1600
        %vm1467 = vcmp.lt.s32.totalorder %v1435, 1600
        %vm1468 = vcmp.lt.s32.totalorder %v1436, 1600
        %vm1469 = vcmp.lt.s32.totalorder %v1437, 1600
        %vm1470 = vcmp.lt.s32.totalorder %v1438, 1600
        %vm1471 = vcmp.lt.s32.totalorder %v1439, 1600
        %vm1472 = vcmp.lt.s32.totalorder %v1440, 1600
        %vm1473 = vcmp.lt.s32.totalorder %v1441, 1600
        %vm1474 = vcmp.lt.s32.totalorder %v1442, 1600
        %vm1475 = vcmp.lt.s32.totalorder %v1443, 1600
        %vm1476 = vcmp.lt.s32.totalorder %v1444, 1600
        %vm1477 = vcmp.lt.s32.totalorder %v1445, 1600
        %vm1478 = vcmp.lt.s32.totalorder %v1446, 1600
        %vm1479 = vcmp.lt.s32.totalorder %v1447, 1600
        %vm1480 = vcmp.lt.s32.totalorder %v1448, 1600
        %vm1481 = vcmp.lt.s32.totalorder %v1449, 1600
        %vm1482 = vcmp.lt.s32.totalorder %v1450, 1600
        %vm1483 = vcmp.lt.s32.totalorder %v1451, 1600
        %vm1484 = vcmp.lt.s32.totalorder %v1452, 1600
        %vm1485 = vcmp.lt.s32.totalorder %v1453, 1600
        %vm1486 = vcmp.lt.s32.totalorder %v1454, 1600
        %v1487 = vsel %vm1455, 1, 0
        %v1488 = vsel %vm1456, 1, 0
        %v1489 = vsel %vm1457, 1, 0
        %v1490 = vsel %vm1458, 1, 0
        %v1491 = vsel %vm1459, 1, 0
        %v1492 = vsel %vm1460, 1, 0
        %v1493 = vsel %vm1461, 1, 0
        %v1494 = vsel %vm1462, 1, 0
        %v1495 = vsel %vm1463, 1, 0
        %v1496 = vsel %vm1464, 1, 0
        %v1497 = vsel %vm1465, 1, 0
        %v1498 = vsel %vm1466, 1, 0
        %v1499 = vsel %vm1467, 1, 0
        %v1500 = vsel %vm1468, 1, 0
        %v1501 = vsel %vm1469, 1, 0
        %v1502 = vsel %vm1470, 1, 0
        %v1503 = vsel %vm1471, 1, 0
        %v1504 = vsel %vm1472, 1, 0
        %v1505 = vsel %vm1473, 1, 0
        %v1506 = vsel %vm1474, 1, 0
        %v1507 = vsel %vm1475, 1, 0
        %v1508 = vsel %vm1476, 1, 0
        %v1509 = vsel %vm1477, 1, 0
        %v1510 = vsel %vm1478, 1, 0
        %v1511 = vsel %vm1479, 1, 0
        %v1512 = vsel %vm1480, 1, 0
        %v1513 = vsel %vm1481, 1, 0
        %v1514 = vsel %vm1482, 1, 0
        %v1515 = vsel %vm1483, 1, 0
        %v1516 = vsel %vm1484, 1, 0
        %v1517 = vsel %vm1485, 1, 0
        %v1518 = vsel %vm1486, 1, 0
        %vm1519 = vcmp.eq.s32.totalorder %v1487, 1
        %vm1520 = vcmp.eq.s32.totalorder %v1488, 1
        %vm1521 = vcmp.eq.s32.totalorder %v1489, 1
        %vm1522 = vcmp.eq.s32.totalorder %v1490, 1
        %vm1523 = vcmp.eq.s32.totalorder %v1491, 1
        %vm1524 = vcmp.eq.s32.totalorder %v1492, 1
        %vm1525 = vcmp.eq.s32.totalorder %v1493, 1
        %vm1526 = vcmp.eq.s32.totalorder %v1494, 1
        %vm1527 = vcmp.eq.s32.totalorder %v1495, 1
        %vm1528 = vcmp.eq.s32.totalorder %v1496, 1
        %vm1529 = vcmp.eq.s32.totalorder %v1497, 1
        %vm1530 = vcmp.eq.s32.totalorder %v1498, 1
        %vm1531 = vcmp.eq.s32.totalorder %v1499, 1
        %vm1532 = vcmp.eq.s32.totalorder %v1500, 1
        %vm1533 = vcmp.eq.s32.totalorder %v1501, 1
        %vm1534 = vcmp.eq.s32.totalorder %v1502, 1
        %vm1535 = vcmp.eq.s32.totalorder %v1503, 1
        %vm1536 = vcmp.eq.s32.totalorder %v1504, 1
        %vm1537 = vcmp.eq.s32.totalorder %v1505, 1
        %vm1538 = vcmp.eq.s32.totalorder %v1506, 1
        %vm1539 = vcmp.eq.s32.totalorder %v1507, 1
        %vm1540 = vcmp.eq.s32.totalorder %v1508, 1
        %vm1541 = vcmp.eq.s32.totalorder %v1509, 1
        %vm1542 = vcmp.eq.s32.totalorder %v1510, 1
        %vm1543 = vcmp.eq.s32.totalorder %v1511, 1
        %vm1544 = vcmp.eq.s32.totalorder %v1512, 1
        %vm1545 = vcmp.eq.s32.totalorder %v1513, 1
        %vm1546 = vcmp.eq.s32.totalorder %v1514, 1
        %vm1547 = vcmp.eq.s32.totalorder %v1515, 1
        %vm1548 = vcmp.eq.s32.totalorder %v1516, 1
        %vm1549 = vcmp.eq.s32.totalorder %v1517, 1
        %vm1550 = vcmp.eq.s32.totalorder %v1518, 1
        %v1551 = vsel %vm1519, %v1255, 0.0
        %v1552 = vsel %vm1520, %v1258, 0.0
        %v1553 = vsel %vm1521, %v1263, 0.0
        %v1554 = vsel %vm1522, %v1266, 0.0
        %v1555 = vsel %vm1523, %v1271, 0.0
        %v1556 = vsel %vm1524, %v1274, 0.0
        %v1557 = vsel %vm1525, %v1279, 0.0
        %v1558 = vsel %vm1526, %v1282, 0.0
        %v1559 = vsel %vm1527, %v1287, 0.0
        %v1560 = vsel %vm1528, %v1290, 0.0
        %v1561 = vsel %vm1529, %v1295, 0.0
        %v1562 = vsel %vm1530, %v1298, 0.0
        %v1563 = vsel %vm1531, %v1303, 0.0
        %v1564 = vsel %vm1532, %v1306, 0.0
        %v1565 = vsel %vm1533, %v1311, 0.0
        %v1566 = vsel %vm1534, %v1314, 0.0
        %v1567 = vsel %vm1535, %v1319, 0.0
        %v1568 = vsel %vm1536, %v1322, 0.0
        %v1569 = vsel %vm1537, %v1327, 0.0
        %v1570 = vsel %vm1538, %v1330, 0.0
        %v1571 = vsel %vm1539, %v1335, 0.0
        %v1572 = vsel %vm1540, %v1338, 0.0
        %v1573 = vsel %vm1541, %v1343, 0.0
        %v1574 = vsel %vm1542, %v1346, 0.0
        %v1575 = vsel %vm1543, %v1351, 0.0
        %v1576 = vsel %vm1544, %v1354, 0.0
        %v1577 = vsel %vm1545, %v1359, 0.0
        %v1578 = vsel %vm1546, %v1362, 0.0
        %v1579 = vsel %vm1547, %v1367, 0.0
        %v1580 = vsel %vm1548, %v1370, 0.0
        %v1581 = vsel %vm1549, %v1375, 0.0
        %v1582 = vsel %vm1550, %v1378, 0.0
        %v1583 = vld [vmem:[%s335] sm:$0x1]
        %v1584 = vadd.f32 %v1551, %v1552
        %v1585 = vadd.f32 %v1584, %v1553
        %v1586 = vadd.f32 %v1585, %v1554
        %v1587 = vadd.f32 %v1586, %v1555
        %v1588 = vadd.f32 %v1587, %v1556
        %v1589 = vadd.f32 %v1588, %v1557
        %v1590 = vadd.f32 %v1589, %v1558
        %v1591 = vadd.f32 %v1590, %v1559
        %v1592 = vadd.f32 %v1591, %v1560
        %v1593 = vadd.f32 %v1592, %v1561
        %v1594 = vadd.f32 %v1593, %v1562
        %v1595 = vadd.f32 %v1594, %v1563
        %v1596 = vadd.f32 %v1595, %v1564
        %v1597 = vadd.f32 %v1596, %v1565
        %v1598 = vadd.f32 %v1597, %v1566
        %v1599 = vadd.f32 %v1598, %v1567
        %v1600 = vadd.f32 %v1599, %v1568
        %v1601 = vadd.f32 %v1600, %v1569
        %v1602 = vadd.f32 %v1601, %v1570
        %v1603 = vadd.f32 %v1602, %v1571
        %v1604 = vadd.f32 %v1603, %v1572
        %v1605 = vadd.f32 %v1604, %v1573
        %v1606 = vadd.f32 %v1605, %v1574
        %v1607 = vadd.f32 %v1606, %v1575
        %v1608 = vadd.f32 %v1607, %v1576
        %v1609 = vadd.f32 %v1608, %v1577
        %v1610 = vadd.f32 %v1609, %v1578
        %v1611 = vadd.f32 %v1610, %v1579
        %v1612 = vadd.f32 %v1611, %v1580
        %v1613 = vadd.f32 %v1612, %v1581
        %v1614 = vadd.f32 %v1613, %v1582
        %v1615 = vrot.slane %v1614, 4
        %v1616 = vadd.f32 %v1614, %v1615
        %v1617 = vrot.slane %v1616, 2
        %v1618 = vadd.f32 %v1616, %v1617
        %v1619 = vrot.slane %v1618, 1
        %v1620 = vadd.f32 %v1618, %v1619
        %v1621 = vadd.f32 %v1583, %v1620
        %1622 = vst [vmem:[%s335] sm:$0x1] %v1621
        %v1623 = vld [vmem:[%s338] sm:$0x1]
        %v1624 = vmul.f32 %v1551, %v1551
        %v1625 = vmul.f32 %v1552, %v1552
        %v1626 = vmul.f32 %v1553, %v1553
        %v1627 = vmul.f32 %v1554, %v1554
        %v1628 = vmul.f32 %v1555, %v1555
        %v1629 = vmul.f32 %v1556, %v1556
        %v1630 = vmul.f32 %v1557, %v1557
        %v1631 = vmul.f32 %v1558, %v1558
        %v1632 = vmul.f32 %v1559, %v1559
        %v1633 = vmul.f32 %v1560, %v1560
        %v1634 = vmul.f32 %v1561, %v1561
        %v1635 = vmul.f32 %v1562, %v1562
        %v1636 = vmul.f32 %v1563, %v1563
        %v1637 = vmul.f32 %v1564, %v1564
        %v1638 = vmul.f32 %v1565, %v1565
        %v1639 = vmul.f32 %v1566, %v1566
        %v1640 = vmul.f32 %v1567, %v1567
        %v1641 = vmul.f32 %v1568, %v1568
        %v1642 = vmul.f32 %v1569, %v1569
        %v1643 = vmul.f32 %v1570, %v1570
        %v1644 = vmul.f32 %v1571, %v1571
        %v1645 = vmul.f32 %v1572, %v1572
        %v1646 = vmul.f32 %v1573, %v1573
        %v1647 = vmul.f32 %v1574, %v1574
        %v1648 = vmul.f32 %v1575, %v1575
        %v1649 = vmul.f32 %v1576, %v1576
        %v1650 = vmul.f32 %v1577, %v1577
        %v1651 = vmul.f32 %v1578, %v1578
        %v1652 = vmul.f32 %v1579, %v1579
        %v1653 = vmul.f32 %v1580, %v1580
        %v1654 = vmul.f32 %v1581, %v1581
        %v1655 = vmul.f32 %v1582, %v1582
        %v1656 = vadd.f32 %v1624, %v1625
        %v1657 = vadd.f32 %v1656, %v1626
        %v1658 = vadd.f32 %v1657, %v1627
        %v1659 = vadd.f32 %v1658, %v1628
        %v1660 = vadd.f32 %v1659, %v1629
        %v1661 = vadd.f32 %v1660, %v1630
        %v1662 = vadd.f32 %v1661, %v1631
        %v1663 = vadd.f32 %v1662, %v1632
        %v1664 = vadd.f32 %v1663, %v1633
        %v1665 = vadd.f32 %v1664, %v1634
        %v1666 = vadd.f32 %v1665, %v1635
        %v1667 = vadd.f32 %v1666, %v1636
        %v1668 = vadd.f32 %v1667, %v1637
        %v1669 = vadd.f32 %v1668, %v1638
        %v1670 = vadd.f32 %v1669, %v1639
        %v1671 = vadd.f32 %v1670, %v1640
        %v1672 = vadd.f32 %v1671, %v1641
        %v1673 = vadd.f32 %v1672, %v1642
        %v1674 = vadd.f32 %v1673, %v1643
        %v1675 = vadd.f32 %v1674, %v1644
        %v1676 = vadd.f32 %v1675, %v1645
        %v1677 = vadd.f32 %v1676, %v1646
        %v1678 = vadd.f32 %v1677, %v1647
        %v1679 = vadd.f32 %v1678, %v1648
        %v1680 = vadd.f32 %v1679, %v1649
        %v1681 = vadd.f32 %v1680, %v1650
        %v1682 = vadd.f32 %v1681, %v1651
        %v1683 = vadd.f32 %v1682, %v1652
        %v1684 = vadd.f32 %v1683, %v1653
        %v1685 = vadd.f32 %v1684, %v1654
        %v1686 = vadd.f32 %v1685, %v1655
        %v1687 = vrot.slane %v1686, 4
        %v1688 = vadd.f32 %v1686, %v1687
        %v1689 = vrot.slane %v1688, 2
        %v1690 = vadd.f32 %v1688, %v1689
        %v1691 = vrot.slane %v1690, 1
        %v1692 = vadd.f32 %v1690, %v1691
        %v1693 = vadd.f32 %v1623, %v1692
        %1694 = vst [vmem:[%s338] sm:$0x1] %v1693
      $region56: #{transform3d_forward.3} parent=47 // pred_fallthru
        _
      %p1695 = scmp.le.s32.totalorder %s1384, 1600
      // Predicated region
      $region57: #{transform3d_forward.3} parent=47 // pred_check
        %p1696 = pneg %p1695
      $region58: #{transform3d_forward.3} parent=47 // pred_check_branch
        %1698 = sbr.rel (%p1696) target = $region60
      $region59: #{transform3d_forward.3} parent=47 // pred_region
        %v1699 = vld [vmem:[%s335] sm:$0x1]
        %v1700 = vadd.f32 %v1255, %v1258
        %v1701 = vadd.f32 %v1700, %v1263
        %v1702 = vadd.f32 %v1701, %v1266
        %v1703 = vadd.f32 %v1702, %v1271
        %v1704 = vadd.f32 %v1703, %v1274
        %v1705 = vadd.f32 %v1704, %v1279
        %v1706 = vadd.f32 %v1705, %v1282
        %v1707 = vadd.f32 %v1706, %v1287
        %v1708 = vadd.f32 %v1707, %v1290
        %v1709 = vadd.f32 %v1708, %v1295
        %v1710 = vadd.f32 %v1709, %v1298
        %v1711 = vadd.f32 %v1710, %v1303
        %v1712 = vadd.f32 %v1711, %v1306
        %v1713 = vadd.f32 %v1712, %v1311
        %v1714 = vadd.f32 %v1713, %v1314
        %v1715 = vadd.f32 %v1714, %v1319
        %v1716 = vadd.f32 %v1715, %v1322
        %v1717 = vadd.f32 %v1716, %v1327
        %v1718 = vadd.f32 %v1717, %v1330
        %v1719 = vadd.f32 %v1718, %v1335
        %v1720 = vadd.f32 %v1719, %v1338
        %v1721 = vadd.f32 %v1720, %v1343
        %v1722 = vadd.f32 %v1721, %v1346
        %v1723 = vadd.f32 %v1722, %v1351
        %v1724 = vadd.f32 %v1723, %v1354
        %v1725 = vadd.f32 %v1724, %v1359
        %v1726 = vadd.f32 %v1725, %v1362
        %v1727 = vadd.f32 %v1726, %v1367
        %v1728 = vadd.f32 %v1727, %v1370
        %v1729 = vadd.f32 %v1728, %v1375
        %v1730 = vadd.f32 %v1729, %v1378
        %v1731 = vrot.slane %v1730, 4
        %v1732 = vadd.f32 %v1730, %v1731
        %v1733 = vrot.slane %v1732, 2
        %v1734 = vadd.f32 %v1732, %v1733
        %v1735 = vrot.slane %v1734, 1
        %v1736 = vadd.f32 %v1734, %v1735
        %v1737 = vadd.f32 %v1699, %v1736
        %1738 = vst [vmem:[%s335] sm:$0x1] %v1737
        %v1739 = vld [vmem:[%s338] sm:$0x1]
        %v1740 = vmul.f32 %v1255, %v1255
        %v1741 = vmul.f32 %v1258, %v1258
        %v1742 = vmul.f32 %v1263, %v1263
        %v1743 = vmul.f32 %v1266, %v1266
        %v1744 = vmul.f32 %v1271, %v1271
        %v1745 = vmul.f32 %v1274, %v1274
        %v1746 = vmul.f32 %v1279, %v1279
        %v1747 = vmul.f32 %v1282, %v1282
        %v1748 = vmul.f32 %v1287, %v1287
        %v1749 = vmul.f32 %v1290, %v1290
        %v1750 = vmul.f32 %v1295, %v1295
        %v1751 = vmul.f32 %v1298, %v1298
        %v1752 = vmul.f32 %v1303, %v1303
        %v1753 = vmul.f32 %v1306, %v1306
        %v1754 = vmul.f32 %v1311, %v1311
        %v1755 = vmul.f32 %v1314, %v1314
        %v1756 = vmul.f32 %v1319, %v1319
        %v1757 = vmul.f32 %v1322, %v1322
        %v1758 = vmul.f32 %v1327, %v1327
        %v1759 = vmul.f32 %v1330, %v1330
        %v1760 = vmul.f32 %v1335, %v1335
        %v1761 = vmul.f32 %v1338, %v1338
        %v1762 = vmul.f32 %v1343, %v1343
        %v1763 = vmul.f32 %v1346, %v1346
        %v1764 = vmul.f32 %v1351, %v1351
        %v1765 = vmul.f32 %v1354, %v1354
        %v1766 = vmul.f32 %v1359, %v1359
        %v1767 = vmul.f32 %v1362, %v1362
        %v1768 = vmul.f32 %v1367, %v1367
        %v1769 = vmul.f32 %v1370, %v1370
        %v1770 = vmul.f32 %v1375, %v1375
        %v1771 = vmul.f32 %v1378, %v1378
        %v1772 = vadd.f32 %v1740, %v1741
        %v1773 = vadd.f32 %v1772, %v1742
        %v1774 = vadd.f32 %v1773, %v1743
        %v1775 = vadd.f32 %v1774, %v1744
        %v1776 = vadd.f32 %v1775, %v1745
        %v1777 = vadd.f32 %v1776, %v1746
        %v1778 = vadd.f32 %v1777, %v1747
        %v1779 = vadd.f32 %v1778, %v1748
        %v1780 = vadd.f32 %v1779, %v1749
        %v1781 = vadd.f32 %v1780, %v1750
        %v1782 = vadd.f32 %v1781, %v1751
        %v1783 = vadd.f32 %v1782, %v1752
        %v1784 = vadd.f32 %v1783, %v1753
        %v1785 = vadd.f32 %v1784, %v1754
        %v1786 = vadd.f32 %v1785, %v1755
        %v1787 = vadd.f32 %v1786, %v1756
        %v1788 = vadd.f32 %v1787, %v1757
        %v1789 = vadd.f32 %v1788, %v1758
        %v1790 = vadd.f32 %v1789, %v1759
        %v1791 = vadd.f32 %v1790, %v1760
        %v1792 = vadd.f32 %v1791, %v1761
        %v1793 = vadd.f32 %v1792, %v1762
        %v1794 = vadd.f32 %v1793, %v1763
        %v1795 = vadd.f32 %v1794, %v1764
        %v1796 = vadd.f32 %v1795, %v1765
        %v1797 = vadd.f32 %v1796, %v1766
        %v1798 = vadd.f32 %v1797, %v1767
        %v1799 = vadd.f32 %v1798, %v1768
        %v1800 = vadd.f32 %v1799, %v1769
        %v1801 = vadd.f32 %v1800, %v1770
        %v1802 = vadd.f32 %v1801, %v1771
        %v1803 = vrot.slane %v1802, 4
        %v1804 = vadd.f32 %v1802, %v1803
        %v1805 = vrot.slane %v1804, 2
        %v1806 = vadd.f32 %v1804, %v1805
        %v1807 = vrot.slane %v1806, 1
        %v1808 = vadd.f32 %v1806, %v1807
        %v1809 = vadd.f32 %v1739, %v1808
        %1810 = vst [vmem:[%s338] sm:$0x1] %v1809
      $region60: #{transform3d_forward.3} parent=47 // pred_fallthru
        _
      %p1811 = scmp.lt.s32.totalorder %s24, 1
      %s1812 = scalar_select %p1811, %s24, 1
      %s1813 = scalar_lea.vmem %s7, %s1812
      %p1814 = scmp.lt.s32.totalorder %s24, 1
      %s1815 = scalar_select %p1814, %s24, 1
      %s1816 = scalar_lea.vmem %s8, %s1815
      // Predicated region
      $region61: #{transform3d_forward.3} parent=47 // pred_check
        %p1817 = pneg %p206
      $region62: #{transform3d_forward.3} parent=47 // pred_check_branch
        %1819 = sbr.rel (%p1817) target = $region64
      $region63: #{transform3d_forward.3} parent=47 // pred_region
        _
      $region64: #{transform3d_forward.3} parent=47 // pred_fallthru
        _
      // Predicated region
      $region65: #{transform3d_forward.3} parent=47 // pred_check
        %p1820 = pneg %p232
      $region66: #{transform3d_forward.3} parent=47 // pred_check_branch
        %1822 = sbr.rel (%p1820) target = $region68
      $region67: #{transform3d_forward.3} parent=47 // pred_region
        _
      $region68: #{transform3d_forward.3} parent=47 // pred_fallthru
        _
    $region48: #{transform3d_forward.3} parent=5 // pred_fallthru
      _
    %p1823 = scmp.le.s32.totalorder 2, %s15
    // Predicated region
    $region69: #{transform3d_forward.3} parent=5 // pred_check
      %p1824 = pneg %p1823
    $region70: #{transform3d_forward.3} parent=5 // pred_check_branch
      %1826 = sbr.rel (%p1824) target = $region72
    $region71: #{transform3d_forward.3} parent=5 // pred_region
      %s1827 = ssub.s32 %s15, 2
      // Predicated region
      $region73: #{transform3d_forward.3} parent=71 // pred_check
        %p1828 = pneg %p212
      $region74: #{transform3d_forward.3} parent=71 // pred_check_branch
        %1830 = sbr.rel (%p1828) target = $region76
      $region75: #{transform3d_forward.3} parent=71 // pred_region
        %p1831 = scmp.lt.s32.totalorder %s26, 1
        %s1832 = scalar_select %p1831, %s26, 1
        %s1833 = scalar_lea.vmem %s7, %s1832
      $region76: #{transform3d_forward.3} parent=71 // pred_fallthru
        _
      // Predicated region
      $region77: #{transform3d_forward.3} parent=71 // pred_check
        %p1834 = pneg %p238
      $region78: #{transform3d_forward.3} parent=71 // pred_check_branch
        %1836 = sbr.rel (%p1834) target = $region80
      $region79: #{transform3d_forward.3} parent=71 // pred_region
        %p1837 = scmp.lt.s32.totalorder %s26, 1
        %s1838 = scalar_select %p1837, %s26, 1
        %s1839 = scalar_lea.vmem %s8, %s1838
      $region80: #{transform3d_forward.3} parent=71 // pred_fallthru
        _
    $region72: #{transform3d_forward.3} parent=5 // pred_fallthru
      _
  $region6: #{transform3d_forward.3} parent=0 // loop_footer
    %s19 = sadd.s32 1, %s15
  $region7: #{transform3d_forward.3} parent=0 // loop_footer_branch
    %14 = sbr.rel target = $region3
  $region8: #{transform3d_forward.3} parent=0 // loop_exit
    _

// kernel: transform3d_forward.4
$region0: #{transform3d_forward.4}
  #allocation0 [shape = 'u32[]', space=smem, size = 0x4, offset = 0x4, fixed_abs, tag = 'smem constant byte address 0x4 - core index']
  #allocation1 [shape = 'u32[144,128]{1,0:T(1,128)}', space=vmem, size = 0x12000, scoped, tag = 'internal scratch']
  %s0 = inlined_call_operand.vmem [shape: f32[4,512,3], index: 0, kind: input, shape index: {}]
  %s1 = inlined_call_operand.vmem [shape: f32[3,64], index: 1, kind: input, shape index: {}]
  %s2 = inlined_call_operand.vmem [shape: f32[1,64], index: 2, kind: input, shape index: {}]
  %s3 = inlined_call_operand.vmem [shape: f32[1,64], index: 3, kind: input, shape index: {}]
  %s4 = inlined_call_operand.vmem [shape: f32[1,64], index: 4, kind: input, shape index: {}]
  %s5 = inlined_call_operand.vmem [shape: bf16[64,128], index: 5, kind: input, shape index: {}]
  %s6 = inlined_call_operand.vmem [shape: f32[1,128], index: 6, kind: input, shape index: {}]
  %s7 = inlined_call_operand.vmem [shape: f32[1,128], index: 7, kind: input, shape index: {}]
  %s8 = inlined_call_operand.vmem [shape: f32[1,128], index: 8, kind: input, shape index: {}]
  %s9 = inlined_call_operand.vmem [shape: bf16[128,1024], index: 9, kind: input, shape index: {}]
  %s10 = inlined_call_operand.vmem [shape: f32[1,1024], index: 10, kind: input, shape index: {}]
  %s11 = inlined_call_operand.vmem [shape: f32[4,1,1024], index: 11, kind: output, shape index: {0}]
  %s12 = inlined_call_operand.vmem [shape: f32[4,1,1024], index: 12, kind: output, shape index: {1}]
  %s13 = inlined_call_operand.vmem [shape: f32[4,1,1024], index: 13, kind: output, shape index: {2}]
  %s14 = inlined_call_operand.vmem [shape: f32[4,1,1024], index: 14, kind: output, shape index: {3}]
  %15 = xla_tuple %s11, %s12, %s13, %s14
  %s16 = sld [smem:[#allocation0]]
  $region113: #{transform3d_forward.4} parent=0
    _
  %s18 = ssub.s32 1, %s16
  %s19 = scalar_select 0, %s18, %s16
  loop: start=0, step=1, limit=18
  $region2: #{transform3d_forward.4} parent=0 // loop_pre_header
    _
  $region3: #{transform3d_forward.4} parent=0 // loop_header
    %s21 = sphi 0, %s25
    %p22 = scmp.ge.s32.totalorder %s21, 18
    %s28 = sphi 0, %s40
    %s29 = sphi 0, %s36
    %s30 = sphi 0, %s28
    %s31 = sphi 0, %s29
    %s32 = sphi 0, %s30
    %s33 = sphi 0, %s31
    %s45 = sphi 0, %s47
    %s48 = sphi 0, %s45
    %s49 = sphi 0, %s48
    %s65 = sphi 0, %s49
    %s69 = sphi 0, %s69
    %s71 = sphi 0, %s69
    %s72 = sphi 0, %s71
    %s86 = sphi 0, %s72
    %s90 = sphi 0, %s90
    %s92 = sphi 0, %s90
    %s93 = sphi 0, %s92
    %s107 = sphi 0, %s93
    %s111 = sphi 0, %s111
    %s113 = sphi 0, %s111
    %s114 = sphi 0, %s113
    %s128 = sphi 0, %s114
    %s132 = sphi 0, %s132
    %s134 = sphi 0, %s132
    %s135 = sphi 0, %s134
    %s149 = sphi 0, %s135
    %s153 = sphi 0, %s153
    %s155 = sphi 0, %s153
    %s156 = sphi 0, %s155
    %s170 = sphi 0, %s156
    %s174 = sphi 0, %s174
    %s176 = sphi 0, %s174
    %s177 = sphi 0, %s176
    %s191 = sphi 0, %s177
    %s195 = sphi 0, %s195
    %s197 = sphi 0, %s195
    %s198 = sphi 0, %s197
    %s212 = sphi 0, %s198
    %s216 = sphi 0, %s216
    %s218 = sphi 0, %s216
    %s219 = sphi 0, %s218
    %s233 = sphi 0, %s219
    %s237 = sphi 0, %s237
    %s239 = sphi 0, %s237
    %s240 = sphi 0, %s239
    %s254 = sphi 0, %s240
    %s258 = sphi 0, %s258
    %s260 = sphi 0, %s258
    %s261 = sphi 0, %s260
    %s275 = sphi 0, %s261
    %s281 = sphi 0, %s283
    %s284 = sphi 0, %s281
    %s285 = sphi 0, %s284
    %s301 = sphi 0, %s285
    %s307 = sphi 0, %s309
    %s310 = sphi 0, %s307
    %s311 = sphi 0, %s310
    %s327 = sphi 0, %s311
    %s333 = sphi 0, %s335
    %s336 = sphi 0, %s333
    %s337 = sphi 0, %s336
    %s353 = sphi 0, %s337
    %s359 = sphi 0, %s361
    %s362 = sphi 0, %s359
    %s363 = sphi 0, %s362
    %s379 = sphi 0, %s363
  $region4: #{transform3d_forward.4} parent=0 // loop_header_branch
    %24 = sbr.rel (%p22) target = $region8
  $region5: #{transform3d_forward.4} parent=0 // loop_body
    %s26 = ssub.s32 %s21, 1
    %s27 = ssub.s32 %s21, 2
    %s34 = sadd.s32 1, %s29
    %p35 = scmp.ge.s32.totalorder %s34, 4
    %s36 = scalar_select %p35, 0, %s34
    %s37 = sadd.s32 1, %s28
    %s38 = scalar_select %p35, %s37, %s28
    %p39 = scmp.ge.s32.totalorder %s38, 4
    %s40 = scalar_select %p39, 0, %s38
    %s41 = ssub.s32 %s28, %s40
    %s42 = ssub.s32 %s29, %s36
    %s43 = sor.u32 %s41, %s42
    %p44 = scmp.eq.s32.totalorder %s43, 0
    %s46 = sadd.s32 %s45, 1
    %s47 = scalar_select %p44, %s45, %s46
    %p50 = pneg %p44
    %p51 = scmp.eq.s32.totalorder %s21, 15
    %p52 = por %p50, %p51
    %p53 = scmp.ne.s32.totalorder %s45, %s48
    %p54 = scmp.eq.s32.totalorder %s21, 0
    %p55 = por %p53, %p54
    %p56 = scmp.ne.s32.totalorder %s45, %s48
    %p57 = scmp.eq.s32.totalorder %s26, 15
    %p58 = por %p56, %p57
    %p59 = scmp.ne.s32.totalorder %s48, %s49
    %p60 = scmp.eq.s32.totalorder %s26, 0
    %p61 = por %p59, %p60
    %p62 = scmp.ne.s32.totalorder %s48, %s49
    %p63 = scmp.eq.s32.totalorder %s27, 15
    %p64 = por %p62, %p63
    %p66 = scmp.ne.s32.totalorder %s49, %s65
    %p67 = scmp.eq.s32.totalorder %s27, 0
    %p68 = por %p66, %p67
    %s70 = sadd.s32 %s69, 1
    %p73 = scmp.eq.s32.totalorder %s21, 15
    %p74 = scmp.ne.s32.totalorder %s69, %s71
    %p75 = scmp.eq.s32.totalorder %s21, 0
    %p76 = por %p74, %p75
    %p77 = scmp.ne.s32.totalorder %s69, %s71
    %p78 = scmp.eq.s32.totalorder %s26, 15
    %p79 = por %p77, %p78
    %p80 = scmp.ne.s32.totalorder %s71, %s72
    %p81 = scmp.eq.s32.totalorder %s26, 0
    %p82 = por %p80, %p81
    %p83 = scmp.ne.s32.totalorder %s71, %s72
    %p84 = scmp.eq.s32.totalorder %s27, 15
    %p85 = por %p83, %p84
    %p87 = scmp.ne.s32.totalorder %s72, %s86
    %p88 = scmp.eq.s32.totalorder %s27, 0
    %p89 = por %p87, %p88
    %s91 = sadd.s32 %s90, 1
    %p94 = scmp.eq.s32.totalorder %s21, 15
    %p95 = scmp.ne.s32.totalorder %s90, %s92
    %p96 = scmp.eq.s32.totalorder %s21, 0
    %p97 = por %p95, %p96
    %p98 = scmp.ne.s32.totalorder %s90, %s92
    %p99 = scmp.eq.s32.totalorder %s26, 15
    %p100 = por %p98, %p99
    %p101 = scmp.ne.s32.totalorder %s92, %s93
    %p102 = scmp.eq.s32.totalorder %s26, 0
    %p103 = por %p101, %p102
    %p104 = scmp.ne.s32.totalorder %s92, %s93
    %p105 = scmp.eq.s32.totalorder %s27, 15
    %p106 = por %p104, %p105
    %p108 = scmp.ne.s32.totalorder %s93, %s107
    %p109 = scmp.eq.s32.totalorder %s27, 0
    %p110 = por %p108, %p109
    %s112 = sadd.s32 %s111, 1
    %p115 = scmp.eq.s32.totalorder %s21, 15
    %p116 = scmp.ne.s32.totalorder %s111, %s113
    %p117 = scmp.eq.s32.totalorder %s21, 0
    %p118 = por %p116, %p117
    %p119 = scmp.ne.s32.totalorder %s111, %s113
    %p120 = scmp.eq.s32.totalorder %s26, 15
    %p121 = por %p119, %p120
    %p122 = scmp.ne.s32.totalorder %s113, %s114
    %p123 = scmp.eq.s32.totalorder %s26, 0
    %p124 = por %p122, %p123
    %p125 = scmp.ne.s32.totalorder %s113, %s114
    %p126 = scmp.eq.s32.totalorder %s27, 15
    %p127 = por %p125, %p126
    %p129 = scmp.ne.s32.totalorder %s114, %s128
    %p130 = scmp.eq.s32.totalorder %s27, 0
    %p131 = por %p129, %p130
    %s133 = sadd.s32 %s132, 1
    %p136 = scmp.eq.s32.totalorder %s21, 15
    %p137 = scmp.ne.s32.totalorder %s132, %s134
    %p138 = scmp.eq.s32.totalorder %s21, 0
    %p139 = por %p137, %p138
    %p140 = scmp.ne.s32.totalorder %s132, %s134
    %p141 = scmp.eq.s32.totalorder %s26, 15
    %p142 = por %p140, %p141
    %p143 = scmp.ne.s32.totalorder %s134, %s135
    %p144 = scmp.eq.s32.totalorder %s26, 0
    %p145 = por %p143, %p144
    %p146 = scmp.ne.s32.totalorder %s134, %s135
    %p147 = scmp.eq.s32.totalorder %s27, 15
    %p148 = por %p146, %p147
    %p150 = scmp.ne.s32.totalorder %s135, %s149
    %p151 = scmp.eq.s32.totalorder %s27, 0
    %p152 = por %p150, %p151
    %s154 = sadd.s32 %s153, 1
    %p157 = scmp.eq.s32.totalorder %s21, 15
    %p158 = scmp.ne.s32.totalorder %s153, %s155
    %p159 = scmp.eq.s32.totalorder %s21, 0
    %p160 = por %p158, %p159
    %p161 = scmp.ne.s32.totalorder %s153, %s155
    %p162 = scmp.eq.s32.totalorder %s26, 15
    %p163 = por %p161, %p162
    %p164 = scmp.ne.s32.totalorder %s155, %s156
    %p165 = scmp.eq.s32.totalorder %s26, 0
    %p166 = por %p164, %p165
    %p167 = scmp.ne.s32.totalorder %s155, %s156
    %p168 = scmp.eq.s32.totalorder %s27, 15
    %p169 = por %p167, %p168
    %p171 = scmp.ne.s32.totalorder %s156, %s170
    %p172 = scmp.eq.s32.totalorder %s27, 0
    %p173 = por %p171, %p172
    %s175 = sadd.s32 %s174, 1
    %p178 = scmp.eq.s32.totalorder %s21, 15
    %p179 = scmp.ne.s32.totalorder %s174, %s176
    %p180 = scmp.eq.s32.totalorder %s21, 0
    %p181 = por %p179, %p180
    %p182 = scmp.ne.s32.totalorder %s174, %s176
    %p183 = scmp.eq.s32.totalorder %s26, 15
    %p184 = por %p182, %p183
    %p185 = scmp.ne.s32.totalorder %s176, %s177
    %p186 = scmp.eq.s32.totalorder %s26, 0
    %p187 = por %p185, %p186
    %p188 = scmp.ne.s32.totalorder %s176, %s177
    %p189 = scmp.eq.s32.totalorder %s27, 15
    %p190 = por %p188, %p189
    %p192 = scmp.ne.s32.totalorder %s177, %s191
    %p193 = scmp.eq.s32.totalorder %s27, 0
    %p194 = por %p192, %p193
    %s196 = sadd.s32 %s195, 1
    %p199 = scmp.eq.s32.totalorder %s21, 15
    %p200 = scmp.ne.s32.totalorder %s195, %s197
    %p201 = scmp.eq.s32.totalorder %s21, 0
    %p202 = por %p200, %p201
    %p203 = scmp.ne.s32.totalorder %s195, %s197
    %p204 = scmp.eq.s32.totalorder %s26, 15
    %p205 = por %p203, %p204
    %p206 = scmp.ne.s32.totalorder %s197, %s198
    %p207 = scmp.eq.s32.totalorder %s26, 0
    %p208 = por %p206, %p207
    %p209 = scmp.ne.s32.totalorder %s197, %s198
    %p210 = scmp.eq.s32.totalorder %s27, 15
    %p211 = por %p209, %p210
    %p213 = scmp.ne.s32.totalorder %s198, %s212
    %p214 = scmp.eq.s32.totalorder %s27, 0
    %p215 = por %p213, %p214
    %s217 = sadd.s32 %s216, 1
    %p220 = scmp.eq.s32.totalorder %s21, 15
    %p221 = scmp.ne.s32.totalorder %s216, %s218
    %p222 = scmp.eq.s32.totalorder %s21, 0
    %p223 = por %p221, %p222
    %p224 = scmp.ne.s32.totalorder %s216, %s218
    %p225 = scmp.eq.s32.totalorder %s26, 15
    %p226 = por %p224, %p225
    %p227 = scmp.ne.s32.totalorder %s218, %s219
    %p228 = scmp.eq.s32.totalorder %s26, 0
    %p229 = por %p227, %p228
    %p230 = scmp.ne.s32.totalorder %s218, %s219
    %p231 = scmp.eq.s32.totalorder %s27, 15
    %p232 = por %p230, %p231
    %p234 = scmp.ne.s32.totalorder %s219, %s233
    %p235 = scmp.eq.s32.totalorder %s27, 0
    %p236 = por %p234, %p235
    %s238 = sadd.s32 %s237, 1
    %p241 = scmp.eq.s32.totalorder %s21, 15
    %p242 = scmp.ne.s32.totalorder %s237, %s239
    %p243 = scmp.eq.s32.totalorder %s21, 0
    %p244 = por %p242, %p243
    %p245 = scmp.ne.s32.totalorder %s237, %s239
    %p246 = scmp.eq.s32.totalorder %s26, 15
    %p247 = por %p245, %p246
    %p248 = scmp.ne.s32.totalorder %s239, %s240
    %p249 = scmp.eq.s32.totalorder %s26, 0
    %p250 = por %p248, %p249
    %p251 = scmp.ne.s32.totalorder %s239, %s240
    %p252 = scmp.eq.s32.totalorder %s27, 15
    %p253 = por %p251, %p252
    %p255 = scmp.ne.s32.totalorder %s240, %s254
    %p256 = scmp.eq.s32.totalorder %s27, 0
    %p257 = por %p255, %p256
    %s259 = sadd.s32 %s258, 1
    %p262 = scmp.eq.s32.totalorder %s21, 15
    %p263 = scmp.ne.s32.totalorder %s258, %s260
    %p264 = scmp.eq.s32.totalorder %s21, 0
    %p265 = por %p263, %p264
    %p266 = scmp.ne.s32.totalorder %s258, %s260
    %p267 = scmp.eq.s32.totalorder %s26, 15
    %p268 = por %p266, %p267
    %p269 = scmp.ne.s32.totalorder %s260, %s261
    %p270 = scmp.eq.s32.totalorder %s26, 0
    %p271 = por %p269, %p270
    %p272 = scmp.ne.s32.totalorder %s260, %s261
    %p273 = scmp.eq.s32.totalorder %s27, 15
    %p274 = por %p272, %p273
    %p276 = scmp.ne.s32.totalorder %s261, %s275
    %p277 = scmp.eq.s32.totalorder %s27, 0
    %p278 = por %p276, %p277
    %s279 = ssub.s32 %s28, %s40
    %p280 = scmp.eq.s32.totalorder %s279, 0
    %s282 = sadd.s32 %s281, 1
    %s283 = scalar_select %p280, %s281, %s282
    %p286 = pneg %p280
    %p287 = scmp.eq.s32.totalorder %s21, 15
    %p288 = por %p286, %p287
    %p289 = scmp.ne.s32.totalorder %s281, %s284
    %p290 = scmp.eq.s32.totalorder %s21, 0
    %p291 = por %p289, %p290
    %p292 = scmp.ne.s32.totalorder %s281, %s284
    %p293 = scmp.eq.s32.totalorder %s26, 15
    %p294 = por %p292, %p293
    %p295 = scmp.ne.s32.totalorder %s284, %s285
    %p296 = scmp.eq.s32.totalorder %s26, 0
    %p297 = por %p295, %p296
    %p298 = scmp.ne.s32.totalorder %s284, %s285
    %p299 = scmp.eq.s32.totalorder %s27, 15
    %p300 = por %p298, %p299
    %p302 = scmp.ne.s32.totalorder %s285, %s301
    %p303 = scmp.eq.s32.totalorder %s27, 0
    %p304 = por %p302, %p303
    %s305 = ssub.s32 %s28, %s40
    %p306 = scmp.eq.s32.totalorder %s305, 0
    %s308 = sadd.s32 %s307, 1
    %s309 = scalar_select %p306, %s307, %s308
    %p312 = pneg %p306
    %p313 = scmp.eq.s32.totalorder %s21, 15
    %p314 = por %p312, %p313
    %p315 = scmp.ne.s32.totalorder %s307, %s310
    %p316 = scmp.eq.s32.totalorder %s21, 0
    %p317 = por %p315, %p316
    %p318 = scmp.ne.s32.totalorder %s307, %s310
    %p319 = scmp.eq.s32.totalorder %s26, 15
    %p320 = por %p318, %p319
    %p321 = scmp.ne.s32.totalorder %s310, %s311
    %p322 = scmp.eq.s32.totalorder %s26, 0
    %p323 = por %p321, %p322
    %p324 = scmp.ne.s32.totalorder %s310, %s311
    %p325 = scmp.eq.s32.totalorder %s27, 15
    %p326 = por %p324, %p325
    %p328 = scmp.ne.s32.totalorder %s311, %s327
    %p329 = scmp.eq.s32.totalorder %s27, 0
    %p330 = por %p328, %p329
    %s331 = ssub.s32 %s28, %s40
    %p332 = scmp.eq.s32.totalorder %s331, 0
    %s334 = sadd.s32 %s333, 1
    %s335 = scalar_select %p332, %s333, %s334
    %p338 = pneg %p332
    %p339 = scmp.eq.s32.totalorder %s21, 15
    %p340 = por %p338, %p339
    %p341 = scmp.ne.s32.totalorder %s333, %s336
    %p342 = scmp.eq.s32.totalorder %s21, 0
    %p343 = por %p341, %p342
    %p344 = scmp.ne.s32.totalorder %s333, %s336
    %p345 = scmp.eq.s32.totalorder %s26, 15
    %p346 = por %p344, %p345
    %p347 = scmp.ne.s32.totalorder %s336, %s337
    %p348 = scmp.eq.s32.totalorder %s26, 0
    %p349 = por %p347, %p348
    %p350 = scmp.ne.s32.totalorder %s336, %s337
    %p351 = scmp.eq.s32.totalorder %s27, 15
    %p352 = por %p350, %p351
    %p354 = scmp.ne.s32.totalorder %s337, %s353
    %p355 = scmp.eq.s32.totalorder %s27, 0
    %p356 = por %p354, %p355
    %s357 = ssub.s32 %s28, %s40
    %p358 = scmp.eq.s32.totalorder %s357, 0
    %s360 = sadd.s32 %s359, 1
    %s361 = scalar_select %p358, %s359, %s360
    %p364 = pneg %p358
    %p365 = scmp.eq.s32.totalorder %s21, 15
    %p366 = por %p364, %p365
    %p367 = scmp.ne.s32.totalorder %s359, %s362
    %p368 = scmp.eq.s32.totalorder %s21, 0
    %p369 = por %p367, %p368
    %p370 = scmp.ne.s32.totalorder %s359, %s362
    %p371 = scmp.eq.s32.totalorder %s26, 15
    %p372 = por %p370, %p371
    %p373 = scmp.ne.s32.totalorder %s362, %s363
    %p374 = scmp.eq.s32.totalorder %s26, 0
    %p375 = por %p373, %p374
    %p376 = scmp.ne.s32.totalorder %s362, %s363
    %p377 = scmp.eq.s32.totalorder %s27, 15
    %p378 = por %p376, %p377
    %p380 = scmp.ne.s32.totalorder %s363, %s379
    %p381 = scmp.eq.s32.totalorder %s27, 0
    %p382 = por %p380, %p381
    %p383 = scmp.le.s32.totalorder 1, %s21
    %p384 = scmp.lt.s32.totalorder %s21, 17
    %p385 = pnand %p383, %p384
    %p386 = pneg %p385
    // Predicated region
    $region9: #{transform3d_forward.4} parent=5 // pred_check
      _
    $region10: #{transform3d_forward.4} parent=5 // pred_check_branch
      %388 = sbr.rel (%p385) target = $region12
    $region11: #{transform3d_forward.4} parent=5 // pred_region
      %s389 = ssub.s32 %s21, 1
      // Predicated region
      $region13: #{transform3d_forward.4} parent=11 // pred_check
        %p390 = pneg %p82
      $region14: #{transform3d_forward.4} parent=11 // pred_check_branch
        %392 = sbr.rel (%p390) target = $region16
      $region15: #{transform3d_forward.4} parent=11 // pred_region
        _
      $region16: #{transform3d_forward.4} parent=11 // pred_fallthru
        _
      // Predicated region
      $region17: #{transform3d_forward.4} parent=11 // pred_check
        %p393 = pneg %p103
      $region18: #{transform3d_forward.4} parent=11 // pred_check_branch
        %395 = sbr.rel (%p393) target = $region20
      $region19: #{transform3d_forward.4} parent=11 // pred_region
        _
      $region20: #{transform3d_forward.4} parent=11 // pred_fallthru
        _
      // Predicated region
      $region21: #{transform3d_forward.4} parent=11 // pred_check
        %p396 = pneg %p124
      $region22: #{transform3d_forward.4} parent=11 // pred_check_branch
        %398 = sbr.rel (%p396) target = $region24
      $region23: #{transform3d_forward.4} parent=11 // pred_region
        _
      $region24: #{transform3d_forward.4} parent=11 // pred_fallthru
        _
      // Predicated region
      $region25: #{transform3d_forward.4} parent=11 // pred_check
        %p399 = pneg %p145
      $region26: #{transform3d_forward.4} parent=11 // pred_check_branch
        %401 = sbr.rel (%p399) target = $region28
      $region27: #{transform3d_forward.4} parent=11 // pred_region
        _
      $region28: #{transform3d_forward.4} parent=11 // pred_fallthru
        _
      // Predicated region
      $region29: #{transform3d_forward.4} parent=11 // pred_check
        %p402 = pneg %p166
      $region30: #{transform3d_forward.4} parent=11 // pred_check_branch
        %404 = sbr.rel (%p402) target = $region32
      $region31: #{transform3d_forward.4} parent=11 // pred_region
        _
      $region32: #{transform3d_forward.4} parent=11 // pred_fallthru
        _
      // Predicated region
      $region33: #{transform3d_forward.4} parent=11 // pred_check
        %p405 = pneg %p187
      $region34: #{transform3d_forward.4} parent=11 // pred_check_branch
        %407 = sbr.rel (%p405) target = $region36
      $region35: #{transform3d_forward.4} parent=11 // pred_region
        _
      $region36: #{transform3d_forward.4} parent=11 // pred_fallthru
        _
      // Predicated region
      $region37: #{transform3d_forward.4} parent=11 // pred_check
        %p408 = pneg %p208
      $region38: #{transform3d_forward.4} parent=11 // pred_check_branch
        %410 = sbr.rel (%p408) target = $region40
      $region39: #{transform3d_forward.4} parent=11 // pred_region
        _
      $region40: #{transform3d_forward.4} parent=11 // pred_fallthru
        _
      // Predicated region
      $region41: #{transform3d_forward.4} parent=11 // pred_check
        %p411 = pneg %p229
      $region42: #{transform3d_forward.4} parent=11 // pred_check_branch
        %413 = sbr.rel (%p411) target = $region44
      $region43: #{transform3d_forward.4} parent=11 // pred_region
        _
      $region44: #{transform3d_forward.4} parent=11 // pred_fallthru
        _
      // Predicated region
      $region45: #{transform3d_forward.4} parent=11 // pred_check
        %p414 = pneg %p250
      $region46: #{transform3d_forward.4} parent=11 // pred_check_branch
        %416 = sbr.rel (%p414) target = $region48
      $region47: #{transform3d_forward.4} parent=11 // pred_region
        _
      $region48: #{transform3d_forward.4} parent=11 // pred_fallthru
        _
      // Predicated region
      $region49: #{transform3d_forward.4} parent=11 // pred_check
        %p417 = pneg %p271
      $region50: #{transform3d_forward.4} parent=11 // pred_check_branch
        %419 = sbr.rel (%p417) target = $region52
      $region51: #{transform3d_forward.4} parent=11 // pred_region
        _
      $region52: #{transform3d_forward.4} parent=11 // pred_fallthru
        _
    $region12: #{transform3d_forward.4} parent=5 // pred_fallthru
      _
    %p420 = scmp.lt.s32.totalorder %s21, 16
    // Predicated region
    $region53: #{transform3d_forward.4} parent=5 // pred_check
      %p421 = pneg %p420
    $region54: #{transform3d_forward.4} parent=5 // pred_check_branch
      %423 = sbr.rel (%p421) target = $region56
    $region55: #{transform3d_forward.4} parent=5 // pred_region
      // Predicated region
      $region57: #{transform3d_forward.4} parent=55 // pred_check
        %p424 = pneg %p55
      $region58: #{transform3d_forward.4} parent=55 // pred_check_branch
        %426 = sbr.rel (%p424) target = $region60
      $region59: #{transform3d_forward.4} parent=55 // pred_region
        %s427 = smul.u32 16, %s29
        %p428 = scmp.lt.s32.totalorder %s28, 3
        %s429 = scalar_select %p428, %s28, 3
        %p430 = scmp.lt.s32.totalorder %s427, 63
        %s431 = scalar_select %p430, %s427, 63
        %s432 = smul.addr %s429, 64
        %s433 = sadd.s32 %s431, %s432
        %s434 = smul.addr %s433, 8
        %s435 = scalar_lea.vmem %s0, %s434
        %s436 = smul.u32 16, %s29
      $region60: #{transform3d_forward.4} parent=55 // pred_fallthru
        _
    $region56: #{transform3d_forward.4} parent=5 // pred_fallthru
      _
    %p437 = scmp.le.s32.totalorder 1, %s21
    %p438 = scmp.lt.s32.totalorder %s21, 17
    %p439 = pnand %p437, %p438
    %p440 = pneg %p439
    // Predicated region
    $region61: #{transform3d_forward.4} parent=5 // pred_check
      _
    $region62: #{transform3d_forward.4} parent=5 // pred_check_branch
      %442 = sbr.rel (%p439) target = $region64
    $region63: #{transform3d_forward.4} parent=5 // pred_region
      %s443 = ssub.s32 %s21, 1
      %s444 = smul.u32 16, %s31
      %p445 = scmp.lt.s32.totalorder %s30, 3
      %s446 = scalar_select %p445, %s30, 3
      %p447 = scmp.lt.s32.totalorder %s444, 63
      %s448 = scalar_select %p447, %s444, 63
      %s449 = smul.addr %s446, 64
      %s450 = sadd.s32 %s448, %s449
      %s451 = smul.addr %s450, 8
      %s452 = scalar_lea.vmem %s0, %s451
      %p453 = pneg %p61
      %p454 = pneg %p58
      %p455 = pneg %p82
      %p456 = pneg %p79
      %p457 = pneg %p103
      %p458 = pneg %p100
      %p459 = pneg %p124
      %p460 = pneg %p121
      %p461 = pneg %p145
      %p462 = pneg %p142
      %p463 = pneg %p166
      %p464 = pneg %p163
      %p465 = pneg %p187
      %p466 = pneg %p184
      %p467 = pneg %p208
      %p468 = pneg %p205
      %p469 = pneg %p229
      %p470 = pneg %p226
      %p471 = pneg %p250
      %p472 = pneg %p247
      %p473 = pneg %p271
      %p474 = pneg %p268
      %p475 = pneg %p297
      %p476 = pneg %p294
      %p477 = scmp.lt.s32.totalorder %s30, 3
      %s478 = scalar_select %p477, %s30, 3
      %s479 = smul.addr %s478, 8
      %s480 = scalar_lea.vmem %s11, %s479
      %p481 = pneg %p323
      %p482 = pneg %p320
      %p483 = scmp.lt.s32.totalorder %s30, 3
      %s484 = scalar_select %p483, %s30, 3
      %s485 = smul.addr %s484, 8
      %s486 = scalar_lea.vmem %s12, %s485
      %p487 = pneg %p349
      %p488 = pneg %p346
      %p489 = scmp.lt.s32.totalorder %s30, 3
      %s490 = scalar_select %p489, %s30, 3
      %s491 = smul.addr %s490, 8
      %s492 = scalar_lea.vmem %s13, %s491
      %p493 = pneg %p375
      %p494 = pneg %p372
      %p495 = scmp.lt.s32.totalorder %s30, 3
      %s496 = scalar_select %p495, %s30, 3
      %s497 = smul.addr %s496, 8
      %s498 = scalar_lea.vmem %s14, %s497
      %s499 = smul.u32 16, %s31
      %p500 = scmp.lt.s32.totalorder %s30, 3
      %s501 = scalar_select %p500, %s30, 3
      %p502 = scmp.lt.s32.totalorder %s499, 63
      %s503 = scalar_select %p502, %s499, 63
      %s504 = smul.addr %s501, 64
      %s505 = sadd.s32 %s503, %s504
      %s506 = smul.addr %s505, 8
      %s507 = scalar_lea.vmem %s0, %s506
      %s508 = smul.u32 16, %s31
      %p509 = scmp.lt.s32.totalorder %s30, 3
      %s510 = scalar_select %p509, %s30, 3
      %s511 = smul.addr %s510, 8
      %s512 = scalar_lea.vmem %s11, %s511
      %p513 = scmp.lt.s32.totalorder %s30, 3
      %s514 = scalar_select %p513, %s30, 3
      %s515 = smul.addr %s514, 8
      %s516 = scalar_lea.vmem %s12, %s515
      %p517 = scmp.lt.s32.totalorder %s30, 3
      %s518 = scalar_select %p517, %s30, 3
      %s519 = smul.addr %s518, 8
      %s520 = scalar_lea.vmem %s13, %s519
      %p521 = scmp.lt.s32.totalorder %s30, 3
      %s522 = scalar_select %p521, %s30, 3
      %s523 = smul.addr %s522, 8
      %s524 = scalar_lea.vmem %s14, %s523
      %p526 = scmp.eq.s32.totalorder %s31, 0
      // Predicated region
      $region65: #{transform3d_forward.4} parent=63 // pred_check
        %p527 = pneg %p526
      $region66: #{transform3d_forward.4} parent=63 // pred_check_branch
        %529 = sbr.rel (%p527) target = $region68
      $region67: #{transform3d_forward.4} parent=63 // pred_region
        %530 = vst [vmem:[%s512] sm:$0xff] 0.0
        %531 = vst [vmem:[%s516] sm:$0xff] 0.0
        %532 = vst [vmem:[%s520] sm:$0xff] -inf
        %533 = vst [vmem:[%s524] sm:$0xff] inf
      $region68: #{transform3d_forward.4} parent=63 // pred_fallthru
        _
      %v534 = vld [vmem:[%s507] sm:$0xff]
      %v535 = vld [vmem:[%s507 + $0x8] sm:$0xff]
      %v536 = vld [vmem:[%s507 + $0x10] sm:$0xff]
      %v537 = vld [vmem:[%s507 + $0x18] sm:$0xff]
      %v538 = vld [vmem:[%s507 + $0x20] sm:$0xff]
      %v539 = vld [vmem:[%s507 + $0x28] sm:$0xff]
      %v540 = vld [vmem:[%s507 + $0x30] sm:$0xff]
      %v541 = vld [vmem:[%s507 + $0x38] sm:$0xff]
      %v542 = vld [vmem:[%s507 + $0x40] sm:$0xff]
      %v543 = vld [vmem:[%s507 + $0x48] sm:$0xff]
      %v544 = vld [vmem:[%s507 + $0x50] sm:$0xff]
      %v545 = vld [vmem:[%s507 + $0x58] sm:$0xff]
      %v546 = vld [vmem:[%s507 + $0x60] sm:$0xff]
      %v547 = vld [vmem:[%s507 + $0x68] sm:$0xff]
      %v548 = vld [vmem:[%s507 + $0x70] sm:$0xff]
      %v549 = vld [vmem:[%s507 + $0x78] sm:$0xff]
      %v550 = vld [vmem:[%s1] sm:$0x7]
      %v551 = vld [vmem:[%s2] sm:$0x1]
      %553 = vset.pattern.permute.xlu0 0
      %554 = vperm.xlu0 %553, %v534
      %v555 = vpop.permute.xlu0 %554
      %558 = vset.pattern.permute.xlu0 0
      %559 = vperm.xlu0 %558, %v535
      %v560 = vpop.permute.xlu0 %559
      %563 = vset.pattern.permute.xlu0 0
      %564 = vperm.xlu0 %563, %v536
      %v565 = vpop.permute.xlu0 %564
      %568 = vset.pattern.permute.xlu0 0
      %569 = vperm.xlu0 %568, %v537
      %v570 = vpop.permute.xlu0 %569
      %573 = vset.pattern.permute.xlu0 0
      %574 = vperm.xlu0 %573, %v538
      %v575 = vpop.permute.xlu0 %574
      %578 = vset.pattern.permute.xlu0 0
      %579 = vperm.xlu0 %578, %v539
      %v580 = vpop.permute.xlu0 %579
      %583 = vset.pattern.permute.xlu0 0
      %584 = vperm.xlu0 %583, %v540
      %v585 = vpop.permute.xlu0 %584
      %588 = vset.pattern.permute.xlu0 0
      %589 = vperm.xlu0 %588, %v541
      %v590 = vpop.permute.xlu0 %589
      %593 = vset.pattern.permute.xlu0 0
      %594 = vperm.xlu0 %593, %v542
      %v595 = vpop.permute.xlu0 %594
      %598 = vset.pattern.permute.xlu0 0
      %599 = vperm.xlu0 %598, %v543
      %v600 = vpop.permute.xlu0 %599
      %603 = vset.pattern.permute.xlu0 0
      %604 = vperm.xlu0 %603, %v544
      %v605 = vpop.permute.xlu0 %604
      %608 = vset.pattern.permute.xlu0 0
      %609 = vperm.xlu0 %608, %v545
      %v610 = vpop.permute.xlu0 %609
      %613 = vset.pattern.permute.xlu0 0
      %614 = vperm.xlu0 %613, %v546
      %v615 = vpop.permute.xlu0 %614
      %618 = vset.pattern.permute.xlu0 0
      %619 = vperm.xlu0 %618, %v547
      %v620 = vpop.permute.xlu0 %619
      %623 = vset.pattern.permute.xlu0 0
      %624 = vperm.xlu0 %623, %v548
      %v625 = vpop.permute.xlu0 %624
      %628 = vset.pattern.permute.xlu0 0
      %629 = vperm.xlu0 %628, %v549
      %v630 = vpop.permute.xlu0 %629
      %v632 = vlaneseq
      %v633 = vshrl.u32 %v632, 7
      %v634 = vsub.s32 0, %v633
      %v635 = vrot.slane %v550, %v634
      %v636 = vmul.f32 %v555, %v635
      %v637 = vmul.f32 %v560, %v635
      %v638 = vmul.f32 %v565, %v635
      %v639 = vmul.f32 %v570, %v635
      %v640 = vmul.f32 %v575, %v635
      %v641 = vmul.f32 %v580, %v635
      %v642 = vmul.f32 %v585, %v635
      %v643 = vmul.f32 %v590, %v635
      %v644 = vmul.f32 %v595, %v635
      %v645 = vmul.f32 %v600, %v635
      %v646 = vmul.f32 %v605, %v635
      %v647 = vmul.f32 %v610, %v635
      %v648 = vmul.f32 %v615, %v635
      %v649 = vmul.f32 %v620, %v635
      %v650 = vmul.f32 %v625, %v635
      %v651 = vmul.f32 %v630, %v635
      %652 = vset.pattern.permute.xlu0 1
      %653 = vperm.xlu0 %652, %v534
      %v654 = vpop.permute.xlu0 %653
      %656 = vset.pattern.permute.xlu0 1
      %657 = vperm.xlu0 %656, %v535
      %v658 = vpop.permute.xlu0 %657
      %660 = vset.pattern.permute.xlu0 1
      %661 = vperm.xlu0 %660, %v536
      %v662 = vpop.permute.xlu0 %661
      %664 = vset.pattern.permute.xlu0 1
      %665 = vperm.xlu0 %664, %v537
      %v666 = vpop.permute.xlu0 %665
      %668 = vset.pattern.permute.xlu0 1
      %669 = vperm.xlu0 %668, %v538
      %v670 = vpop.permute.xlu0 %669
      %672 = vset.pattern.permute.xlu0 1
      %673 = vperm.xlu0 %672, %v539
      %v674 = vpop.permute.xlu0 %673
      %676 = vset.pattern.permute.xlu0 1
      %677 = vperm.xlu0 %676, %v540
      %v678 = vpop.permute.xlu0 %677
      %680 = vset.pattern.permute.xlu0 1
      %681 = vperm.xlu0 %680, %v541
      %v682 = vpop.permute.xlu0 %681
      %684 = vset.pattern.permute.xlu0 1
      %685 = vperm.xlu0 %684, %v542
      %v686 = vpop.permute.xlu0 %685
      %688 = vset.pattern.permute.xlu0 1
      %689 = vperm.xlu0 %688, %v543
      %v690 = vpop.permute.xlu0 %689
      %692 = vset.pattern.permute.xlu0 1
      %693 = vperm.xlu0 %692, %v544
      %v694 = vpop.permute.xlu0 %693
      %696 = vset.pattern.permute.xlu0 1
      %697 = vperm.xlu0 %696, %v545
      %v698 = vpop.permute.xlu0 %697
      %700 = vset.pattern.permute.xlu0 1
      %701 = vperm.xlu0 %700, %v546
      %v702 = vpop.permute.xlu0 %701
      %704 = vset.pattern.permute.xlu0 1
      %705 = vperm.xlu0 %704, %v547
      %v706 = vpop.permute.xlu0 %705
      %708 = vset.pattern.permute.xlu0 1
      %709 = vperm.xlu0 %708, %v548
      %v710 = vpop.permute.xlu0 %709
      %712 = vset.pattern.permute.xlu0 1
      %713 = vperm.xlu0 %712, %v549
      %v714 = vpop.permute.xlu0 %713
      %v716 = vlaneseq
      %v717 = vshrl.u32 %v716, 7
      %v718 = vsub.s32 1, %v717
      %v719 = vrot.slane %v550, %v718
      %v720 = vmul.f32 %v654, %v719
      %v721 = vmul.f32 %v658, %v719
      %v722 = vmul.f32 %v662, %v719
      %v723 = vmul.f32 %v666, %v719
      %v724 = vmul.f32 %v670, %v719
      %v725 = vmul.f32 %v674, %v719
      %v726 = vmul.f32 %v678, %v719
      %v727 = vmul.f32 %v682, %v719
      %v728 = vmul.f32 %v686, %v719
      %v729 = vmul.f32 %v690, %v719
      %v730 = vmul.f32 %v694, %v719
      %v731 = vmul.f32 %v698, %v719
      %v732 = vmul.f32 %v702, %v719
      %v733 = vmul.f32 %v706, %v719
      %v734 = vmul.f32 %v710, %v719
      %v735 = vmul.f32 %v714, %v719
      %v736 = vadd.f32 %v636, %v720
      %v737 = vadd.f32 %v637, %v721
      %v738 = vadd.f32 %v638, %v722
      %v739 = vadd.f32 %v639, %v723
      %v740 = vadd.f32 %v640, %v724
      %v741 = vadd.f32 %v641, %v725
      %v742 = vadd.f32 %v642, %v726
      %v743 = vadd.f32 %v643, %v727
      %v744 = vadd.f32 %v644, %v728
      %v745 = vadd.f32 %v645, %v729
      %v746 = vadd.f32 %v646, %v730
      %v747 = vadd.f32 %v647, %v731
      %v748 = vadd.f32 %v648, %v732
      %v749 = vadd.f32 %v649, %v733
      %v750 = vadd.f32 %v650, %v734
      %v751 = vadd.f32 %v651, %v735
      %752 = vset.pattern.permute.xlu0 2
      %753 = vperm.xlu0 %752, %v534
      %v754 = vpop.permute.xlu0 %753
      %756 = vset.pattern.permute.xlu0 2
      %757 = vperm.xlu0 %756, %v535
      %v758 = vpop.permute.xlu0 %757
      %760 = vset.pattern.permute.xlu0 2
      %761 = vperm.xlu0 %760, %v536
      %v762 = vpop.permute.xlu0 %761
      %764 = vset.pattern.permute.xlu0 2
      %765 = vperm.xlu0 %764, %v537
      %v766 = vpop.permute.xlu0 %765
      %768 = vset.pattern.permute.xlu0 2
      %769 = vperm.xlu0 %768, %v538
      %v770 = vpop.permute.xlu0 %769
      %772 = vset.pattern.permute.xlu0 2
      %773 = vperm.xlu0 %772, %v539
      %v774 = vpop.permute.xlu0 %773
      %776 = vset.pattern.permute.xlu0 2
      %777 = vperm.xlu0 %776, %v540
      %v778 = vpop.permute.xlu0 %777
      %780 = vset.pattern.permute.xlu0 2
      %781 = vperm.xlu0 %780, %v541
      %v782 = vpop.permute.xlu0 %781
      %784 = vset.pattern.permute.xlu0 2
      %785 = vperm.xlu0 %784, %v542
      %v786 = vpop.permute.xlu0 %785
      %788 = vset.pattern.permute.xlu0 2
      %789 = vperm.xlu0 %788, %v543
      %v790 = vpop.permute.xlu0 %789
      %792 = vset.pattern.permute.xlu0 2
      %793 = vperm.xlu0 %792, %v544
      %v794 = vpop.permute.xlu0 %793
      %796 = vset.pattern.permute.xlu0 2
      %797 = vperm.xlu0 %796, %v545
      %v798 = vpop.permute.xlu0 %797
      %800 = vset.pattern.permute.xlu0 2
      %801 = vperm.xlu0 %800, %v546
      %v802 = vpop.permute.xlu0 %801
      %804 = vset.pattern.permute.xlu0 2
      %805 = vperm.xlu0 %804, %v547
      %v806 = vpop.permute.xlu0 %805
      %808 = vset.pattern.permute.xlu0 2
      %809 = vperm.xlu0 %808, %v548
      %v810 = vpop.permute.xlu0 %809
      %812 = vset.pattern.permute.xlu0 2
      %813 = vperm.xlu0 %812, %v549
      %v814 = vpop.permute.xlu0 %813
      %v816 = vlaneseq
      %v817 = vshrl.u32 %v816, 7
      %v818 = vsub.s32 2, %v817
      %v819 = vrot.slane %v550, %v818
      %v820 = vmul.f32 %v754, %v819
      %v821 = vmul.f32 %v758, %v819
      %v822 = vmul.f32 %v762, %v819
      %v823 = vmul.f32 %v766, %v819
      %v824 = vmul.f32 %v770, %v819
      %v825 = vmul.f32 %v774, %v819
      %v826 = vmul.f32 %v778, %v819
      %v827 = vmul.f32 %v782, %v819
      %v828 = vmul.f32 %v786, %v819
      %v829 = vmul.f32 %v790, %v819
      %v830 = vmul.f32 %v794, %v819
      %v831 = vmul.f32 %v798, %v819
      %v832 = vmul.f32 %v802, %v819
      %v833 = vmul.f32 %v806, %v819
      %v834 = vmul.f32 %v810, %v819
      %v835 = vmul.f32 %v814, %v819
      %v836 = vadd.f32 %v736, %v820
      %v837 = vadd.f32 %v737, %v821
      %v838 = vadd.f32 %v738, %v822
      %v839 = vadd.f32 %v739, %v823
      %v840 = vadd.f32 %v740, %v824
      %v841 = vadd.f32 %v741, %v825
      %v842 = vadd.f32 %v742, %v826
      %v843 = vadd.f32 %v743, %v827
      %v844 = vadd.f32 %v744, %v828
      %v845 = vadd.f32 %v745, %v829
      %v846 = vadd.f32 %v746, %v830
      %v847 = vadd.f32 %v747, %v831
      %v848 = vadd.f32 %v748, %v832
      %v849 = vadd.f32 %v749, %v833
      %v850 = vadd.f32 %v750, %v834
      %v851 = vadd.f32 %v751, %v835
      %v853 = vlaneseq
      %v854 = vshrl.u32 %v853, 7
      %v855 = vsub.s32 0, %v854
      %v856 = vrot.slane %v551, %v855
      %v858 = vadd.f32 %v836, %v856
      %v859 = vadd.f32 %v837, %v856
      %v860 = vadd.f32 %v838, %v856
      %v861 = vadd.f32 %v839, %v856
      %v862 = vadd.f32 %v840, %v856
      %v863 = vadd.f32 %v841, %v856
      %v864 = vadd.f32 %v842, %v856
      %v865 = vadd.f32 %v843, %v856
      %v866 = vadd.f32 %v844, %v856
      %v867 = vadd.f32 %v845, %v856
      %v868 = vadd.f32 %v846, %v856
      %v869 = vadd.f32 %v847, %v856
      %v870 = vadd.f32 %v848, %v856
      %v871 = vadd.f32 %v849, %v856
      %v872 = vadd.f32 %v850, %v856
      %v873 = vadd.f32 %v851, %v856
      %v874 = vld [vmem:[%s3] sm:$0x1]
      %v876 = vlaneseq
      %v877 = vshrl.u32 %v876, 7
      %v878 = vsub.s32 0, %v877
      %v879 = vrot.slane %v874, %v878
      %v881 = vmul.f32 %v858, %v879
      %v882 = vmul.f32 %v859, %v879
      %v883 = vmul.f32 %v860, %v879
      %v884 = vmul.f32 %v861, %v879
      %v885 = vmul.f32 %v862, %v879
      %v886 = vmul.f32 %v863, %v879
      %v887 = vmul.f32 %v864, %v879
      %v888 = vmul.f32 %v865, %v879
      %v889 = vmul.f32 %v866, %v879
      %v890 = vmul.f32 %v867, %v879
      %v891 = vmul.f32 %v868, %v879
      %v892 = vmul.f32 %v869, %v879
      %v893 = vmul.f32 %v870, %v879
      %v894 = vmul.f32 %v871, %v879
      %v895 = vmul.f32 %v872, %v879
      %v896 = vmul.f32 %v873, %v879
      %v897 = vld [vmem:[%s4] sm:$0x1]
      %v899 = vlaneseq
      %v900 = vshrl.u32 %v899, 7
      %v901 = vsub.s32 0, %v900
      %v902 = vrot.slane %v897, %v901
      %v904 = vadd.f32 %v881, %v902
      %v905 = vadd.f32 %v882, %v902
      %v906 = vadd.f32 %v883, %v902
      %v907 = vadd.f32 %v884, %v902
      %v908 = vadd.f32 %v885, %v902
      %v909 = vadd.f32 %v886, %v902
      %v910 = vadd.f32 %v887, %v902
      %v911 = vadd.f32 %v888, %v902
      %v912 = vadd.f32 %v889, %v902
      %v913 = vadd.f32 %v890, %v902
      %v914 = vadd.f32 %v891, %v902
      %v915 = vadd.f32 %v892, %v902
      %v916 = vadd.f32 %v893, %v902
      %v917 = vadd.f32 %v894, %v902
      %v918 = vadd.f32 %v895, %v902
      %v919 = vadd.f32 %v896, %v902
      %v920 = vmax.f32 %v904, 0.0
      %v921 = vmax.f32 %v905, 0.0
      %v922 = vmax.f32 %v906, 0.0
      %v923 = vmax.f32 %v907, 0.0
      %v924 = vmax.f32 %v908, 0.0
      %v925 = vmax.f32 %v909, 0.0
      %v926 = vmax.f32 %v910, 0.0
      %v927 = vmax.f32 %v911, 0.0
      %v928 = vmax.f32 %v912, 0.0
      %v929 = vmax.f32 %v913, 0.0
      %v930 = vmax.f32 %v914, 0.0
      %v931 = vmax.f32 %v915, 0.0
      %v932 = vmax.f32 %v916, 0.0
      %v933 = vmax.f32 %v917, 0.0
      %v934 = vmax.f32 %v918, 0.0
      %v935 = vmax.f32 %v919, 0.0
      %v936 = vpack.c.bf16 %v921, %v920
      %v937 = vpack.c.bf16 %v923, %v922
      %v938 = vpack.c.bf16 %v925, %v924
      %v939 = vpack.c.bf16 %v927, %v926
      %v940 = vpack.c.bf16 %v929, %v928
      %v941 = vpack.c.bf16 %v931, %v930
      %v942 = vpack.c.bf16 %v933, %v932
      %v943 = vpack.c.bf16 %v935, %v934
      %v944 = vld [vmem:[%s5] sm:$0xf]
      %v945 = vld [vmem:[%s5 + $0x4] sm:$0xf]
      %v946 = vld [vmem:[%s5 + $0x8] sm:$0xf]
      %v947 = vld [vmem:[%s5 + $0xc] sm:$0xf]
      %v948 = vld [vmem:[%s5 + $0x10] sm:$0xf]
      %v949 = vld [vmem:[%s5 + $0x14] sm:$0xf]
      %v950 = vld [vmem:[%s5 + $0x18] sm:$0xf]
      %v951 = vld [vmem:[%s5 + $0x1c] sm:$0xf]
      %v952 = vld [vmem:[%s6] sm:$0x1]
      %v954 = vlaneseq
      %v955 = vshrl.u32 %v954, 7
      %v956 = vsub.s32 0, %v955
      %v957 = vrot.slane %v952, %v956
      %v967 = vunpack.c.l.b16 %v944
      %v968 = vunpack.c.l.b16 %v945
      %v969 = vunpack.c.l.b16 %v946
      %v970 = vunpack.c.l.b16 %v947
      %v971 = vunpack.c.l.b16 %v948
      %v972 = vunpack.c.l.b16 %v949
      %v973 = vunpack.c.l.b16 %v950
      %v974 = vunpack.c.l.b16 %v951
      %v975 = vpack.c.b16 %v968, %v967
      %v976 = vpack.c.b16 %v970, %v969
      %v977 = vpack.c.b16 %v972, %v971
      %v978 = vpack.c.b16 %v974, %v973
      %vm983 = vcmask 523264
      %v985 = vsel %vm983, %v936, 0
      %v988 = vsel %vm983, %v937, 0
      %v991 = vsel %vm983, %v938, 0
      %v994 = vsel %vm983, %v939, 0
      %v997 = vsel %vm983, %v940, 0
      %v1000 = vsel %vm983, %v941, 0
      %v1003 = vsel %vm983, %v942, 0
      %v1006 = vsel %vm983, %v943, 0
      %1008 = vmatprep.subr.bf16.mxu0 0
      %1009 = vmatpush1.bf16.msra.mxu0 %v975
      %1010 = vmatprep.subr.bf16.mxu0 0
      %1011 = vmatpush1.bf16.msra.mxu0 %v976
      %1012 = vmatprep.subr.bf16.mxu0 0
      %1013 = vmatpush1.bf16.msra.mxu0 %v977
      %1014 = vmatprep.subr.bf16.mxu0 0
      %1015 = vmatpush1.bf16.msra.mxu0 %v978
      %1016 = vmatprep.subr.bf16.mxu0 0
      %1017 = vmatpush1.bf16.msra.mxu0 0
      %1018 = vmatprep.subr.bf16.mxu0 0
      %1019 = vmatpush1.bf16.msra.mxu0 0
      %1020 = vmatprep.subr.bf16.mxu0 0
      %1021 = vmatpush1.bf16.msra.mxu0 0
      %1022 = vmatprep.subr.bf16.mxu0 0
      %1023 = vmatpush1.bf16.msra.mxu0 0
      %1024 = vmatprep.subr.bf16.mxu0 0
      %1025 = vmatpush1.bf16.msra.mxu0 0
      %1026 = vmatprep.subr.bf16.mxu0 0
      %1027 = vmatpush1.bf16.msra.mxu0 0
      %1028 = vmatprep.subr.bf16.mxu0 0
      %1029 = vmatpush1.bf16.msra.mxu0 0
      %1030 = vmatprep.subr.bf16.mxu0 0
      %1031 = vmatpush1.bf16.msra.mxu0 0
      %1032 = vmatprep.subr.bf16.mxu0 0
      %1033 = vmatpush1.bf16.msra.mxu0 0
      %1034 = vmatprep.subr.bf16.mxu0 0
      %1035 = vmatpush1.bf16.msra.mxu0 0
      %1036 = vmatprep.subr.bf16.mxu0 0
      %1037 = vmatpush1.bf16.msra.mxu0 0
      %1038 = vmatprep.subr.bf16.mxu0 0
      %1039 = vmatpush1.bf16.msra.mxu0 0
      %1040 = vmatprep.mubr.bf16.mxu0 0
      %1041 = vmatmul.mubr.bf16.gmra.mrb[0].mxu0 %v985
      %v1042 = vpop.f32.mrb[0].mxu0
      %v1043 = vadd.f32 %v957, %v1042
      %v1044 = vpop.f32.mrb[0].mxu0
      %v1045 = vpop.f32.mrb[0].mxu0
      %v1046 = vadd.f32 %v957, %v1045
      %v1047 = vpop.f32.mrb[0].mxu0
      %1048 = vmatprep.mubr.bf16.mxu0 0
      %1049 = vmatmul.mubr.bf16.gmra.mrb[0].mxu0 %v988
      %v1050 = vpop.f32.mrb[0].mxu0
      %v1051 = vadd.f32 %v957, %v1050
      %v1052 = vpop.f32.mrb[0].mxu0
      %v1053 = vpop.f32.mrb[0].mxu0
      %v1054 = vadd.f32 %v957, %v1053
      %v1055 = vpop.f32.mrb[0].mxu0
      %1056 = vmatprep.mubr.bf16.mxu0 0
      %1057 = vmatmul.mubr.bf16.gmra.mrb[0].mxu0 %v991
      %v1058 = vpop.f32.mrb[0].mxu0
      %v1059 = vadd.f32 %v957, %v1058
      %v1060 = vpop.f32.mrb[0].mxu0
      %v1061 = vpop.f32.mrb[0].mxu0
      %v1062 = vadd.f32 %v957, %v1061
      %v1063 = vpop.f32.mrb[0].mxu0
      %1064 = vmatprep.mubr.bf16.mxu0 0
      %1065 = vmatmul.mubr.bf16.gmra.mrb[0].mxu0 %v994
      %v1066 = vpop.f32.mrb[0].mxu0
      %v1067 = vadd.f32 %v957, %v1066
      %v1068 = vpop.f32.mrb[0].mxu0
      %v1069 = vpop.f32.mrb[0].mxu0
      %v1070 = vadd.f32 %v957, %v1069
      %v1071 = vpop.f32.mrb[0].mxu0
      %1072 = vmatprep.mubr.bf16.mxu0 0
      %1073 = vmatmul.mubr.bf16.gmra.mrb[0].mxu0 %v997
      %v1074 = vpop.f32.mrb[0].mxu0
      %v1075 = vadd.f32 %v957, %v1074
      %v1076 = vpop.f32.mrb[0].mxu0
      %v1077 = vpop.f32.mrb[0].mxu0
      %v1078 = vadd.f32 %v957, %v1077
      %v1079 = vpop.f32.mrb[0].mxu0
      %1080 = vmatprep.mubr.bf16.mxu0 0
      %1081 = vmatmul.mubr.bf16.gmra.mrb[0].mxu0 %v1000
      %v1082 = vpop.f32.mrb[0].mxu0
      %v1083 = vadd.f32 %v957, %v1082
      %v1084 = vpop.f32.mrb[0].mxu0
      %v1085 = vpop.f32.mrb[0].mxu0
      %v1086 = vadd.f32 %v957, %v1085
      %v1087 = vpop.f32.mrb[0].mxu0
      %1088 = vmatprep.mubr.bf16.mxu0 0
      %1089 = vmatmul.mubr.bf16.gmra.mrb[0].mxu0 %v1003
      %v1090 = vpop.f32.mrb[0].mxu0
      %v1091 = vadd.f32 %v957, %v1090
      %v1092 = vpop.f32.mrb[0].mxu0
      %v1093 = vpop.f32.mrb[0].mxu0
      %v1094 = vadd.f32 %v957, %v1093
      %v1095 = vpop.f32.mrb[0].mxu0
      %1096 = vmatprep.mubr.bf16.mxu0 0
      %1097 = vmatmul.mubr.bf16.gmra.mrb[0].mxu0 %v1006
      %v1098 = vpop.f32.mrb[0].mxu0
      %v1099 = vadd.f32 %v957, %v1098
      %v1100 = vpop.f32.mrb[0].mxu0
      %v1101 = vpop.f32.mrb[0].mxu0
      %v1102 = vadd.f32 %v957, %v1101
      %v1103 = vpop.f32.mrb[0].mxu0
      %1104 = vdwg.mxu0
      %v1105 = vld [vmem:[%s7] sm:$0x1]
      %v1107 = vlaneseq
      %v1108 = vshrl.u32 %v1107, 7
      %v1109 = vsub.s32 0, %v1108
      %v1110 = vrot.slane %v1105, %v1109
      %v1112 = vmul.f32 %v1043, %v1110
      %v1113 = vmul.f32 %v1046, %v1110
      %v1114 = vmul.f32 %v1051, %v1110
      %v1115 = vmul.f32 %v1054, %v1110
      %v1116 = vmul.f32 %v1059, %v1110
      %v1117 = vmul.f32 %v1062, %v1110
      %v1118 = vmul.f32 %v1067, %v1110
      %v1119 = vmul.f32 %v1070, %v1110
      %v1120 = vmul.f32 %v1075, %v1110
      %v1121 = vmul.f32 %v1078, %v1110
      %v1122 = vmul.f32 %v1083, %v1110
      %v1123 = vmul.f32 %v1086, %v1110
      %v1124 = vmul.f32 %v1091, %v1110
      %v1125 = vmul.f32 %v1094, %v1110
      %v1126 = vmul.f32 %v1099, %v1110
      %v1127 = vmul.f32 %v1102, %v1110
      %v1128 = vld [vmem:[%s8] sm:$0x1]
      %v1130 = vlaneseq
      %v1131 = vshrl.u32 %v1130, 7
      %v1132 = vsub.s32 0, %v1131
      %v1133 = vrot.slane %v1128, %v1132
      %v1135 = vadd.f32 %v1112, %v1133
      %v1136 = vadd.f32 %v1113, %v1133
      %v1137 = vadd.f32 %v1114, %v1133
      %v1138 = vadd.f32 %v1115, %v1133
      %v1139 = vadd.f32 %v1116, %v1133
      %v1140 = vadd.f32 %v1117, %v1133
      %v1141 = vadd.f32 %v1118, %v1133
      %v1142 = vadd.f32 %v1119, %v1133
      %v1143 = vadd.f32 %v1120, %v1133
      %v1144 = vadd.f32 %v1121, %v1133
      %v1145 = vadd.f32 %v1122, %v1133
      %v1146 = vadd.f32 %v1123, %v1133
      %v1147 = vadd.f32 %v1124, %v1133
      %v1148 = vadd.f32 %v1125, %v1133
      %v1149 = vadd.f32 %v1126, %v1133
      %v1150 = vadd.f32 %v1127, %v1133
      %v1151 = vmax.f32 %v1135, 0.0
      %v1152 = vmax.f32 %v1136, 0.0
      %v1153 = vmax.f32 %v1137, 0.0
      %v1154 = vmax.f32 %v1138, 0.0
      %v1155 = vmax.f32 %v1139, 0.0
      %v1156 = vmax.f32 %v1140, 0.0
      %v1157 = vmax.f32 %v1141, 0.0
      %v1158 = vmax.f32 %v1142, 0.0
      %v1159 = vmax.f32 %v1143, 0.0
      %v1160 = vmax.f32 %v1144, 0.0
      %v1161 = vmax.f32 %v1145, 0.0
      %v1162 = vmax.f32 %v1146, 0.0
      %v1163 = vmax.f32 %v1147, 0.0
      %v1164 = vmax.f32 %v1148, 0.0
      %v1165 = vmax.f32 %v1149, 0.0
      %v1166 = vmax.f32 %v1150, 0.0
      %v1167 = vpack.c.bf16 %v1152, %v1151
      %v1168 = vpack.c.bf16 %v1154, %v1153
      %v1169 = vpack.c.bf16 %v1156, %v1155
      %v1170 = vpack.c.bf16 %v1158, %v1157
      %v1171 = vpack.c.bf16 %v1160, %v1159
      %v1172 = vpack.c.bf16 %v1162, %v1161
      %v1173 = vpack.c.bf16 %v1164, %v1163
      %v1174 = vpack.c.bf16 %v1166, %v1165
      %v1175 = vld [vmem:[%s9] sm:$0xff]
      %v1176 = vld [vmem:[%s9 + $0x8] sm:$0xff]
      %v1177 = vld [vmem:[%s9 + $0x10] sm:$0xff]
      %v1178 = vld [vmem:[%s9 + $0x18] sm:$0xff]
      %v1179 = vld [vmem:[%s9 + $0x20] sm:$0xff]
      %v1180 = vld [vmem:[%s9 + $0x28] sm:$0xff]
      %v1181 = vld [vmem:[%s9 + $0x30] sm:$0xff]
      %v1182 = vld [vmem:[%s9 + $0x38] sm:$0xff]
      %v1183 = vld [vmem:[%s9 + $0x40] sm:$0xff]
      %v1184 = vld [vmem:[%s9 + $0x48] sm:$0xff]
      %v1185 = vld [vmem:[%s9 + $0x50] sm:$0xff]
      %v1186 = vld [vmem:[%s9 + $0x58] sm:$0xff]
      %v1187 = vld [vmem:[%s9 + $0x60] sm:$0xff]
      %v1188 = vld [vmem:[%s9 + $0x68] sm:$0xff]
      %v1189 = vld [vmem:[%s9 + $0x70] sm:$0xff]
      %v1190 = vld [vmem:[%s9 + $0x78] sm:$0xff]
      %v1191 = vld [vmem:[%s9 + $0x80] sm:$0xff]
      %v1192 = vld [vmem:[%s9 + $0x88] sm:$0xff]
      %v1193 = vld [vmem:[%s9 + $0x90] sm:$0xff]
      %v1194 = vld [vmem:[%s9 + $0x98] sm:$0xff]
      %v1195 = vld [vmem:[%s9 + $0xa0] sm:$0xff]
      %v1196 = vld [vmem:[%s9 + $0xa8] sm:$0xff]
      %v1197 = vld [vmem:[%s9 + $0xb0] sm:$0xff]
      %v1198 = vld [vmem:[%s9 + $0xb8] sm:$0xff]
      %v1199 = vld [vmem:[%s9 + $0xc0] sm:$0xff]
      %v1200 = vld [vmem:[%s9 + $0xc8] sm:$0xff]
      %v1201 = vld [vmem:[%s9 + $0xd0] sm:$0xff]
      %v1202 = vld [vmem:[%s9 + $0xd8] sm:$0xff]
      %v1203 = vld [vmem:[%s9 + $0xe0] sm:$0xff]
      %v1204 = vld [vmem:[%s9 + $0xe8] sm:$0xff]
      %v1205 = vld [vmem:[%s9 + $0xf0] sm:$0xff]
      %v1206 = vld [vmem:[%s9 + $0xf8] sm:$0xff]
      %v1207 = vld [vmem:[%s9 + $0x100] sm:$0xff]
      %v1208 = vld [vmem:[%s9 + $0x108] sm:$0xff]
      %v1209 = vld [vmem:[%s9 + $0x110] sm:$0xff]
      %v1210 = vld [vmem:[%s9 + $0x118] sm:$0xff]
      %v1211 = vld [vmem:[%s9 + $0x120] sm:$0xff]
      %v1212 = vld [vmem:[%s9 + $0x128] sm:$0xff]
      %v1213 = vld [vmem:[%s9 + $0x130] sm:$0xff]
      %v1214 = vld [vmem:[%s9 + $0x138] sm:$0xff]
      %v1215 = vld [vmem:[%s9 + $0x140] sm:$0xff]
      %v1216 = vld [vmem:[%s9 + $0x148] sm:$0xff]
      %v1217 = vld [vmem:[%s9 + $0x150] sm:$0xff]
      %v1218 = vld [vmem:[%s9 + $0x158] sm:$0xff]
      %v1219 = vld [vmem:[%s9 + $0x160] sm:$0xff]
      %v1220 = vld [vmem:[%s9 + $0x168] sm:$0xff]
      %v1221 = vld [vmem:[%s9 + $0x170] sm:$0xff]
      %v1222 = vld [vmem:[%s9 + $0x178] sm:$0xff]
      %v1223 = vld [vmem:[%s9 + $0x180] sm:$0xff]
      %v1224 = vld [vmem:[%s9 + $0x188] sm:$0xff]
      %v1225 = vld [vmem:[%s9 + $0x190] sm:$0xff]
      %v1226 = vld [vmem:[%s9 + $0x198] sm:$0xff]
      %v1227 = vld [vmem:[%s9 + $0x1a0] sm:$0xff]
      %v1228 = vld [vmem:[%s9 + $0x1a8] sm:$0xff]
      %v1229 = vld [vmem:[%s9 + $0x1b0] sm:$0xff]
      %v1230 = vld [vmem:[%s9 + $0x1b8] sm:$0xff]
      %v1231 = vld [vmem:[%s9 + $0x1c0] sm:$0xff]
      %v1232 = vld [vmem:[%s9 + $0x1c8] sm:$0xff]
      %v1233 = vld [vmem:[%s9 + $0x1d0] sm:$0xff]
      %v1234 = vld [vmem:[%s9 + $0x1d8] sm:$0xff]
      %v1235 = vld [vmem:[%s9 + $0x1e0] sm:$0xff]
      %v1236 = vld [vmem:[%s9 + $0x1e8] sm:$0xff]
      %v1237 = vld [vmem:[%s9 + $0x1f0] sm:$0xff]
      %v1238 = vld [vmem:[%s9 + $0x1f8] sm:$0xff]
      %v1239 = vld [vmem:[%s10] sm:$0xff]
      %v1241 = vlaneseq
      %v1242 = vshrl.u32 %v1241, 7
      %v1243 = vsub.s32 0, %v1242
      %v1244 = vrot.slane %v1239, %v1243
      %v1245 = vlaneseq
      %v1246 = vshrl.u32 %v1245, 7
      %v1247 = vsub.s32 1, %v1246
      %v1248 = vrot.slane %v1239, %v1247
      %v1249 = vlaneseq
      %v1250 = vshrl.u32 %v1249, 7
      %v1251 = vsub.s32 2, %v1250
      %v1252 = vrot.slane %v1239, %v1251
      %v1253 = vlaneseq
      %v1254 = vshrl.u32 %v1253, 7
      %v1255 = vsub.s32 3, %v1254
      %v1256 = vrot.slane %v1239, %v1255
      %v1257 = vlaneseq
      %v1258 = vshrl.u32 %v1257, 7
      %v1259 = vsub.s32 4, %v1258
      %v1260 = vrot.slane %v1239, %v1259
      %v1261 = vlaneseq
      %v1262 = vshrl.u32 %v1261, 7
      %v1263 = vsub.s32 5, %v1262
      %v1264 = vrot.slane %v1239, %v1263
      %v1265 = vlaneseq
      %v1266 = vshrl.u32 %v1265, 7
      %v1267 = vsub.s32 6, %v1266
      %v1268 = vrot.slane %v1239, %v1267
      %v1269 = vlaneseq
      %v1270 = vshrl.u32 %v1269, 7
      %v1271 = vsub.s32 7, %v1270
      %v1272 = vrot.slane %v1239, %v1271
      %v1345 = vunpack.c.l.b16 %v1175
      %v1346 = vunpack.c.h.b16 %v1175
      %v1347 = vunpack.c.l.b16 %v1176
      %v1348 = vunpack.c.h.b16 %v1176
      %v1349 = vunpack.c.l.b16 %v1177
      %v1350 = vunpack.c.h.b16 %v1177
      %v1351 = vunpack.c.l.b16 %v1178
      %v1352 = vunpack.c.h.b16 %v1178
      %v1353 = vunpack.c.l.b16 %v1179
      %v1354 = vunpack.c.h.b16 %v1179
      %v1355 = vunpack.c.l.b16 %v1180
      %v1356 = vunpack.c.h.b16 %v1180
      %v1357 = vunpack.c.l.b16 %v1181
      %v1358 = vunpack.c.h.b16 %v1181
      %v1359 = vunpack.c.l.b16 %v1182
      %v1360 = vunpack.c.h.b16 %v1182
      %v1361 = vunpack.c.l.b16 %v1183
      %v1362 = vunpack.c.h.b16 %v1183
      %v1363 = vunpack.c.l.b16 %v1184
      %v1364 = vunpack.c.h.b16 %v1184
      %v1365 = vunpack.c.l.b16 %v1185
      %v1366 = vunpack.c.h.b16 %v1185
      %v1367 = vunpack.c.l.b16 %v1186
      %v1368 = vunpack.c.h.b16 %v1186
      %v1369 = vunpack.c.l.b16 %v1187
      %v1370 = vunpack.c.h.b16 %v1187
      %v1371 = vunpack.c.l.b16 %v1188
      %v1372 = vunpack.c.h.b16 %v1188
      %v1373 = vunpack.c.l.b16 %v1189
      %v1374 = vunpack.c.h.b16 %v1189
      %v1375 = vunpack.c.l.b16 %v1190
      %v1376 = vunpack.c.h.b16 %v1190
      %v1377 = vunpack.c.l.b16 %v1191
      %v1378 = vunpack.c.h.b16 %v1191
      %v1379 = vunpack.c.l.b16 %v1192
      %v1380 = vunpack.c.h.b16 %v1192
      %v1381 = vunpack.c.l.b16 %v1193
      %v1382 = vunpack.c.h.b16 %v1193
      %v1383 = vunpack.c.l.b16 %v1194
      %v1384 = vunpack.c.h.b16 %v1194
      %v1385 = vunpack.c.l.b16 %v1195
      %v1386 = vunpack.c.h.b16 %v1195
      %v1387 = vunpack.c.l.b16 %v1196
      %v1388 = vunpack.c.h.b16 %v1196
      %v1389 = vunpack.c.l.b16 %v1197
      %v1390 = vunpack.c.h.b16 %v1197
      %v1391 = vunpack.c.l.b16 %v1198
      %v1392 = vunpack.c.h.b16 %v1198
      %v1393 = vunpack.c.l.b16 %v1199
      %v1394 = vunpack.c.h.b16 %v1199
      %v1395 = vunpack.c.l.b16 %v1200
      %v1396 = vunpack.c.h.b16 %v1200
      %v1397 = vunpack.c.l.b16 %v1201
      %v1398 = vunpack.c.h.b16 %v1201
      %v1399 = vunpack.c.l.b16 %v1202
      %v1400 = vunpack.c.h.b16 %v1202
      %v1401 = vunpack.c.l.b16 %v1203
      %v1402 = vunpack.c.h.b16 %v1203
      %v1403 = vunpack.c.l.b16 %v1204
      %v1404 = vunpack.c.h.b16 %v1204
      %v1405 = vunpack.c.l.b16 %v1205
      %v1406 = vunpack.c.h.b16 %v1205
      %v1407 = vunpack.c.l.b16 %v1206
      %v1408 = vunpack.c.h.b16 %v1206
      %v1409 = vunpack.c.l.b16 %v1207
      %v1410 = vunpack.c.h.b16 %v1207
      %v1411 = vunpack.c.l.b16 %v1208
      %v1412 = vunpack.c.h.b16 %v1208
      %v1413 = vunpack.c.l.b16 %v1209
      %v1414 = vunpack.c.h.b16 %v1209
      %v1415 = vunpack.c.l.b16 %v1210
      %v1416 = vunpack.c.h.b16 %v1210
      %v1417 = vunpack.c.l.b16 %v1211
      %v1418 = vunpack.c.h.b16 %v1211
      %v1419 = vunpack.c.l.b16 %v1212
      %v1420 = vunpack.c.h.b16 %v1212
      %v1421 = vunpack.c.l.b16 %v1213
      %v1422 = vunpack.c.h.b16 %v1213
      %v1423 = vunpack.c.l.b16 %v1214
      %v1424 = vunpack.c.h.b16 %v1214
      %v1425 = vunpack.c.l.b16 %v1215
      %v1426 = vunpack.c.h.b16 %v1215
      %v1427 = vunpack.c.l.b16 %v1216
      %v1428 = vunpack.c.h.b16 %v1216
      %v1429 = vunpack.c.l.b16 %v1217
      %v1430 = vunpack.c.h.b16 %v1217
      %v1431 = vunpack.c.l.b16 %v1218
      %v1432 = vunpack.c.h.b16 %v1218
      %v1433 = vunpack.c.l.b16 %v1219
      %v1434 = vunpack.c.h.b16 %v1219
      %v1435 = vunpack.c.l.b16 %v1220
      %v1436 = vunpack.c.h.b16 %v1220
      %v1437 = vunpack.c.l.b16 %v1221
      %v1438 = vunpack.c.h.b16 %v1221
      %v1439 = vunpack.c.l.b16 %v1222
      %v1440 = vunpack.c.h.b16 %v1222
      %v1441 = vunpack.c.l.b16 %v1223
      %v1442 = vunpack.c.h.b16 %v1223
      %v1443 = vunpack.c.l.b16 %v1224
      %v1444 = vunpack.c.h.b16 %v1224
      %v1445 = vunpack.c.l.b16 %v1225
      %v1446 = vunpack.c.h.b16 %v1225
      %v1447 = vunpack.c.l.b16 %v1226
      %v1448 = vunpack.c.h.b16 %v1226
      %v1449 = vunpack.c.l.b16 %v1227
      %v1450 = vunpack.c.h.b16 %v1227
      %v1451 = vunpack.c.l.b16 %v1228
      %v1452 = vunpack.c.h.b16 %v1228
      %v1453 = vunpack.c.l.b16 %v1229
      %v1454 = vunpack.c.h.b16 %v1229
      %v1455 = vunpack.c.l.b16 %v1230
      %v1456 = vunpack.c.h.b16 %v1230
      %v1457 = vunpack.c.l.b16 %v1231
      %v1458 = vunpack.c.h.b16 %v1231
      %v1459 = vunpack.c.l.b16 %v1232
      %v1460 = vunpack.c.h.b16 %v1232
      %v1461 = vunpack.c.l.b16 %v1233
      %v1462 = vunpack.c.h.b16 %v1233
      %v1463 = vunpack.c.l.b16 %v1234
      %v1464 = vunpack.c.h.b16 %v1234
      %v1465 = vunpack.c.l.b16 %v1235
      %v1466 = vunpack.c.h.b16 %v1235
      %v1467 = vunpack.c.l.b16 %v1236
      %v1468 = vunpack.c.h.b16 %v1236
      %v1469 = vunpack.c.l.b16 %v1237
      %v1470 = vunpack.c.h.b16 %v1237
      %v1471 = vunpack.c.l.b16 %v1238
      %v1472 = vunpack.c.h.b16 %v1238
      %v1473 = vpack.c.b16 %v1353, %v1345
      %v1474 = vpack.c.b16 %v1354, %v1346
      %v1475 = vpack.c.b16 %v1355, %v1347
      %v1476 = vpack.c.b16 %v1356, %v1348
      %v1477 = vpack.c.b16 %v1357, %v1349
      %v1478 = vpack.c.b16 %v1358, %v1350
      %v1479 = vpack.c.b16 %v1359, %v1351
      %v1480 = vpack.c.b16 %v1360, %v1352
      %v1481 = vpack.c.b16 %v1369, %v1361
      %v1482 = vpack.c.b16 %v1370, %v1362
      %v1483 = vpack.c.b16 %v1371, %v1363
      %v1484 = vpack.c.b16 %v1372, %v1364
      %v1485 = vpack.c.b16 %v1373, %v1365
      %v1486 = vpack.c.b16 %v1374, %v1366
      %v1487 = vpack.c.b16 %v1375, %v1367
      %v1488 = vpack.c.b16 %v1376, %v1368
      %v1489 = vpack.c.b16 %v1385, %v1377
      %v1490 = vpack.c.b16 %v1386, %v1378
      %v1491 = vpack.c.b16 %v1387, %v1379
      %v1492 = vpack.c.b16 %v1388, %v1380
      %v1493 = vpack.c.b16 %v1389, %v1381
      %v1494 = vpack.c.b16 %v1390, %v1382
      %v1495 = vpack.c.b16 %v1391, %v1383
      %v1496 = vpack.c.b16 %v1392, %v1384
      %v1497 = vpack.c.b16 %v1401, %v1393
      %v1498 = vpack.c.b16 %v1402, %v1394
      %v1499 = vpack.c.b16 %v1403, %v1395
      %v1500 = vpack.c.b16 %v1404, %v1396
      %v1501 = vpack.c.b16 %v1405, %v1397
      %v1502 = vpack.c.b16 %v1406, %v1398
      %v1503 = vpack.c.b16 %v1407, %v1399
      %v1504 = vpack.c.b16 %v1408, %v1400
      %v1505 = vpack.c.b16 %v1417, %v1409
      %v1506 = vpack.c.b16 %v1418, %v1410
      %v1507 = vpack.c.b16 %v1419, %v1411
      %v1508 = vpack.c.b16 %v1420, %v1412
      %v1509 = vpack.c.b16 %v1421, %v1413
      %v1510 = vpack.c.b16 %v1422, %v1414
      %v1511 = vpack.c.b16 %v1423, %v1415
      %v1512 = vpack.c.b16 %v1424, %v1416
      %v1513 = vpack.c.b16 %v1433, %v1425
      %v1514 = vpack.c.b16 %v1434, %v1426
      %v1515 = vpack.c.b16 %v1435, %v1427
      %v1516 = vpack.c.b16 %v1436, %v1428
      %v1517 = vpack.c.b16 %v1437, %v1429
      %v1518 = vpack.c.b16 %v1438, %v1430
      %v1519 = vpack.c.b16 %v1439, %v1431
      %v1520 = vpack.c.b16 %v1440, %v1432
      %v1521 = vpack.c.b16 %v1449, %v1441
      %v1522 = vpack.c.b16 %v1450, %v1442
      %v1523 = vpack.c.b16 %v1451, %v1443
      %v1524 = vpack.c.b16 %v1452, %v1444
      %v1525 = vpack.c.b16 %v1453, %v1445
      %v1526 = vpack.c.b16 %v1454, %v1446
      %v1527 = vpack.c.b16 %v1455, %v1447
      %v1528 = vpack.c.b16 %v1456, %v1448
      %v1529 = vpack.c.b16 %v1465, %v1457
      %v1530 = vpack.c.b16 %v1466, %v1458
      %v1531 = vpack.c.b16 %v1467, %v1459
      %v1532 = vpack.c.b16 %v1468, %v1460
      %v1533 = vpack.c.b16 %v1469, %v1461
      %v1534 = vpack.c.b16 %v1470, %v1462
      %v1535 = vpack.c.b16 %v1471, %v1463
      %v1536 = vpack.c.b16 %v1472, %v1464
      %1601 = vmatprep.subr.bf16.mxu0 %v1474
      %1602 = vmatpush1.bf16.msra.mxu0 %v1473
      %1603 = vmatprep.subr.bf16.mxu0 %v1482
      %1604 = vmatpush1.bf16.msra.mxu0 %v1481
      %1605 = vmatprep.subr.bf16.mxu0 %v1490
      %1606 = vmatpush1.bf16.msra.mxu0 %v1489
      %1607 = vmatprep.subr.bf16.mxu0 %v1498
      %1608 = vmatpush1.bf16.msra.mxu0 %v1497
      %1609 = vmatprep.subr.bf16.mxu0 %v1506
      %1610 = vmatpush1.bf16.msra.mxu0 %v1505
      %1611 = vmatprep.subr.bf16.mxu0 %v1514
      %1612 = vmatpush1.bf16.msra.mxu0 %v1513
      %1613 = vmatprep.subr.bf16.mxu0 %v1522
      %1614 = vmatpush1.bf16.msra.mxu0 %v1521
      %1615 = vmatprep.subr.bf16.mxu0 %v1530
      %1616 = vmatpush1.bf16.msra.mxu0 %v1529
      %1617 = vmatprep.subr.bf16.mxu0 0
      %1618 = vmatpush1.bf16.msra.mxu0 0
      %1619 = vmatprep.subr.bf16.mxu0 0
      %1620 = vmatpush1.bf16.msra.mxu0 0
      %1621 = vmatprep.subr.bf16.mxu0 0
      %1622 = vmatpush1.bf16.msra.mxu0 0
      %1623 = vmatprep.subr.bf16.mxu0 0
      %1624 = vmatpush1.bf16.msra.mxu0 0
      %1625 = vmatprep.subr.bf16.mxu0 0
      %1626 = vmatpush1.bf16.msra.mxu0 0
      %1627 = vmatprep.subr.bf16.mxu0 0
      %1628 = vmatpush1.bf16.msra.mxu0 0
      %1629 = vmatprep.subr.bf16.mxu0 0
      %1630 = vmatpush1.bf16.msra.mxu0 0
      %1631 = vmatprep.subr.bf16.mxu0 0
      %1632 = vmatpush1.bf16.msra.mxu0 0
      %1633 = vmatprep.mubr.bf16.mxu0 0
      %1634 = vmatmul.mubr.bf16.gmra.mrb[0].mxu0 %v1167
      %v1635 = vpop.f32.mrb[0].mxu0
      %v1636 = vadd.f32 %v1244, %v1635
      %v1637 = vpop.f32.mrb[0].mxu0
      %v1638 = vadd.f32 %v1248, %v1637
      %v1639 = vpop.f32.mrb[0].mxu0
      %v1640 = vadd.f32 %v1244, %v1639
      %v1641 = vpop.f32.mrb[0].mxu0
      %v1642 = vadd.f32 %v1248, %v1641
      %1643 = vmatprep.mubr.bf16.mxu0 0
      %1644 = vmatmul.mubr.bf16.gmra.mrb[0].mxu0 %v1168
      %v1645 = vpop.f32.mrb[0].mxu0
      %v1646 = vadd.f32 %v1244, %v1645
      %v1647 = vpop.f32.mrb[0].mxu0
      %v1648 = vadd.f32 %v1248, %v1647
      %v1649 = vpop.f32.mrb[0].mxu0
      %v1650 = vadd.f32 %v1244, %v1649
      %v1651 = vpop.f32.mrb[0].mxu0
      %v1652 = vadd.f32 %v1248, %v1651
      %1653 = vmatprep.mubr.bf16.mxu0 0
      %1654 = vmatmul.mubr.bf16.gmra.mrb[0].mxu0 %v1169
      %v1655 = vpop.f32.mrb[0].mxu0
      %v1656 = vadd.f32 %v1244, %v1655
      %v1657 = vpop.f32.mrb[0].mxu0
      %v1658 = vadd.f32 %v1248, %v1657
      %v1659 = vpop.f32.mrb[0].mxu0
      %v1660 = vadd.f32 %v1244, %v1659
      %v1661 = vpop.f32.mrb[0].mxu0
      %v1662 = vadd.f32 %v1248, %v1661
      %1663 = vmatprep.mubr.bf16.mxu0 0
      %1664 = vmatmul.mubr.bf16.gmra.mrb[0].mxu0 %v1170
      %v1665 = vpop.f32.mrb[0].mxu0
      %v1666 = vadd.f32 %v1244, %v1665
      %v1667 = vpop.f32.mrb[0].mxu0
      %v1668 = vadd.f32 %v1248, %v1667
      %v1669 = vpop.f32.mrb[0].mxu0
      %v1670 = vadd.f32 %v1244, %v1669
      %v1671 = vpop.f32.mrb[0].mxu0
      %v1672 = vadd.f32 %v1248, %v1671
      %1673 = vmatprep.mubr.bf16.mxu0 0
      %1674 = vmatmul.mubr.bf16.gmra.mrb[0].mxu0 %v1171
      %v1675 = vpop.f32.mrb[0].mxu0
      %v1676 = vadd.f32 %v1244, %v1675
      %v1677 = vpop.f32.mrb[0].mxu0
      %v1678 = vadd.f32 %v1248, %v1677
      %v1679 = vpop.f32.mrb[0].mxu0
      %v1680 = vadd.f32 %v1244, %v1679
      %v1681 = vpop.f32.mrb[0].mxu0
      %v1682 = vadd.f32 %v1248, %v1681
      %1683 = vmatprep.mubr.bf16.mxu0 0
      %1684 = vmatmul.mubr.bf16.gmra.mrb[0].mxu0 %v1172
      %v1685 = vpop.f32.mrb[0].mxu0
      %v1686 = vadd.f32 %v1244, %v1685
      %v1687 = vpop.f32.mrb[0].mxu0
      %v1688 = vadd.f32 %v1248, %v1687
      %v1689 = vpop.f32.mrb[0].mxu0
      %v1690 = vadd.f32 %v1244, %v1689
      %v1691 = vpop.f32.mrb[0].mxu0
      %v1692 = vadd.f32 %v1248, %v1691
      %1693 = vmatprep.mubr.bf16.mxu0 0
      %1694 = vmatmul.mubr.bf16.gmra.mrb[0].mxu0 %v1173
      %v1695 = vpop.f32.mrb[0].mxu0
      %v1696 = vadd.f32 %v1244, %v1695
      %v1697 = vpop.f32.mrb[0].mxu0
      %v1698 = vadd.f32 %v1248, %v1697
      %v1699 = vpop.f32.mrb[0].mxu0
      %v1700 = vadd.f32 %v1244, %v1699
      %v1701 = vpop.f32.mrb[0].mxu0
      %v1702 = vadd.f32 %v1248, %v1701
      %1703 = vmatprep.mubr.bf16.mxu0 0
      %1704 = vmatmul.mubr.bf16.gmra.mrb[0].mxu0 %v1174
      %v1705 = vpop.f32.mrb[0].mxu0
      %v1706 = vadd.f32 %v1244, %v1705
      %v1707 = vpop.f32.mrb[0].mxu0
      %v1708 = vadd.f32 %v1248, %v1707
      %v1709 = vpop.f32.mrb[0].mxu0
      %v1710 = vadd.f32 %v1244, %v1709
      %v1711 = vpop.f32.mrb[0].mxu0
      %v1712 = vadd.f32 %v1248, %v1711
      %1713 = vdwg.mxu0
      %1714 = vmatprep.subr.bf16.mxu0 %v1476
      %1715 = vmatpush1.bf16.msra.mxu0 %v1475
      %1716 = vmatprep.subr.bf16.mxu0 %v1484
      %1717 = vmatpush1.bf16.msra.mxu0 %v1483
      %1718 = vmatprep.subr.bf16.mxu0 %v1492
      %1719 = vmatpush1.bf16.msra.mxu0 %v1491
      %1720 = vmatprep.subr.bf16.mxu0 %v1500
      %1721 = vmatpush1.bf16.msra.mxu0 %v1499
      %1722 = vmatprep.subr.bf16.mxu0 %v1508
      %1723 = vmatpush1.bf16.msra.mxu0 %v1507
      %1724 = vmatprep.subr.bf16.mxu0 %v1516
      %1725 = vmatpush1.bf16.msra.mxu0 %v1515
      %1726 = vmatprep.subr.bf16.mxu0 %v1524
      %1727 = vmatpush1.bf16.msra.mxu0 %v1523
      %1728 = vmatprep.subr.bf16.mxu0 %v1532
      %1729 = vmatpush1.bf16.msra.mxu0 %v1531
      %1730 = vmatprep.subr.bf16.mxu0 0
      %1731 = vmatpush1.bf16.msra.mxu0 0
      %1732 = vmatprep.subr.bf16.mxu0 0
      %1733 = vmatpush1.bf16.msra.mxu0 0
      %1734 = vmatprep.subr.bf16.mxu0 0
      %1735 = vmatpush1.bf16.msra.mxu0 0
      %1736 = vmatprep.subr.bf16.mxu0 0
      %1737 = vmatpush1.bf16.msra.mxu0 0
      %1738 = vmatprep.subr.bf16.mxu0 0
      %1739 = vmatpush1.bf16.msra.mxu0 0
      %1740 = vmatprep.subr.bf16.mxu0 0
      %1741 = vmatpush1.bf16.msra.mxu0 0
      %1742 = vmatprep.subr.bf16.mxu0 0
      %1743 = vmatpush1.bf16.msra.mxu0 0
      %1744 = vmatprep.subr.bf16.mxu0 0
      %1745 = vmatpush1.bf16.msra.mxu0 0
      %1746 = vmatprep.mubr.bf16.mxu0 0
      %1747 = vmatmul.mubr.bf16.gmra.mrb[0].mxu0 %v1167
      %v1748 = vpop.f32.mrb[0].mxu0
      %v1749 = vadd.f32 %v1252, %v1748
      %v1750 = vpop.f32.mrb[0].mxu0
      %v1751 = vadd.f32 %v1256, %v1750
      %v1752 = vpop.f32.mrb[0].mxu0
      %v1753 = vadd.f32 %v1252, %v1752
      %v1754 = vpop.f32.mrb[0].mxu0
      %v1755 = vadd.f32 %v1256, %v1754
      %1756 = vmatprep.mubr.bf16.mxu0 0
      %1757 = vmatmul.mubr.bf16.gmra.mrb[0].mxu0 %v1168
      %v1758 = vpop.f32.mrb[0].mxu0
      %v1759 = vadd.f32 %v1252, %v1758
      %v1760 = vpop.f32.mrb[0].mxu0
      %v1761 = vadd.f32 %v1256, %v1760
      %v1762 = vpop.f32.mrb[0].mxu0
      %v1763 = vadd.f32 %v1252, %v1762
      %v1764 = vpop.f32.mrb[0].mxu0
      %v1765 = vadd.f32 %v1256, %v1764
      %1766 = vmatprep.mubr.bf16.mxu0 0
      %1767 = vmatmul.mubr.bf16.gmra.mrb[0].mxu0 %v1169
      %v1768 = vpop.f32.mrb[0].mxu0
      %v1769 = vadd.f32 %v1252, %v1768
      %v1770 = vpop.f32.mrb[0].mxu0
      %v1771 = vadd.f32 %v1256, %v1770
      %v1772 = vpop.f32.mrb[0].mxu0
      %v1773 = vadd.f32 %v1252, %v1772
      %v1774 = vpop.f32.mrb[0].mxu0
      %v1775 = vadd.f32 %v1256, %v1774
      %1776 = vmatprep.mubr.bf16.mxu0 0
      %1777 = vmatmul.mubr.bf16.gmra.mrb[0].mxu0 %v1170
      %v1778 = vpop.f32.mrb[0].mxu0
      %v1779 = vadd.f32 %v1252, %v1778
      %v1780 = vpop.f32.mrb[0].mxu0
      %v1781 = vadd.f32 %v1256, %v1780
      %v1782 = vpop.f32.mrb[0].mxu0
      %v1783 = vadd.f32 %v1252, %v1782
      %v1784 = vpop.f32.mrb[0].mxu0
      %v1785 = vadd.f32 %v1256, %v1784
      %1786 = vmatprep.mubr.bf16.mxu0 0
      %1787 = vmatmul.mubr.bf16.gmra.mrb[0].mxu0 %v1171
      %v1788 = vpop.f32.mrb[0].mxu0
      %v1789 = vadd.f32 %v1252, %v1788
      %v1790 = vpop.f32.mrb[0].mxu0
      %v1791 = vadd.f32 %v1256, %v1790
      %v1792 = vpop.f32.mrb[0].mxu0
      %v1793 = vadd.f32 %v1252, %v1792
      %v1794 = vpop.f32.mrb[0].mxu0
      %v1795 = vadd.f32 %v1256, %v1794
      %1796 = vmatprep.mubr.bf16.mxu0 0
      %1797 = vmatmul.mubr.bf16.gmra.mrb[0].mxu0 %v1172
      %v1798 = vpop.f32.mrb[0].mxu0
      %v1799 = vadd.f32 %v1252, %v1798
      %v1800 = vpop.f32.mrb[0].mxu0
      %v1801 = vadd.f32 %v1256, %v1800
      %v1802 = vpop.f32.mrb[0].mxu0
      %v1803 = vadd.f32 %v1252, %v1802
      %v1804 = vpop.f32.mrb[0].mxu0
      %v1805 = vadd.f32 %v1256, %v1804
      %1806 = vmatprep.mubr.bf16.mxu0 0
      %1807 = vmatmul.mubr.bf16.gmra.mrb[0].mxu0 %v1173
      %v1808 = vpop.f32.mrb[0].mxu0
      %v1809 = vadd.f32 %v1252, %v1808
      %v1810 = vpop.f32.mrb[0].mxu0
      %v1811 = vadd.f32 %v1256, %v1810
      %v1812 = vpop.f32.mrb[0].mxu0
      %v1813 = vadd.f32 %v1252, %v1812
      %v1814 = vpop.f32.mrb[0].mxu0
      %v1815 = vadd.f32 %v1256, %v1814
      %1816 = vmatprep.mubr.bf16.mxu0 0
      %1817 = vmatmul.mubr.bf16.gmra.mrb[0].mxu0 %v1174
      %v1818 = vpop.f32.mrb[0].mxu0
      %v1819 = vadd.f32 %v1252, %v1818
      %v1820 = vpop.f32.mrb[0].mxu0
      %v1821 = vadd.f32 %v1256, %v1820
      %v1822 = vpop.f32.mrb[0].mxu0
      %v1823 = vadd.f32 %v1252, %v1822
      %v1824 = vpop.f32.mrb[0].mxu0
      %v1825 = vadd.f32 %v1256, %v1824
      %1826 = vdwg.mxu0
      %1827 = vmatprep.subr.bf16.mxu0 %v1478
      %1828 = vmatpush1.bf16.msra.mxu0 %v1477
      %1829 = vmatprep.subr.bf16.mxu0 %v1486
      %1830 = vmatpush1.bf16.msra.mxu0 %v1485
      %1831 = vmatprep.subr.bf16.mxu0 %v1494
      %1832 = vmatpush1.bf16.msra.mxu0 %v1493
      %1833 = vmatprep.subr.bf16.mxu0 %v1502
      %1834 = vmatpush1.bf16.msra.mxu0 %v1501
      %1835 = vmatprep.subr.bf16.mxu0 %v1510
      %1836 = vmatpush1.bf16.msra.mxu0 %v1509
      %1837 = vmatprep.subr.bf16.mxu0 %v1518
      %1838 = vmatpush1.bf16.msra.mxu0 %v1517
      %1839 = vmatprep.subr.bf16.mxu0 %v1526
      %1840 = vmatpush1.bf16.msra.mxu0 %v1525
      %1841 = vmatprep.subr.bf16.mxu0 %v1534
      %1842 = vmatpush1.bf16.msra.mxu0 %v1533
      %1843 = vmatprep.subr.bf16.mxu0 0
      %1844 = vmatpush1.bf16.msra.mxu0 0
      %1845 = vmatprep.subr.bf16.mxu0 0
      %1846 = vmatpush1.bf16.msra.mxu0 0
      %1847 = vmatprep.subr.bf16.mxu0 0
      %1848 = vmatpush1.bf16.msra.mxu0 0
      %1849 = vmatprep.subr.bf16.mxu0 0
      %1850 = vmatpush1.bf16.msra.mxu0 0
      %1851 = vmatprep.subr.bf16.mxu0 0
      %1852 = vmatpush1.bf16.msra.mxu0 0
      %1853 = vmatprep.subr.bf16.mxu0 0
      %1854 = vmatpush1.bf16.msra.mxu0 0
      %1855 = vmatprep.subr.bf16.mxu0 0
      %1856 = vmatpush1.bf16.msra.mxu0 0
      %1857 = vmatprep.subr.bf16.mxu0 0
      %1858 = vmatpush1.bf16.msra.mxu0 0
      %1859 = vmatprep.mubr.bf16.mxu0 0
      %1860 = vmatmul.mubr.bf16.gmra.mrb[0].mxu0 %v1167
      %v1861 = vpop.f32.mrb[0].mxu0
      %v1862 = vadd.f32 %v1260, %v1861
      %v1863 = vpop.f32.mrb[0].mxu0
      %v1864 = vadd.f32 %v1264, %v1863
      %v1865 = vpop.f32.mrb[0].mxu0
      %v1866 = vadd.f32 %v1260, %v1865
      %v1867 = vpop.f32.mrb[0].mxu0
      %v1868 = vadd.f32 %v1264, %v1867
      %1869 = vmatprep.mubr.bf16.mxu0 0
      %1870 = vmatmul.mubr.bf16.gmra.mrb[0].mxu0 %v1168
      %v1871 = vpop.f32.mrb[0].mxu0
      %v1872 = vadd.f32 %v1260, %v1871
      %v1873 = vpop.f32.mrb[0].mxu0
      %v1874 = vadd.f32 %v1264, %v1873
      %v1875 = vpop.f32.mrb[0].mxu0
      %v1876 = vadd.f32 %v1260, %v1875
      %v1877 = vpop.f32.mrb[0].mxu0
      %v1878 = vadd.f32 %v1264, %v1877
      %1879 = vmatprep.mubr.bf16.mxu0 0
      %1880 = vmatmul.mubr.bf16.gmra.mrb[0].mxu0 %v1169
      %v1881 = vpop.f32.mrb[0].mxu0
      %v1882 = vadd.f32 %v1260, %v1881
      %v1883 = vpop.f32.mrb[0].mxu0
      %v1884 = vadd.f32 %v1264, %v1883
      %v1885 = vpop.f32.mrb[0].mxu0
      %v1886 = vadd.f32 %v1260, %v1885
      %v1887 = vpop.f32.mrb[0].mxu0
      %v1888 = vadd.f32 %v1264, %v1887
      %1889 = vmatprep.mubr.bf16.mxu0 0
      %1890 = vmatmul.mubr.bf16.gmra.mrb[0].mxu0 %v1170
      %v1891 = vpop.f32.mrb[0].mxu0
      %v1892 = vadd.f32 %v1260, %v1891
      %v1893 = vpop.f32.mrb[0].mxu0
      %v1894 = vadd.f32 %v1264, %v1893
      %v1895 = vpop.f32.mrb[0].mxu0
      %v1896 = vadd.f32 %v1260, %v1895
      %v1897 = vpop.f32.mrb[0].mxu0
      %v1898 = vadd.f32 %v1264, %v1897
      %1899 = vmatprep.mubr.bf16.mxu0 0
      %1900 = vmatmul.mubr.bf16.gmra.mrb[0].mxu0 %v1171
      %v1901 = vpop.f32.mrb[0].mxu0
      %v1902 = vadd.f32 %v1260, %v1901
      %v1903 = vpop.f32.mrb[0].mxu0
      %v1904 = vadd.f32 %v1264, %v1903
      %v1905 = vpop.f32.mrb[0].mxu0
      %v1906 = vadd.f32 %v1260, %v1905
      %v1907 = vpop.f32.mrb[0].mxu0
      %v1908 = vadd.f32 %v1264, %v1907
      %1909 = vmatprep.mubr.bf16.mxu0 0
      %1910 = vmatmul.mubr.bf16.gmra.mrb[0].mxu0 %v1172
      %v1911 = vpop.f32.mrb[0].mxu0
      %v1912 = vadd.f32 %v1260, %v1911
      %v1913 = vpop.f32.mrb[0].mxu0
      %v1914 = vadd.f32 %v1264, %v1913
      %v1915 = vpop.f32.mrb[0].mxu0
      %v1916 = vadd.f32 %v1260, %v1915
      %v1917 = vpop.f32.mrb[0].mxu0
      %v1918 = vadd.f32 %v1264, %v1917
      %1919 = vmatprep.mubr.bf16.mxu0 0
      %1920 = vmatmul.mubr.bf16.gmra.mrb[0].mxu0 %v1173
      %v1921 = vpop.f32.mrb[0].mxu0
      %v1922 = vadd.f32 %v1260, %v1921
      %v1923 = vpop.f32.mrb[0].mxu0
      %v1924 = vadd.f32 %v1264, %v1923
      %v1925 = vpop.f32.mrb[0].mxu0
      %v1926 = vadd.f32 %v1260, %v1925
      %v1927 = vpop.f32.mrb[0].mxu0
      %v1928 = vadd.f32 %v1264, %v1927
      %1929 = vmatprep.mubr.bf16.mxu0 0
      %1930 = vmatmul.mubr.bf16.gmra.mrb[0].mxu0 %v1174
      %v1931 = vpop.f32.mrb[0].mxu0
      %v1932 = vadd.f32 %v1260, %v1931
      %v1933 = vpop.f32.mrb[0].mxu0
      %v1934 = vadd.f32 %v1264, %v1933
      %v1935 = vpop.f32.mrb[0].mxu0
      %v1936 = vadd.f32 %v1260, %v1935
      %v1937 = vpop.f32.mrb[0].mxu0
      %v1938 = vadd.f32 %v1264, %v1937
      %1939 = vdwg.mxu0
      %1940 = vmatprep.subr.bf16.mxu0 %v1480
      %1941 = vmatpush1.bf16.msra.mxu0 %v1479
      %1942 = vmatprep.subr.bf16.mxu0 %v1488
      %1943 = vmatpush1.bf16.msra.mxu0 %v1487
      %1944 = vmatprep.subr.bf16.mxu0 %v1496
      %1945 = vmatpush1.bf16.msra.mxu0 %v1495
      %1946 = vmatprep.subr.bf16.mxu0 %v1504
      %1947 = vmatpush1.bf16.msra.mxu0 %v1503
      %1948 = vmatprep.subr.bf16.mxu0 %v1512
      %1949 = vmatpush1.bf16.msra.mxu0 %v1511
      %1950 = vmatprep.subr.bf16.mxu0 %v1520
      %1951 = vmatpush1.bf16.msra.mxu0 %v1519
      %1952 = vmatprep.subr.bf16.mxu0 %v1528
      %1953 = vmatpush1.bf16.msra.mxu0 %v1527
      %1954 = vmatprep.subr.bf16.mxu0 %v1536
      %1955 = vmatpush1.bf16.msra.mxu0 %v1535
      %1956 = vmatprep.subr.bf16.mxu0 0
      %1957 = vmatpush1.bf16.msra.mxu0 0
      %1958 = vmatprep.subr.bf16.mxu0 0
      %1959 = vmatpush1.bf16.msra.mxu0 0
      %1960 = vmatprep.subr.bf16.mxu0 0
      %1961 = vmatpush1.bf16.msra.mxu0 0
      %1962 = vmatprep.subr.bf16.mxu0 0
      %1963 = vmatpush1.bf16.msra.mxu0 0
      %1964 = vmatprep.subr.bf16.mxu0 0
      %1965 = vmatpush1.bf16.msra.mxu0 0
      %1966 = vmatprep.subr.bf16.mxu0 0
      %1967 = vmatpush1.bf16.msra.mxu0 0
      %1968 = vmatprep.subr.bf16.mxu0 0
      %1969 = vmatpush1.bf16.msra.mxu0 0
      %1970 = vmatprep.subr.bf16.mxu0 0
      %1971 = vmatpush1.bf16.msra.mxu0 0
      %1972 = vmatprep.mubr.bf16.mxu0 0
      %1973 = vmatmul.mubr.bf16.gmra.mrb[0].mxu0 %v1167
      %v1974 = vpop.f32.mrb[0].mxu0
      %v1975 = vadd.f32 %v1268, %v1974
      %v1976 = vpop.f32.mrb[0].mxu0
      %v1977 = vadd.f32 %v1272, %v1976
      %v1978 = vpop.f32.mrb[0].mxu0
      %v1979 = vadd.f32 %v1268, %v1978
      %v1980 = vpop.f32.mrb[0].mxu0
      %v1981 = vadd.f32 %v1272, %v1980
      %1982 = vmatprep.mubr.bf16.mxu0 0
      %1983 = vmatmul.mubr.bf16.gmra.mrb[0].mxu0 %v1168
      %v1984 = vpop.f32.mrb[0].mxu0
      %v1985 = vadd.f32 %v1268, %v1984
      %v1986 = vpop.f32.mrb[0].mxu0
      %v1987 = vadd.f32 %v1272, %v1986
      %v1988 = vpop.f32.mrb[0].mxu0
      %v1989 = vadd.f32 %v1268, %v1988
      %v1990 = vpop.f32.mrb[0].mxu0
      %v1991 = vadd.f32 %v1272, %v1990
      %1992 = vmatprep.mubr.bf16.mxu0 0
      %1993 = vmatmul.mubr.bf16.gmra.mrb[0].mxu0 %v1169
      %v1994 = vpop.f32.mrb[0].mxu0
      %v1995 = vadd.f32 %v1268, %v1994
      %v1996 = vpop.f32.mrb[0].mxu0
      %v1997 = vadd.f32 %v1272, %v1996
      %v1998 = vpop.f32.mrb[0].mxu0
      %v1999 = vadd.f32 %v1268, %v1998
      %v2000 = vpop.f32.mrb[0].mxu0
      %v2001 = vadd.f32 %v1272, %v2000
      %2002 = vmatprep.mubr.bf16.mxu0 0
      %2003 = vmatmul.mubr.bf16.gmra.mrb[0].mxu0 %v1170
      %v2004 = vpop.f32.mrb[0].mxu0
      %v2005 = vadd.f32 %v1268, %v2004
      %v2006 = vpop.f32.mrb[0].mxu0
      %v2007 = vadd.f32 %v1272, %v2006
      %v2008 = vpop.f32.mrb[0].mxu0
      %v2009 = vadd.f32 %v1268, %v2008
      %v2010 = vpop.f32.mrb[0].mxu0
      %v2011 = vadd.f32 %v1272, %v2010
      %2012 = vmatprep.mubr.bf16.mxu0 0
      %2013 = vmatmul.mubr.bf16.gmra.mrb[0].mxu0 %v1171
      %v2014 = vpop.f32.mrb[0].mxu0
      %v2015 = vadd.f32 %v1268, %v2014
      %v2016 = vpop.f32.mrb[0].mxu0
      %v2017 = vadd.f32 %v1272, %v2016
      %v2018 = vpop.f32.mrb[0].mxu0
      %v2019 = vadd.f32 %v1268, %v2018
      %v2020 = vpop.f32.mrb[0].mxu0
      %v2021 = vadd.f32 %v1272, %v2020
      %2022 = vmatprep.mubr.bf16.mxu0 0
      %2023 = vmatmul.mubr.bf16.gmra.mrb[0].mxu0 %v1172
      %v2024 = vpop.f32.mrb[0].mxu0
      %v2025 = vadd.f32 %v1268, %v2024
      %v2026 = vpop.f32.mrb[0].mxu0
      %v2027 = vadd.f32 %v1272, %v2026
      %v2028 = vpop.f32.mrb[0].mxu0
      %v2029 = vadd.f32 %v1268, %v2028
      %v2030 = vpop.f32.mrb[0].mxu0
      %v2031 = vadd.f32 %v1272, %v2030
      %2032 = vmatprep.mubr.bf16.mxu0 0
      %2033 = vmatmul.mubr.bf16.gmra.mrb[0].mxu0 %v1173
      %v2034 = vpop.f32.mrb[0].mxu0
      %v2035 = vadd.f32 %v1268, %v2034
      %v2036 = vpop.f32.mrb[0].mxu0
      %v2037 = vadd.f32 %v1272, %v2036
      %v2038 = vpop.f32.mrb[0].mxu0
      %v2039 = vadd.f32 %v1268, %v2038
      %v2040 = vpop.f32.mrb[0].mxu0
      %v2041 = vadd.f32 %v1272, %v2040
      %2042 = vmatprep.mubr.bf16.mxu0 0
      %2043 = vmatmul.mubr.bf16.gmra.mrb[0].mxu0 %v1174
      %v2044 = vpop.f32.mrb[0].mxu0
      %v2045 = vadd.f32 %v1268, %v2044
      %v2046 = vpop.f32.mrb[0].mxu0
      %v2047 = vadd.f32 %v1272, %v2046
      %v2048 = vpop.f32.mrb[0].mxu0
      %v2049 = vadd.f32 %v1268, %v2048
      %v2050 = vpop.f32.mrb[0].mxu0
      %v2051 = vadd.f32 %v1272, %v2050
      %2052 = vdwg.mxu0
      %p2053 = scmp.eq.s32.totalorder %s31, 3
      // Predicated region
      $region69: #{transform3d_forward.4} parent=63 // pred_check
        %p2054 = pneg %p2053
      $region70: #{transform3d_forward.4} parent=63 // pred_check_branch
        %2056 = sbr.rel (%p2054) target = $region72
      $region71: #{transform3d_forward.4} parent=63 // pred_region
        %s2057 = smul.u32 %s31, 128
        %v2058 = vlaneseq
        %v2059 = vshrl.u32 %v2058, 7
        %v2060 = vadd.s32 %v2059, 8
        %v2061 = vadd.s32 %v2059, 16
        %v2062 = vadd.s32 %v2059, 24
        %v2063 = vadd.s32 %v2059, 32
        %v2064 = vadd.s32 %v2059, 40
        %v2065 = vadd.s32 %v2059, 48
        %v2066 = vadd.s32 %v2059, 56
        %v2067 = vadd.s32 %v2059, 64
        %v2068 = vadd.s32 %v2059, 72
        %v2069 = vadd.s32 %v2059, 80
        %v2070 = vadd.s32 %v2059, 88
        %v2071 = vadd.s32 %v2059, 96
        %v2072 = vadd.s32 %v2059, 104
        %v2073 = vadd.s32 %v2059, 112
        %v2074 = vadd.s32 %v2059, 120
        %v2075 = vstv %s2057
        %v2076 = vadd.s32 %v2075, %v2059
        %v2077 = vadd.s32 %v2075, %v2060
        %v2078 = vadd.s32 %v2075, %v2061
        %v2079 = vadd.s32 %v2075, %v2062
        %v2080 = vadd.s32 %v2075, %v2063
        %v2081 = vadd.s32 %v2075, %v2064
        %v2082 = vadd.s32 %v2075, %v2065
        %v2083 = vadd.s32 %v2075, %v2066
        %v2084 = vadd.s32 %v2075, %v2067
        %v2085 = vadd.s32 %v2075, %v2068
        %v2086 = vadd.s32 %v2075, %v2069
        %v2087 = vadd.s32 %v2075, %v2070
        %v2088 = vadd.s32 %v2075, %v2071
        %v2089 = vadd.s32 %v2075, %v2072
        %v2090 = vadd.s32 %v2075, %v2073
        %v2091 = vadd.s32 %v2075, %v2074
        %vm2092 = vcmp.lt.s32.totalorder %v2076, 400
        %vm2093 = vcmp.lt.s32.totalorder %v2077, 400
        %vm2094 = vcmp.lt.s32.totalorder %v2078, 400
        %vm2095 = vcmp.lt.s32.totalorder %v2079, 400
        %vm2096 = vcmp.lt.s32.totalorder %v2080, 400
        %vm2097 = vcmp.lt.s32.totalorder %v2081, 400
        %vm2098 = vcmp.lt.s32.totalorder %v2082, 400
        %vm2099 = vcmp.lt.s32.totalorder %v2083, 400
        %vm2100 = vcmp.lt.s32.totalorder %v2084, 400
        %vm2101 = vcmp.lt.s32.totalorder %v2085, 400
        %vm2102 = vcmp.lt.s32.totalorder %v2086, 400
        %vm2103 = vcmp.lt.s32.totalorder %v2087, 400
        %vm2104 = vcmp.lt.s32.totalorder %v2088, 400
        %vm2105 = vcmp.lt.s32.totalorder %v2089, 400
        %vm2106 = vcmp.lt.s32.totalorder %v2090, 400
        %vm2107 = vcmp.lt.s32.totalorder %v2091, 400
        %v2108 = vsel %vm2092, 1, 0
        %v2109 = vsel %vm2093, 1, 0
        %v2110 = vsel %vm2094, 1, 0
        %v2111 = vsel %vm2095, 1, 0
        %v2112 = vsel %vm2096, 1, 0
        %v2113 = vsel %vm2097, 1, 0
        %v2114 = vsel %vm2098, 1, 0
        %v2115 = vsel %vm2099, 1, 0
        %v2116 = vsel %vm2100, 1, 0
        %v2117 = vsel %vm2101, 1, 0
        %v2118 = vsel %vm2102, 1, 0
        %v2119 = vsel %vm2103, 1, 0
        %v2120 = vsel %vm2104, 1, 0
        %v2121 = vsel %vm2105, 1, 0
        %v2122 = vsel %vm2106, 1, 0
        %v2123 = vsel %vm2107, 1, 0
        %vm2124 = vcmp.eq.s32.totalorder %v2108, 1
        %vm2125 = vcmp.eq.s32.totalorder %v2109, 1
        %vm2126 = vcmp.eq.s32.totalorder %v2110, 1
        %vm2127 = vcmp.eq.s32.totalorder %v2111, 1
        %vm2128 = vcmp.eq.s32.totalorder %v2112, 1
        %vm2129 = vcmp.eq.s32.totalorder %v2113, 1
        %vm2130 = vcmp.eq.s32.totalorder %v2114, 1
        %vm2131 = vcmp.eq.s32.totalorder %v2115, 1
        %vm2132 = vcmp.eq.s32.totalorder %v2116, 1
        %vm2133 = vcmp.eq.s32.totalorder %v2117, 1
        %vm2134 = vcmp.eq.s32.totalorder %v2118, 1
        %vm2135 = vcmp.eq.s32.totalorder %v2119, 1
        %vm2136 = vcmp.eq.s32.totalorder %v2120, 1
        %vm2137 = vcmp.eq.s32.totalorder %v2121, 1
        %vm2138 = vcmp.eq.s32.totalorder %v2122, 1
        %vm2139 = vcmp.eq.s32.totalorder %v2123, 1
        %v2140 = vsel %vm2124, %v1636, 0.0
        %v2141 = vsel %vm2124, %v1638, 0.0
        %v2142 = vsel %vm2124, %v1749, 0.0
        %v2143 = vsel %vm2124, %v1751, 0.0
        %v2144 = vsel %vm2124, %v1862, 0.0
        %v2145 = vsel %vm2124, %v1864, 0.0
        %v2146 = vsel %vm2124, %v1975, 0.0
        %v2147 = vsel %vm2124, %v1977, 0.0
        %v2148 = vsel %vm2125, %v1640, 0.0
        %v2149 = vsel %vm2125, %v1642, 0.0
        %v2150 = vsel %vm2125, %v1753, 0.0
        %v2151 = vsel %vm2125, %v1755, 0.0
        %v2152 = vsel %vm2125, %v1866, 0.0
        %v2153 = vsel %vm2125, %v1868, 0.0
        %v2154 = vsel %vm2125, %v1979, 0.0
        %v2155 = vsel %vm2125, %v1981, 0.0
        %v2156 = vsel %vm2126, %v1646, 0.0
        %v2157 = vsel %vm2126, %v1648, 0.0
        %v2158 = vsel %vm2126, %v1759, 0.0
        %v2159 = vsel %vm2126, %v1761, 0.0
        %v2160 = vsel %vm2126, %v1872, 0.0
        %v2161 = vsel %vm2126, %v1874, 0.0
        %v2162 = vsel %vm2126, %v1985, 0.0
        %v2163 = vsel %vm2126, %v1987, 0.0
        %v2164 = vsel %vm2127, %v1650, 0.0
        %v2165 = vsel %vm2127, %v1652, 0.0
        %v2166 = vsel %vm2127, %v1763, 0.0
        %v2167 = vsel %vm2127, %v1765, 0.0
        %v2168 = vsel %vm2127, %v1876, 0.0
        %v2169 = vsel %vm2127, %v1878, 0.0
        %v2170 = vsel %vm2127, %v1989, 0.0
        %v2171 = vsel %vm2127, %v1991, 0.0
        %v2172 = vsel %vm2128, %v1656, 0.0
        %v2173 = vsel %vm2128, %v1658, 0.0
        %v2174 = vsel %vm2128, %v1769, 0.0
        %v2175 = vsel %vm2128, %v1771, 0.0
        %v2176 = vsel %vm2128, %v1882, 0.0
        %v2177 = vsel %vm2128, %v1884, 0.0
        %v2178 = vsel %vm2128, %v1995, 0.0
        %v2179 = vsel %vm2128, %v1997, 0.0
        %v2180 = vsel %vm2129, %v1660, 0.0
        %v2181 = vsel %vm2129, %v1662, 0.0
        %v2182 = vsel %vm2129, %v1773, 0.0
        %v2183 = vsel %vm2129, %v1775, 0.0
        %v2184 = vsel %vm2129, %v1886, 0.0
        %v2185 = vsel %vm2129, %v1888, 0.0
        %v2186 = vsel %vm2129, %v1999, 0.0
        %v2187 = vsel %vm2129, %v2001, 0.0
        %v2188 = vsel %vm2130, %v1666, 0.0
        %v2189 = vsel %vm2130, %v1668, 0.0
        %v2190 = vsel %vm2130, %v1779, 0.0
        %v2191 = vsel %vm2130, %v1781, 0.0
        %v2192 = vsel %vm2130, %v1892, 0.0
        %v2193 = vsel %vm2130, %v1894, 0.0
        %v2194 = vsel %vm2130, %v2005, 0.0
        %v2195 = vsel %vm2130, %v2007, 0.0
        %v2196 = vsel %vm2131, %v1670, 0.0
        %v2197 = vsel %vm2131, %v1672, 0.0
        %v2198 = vsel %vm2131, %v1783, 0.0
        %v2199 = vsel %vm2131, %v1785, 0.0
        %v2200 = vsel %vm2131, %v1896, 0.0
        %v2201 = vsel %vm2131, %v1898, 0.0
        %v2202 = vsel %vm2131, %v2009, 0.0
        %v2203 = vsel %vm2131, %v2011, 0.0
        %v2204 = vsel %vm2132, %v1676, 0.0
        %v2205 = vsel %vm2132, %v1678, 0.0
        %v2206 = vsel %vm2132, %v1789, 0.0
        %v2207 = vsel %vm2132, %v1791, 0.0
        %v2208 = vsel %vm2132, %v1902, 0.0
        %v2209 = vsel %vm2132, %v1904, 0.0
        %v2210 = vsel %vm2132, %v2015, 0.0
        %v2211 = vsel %vm2132, %v2017, 0.0
        %v2212 = vsel %vm2133, %v1680, 0.0
        %v2213 = vsel %vm2133, %v1682, 0.0
        %v2214 = vsel %vm2133, %v1793, 0.0
        %v2215 = vsel %vm2133, %v1795, 0.0
        %v2216 = vsel %vm2133, %v1906, 0.0
        %v2217 = vsel %vm2133, %v1908, 0.0
        %v2218 = vsel %vm2133, %v2019, 0.0
        %v2219 = vsel %vm2133, %v2021, 0.0
        %v2220 = vsel %vm2134, %v1686, 0.0
        %v2221 = vsel %vm2134, %v1688, 0.0
        %v2222 = vsel %vm2134, %v1799, 0.0
        %v2223 = vsel %vm2134, %v1801, 0.0
        %v2224 = vsel %vm2134, %v1912, 0.0
        %v2225 = vsel %vm2134, %v1914, 0.0
        %v2226 = vsel %vm2134, %v2025, 0.0
        %v2227 = vsel %vm2134, %v2027, 0.0
        %v2228 = vsel %vm2135, %v1690, 0.0
        %v2229 = vsel %vm2135, %v1692, 0.0
        %v2230 = vsel %vm2135, %v1803, 0.0
        %v2231 = vsel %vm2135, %v1805, 0.0
        %v2232 = vsel %vm2135, %v1916, 0.0
        %v2233 = vsel %vm2135, %v1918, 0.0
        %v2234 = vsel %vm2135, %v2029, 0.0
        %v2235 = vsel %vm2135, %v2031, 0.0
        %v2236 = vsel %vm2136, %v1696, 0.0
        %v2237 = vsel %vm2136, %v1698, 0.0
        %v2238 = vsel %vm2136, %v1809, 0.0
        %v2239 = vsel %vm2136, %v1811, 0.0
        %v2240 = vsel %vm2136, %v1922, 0.0
        %v2241 = vsel %vm2136, %v1924, 0.0
        %v2242 = vsel %vm2136, %v2035, 0.0
        %v2243 = vsel %vm2136, %v2037, 0.0
        %v2244 = vsel %vm2137, %v1700, 0.0
        %v2245 = vsel %vm2137, %v1702, 0.0
        %v2246 = vsel %vm2137, %v1813, 0.0
        %v2247 = vsel %vm2137, %v1815, 0.0
        %v2248 = vsel %vm2137, %v1926, 0.0
        %v2249 = vsel %vm2137, %v1928, 0.0
        %v2250 = vsel %vm2137, %v2039, 0.0
        %v2251 = vsel %vm2137, %v2041, 0.0
        %v2252 = vsel %vm2138, %v1706, 0.0
        %v2253 = vsel %vm2138, %v1708, 0.0
        %v2254 = vsel %vm2138, %v1819, 0.0
        %v2255 = vsel %vm2138, %v1821, 0.0
        %v2256 = vsel %vm2138, %v1932, 0.0
        %v2257 = vsel %vm2138, %v1934, 0.0
        %v2258 = vsel %vm2138, %v2045, 0.0
        %v2259 = vsel %vm2138, %v2047, 0.0
        %v2260 = vsel %vm2139, %v1710, 0.0
        %v2261 = vsel %vm2139, %v1712, 0.0
        %v2262 = vsel %vm2139, %v1823, 0.0
        %v2263 = vsel %vm2139, %v1825, 0.0
        %v2264 = vsel %vm2139, %v1936, 0.0
        %v2265 = vsel %vm2139, %v1938, 0.0
        %v2266 = vsel %vm2139, %v2049, 0.0
        %v2267 = vsel %vm2139, %v2051, 0.0
        %v2268 = vsel %vm2124, %v1636, -inf
        %v2269 = vsel %vm2124, %v1638, -inf
        %v2270 = vsel %vm2124, %v1749, -inf
        %v2271 = vsel %vm2124, %v1751, -inf
        %v2272 = vsel %vm2124, %v1862, -inf
        %v2273 = vsel %vm2124, %v1864, -inf
        %v2274 = vsel %vm2124, %v1975, -inf
        %v2275 = vsel %vm2124, %v1977, -inf
        %v2276 = vsel %vm2125, %v1640, -inf
        %v2277 = vsel %vm2125, %v1642, -inf
        %v2278 = vsel %vm2125, %v1753, -inf
        %v2279 = vsel %vm2125, %v1755, -inf
        %v2280 = vsel %vm2125, %v1866, -inf
        %v2281 = vsel %vm2125, %v1868, -inf
        %v2282 = vsel %vm2125, %v1979, -inf
        %v2283 = vsel %vm2125, %v1981, -inf
        %v2284 = vsel %vm2126, %v1646, -inf
        %v2285 = vsel %vm2126, %v1648, -inf
        %v2286 = vsel %vm2126, %v1759, -inf
        %v2287 = vsel %vm2126, %v1761, -inf
        %v2288 = vsel %vm2126, %v1872, -inf
        %v2289 = vsel %vm2126, %v1874, -inf
        %v2290 = vsel %vm2126, %v1985, -inf
        %v2291 = vsel %vm2126, %v1987, -inf
        %v2292 = vsel %vm2127, %v1650, -inf
        %v2293 = vsel %vm2127, %v1652, -inf
        %v2294 = vsel %vm2127, %v1763, -inf
        %v2295 = vsel %vm2127, %v1765, -inf
        %v2296 = vsel %vm2127, %v1876, -inf
        %v2297 = vsel %vm2127, %v1878, -inf
        %v2298 = vsel %vm2127, %v1989, -inf
        %v2299 = vsel %vm2127, %v1991, -inf
        %v2300 = vsel %vm2128, %v1656, -inf
        %v2301 = vsel %vm2128, %v1658, -inf
        %v2302 = vsel %vm2128, %v1769, -inf
        %v2303 = vsel %vm2128, %v1771, -inf
        %v2304 = vsel %vm2128, %v1882, -inf
        %v2305 = vsel %vm2128, %v1884, -inf
        %v2306 = vsel %vm2128, %v1995, -inf
        %v2307 = vsel %vm2128, %v1997, -inf
        %v2308 = vsel %vm2129, %v1660, -inf
        %v2309 = vsel %vm2129, %v1662, -inf
        %v2310 = vsel %vm2129, %v1773, -inf
        %v2311 = vsel %vm2129, %v1775, -inf
        %v2312 = vsel %vm2129, %v1886, -inf
        %v2313 = vsel %vm2129, %v1888, -inf
        %v2314 = vsel %vm2129, %v1999, -inf
        %v2315 = vsel %vm2129, %v2001, -inf
        %v2316 = vsel %vm2130, %v1666, -inf
        %v2317 = vsel %vm2130, %v1668, -inf
        %v2318 = vsel %vm2130, %v1779, -inf
        %v2319 = vsel %vm2130, %v1781, -inf
        %v2320 = vsel %vm2130, %v1892, -inf
        %v2321 = vsel %vm2130, %v1894, -inf
        %v2322 = vsel %vm2130, %v2005, -inf
        %v2323 = vsel %vm2130, %v2007, -inf
        %v2324 = vsel %vm2131, %v1670, -inf
        %v2325 = vsel %vm2131, %v1672, -inf
        %v2326 = vsel %vm2131, %v1783, -inf
        %v2327 = vsel %vm2131, %v1785, -inf
        %v2328 = vsel %vm2131, %v1896, -inf
        %v2329 = vsel %vm2131, %v1898, -inf
        %v2330 = vsel %vm2131, %v2009, -inf
        %v2331 = vsel %vm2131, %v2011, -inf
        %v2332 = vsel %vm2132, %v1676, -inf
        %v2333 = vsel %vm2132, %v1678, -inf
        %v2334 = vsel %vm2132, %v1789, -inf
        %v2335 = vsel %vm2132, %v1791, -inf
        %v2336 = vsel %vm2132, %v1902, -inf
        %v2337 = vsel %vm2132, %v1904, -inf
        %v2338 = vsel %vm2132, %v2015, -inf
        %v2339 = vsel %vm2132, %v2017, -inf
        %v2340 = vsel %vm2133, %v1680, -inf
        %v2341 = vsel %vm2133, %v1682, -inf
        %v2342 = vsel %vm2133, %v1793, -inf
        %v2343 = vsel %vm2133, %v1795, -inf
        %v2344 = vsel %vm2133, %v1906, -inf
        %v2345 = vsel %vm2133, %v1908, -inf
        %v2346 = vsel %vm2133, %v2019, -inf
        %v2347 = vsel %vm2133, %v2021, -inf
        %v2348 = vsel %vm2134, %v1686, -inf
        %v2349 = vsel %vm2134, %v1688, -inf
        %v2350 = vsel %vm2134, %v1799, -inf
        %v2351 = vsel %vm2134, %v1801, -inf
        %v2352 = vsel %vm2134, %v1912, -inf
        %v2353 = vsel %vm2134, %v1914, -inf
        %v2354 = vsel %vm2134, %v2025, -inf
        %v2355 = vsel %vm2134, %v2027, -inf
        %v2356 = vsel %vm2135, %v1690, -inf
        %v2357 = vsel %vm2135, %v1692, -inf
        %v2358 = vsel %vm2135, %v1803, -inf
        %v2359 = vsel %vm2135, %v1805, -inf
        %v2360 = vsel %vm2135, %v1916, -inf
        %v2361 = vsel %vm2135, %v1918, -inf
        %v2362 = vsel %vm2135, %v2029, -inf
        %v2363 = vsel %vm2135, %v2031, -inf
        %v2364 = vsel %vm2136, %v1696, -inf
        %v2365 = vsel %vm2136, %v1698, -inf
        %v2366 = vsel %vm2136, %v1809, -inf
        %v2367 = vsel %vm2136, %v1811, -inf
        %v2368 = vsel %vm2136, %v1922, -inf
        %v2369 = vsel %vm2136, %v1924, -inf
        %v2370 = vsel %vm2136, %v2035, -inf
        %v2371 = vsel %vm2136, %v2037, -inf
        %v2372 = vsel %vm2137, %v1700, -inf
        %v2373 = vsel %vm2137, %v1702, -inf
        %v2374 = vsel %vm2137, %v1813, -inf
        %v2375 = vsel %vm2137, %v1815, -inf
        %v2376 = vsel %vm2137, %v1926, -inf
        %v2377 = vsel %vm2137, %v1928, -inf
        %v2378 = vsel %vm2137, %v2039, -inf
        %v2379 = vsel %vm2137, %v2041, -inf
        %v2380 = vsel %vm2138, %v1706, -inf
        %v2381 = vsel %vm2138, %v1708, -inf
        %v2382 = vsel %vm2138, %v1819, -inf
        %v2383 = vsel %vm2138, %v1821, -inf
        %v2384 = vsel %vm2138, %v1932, -inf
        %v2385 = vsel %vm2138, %v1934, -inf
        %v2386 = vsel %vm2138, %v2045, -inf
        %v2387 = vsel %vm2138, %v2047, -inf
        %v2388 = vsel %vm2139, %v1710, -inf
        %v2389 = vsel %vm2139, %v1712, -inf
        %v2390 = vsel %vm2139, %v1823, -inf
        %v2391 = vsel %vm2139, %v1825, -inf
        %v2392 = vsel %vm2139, %v1936, -inf
        %v2393 = vsel %vm2139, %v1938, -inf
        %v2394 = vsel %vm2139, %v2049, -inf
        %v2395 = vsel %vm2139, %v2051, -inf
        %v2396 = vsel %vm2124, %v1636, inf
        %v2397 = vsel %vm2124, %v1638, inf
        %v2398 = vsel %vm2124, %v1749, inf
        %v2399 = vsel %vm2124, %v1751, inf
        %v2400 = vsel %vm2124, %v1862, inf
        %v2401 = vsel %vm2124, %v1864, inf
        %v2402 = vsel %vm2124, %v1975, inf
        %v2403 = vsel %vm2124, %v1977, inf
        %v2404 = vsel %vm2125, %v1640, inf
        %v2405 = vsel %vm2125, %v1642, inf
        %v2406 = vsel %vm2125, %v1753, inf
        %v2407 = vsel %vm2125, %v1755, inf
        %v2408 = vsel %vm2125, %v1866, inf
        %v2409 = vsel %vm2125, %v1868, inf
        %v2410 = vsel %vm2125, %v1979, inf
        %v2411 = vsel %vm2125, %v1981, inf
        %v2412 = vsel %vm2126, %v1646, inf
        %v2413 = vsel %vm2126, %v1648, inf
        %v2414 = vsel %vm2126, %v1759, inf
        %v2415 = vsel %vm2126, %v1761, inf
        %v2416 = vsel %vm2126, %v1872, inf
        %v2417 = vsel %vm2126, %v1874, inf
        %v2418 = vsel %vm2126, %v1985, inf
        %v2419 = vsel %vm2126, %v1987, inf
        %v2420 = vsel %vm2127, %v1650, inf
        %v2421 = vsel %vm2127, %v1652, inf
        %v2422 = vsel %vm2127, %v1763, inf
        %v2423 = vsel %vm2127, %v1765, inf
        %v2424 = vsel %vm2127, %v1876, inf
        %v2425 = vsel %vm2127, %v1878, inf
        %v2426 = vsel %vm2127, %v1989, inf
        %v2427 = vsel %vm2127, %v1991, inf
        %v2428 = vsel %vm2128, %v1656, inf
        %v2429 = vsel %vm2128, %v1658, inf
        %v2430 = vsel %vm2128, %v1769, inf
        %v2431 = vsel %vm2128, %v1771, inf
        %v2432 = vsel %vm2128, %v1882, inf
        %v2433 = vsel %vm2128, %v1884, inf
        %v2434 = vsel %vm2128, %v1995, inf
        %v2435 = vsel %vm2128, %v1997, inf
        %v2436 = vsel %vm2129, %v1660, inf
        %v2437 = vsel %vm2129, %v1662, inf
        %v2438 = vsel %vm2129, %v1773, inf
        %v2439 = vsel %vm2129, %v1775, inf
        %v2440 = vsel %vm2129, %v1886, inf
        %v2441 = vsel %vm2129, %v1888, inf
        %v2442 = vsel %vm2129, %v1999, inf
        %v2443 = vsel %vm2129, %v2001, inf
        %v2444 = vsel %vm2130, %v1666, inf
        %v2445 = vsel %vm2130, %v1668, inf
        %v2446 = vsel %vm2130, %v1779, inf
        %v2447 = vsel %vm2130, %v1781, inf
        %v2448 = vsel %vm2130, %v1892, inf
        %v2449 = vsel %vm2130, %v1894, inf
        %v2450 = vsel %vm2130, %v2005, inf
        %v2451 = vsel %vm2130, %v2007, inf
        %v2452 = vsel %vm2131, %v1670, inf
        %v2453 = vsel %vm2131, %v1672, inf
        %v2454 = vsel %vm2131, %v1783, inf
        %v2455 = vsel %vm2131, %v1785, inf
        %v2456 = vsel %vm2131, %v1896, inf
        %v2457 = vsel %vm2131, %v1898, inf
        %v2458 = vsel %vm2131, %v2009, inf
        %v2459 = vsel %vm2131, %v2011, inf
        %v2460 = vsel %vm2132, %v1676, inf
        %v2461 = vsel %vm2132, %v1678, inf
        %v2462 = vsel %vm2132, %v1789, inf
        %v2463 = vsel %vm2132, %v1791, inf
        %v2464 = vsel %vm2132, %v1902, inf
        %v2465 = vsel %vm2132, %v1904, inf
        %v2466 = vsel %vm2132, %v2015, inf
        %v2467 = vsel %vm2132, %v2017, inf
        %v2468 = vsel %vm2133, %v1680, inf
        %v2469 = vsel %vm2133, %v1682, inf
        %v2470 = vsel %vm2133, %v1793, inf
        %v2471 = vsel %vm2133, %v1795, inf
        %v2472 = vsel %vm2133, %v1906, inf
        %v2473 = vsel %vm2133, %v1908, inf
        %v2474 = vsel %vm2133, %v2019, inf
        %v2475 = vsel %vm2133, %v2021, inf
        %v2476 = vsel %vm2134, %v1686, inf
        %v2477 = vsel %vm2134, %v1688, inf
        %v2478 = vsel %vm2134, %v1799, inf
        %v2479 = vsel %vm2134, %v1801, inf
        %v2480 = vsel %vm2134, %v1912, inf
        %v2481 = vsel %vm2134, %v1914, inf
        %v2482 = vsel %vm2134, %v2025, inf
        %v2483 = vsel %vm2134, %v2027, inf
        %v2484 = vsel %vm2135, %v1690, inf
        %v2485 = vsel %vm2135, %v1692, inf
        %v2486 = vsel %vm2135, %v1803, inf
        %v2487 = vsel %vm2135, %v1805, inf
        %v2488 = vsel %vm2135, %v1916, inf
        %v2489 = vsel %vm2135, %v1918, inf
        %v2490 = vsel %vm2135, %v2029, inf
        %v2491 = vsel %vm2135, %v2031, inf
        %v2492 = vsel %vm2136, %v1696, inf
        %v2493 = vsel %vm2136, %v1698, inf
        %v2494 = vsel %vm2136, %v1809, inf
        %v2495 = vsel %vm2136, %v1811, inf
        %v2496 = vsel %vm2136, %v1922, inf
        %v2497 = vsel %vm2136, %v1924, inf
        %v2498 = vsel %vm2136, %v2035, inf
        %v2499 = vsel %vm2136, %v2037, inf
        %v2500 = vsel %vm2137, %v1700, inf
        %v2501 = vsel %vm2137, %v1702, inf
        %v2502 = vsel %vm2137, %v1813, inf
        %v2503 = vsel %vm2137, %v1815, inf
        %v2504 = vsel %vm2137, %v1926, inf
        %v2505 = vsel %vm2137, %v1928, inf
        %v2506 = vsel %vm2137, %v2039, inf
        %v2507 = vsel %vm2137, %v2041, inf
        %v2508 = vsel %vm2138, %v1706, inf
        %v2509 = vsel %vm2138, %v1708, inf
        %v2510 = vsel %vm2138, %v1819, inf
        %v2511 = vsel %vm2138, %v1821, inf
        %v2512 = vsel %vm2138, %v1932, inf
        %v2513 = vsel %vm2138, %v1934, inf
        %v2514 = vsel %vm2138, %v2045, inf
        %v2515 = vsel %vm2138, %v2047, inf
        %v2516 = vsel %vm2139, %v1710, inf
        %v2517 = vsel %vm2139, %v1712, inf
        %v2518 = vsel %vm2139, %v1823, inf
        %v2519 = vsel %vm2139, %v1825, inf
        %v2520 = vsel %vm2139, %v1936, inf
        %v2521 = vsel %vm2139, %v1938, inf
        %v2522 = vsel %vm2139, %v2049, inf
        %v2523 = vsel %vm2139, %v2051, inf
        %v2524 = vld [vmem:[%s512] sm:$0xff]
        %v2525 = vadd.f32 %v2140, %v2148
        %v2526 = vadd.f32 %v2525, %v2156
        %v2527 = vadd.f32 %v2526, %v2164
        %v2528 = vadd.f32 %v2527, %v2172
        %v2529 = vadd.f32 %v2528, %v2180
        %v2530 = vadd.f32 %v2529, %v2188
        %v2531 = vadd.f32 %v2530, %v2196
        %v2532 = vadd.f32 %v2531, %v2204
        %v2533 = vadd.f32 %v2532, %v2212
        %v2534 = vadd.f32 %v2533, %v2220
        %v2535 = vadd.f32 %v2534, %v2228
        %v2536 = vadd.f32 %v2535, %v2236
        %v2537 = vadd.f32 %v2536, %v2244
        %v2538 = vadd.f32 %v2537, %v2252
        %v2539 = vadd.f32 %v2538, %v2260
        %v2540 = vrot.slane %v2539, 4
        %v2541 = vadd.f32 %v2539, %v2540
        %v2542 = vrot.slane %v2541, 2
        %v2543 = vadd.f32 %v2541, %v2542
        %v2544 = vrot.slane %v2543, 1
        %v2545 = vadd.f32 %v2543, %v2544
        %v2546 = vadd.f32 %v2141, %v2149
        %v2547 = vadd.f32 %v2546, %v2157
        %v2548 = vadd.f32 %v2547, %v2165
        %v2549 = vadd.f32 %v2548, %v2173
        %v2550 = vadd.f32 %v2549, %v2181
        %v2551 = vadd.f32 %v2550, %v2189
        %v2552 = vadd.f32 %v2551, %v2197
        %v2553 = vadd.f32 %v2552, %v2205
        %v2554 = vadd.f32 %v2553, %v2213
        %v2555 = vadd.f32 %v2554, %v2221
        %v2556 = vadd.f32 %v2555, %v2229
        %v2557 = vadd.f32 %v2556, %v2237
        %v2558 = vadd.f32 %v2557, %v2245
        %v2559 = vadd.f32 %v2558, %v2253
        %v2560 = vadd.f32 %v2559, %v2261
        %v2561 = vrot.slane %v2560, 4
        %v2562 = vadd.f32 %v2560, %v2561
        %v2563 = vrot.slane %v2562, 2
        %v2564 = vadd.f32 %v2562, %v2563
        %v2565 = vrot.slane %v2564, 1
        %v2566 = vadd.f32 %v2564, %v2565
        %v2567 = vadd.f32 %v2142, %v2150
        %v2568 = vadd.f32 %v2567, %v2158
        %v2569 = vadd.f32 %v2568, %v2166
        %v2570 = vadd.f32 %v2569, %v2174
        %v2571 = vadd.f32 %v2570, %v2182
        %v2572 = vadd.f32 %v2571, %v2190
        %v2573 = vadd.f32 %v2572, %v2198
        %v2574 = vadd.f32 %v2573, %v2206
        %v2575 = vadd.f32 %v2574, %v2214
        %v2576 = vadd.f32 %v2575, %v2222
        %v2577 = vadd.f32 %v2576, %v2230
        %v2578 = vadd.f32 %v2577, %v2238
        %v2579 = vadd.f32 %v2578, %v2246
        %v2580 = vadd.f32 %v2579, %v2254
        %v2581 = vadd.f32 %v2580, %v2262
        %v2582 = vrot.slane %v2581, 4
        %v2583 = vadd.f32 %v2581, %v2582
        %v2584 = vrot.slane %v2583, 2
        %v2585 = vadd.f32 %v2583, %v2584
        %v2586 = vrot.slane %v2585, 1
        %v2587 = vadd.f32 %v2585, %v2586
        %v2588 = vadd.f32 %v2143, %v2151
        %v2589 = vadd.f32 %v2588, %v2159
        %v2590 = vadd.f32 %v2589, %v2167
        %v2591 = vadd.f32 %v2590, %v2175
        %v2592 = vadd.f32 %v2591, %v2183
        %v2593 = vadd.f32 %v2592, %v2191
        %v2594 = vadd.f32 %v2593, %v2199
        %v2595 = vadd.f32 %v2594, %v2207
        %v2596 = vadd.f32 %v2595, %v2215
        %v2597 = vadd.f32 %v2596, %v2223
        %v2598 = vadd.f32 %v2597, %v2231
        %v2599 = vadd.f32 %v2598, %v2239
        %v2600 = vadd.f32 %v2599, %v2247
        %v2601 = vadd.f32 %v2600, %v2255
        %v2602 = vadd.f32 %v2601, %v2263
        %v2603 = vrot.slane %v2602, 4
        %v2604 = vadd.f32 %v2602, %v2603
        %v2605 = vrot.slane %v2604, 2
        %v2606 = vadd.f32 %v2604, %v2605
        %v2607 = vrot.slane %v2606, 1
        %v2608 = vadd.f32 %v2606, %v2607
        %v2609 = vadd.f32 %v2144, %v2152
        %v2610 = vadd.f32 %v2609, %v2160
        %v2611 = vadd.f32 %v2610, %v2168
        %v2612 = vadd.f32 %v2611, %v2176
        %v2613 = vadd.f32 %v2612, %v2184
        %v2614 = vadd.f32 %v2613, %v2192
        %v2615 = vadd.f32 %v2614, %v2200
        %v2616 = vadd.f32 %v2615, %v2208
        %v2617 = vadd.f32 %v2616, %v2216
        %v2618 = vadd.f32 %v2617, %v2224
        %v2619 = vadd.f32 %v2618, %v2232
        %v2620 = vadd.f32 %v2619, %v2240
        %v2621 = vadd.f32 %v2620, %v2248
        %v2622 = vadd.f32 %v2621, %v2256
        %v2623 = vadd.f32 %v2622, %v2264
        %v2624 = vrot.slane %v2623, 4
        %v2625 = vadd.f32 %v2623, %v2624
        %v2626 = vrot.slane %v2625, 2
        %v2627 = vadd.f32 %v2625, %v2626
        %v2628 = vrot.slane %v2627, 1
        %v2629 = vadd.f32 %v2627, %v2628
        %v2630 = vadd.f32 %v2145, %v2153
        %v2631 = vadd.f32 %v2630, %v2161
        %v2632 = vadd.f32 %v2631, %v2169
        %v2633 = vadd.f32 %v2632, %v2177
        %v2634 = vadd.f32 %v2633, %v2185
        %v2635 = vadd.f32 %v2634, %v2193
        %v2636 = vadd.f32 %v2635, %v2201
        %v2637 = vadd.f32 %v2636, %v2209
        %v2638 = vadd.f32 %v2637, %v2217
        %v2639 = vadd.f32 %v2638, %v2225
        %v2640 = vadd.f32 %v2639, %v2233
        %v2641 = vadd.f32 %v2640, %v2241
        %v2642 = vadd.f32 %v2641, %v2249
        %v2643 = vadd.f32 %v2642, %v2257
        %v2644 = vadd.f32 %v2643, %v2265
        %v2645 = vrot.slane %v2644, 4
        %v2646 = vadd.f32 %v2644, %v2645
        %v2647 = vrot.slane %v2646, 2
        %v2648 = vadd.f32 %v2646, %v2647
        %v2649 = vrot.slane %v2648, 1
        %v2650 = vadd.f32 %v2648, %v2649
        %v2651 = vadd.f32 %v2146, %v2154
        %v2652 = vadd.f32 %v2651, %v2162
        %v2653 = vadd.f32 %v2652, %v2170
        %v2654 = vadd.f32 %v2653, %v2178
        %v2655 = vadd.f32 %v2654, %v2186
        %v2656 = vadd.f32 %v2655, %v2194
        %v2657 = vadd.f32 %v2656, %v2202
        %v2658 = vadd.f32 %v2657, %v2210
        %v2659 = vadd.f32 %v2658, %v2218
        %v2660 = vadd.f32 %v2659, %v2226
        %v2661 = vadd.f32 %v2660, %v2234
        %v2662 = vadd.f32 %v2661, %v2242
        %v2663 = vadd.f32 %v2662, %v2250
        %v2664 = vadd.f32 %v2663, %v2258
        %v2665 = vadd.f32 %v2664, %v2266
        %v2666 = vrot.slane %v2665, 4
        %v2667 = vadd.f32 %v2665, %v2666
        %v2668 = vrot.slane %v2667, 2
        %v2669 = vadd.f32 %v2667, %v2668
        %v2670 = vrot.slane %v2669, 1
        %v2671 = vadd.f32 %v2669, %v2670
        %v2672 = vadd.f32 %v2147, %v2155
        %v2673 = vadd.f32 %v2672, %v2163
        %v2674 = vadd.f32 %v2673, %v2171
        %v2675 = vadd.f32 %v2674, %v2179
        %v2676 = vadd.f32 %v2675, %v2187
        %v2677 = vadd.f32 %v2676, %v2195
        %v2678 = vadd.f32 %v2677, %v2203
        %v2679 = vadd.f32 %v2678, %v2211
        %v2680 = vadd.f32 %v2679, %v2219
        %v2681 = vadd.f32 %v2680, %v2227
        %v2682 = vadd.f32 %v2681, %v2235
        %v2683 = vadd.f32 %v2682, %v2243
        %v2684 = vadd.f32 %v2683, %v2251
        %v2685 = vadd.f32 %v2684, %v2259
        %v2686 = vadd.f32 %v2685, %v2267
        %v2687 = vrot.slane %v2686, 4
        %v2688 = vadd.f32 %v2686, %v2687
        %v2689 = vrot.slane %v2688, 2
        %v2690 = vadd.f32 %v2688, %v2689
        %v2691 = vrot.slane %v2690, 1
        %v2692 = vadd.f32 %v2690, %v2691
        %v2701 = vcombine.low %v2545, %v2566
        %v2702 = vcombine.low %v2587, %v2608
        %v2703 = vcombine.low %v2629, %v2650
        %v2704 = vcombine.low %v2671, %v2692
        %v2706 = vunpack.c.l.s4 1966171168
        %v2707 = vunpack.c.0.s8 %v2706
        %v2708 = vlaneseq
        %v2709 = vshrl.u32 %v2708, 7
        %v2710 = vsub.s32 %v2707, %v2709
        %v2711 = vrot.slane %v2701, %v2710
        %v2713 = vunpack.c.l.s4 1966171168
        %v2714 = vunpack.c.0.s8 %v2713
        %v2715 = vlaneseq
        %v2716 = vshrl.u32 %v2715, 7
        %v2717 = vsub.s32 %v2714, %v2716
        %v2718 = vrot.slane %v2702, %v2717
        %v2720 = vunpack.c.l.s4 1966171168
        %v2721 = vunpack.c.0.s8 %v2720
        %v2722 = vlaneseq
        %v2723 = vshrl.u32 %v2722, 7
        %v2724 = vsub.s32 %v2721, %v2723
        %v2725 = vrot.slane %v2703, %v2724
        %v2727 = vunpack.c.l.s4 1966171168
        %v2728 = vunpack.c.0.s8 %v2727
        %v2729 = vlaneseq
        %v2730 = vshrl.u32 %v2729, 7
        %v2731 = vsub.s32 %v2728, %v2730
        %v2732 = vrot.slane %v2704, %v2731
        %v2733 = vcombine.low %v2711, %v2718
        %v2734 = vcombine.low %v2725, %v2732
        %v2736 = vunpack.c.l.s4 1966171168
        %v2737 = vunpack.c.0.s8 %v2736
        %v2738 = vlaneseq
        %v2739 = vshrl.u32 %v2738, 7
        %v2740 = vsub.s32 %v2737, %v2739
        %v2741 = vrot.slane %v2733, %v2740
        %v2743 = vunpack.c.l.s4 1966171168
        %v2744 = vunpack.c.0.s8 %v2743
        %v2745 = vlaneseq
        %v2746 = vshrl.u32 %v2745, 7
        %v2747 = vsub.s32 %v2744, %v2746
        %v2748 = vrot.slane %v2734, %v2747
        %v2749 = vcombine.low %v2741, %v2748
        %v2751 = vadd.f32 %v2524, %v2749
        %2752 = vst [vmem:[%s512] sm:$0xff] %v2751
        %v2753 = vld [vmem:[%s516] sm:$0xff]
        %v2754 = vmul.f32 %v2140, %v2140
        %v2755 = vmul.f32 %v2141, %v2141
        %v2756 = vmul.f32 %v2142, %v2142
        %v2757 = vmul.f32 %v2143, %v2143
        %v2758 = vmul.f32 %v2144, %v2144
        %v2759 = vmul.f32 %v2145, %v2145
        %v2760 = vmul.f32 %v2146, %v2146
        %v2761 = vmul.f32 %v2147, %v2147
        %v2762 = vmul.f32 %v2148, %v2148
        %v2763 = vmul.f32 %v2149, %v2149
        %v2764 = vmul.f32 %v2150, %v2150
        %v2765 = vmul.f32 %v2151, %v2151
        %v2766 = vmul.f32 %v2152, %v2152
        %v2767 = vmul.f32 %v2153, %v2153
        %v2768 = vmul.f32 %v2154, %v2154
        %v2769 = vmul.f32 %v2155, %v2155
        %v2770 = vmul.f32 %v2156, %v2156
        %v2771 = vmul.f32 %v2157, %v2157
        %v2772 = vmul.f32 %v2158, %v2158
        %v2773 = vmul.f32 %v2159, %v2159
        %v2774 = vmul.f32 %v2160, %v2160
        %v2775 = vmul.f32 %v2161, %v2161
        %v2776 = vmul.f32 %v2162, %v2162
        %v2777 = vmul.f32 %v2163, %v2163
        %v2778 = vmul.f32 %v2164, %v2164
        %v2779 = vmul.f32 %v2165, %v2165
        %v2780 = vmul.f32 %v2166, %v2166
        %v2781 = vmul.f32 %v2167, %v2167
        %v2782 = vmul.f32 %v2168, %v2168
        %v2783 = vmul.f32 %v2169, %v2169
        %v2784 = vmul.f32 %v2170, %v2170
        %v2785 = vmul.f32 %v2171, %v2171
        %v2786 = vmul.f32 %v2172, %v2172
        %v2787 = vmul.f32 %v2173, %v2173
        %v2788 = vmul.f32 %v2174, %v2174
        %v2789 = vmul.f32 %v2175, %v2175
        %v2790 = vmul.f32 %v2176, %v2176
        %v2791 = vmul.f32 %v2177, %v2177
        %v2792 = vmul.f32 %v2178, %v2178
        %v2793 = vmul.f32 %v2179, %v2179
        %v2794 = vmul.f32 %v2180, %v2180
        %v2795 = vmul.f32 %v2181, %v2181
        %v2796 = vmul.f32 %v2182, %v2182
        %v2797 = vmul.f32 %v2183, %v2183
        %v2798 = vmul.f32 %v2184, %v2184
        %v2799 = vmul.f32 %v2185, %v2185
        %v2800 = vmul.f32 %v2186, %v2186
        %v2801 = vmul.f32 %v2187, %v2187
        %v2802 = vmul.f32 %v2188, %v2188
        %v2803 = vmul.f32 %v2189, %v2189
        %v2804 = vmul.f32 %v2190, %v2190
        %v2805 = vmul.f32 %v2191, %v2191
        %v2806 = vmul.f32 %v2192, %v2192
        %v2807 = vmul.f32 %v2193, %v2193
        %v2808 = vmul.f32 %v2194, %v2194
        %v2809 = vmul.f32 %v2195, %v2195
        %v2810 = vmul.f32 %v2196, %v2196
        %v2811 = vmul.f32 %v2197, %v2197
        %v2812 = vmul.f32 %v2198, %v2198
        %v2813 = vmul.f32 %v2199, %v2199
        %v2814 = vmul.f32 %v2200, %v2200
        %v2815 = vmul.f32 %v2201, %v2201
        %v2816 = vmul.f32 %v2202, %v2202
        %v2817 = vmul.f32 %v2203, %v2203
        %v2818 = vmul.f32 %v2204, %v2204
        %v2819 = vmul.f32 %v2205, %v2205
        %v2820 = vmul.f32 %v2206, %v2206
        %v2821 = vmul.f32 %v2207, %v2207
        %v2822 = vmul.f32 %v2208, %v2208
        %v2823 = vmul.f32 %v2209, %v2209
        %v2824 = vmul.f32 %v2210, %v2210
        %v2825 = vmul.f32 %v2211, %v2211
        %v2826 = vmul.f32 %v2212, %v2212
        %v2827 = vmul.f32 %v2213, %v2213
        %v2828 = vmul.f32 %v2214, %v2214
        %v2829 = vmul.f32 %v2215, %v2215
        %v2830 = vmul.f32 %v2216, %v2216
        %v2831 = vmul.f32 %v2217, %v2217
        %v2832 = vmul.f32 %v2218, %v2218
        %v2833 = vmul.f32 %v2219, %v2219
        %v2834 = vmul.f32 %v2220, %v2220
        %v2835 = vmul.f32 %v2221, %v2221
        %v2836 = vmul.f32 %v2222, %v2222
        %v2837 = vmul.f32 %v2223, %v2223
        %v2838 = vmul.f32 %v2224, %v2224
        %v2839 = vmul.f32 %v2225, %v2225
        %v2840 = vmul.f32 %v2226, %v2226
        %v2841 = vmul.f32 %v2227, %v2227
        %v2842 = vmul.f32 %v2228, %v2228
        %v2843 = vmul.f32 %v2229, %v2229
        %v2844 = vmul.f32 %v2230, %v2230
        %v2845 = vmul.f32 %v2231, %v2231
        %v2846 = vmul.f32 %v2232, %v2232
        %v2847 = vmul.f32 %v2233, %v2233
        %v2848 = vmul.f32 %v2234, %v2234
        %v2849 = vmul.f32 %v2235, %v2235
        %v2850 = vmul.f32 %v2236, %v2236
        %v2851 = vmul.f32 %v2237, %v2237
        %v2852 = vmul.f32 %v2238, %v2238
        %v2853 = vmul.f32 %v2239, %v2239
        %v2854 = vmul.f32 %v2240, %v2240
        %v2855 = vmul.f32 %v2241, %v2241
        %v2856 = vmul.f32 %v2242, %v2242
        %v2857 = vmul.f32 %v2243, %v2243
        %v2858 = vmul.f32 %v2244, %v2244
        %v2859 = vmul.f32 %v2245, %v2245
        %v2860 = vmul.f32 %v2246, %v2246
        %v2861 = vmul.f32 %v2247, %v2247
        %v2862 = vmul.f32 %v2248, %v2248
        %v2863 = vmul.f32 %v2249, %v2249
        %v2864 = vmul.f32 %v2250, %v2250
        %v2865 = vmul.f32 %v2251, %v2251
        %v2866 = vmul.f32 %v2252, %v2252
        %v2867 = vmul.f32 %v2253, %v2253
        %v2868 = vmul.f32 %v2254, %v2254
        %v2869 = vmul.f32 %v2255, %v2255
        %v2870 = vmul.f32 %v2256, %v2256
        %v2871 = vmul.f32 %v2257, %v2257
        %v2872 = vmul.f32 %v2258, %v2258
        %v2873 = vmul.f32 %v2259, %v2259
        %v2874 = vmul.f32 %v2260, %v2260
        %v2875 = vmul.f32 %v2261, %v2261
        %v2876 = vmul.f32 %v2262, %v2262
        %v2877 = vmul.f32 %v2263, %v2263
        %v2878 = vmul.f32 %v2264, %v2264
        %v2879 = vmul.f32 %v2265, %v2265
        %v2880 = vmul.f32 %v2266, %v2266
        %v2881 = vmul.f32 %v2267, %v2267
        %v2882 = vadd.f32 %v2754, %v2762
        %v2883 = vadd.f32 %v2882, %v2770
        %v2884 = vadd.f32 %v2883, %v2778
        %v2885 = vadd.f32 %v2884, %v2786
        %v2886 = vadd.f32 %v2885, %v2794
        %v2887 = vadd.f32 %v2886, %v2802
        %v2888 = vadd.f32 %v2887, %v2810
        %v2889 = vadd.f32 %v2888, %v2818
        %v2890 = vadd.f32 %v2889, %v2826
        %v2891 = vadd.f32 %v2890, %v2834
        %v2892 = vadd.f32 %v2891, %v2842
        %v2893 = vadd.f32 %v2892, %v2850
        %v2894 = vadd.f32 %v2893, %v2858
        %v2895 = vadd.f32 %v2894, %v2866
        %v2896 = vadd.f32 %v2895, %v2874
        %v2897 = vrot.slane %v2896, 4
        %v2898 = vadd.f32 %v2896, %v2897
        %v2899 = vrot.slane %v2898, 2
        %v2900 = vadd.f32 %v2898, %v2899
        %v2901 = vrot.slane %v2900, 1
        %v2902 = vadd.f32 %v2900, %v2901
        %v2903 = vadd.f32 %v2755, %v2763
        %v2904 = vadd.f32 %v2903, %v2771
        %v2905 = vadd.f32 %v2904, %v2779
        %v2906 = vadd.f32 %v2905, %v2787
        %v2907 = vadd.f32 %v2906, %v2795
        %v2908 = vadd.f32 %v2907, %v2803
        %v2909 = vadd.f32 %v2908, %v2811
        %v2910 = vadd.f32 %v2909, %v2819
        %v2911 = vadd.f32 %v2910, %v2827
        %v2912 = vadd.f32 %v2911, %v2835
        %v2913 = vadd.f32 %v2912, %v2843
        %v2914 = vadd.f32 %v2913, %v2851
        %v2915 = vadd.f32 %v2914, %v2859
        %v2916 = vadd.f32 %v2915, %v2867
        %v2917 = vadd.f32 %v2916, %v2875
        %v2918 = vrot.slane %v2917, 4
        %v2919 = vadd.f32 %v2917, %v2918
        %v2920 = vrot.slane %v2919, 2
        %v2921 = vadd.f32 %v2919, %v2920
        %v2922 = vrot.slane %v2921, 1
        %v2923 = vadd.f32 %v2921, %v2922
        %v2924 = vadd.f32 %v2756, %v2764
        %v2925 = vadd.f32 %v2924, %v2772
        %v2926 = vadd.f32 %v2925, %v2780
        %v2927 = vadd.f32 %v2926, %v2788
        %v2928 = vadd.f32 %v2927, %v2796
        %v2929 = vadd.f32 %v2928, %v2804
        %v2930 = vadd.f32 %v2929, %v2812
        %v2931 = vadd.f32 %v2930, %v2820
        %v2932 = vadd.f32 %v2931, %v2828
        %v2933 = vadd.f32 %v2932, %v2836
        %v2934 = vadd.f32 %v2933, %v2844
        %v2935 = vadd.f32 %v2934, %v2852
        %v2936 = vadd.f32 %v2935, %v2860
        %v2937 = vadd.f32 %v2936, %v2868
        %v2938 = vadd.f32 %v2937, %v2876
        %v2939 = vrot.slane %v2938, 4
        %v2940 = vadd.f32 %v2938, %v2939
        %v2941 = vrot.slane %v2940, 2
        %v2942 = vadd.f32 %v2940, %v2941
        %v2943 = vrot.slane %v2942, 1
        %v2944 = vadd.f32 %v2942, %v2943
        %v2945 = vadd.f32 %v2757, %v2765
        %v2946 = vadd.f32 %v2945, %v2773
        %v2947 = vadd.f32 %v2946, %v2781
        %v2948 = vadd.f32 %v2947, %v2789
        %v2949 = vadd.f32 %v2948, %v2797
        %v2950 = vadd.f32 %v2949, %v2805
        %v2951 = vadd.f32 %v2950, %v2813
        %v2952 = vadd.f32 %v2951, %v2821
        %v2953 = vadd.f32 %v2952, %v2829
        %v2954 = vadd.f32 %v2953, %v2837
        %v2955 = vadd.f32 %v2954, %v2845
        %v2956 = vadd.f32 %v2955, %v2853
        %v2957 = vadd.f32 %v2956, %v2861
        %v2958 = vadd.f32 %v2957, %v2869
        %v2959 = vadd.f32 %v2958, %v2877
        %v2960 = vrot.slane %v2959, 4
        %v2961 = vadd.f32 %v2959, %v2960
        %v2962 = vrot.slane %v2961, 2
        %v2963 = vadd.f32 %v2961, %v2962
        %v2964 = vrot.slane %v2963, 1
        %v2965 = vadd.f32 %v2963, %v2964
        %v2966 = vadd.f32 %v2758, %v2766
        %v2967 = vadd.f32 %v2966, %v2774
        %v2968 = vadd.f32 %v2967, %v2782
        %v2969 = vadd.f32 %v2968, %v2790
        %v2970 = vadd.f32 %v2969, %v2798
        %v2971 = vadd.f32 %v2970, %v2806
        %v2972 = vadd.f32 %v2971, %v2814
        %v2973 = vadd.f32 %v2972, %v2822
        %v2974 = vadd.f32 %v2973, %v2830
        %v2975 = vadd.f32 %v2974, %v2838
        %v2976 = vadd.f32 %v2975, %v2846
        %v2977 = vadd.f32 %v2976, %v2854
        %v2978 = vadd.f32 %v2977, %v2862
        %v2979 = vadd.f32 %v2978, %v2870
        %v2980 = vadd.f32 %v2979, %v2878
        %v2981 = vrot.slane %v2980, 4
        %v2982 = vadd.f32 %v2980, %v2981
        %v2983 = vrot.slane %v2982, 2
        %v2984 = vadd.f32 %v2982, %v2983
        %v2985 = vrot.slane %v2984, 1
        %v2986 = vadd.f32 %v2984, %v2985
        %v2987 = vadd.f32 %v2759, %v2767
        %v2988 = vadd.f32 %v2987, %v2775
        %v2989 = vadd.f32 %v2988, %v2783
        %v2990 = vadd.f32 %v2989, %v2791
        %v2991 = vadd.f32 %v2990, %v2799
        %v2992 = vadd.f32 %v2991, %v2807
        %v2993 = vadd.f32 %v2992, %v2815
        %v2994 = vadd.f32 %v2993, %v2823
        %v2995 = vadd.f32 %v2994, %v2831
        %v2996 = vadd.f32 %v2995, %v2839
        %v2997 = vadd.f32 %v2996, %v2847
        %v2998 = vadd.f32 %v2997, %v2855
        %v2999 = vadd.f32 %v2998, %v2863
        %v3000 = vadd.f32 %v2999, %v2871
        %v3001 = vadd.f32 %v3000, %v2879
        %v3002 = vrot.slane %v3001, 4
        %v3003 = vadd.f32 %v3001, %v3002
        %v3004 = vrot.slane %v3003, 2
        %v3005 = vadd.f32 %v3003, %v3004
        %v3006 = vrot.slane %v3005, 1
        %v3007 = vadd.f32 %v3005, %v3006
        %v3008 = vadd.f32 %v2760, %v2768
        %v3009 = vadd.f32 %v3008, %v2776
        %v3010 = vadd.f32 %v3009, %v2784
        %v3011 = vadd.f32 %v3010, %v2792
        %v3012 = vadd.f32 %v3011, %v2800
        %v3013 = vadd.f32 %v3012, %v2808
        %v3014 = vadd.f32 %v3013, %v2816
        %v3015 = vadd.f32 %v3014, %v2824
        %v3016 = vadd.f32 %v3015, %v2832
        %v3017 = vadd.f32 %v3016, %v2840
        %v3018 = vadd.f32 %v3017, %v2848
        %v3019 = vadd.f32 %v3018, %v2856
        %v3020 = vadd.f32 %v3019, %v2864
        %v3021 = vadd.f32 %v3020, %v2872
        %v3022 = vadd.f32 %v3021, %v2880
        %v3023 = vrot.slane %v3022, 4
        %v3024 = vadd.f32 %v3022, %v3023
        %v3025 = vrot.slane %v3024, 2
        %v3026 = vadd.f32 %v3024, %v3025
        %v3027 = vrot.slane %v3026, 1
        %v3028 = vadd.f32 %v3026, %v3027
        %v3029 = vadd.f32 %v2761, %v2769
        %v3030 = vadd.f32 %v3029, %v2777
        %v3031 = vadd.f32 %v3030, %v2785
        %v3032 = vadd.f32 %v3031, %v2793
        %v3033 = vadd.f32 %v3032, %v2801
        %v3034 = vadd.f32 %v3033, %v2809
        %v3035 = vadd.f32 %v3034, %v2817
        %v3036 = vadd.f32 %v3035, %v2825
        %v3037 = vadd.f32 %v3036, %v2833
        %v3038 = vadd.f32 %v3037, %v2841
        %v3039 = vadd.f32 %v3038, %v2849
        %v3040 = vadd.f32 %v3039, %v2857
        %v3041 = vadd.f32 %v3040, %v2865
        %v3042 = vadd.f32 %v3041, %v2873
        %v3043 = vadd.f32 %v3042, %v2881
        %v3044 = vrot.slane %v3043, 4
        %v3045 = vadd.f32 %v3043, %v3044
        %v3046 = vrot.slane %v3045, 2
        %v3047 = vadd.f32 %v3045, %v3046
        %v3048 = vrot.slane %v3047, 1
        %v3049 = vadd.f32 %v3047, %v3048
        %v3058 = vcombine.low %v2902, %v2923
        %v3059 = vcombine.low %v2944, %v2965
        %v3060 = vcombine.low %v2986, %v3007
        %v3061 = vcombine.low %v3028, %v3049
        %v3063 = vunpack.c.l.s4 1966171168
        %v3064 = vunpack.c.0.s8 %v3063
        %v3065 = vlaneseq
        %v3066 = vshrl.u32 %v3065, 7
        %v3067 = vsub.s32 %v3064, %v3066
        %v3068 = vrot.slane %v3058, %v3067
        %v3070 = vunpack.c.l.s4 1966171168
        %v3071 = vunpack.c.0.s8 %v3070
        %v3072 = vlaneseq
        %v3073 = vshrl.u32 %v3072, 7
        %v3074 = vsub.s32 %v3071, %v3073
        %v3075 = vrot.slane %v3059, %v3074
        %v3077 = vunpack.c.l.s4 1966171168
        %v3078 = vunpack.c.0.s8 %v3077
        %v3079 = vlaneseq
        %v3080 = vshrl.u32 %v3079, 7
        %v3081 = vsub.s32 %v3078, %v3080
        %v3082 = vrot.slane %v3060, %v3081
        %v3084 = vunpack.c.l.s4 1966171168
        %v3085 = vunpack.c.0.s8 %v3084
        %v3086 = vlaneseq
        %v3087 = vshrl.u32 %v3086, 7
        %v3088 = vsub.s32 %v3085, %v3087
        %v3089 = vrot.slane %v3061, %v3088
        %v3090 = vcombine.low %v3068, %v3075
        %v3091 = vcombine.low %v3082, %v3089
        %v3093 = vunpack.c.l.s4 1966171168
        %v3094 = vunpack.c.0.s8 %v3093
        %v3095 = vlaneseq
        %v3096 = vshrl.u32 %v3095, 7
        %v3097 = vsub.s32 %v3094, %v3096
        %v3098 = vrot.slane %v3090, %v3097
        %v3100 = vunpack.c.l.s4 1966171168
        %v3101 = vunpack.c.0.s8 %v3100
        %v3102 = vlaneseq
        %v3103 = vshrl.u32 %v3102, 7
        %v3104 = vsub.s32 %v3101, %v3103
        %v3105 = vrot.slane %v3091, %v3104
        %v3106 = vcombine.low %v3098, %v3105
        %v3108 = vadd.f32 %v2753, %v3106
        %3109 = vst [vmem:[%s516] sm:$0xff] %v3108
        %v3110 = vld [vmem:[%s520] sm:$0xff]
        %v3111 = vmax.f32 %v2268, %v2276
        %v3112 = vmax.f32 %v3111, %v2284
        %v3113 = vmax.f32 %v3112, %v2292
        %v3114 = vmax.f32 %v3113, %v2300
        %v3115 = vmax.f32 %v3114, %v2308
        %v3116 = vmax.f32 %v3115, %v2316
        %v3117 = vmax.f32 %v3116, %v2324
        %v3118 = vmax.f32 %v3117, %v2332
        %v3119 = vmax.f32 %v3118, %v2340
        %v3120 = vmax.f32 %v3119, %v2348
        %v3121 = vmax.f32 %v3120, %v2356
        %v3122 = vmax.f32 %v3121, %v2364
        %v3123 = vmax.f32 %v3122, %v2372
        %v3124 = vmax.f32 %v3123, %v2380
        %v3125 = vmax.f32 %v3124, %v2388
        %v3126 = vrot.slane %v3125, 4
        %v3127 = vmax.f32 %v3125, %v3126
        %v3128 = vrot.slane %v3127, 2
        %v3129 = vmax.f32 %v3127, %v3128
        %v3130 = vrot.slane %v3129, 1
        %v3131 = vmax.f32 %v3129, %v3130
        %v3132 = vmax.f32 %v2269, %v2277
        %v3133 = vmax.f32 %v3132, %v2285
        %v3134 = vmax.f32 %v3133, %v2293
        %v3135 = vmax.f32 %v3134, %v2301
        %v3136 = vmax.f32 %v3135, %v2309
        %v3137 = vmax.f32 %v3136, %v2317
        %v3138 = vmax.f32 %v3137, %v2325
        %v3139 = vmax.f32 %v3138, %v2333
        %v3140 = vmax.f32 %v3139, %v2341
        %v3141 = vmax.f32 %v3140, %v2349
        %v3142 = vmax.f32 %v3141, %v2357
        %v3143 = vmax.f32 %v3142, %v2365
        %v3144 = vmax.f32 %v3143, %v2373
        %v3145 = vmax.f32 %v3144, %v2381
        %v3146 = vmax.f32 %v3145, %v2389
        %v3147 = vrot.slane %v3146, 4
        %v3148 = vmax.f32 %v3146, %v3147
        %v3149 = vrot.slane %v3148, 2
        %v3150 = vmax.f32 %v3148, %v3149
        %v3151 = vrot.slane %v3150, 1
        %v3152 = vmax.f32 %v3150, %v3151
        %v3153 = vmax.f32 %v2270, %v2278
        %v3154 = vmax.f32 %v3153, %v2286
        %v3155 = vmax.f32 %v3154, %v2294
        %v3156 = vmax.f32 %v3155, %v2302
        %v3157 = vmax.f32 %v3156, %v2310
        %v3158 = vmax.f32 %v3157, %v2318
        %v3159 = vmax.f32 %v3158, %v2326
        %v3160 = vmax.f32 %v3159, %v2334
        %v3161 = vmax.f32 %v3160, %v2342
        %v3162 = vmax.f32 %v3161, %v2350
        %v3163 = vmax.f32 %v3162, %v2358
        %v3164 = vmax.f32 %v3163, %v2366
        %v3165 = vmax.f32 %v3164, %v2374
        %v3166 = vmax.f32 %v3165, %v2382
        %v3167 = vmax.f32 %v3166, %v2390
        %v3168 = vrot.slane %v3167, 4
        %v3169 = vmax.f32 %v3167, %v3168
        %v3170 = vrot.slane %v3169, 2
        %v3171 = vmax.f32 %v3169, %v3170
        %v3172 = vrot.slane %v3171, 1
        %v3173 = vmax.f32 %v3171, %v3172
        %v3174 = vmax.f32 %v2271, %v2279
        %v3175 = vmax.f32 %v3174, %v2287
        %v3176 = vmax.f32 %v3175, %v2295
        %v3177 = vmax.f32 %v3176, %v2303
        %v3178 = vmax.f32 %v3177, %v2311
        %v3179 = vmax.f32 %v3178, %v2319
        %v3180 = vmax.f32 %v3179, %v2327
        %v3181 = vmax.f32 %v3180, %v2335
        %v3182 = vmax.f32 %v3181, %v2343
        %v3183 = vmax.f32 %v3182, %v2351
        %v3184 = vmax.f32 %v3183, %v2359
        %v3185 = vmax.f32 %v3184, %v2367
        %v3186 = vmax.f32 %v3185, %v2375
        %v3187 = vmax.f32 %v3186, %v2383
        %v3188 = vmax.f32 %v3187, %v2391
        %v3189 = vrot.slane %v3188, 4
        %v3190 = vmax.f32 %v3188, %v3189
        %v3191 = vrot.slane %v3190, 2
        %v3192 = vmax.f32 %v3190, %v3191
        %v3193 = vrot.slane %v3192, 1
        %v3194 = vmax.f32 %v3192, %v3193
        %v3195 = vmax.f32 %v2272, %v2280
        %v3196 = vmax.f32 %v3195, %v2288
        %v3197 = vmax.f32 %v3196, %v2296
        %v3198 = vmax.f32 %v3197, %v2304
        %v3199 = vmax.f32 %v3198, %v2312
        %v3200 = vmax.f32 %v3199, %v2320
        %v3201 = vmax.f32 %v3200, %v2328
        %v3202 = vmax.f32 %v3201, %v2336
        %v3203 = vmax.f32 %v3202, %v2344
        %v3204 = vmax.f32 %v3203, %v2352
        %v3205 = vmax.f32 %v3204, %v2360
        %v3206 = vmax.f32 %v3205, %v2368
        %v3207 = vmax.f32 %v3206, %v2376
        %v3208 = vmax.f32 %v3207, %v2384
        %v3209 = vmax.f32 %v3208, %v2392
        %v3210 = vrot.slane %v3209, 4
        %v3211 = vmax.f32 %v3209, %v3210
        %v3212 = vrot.slane %v3211, 2
        %v3213 = vmax.f32 %v3211, %v3212
        %v3214 = vrot.slane %v3213, 1
        %v3215 = vmax.f32 %v3213, %v3214
        %v3216 = vmax.f32 %v2273, %v2281
        %v3217 = vmax.f32 %v3216, %v2289
        %v3218 = vmax.f32 %v3217, %v2297
        %v3219 = vmax.f32 %v3218, %v2305
        %v3220 = vmax.f32 %v3219, %v2313
        %v3221 = vmax.f32 %v3220, %v2321
        %v3222 = vmax.f32 %v3221, %v2329
        %v3223 = vmax.f32 %v3222, %v2337
        %v3224 = vmax.f32 %v3223, %v2345
        %v3225 = vmax.f32 %v3224, %v2353
        %v3226 = vmax.f32 %v3225, %v2361
        %v3227 = vmax.f32 %v3226, %v2369
        %v3228 = vmax.f32 %v3227, %v2377
        %v3229 = vmax.f32 %v3228, %v2385
        %v3230 = vmax.f32 %v3229, %v2393
        %v3231 = vrot.slane %v3230, 4
        %v3232 = vmax.f32 %v3230, %v3231
        %v3233 = vrot.slane %v3232, 2
        %v3234 = vmax.f32 %v3232, %v3233
        %v3235 = vrot.slane %v3234, 1
        %v3236 = vmax.f32 %v3234, %v3235
        %v3237 = vmax.f32 %v2274, %v2282
        %v3238 = vmax.f32 %v3237, %v2290
        %v3239 = vmax.f32 %v3238, %v2298
        %v3240 = vmax.f32 %v3239, %v2306
        %v3241 = vmax.f32 %v3240, %v2314
        %v3242 = vmax.f32 %v3241, %v2322
        %v3243 = vmax.f32 %v3242, %v2330
        %v3244 = vmax.f32 %v3243, %v2338
        %v3245 = vmax.f32 %v3244, %v2346
        %v3246 = vmax.f32 %v3245, %v2354
        %v3247 = vmax.f32 %v3246, %v2362
        %v3248 = vmax.f32 %v3247, %v2370
        %v3249 = vmax.f32 %v3248, %v2378
        %v3250 = vmax.f32 %v3249, %v2386
        %v3251 = vmax.f32 %v3250, %v2394
        %v3252 = vrot.slane %v3251, 4
        %v3253 = vmax.f32 %v3251, %v3252
        %v3254 = vrot.slane %v3253, 2
        %v3255 = vmax.f32 %v3253, %v3254
        %v3256 = vrot.slane %v3255, 1
        %v3257 = vmax.f32 %v3255, %v3256
        %v3258 = vmax.f32 %v2275, %v2283
        %v3259 = vmax.f32 %v3258, %v2291
        %v3260 = vmax.f32 %v3259, %v2299
        %v3261 = vmax.f32 %v3260, %v2307
        %v3262 = vmax.f32 %v3261, %v2315
        %v3263 = vmax.f32 %v3262, %v2323
        %v3264 = vmax.f32 %v3263, %v2331
        %v3265 = vmax.f32 %v3264, %v2339
        %v3266 = vmax.f32 %v3265, %v2347
        %v3267 = vmax.f32 %v3266, %v2355
        %v3268 = vmax.f32 %v3267, %v2363
        %v3269 = vmax.f32 %v3268, %v2371
        %v3270 = vmax.f32 %v3269, %v2379
        %v3271 = vmax.f32 %v3270, %v2387
        %v3272 = vmax.f32 %v3271, %v2395
        %v3273 = vrot.slane %v3272, 4
        %v3274 = vmax.f32 %v3272, %v3273
        %v3275 = vrot.slane %v3274, 2
        %v3276 = vmax.f32 %v3274, %v3275
        %v3277 = vrot.slane %v3276, 1
        %v3278 = vmax.f32 %v3276, %v3277
        %v3287 = vcombine.low %v3131, %v3152
        %v3288 = vcombine.low %v3173, %v3194
        %v3289 = vcombine.low %v3215, %v3236
        %v3290 = vcombine.low %v3257, %v3278
        %v3292 = vunpack.c.l.s4 1966171168
        %v3293 = vunpack.c.0.s8 %v3292
        %v3294 = vlaneseq
        %v3295 = vshrl.u32 %v3294, 7
        %v3296 = vsub.s32 %v3293, %v3295
        %v3297 = vrot.slane %v3287, %v3296
        %v3299 = vunpack.c.l.s4 1966171168
        %v3300 = vunpack.c.0.s8 %v3299
        %v3301 = vlaneseq
        %v3302 = vshrl.u32 %v3301, 7
        %v3303 = vsub.s32 %v3300, %v3302
        %v3304 = vrot.slane %v3288, %v3303
        %v3306 = vunpack.c.l.s4 1966171168
        %v3307 = vunpack.c.0.s8 %v3306
        %v3308 = vlaneseq
        %v3309 = vshrl.u32 %v3308, 7
        %v3310 = vsub.s32 %v3307, %v3309
        %v3311 = vrot.slane %v3289, %v3310
        %v3313 = vunpack.c.l.s4 1966171168
        %v3314 = vunpack.c.0.s8 %v3313
        %v3315 = vlaneseq
        %v3316 = vshrl.u32 %v3315, 7
        %v3317 = vsub.s32 %v3314, %v3316
        %v3318 = vrot.slane %v3290, %v3317
        %v3319 = vcombine.low %v3297, %v3304
        %v3320 = vcombine.low %v3311, %v3318
        %v3322 = vunpack.c.l.s4 1966171168
        %v3323 = vunpack.c.0.s8 %v3322
        %v3324 = vlaneseq
        %v3325 = vshrl.u32 %v3324, 7
        %v3326 = vsub.s32 %v3323, %v3325
        %v3327 = vrot.slane %v3319, %v3326
        %v3329 = vunpack.c.l.s4 1966171168
        %v3330 = vunpack.c.0.s8 %v3329
        %v3331 = vlaneseq
        %v3332 = vshrl.u32 %v3331, 7
        %v3333 = vsub.s32 %v3330, %v3332
        %v3334 = vrot.slane %v3320, %v3333
        %v3335 = vcombine.low %v3327, %v3334
        %v3337 = vmax.f32 %v3110, %v3335
        %3338 = vst [vmem:[%s520] sm:$0xff] %v3337
        %v3339 = vld [vmem:[%s524] sm:$0xff]
        %v3340 = vmin.f32 %v2396, %v2404
        %v3341 = vmin.f32 %v3340, %v2412
        %v3342 = vmin.f32 %v3341, %v2420
        %v3343 = vmin.f32 %v3342, %v2428
        %v3344 = vmin.f32 %v3343, %v2436
        %v3345 = vmin.f32 %v3344, %v2444
        %v3346 = vmin.f32 %v3345, %v2452
        %v3347 = vmin.f32 %v3346, %v2460
        %v3348 = vmin.f32 %v3347, %v2468
        %v3349 = vmin.f32 %v3348, %v2476
        %v3350 = vmin.f32 %v3349, %v2484
        %v3351 = vmin.f32 %v3350, %v2492
        %v3352 = vmin.f32 %v3351, %v2500
        %v3353 = vmin.f32 %v3352, %v2508
        %v3354 = vmin.f32 %v3353, %v2516
        %v3355 = vrot.slane %v3354, 4
        %v3356 = vmin.f32 %v3354, %v3355
        %v3357 = vrot.slane %v3356, 2
        %v3358 = vmin.f32 %v3356, %v3357
        %v3359 = vrot.slane %v3358, 1
        %v3360 = vmin.f32 %v3358, %v3359
        %v3361 = vmin.f32 %v2397, %v2405
        %v3362 = vmin.f32 %v3361, %v2413
        %v3363 = vmin.f32 %v3362, %v2421
        %v3364 = vmin.f32 %v3363, %v2429
        %v3365 = vmin.f32 %v3364, %v2437
        %v3366 = vmin.f32 %v3365, %v2445
        %v3367 = vmin.f32 %v3366, %v2453
        %v3368 = vmin.f32 %v3367, %v2461
        %v3369 = vmin.f32 %v3368, %v2469
        %v3370 = vmin.f32 %v3369, %v2477
        %v3371 = vmin.f32 %v3370, %v2485
        %v3372 = vmin.f32 %v3371, %v2493
        %v3373 = vmin.f32 %v3372, %v2501
        %v3374 = vmin.f32 %v3373, %v2509
        %v3375 = vmin.f32 %v3374, %v2517
        %v3376 = vrot.slane %v3375, 4
        %v3377 = vmin.f32 %v3375, %v3376
        %v3378 = vrot.slane %v3377, 2
        %v3379 = vmin.f32 %v3377, %v3378
        %v3380 = vrot.slane %v3379, 1
        %v3381 = vmin.f32 %v3379, %v3380
        %v3382 = vmin.f32 %v2398, %v2406
        %v3383 = vmin.f32 %v3382, %v2414
        %v3384 = vmin.f32 %v3383, %v2422
        %v3385 = vmin.f32 %v3384, %v2430
        %v3386 = vmin.f32 %v3385, %v2438
        %v3387 = vmin.f32 %v3386, %v2446
        %v3388 = vmin.f32 %v3387, %v2454
        %v3389 = vmin.f32 %v3388, %v2462
        %v3390 = vmin.f32 %v3389, %v2470
        %v3391 = vmin.f32 %v3390, %v2478
        %v3392 = vmin.f32 %v3391, %v2486
        %v3393 = vmin.f32 %v3392, %v2494
        %v3394 = vmin.f32 %v3393, %v2502
        %v3395 = vmin.f32 %v3394, %v2510
        %v3396 = vmin.f32 %v3395, %v2518
        %v3397 = vrot.slane %v3396, 4
        %v3398 = vmin.f32 %v3396, %v3397
        %v3399 = vrot.slane %v3398, 2
        %v3400 = vmin.f32 %v3398, %v3399
        %v3401 = vrot.slane %v3400, 1
        %v3402 = vmin.f32 %v3400, %v3401
        %v3403 = vmin.f32 %v2399, %v2407
        %v3404 = vmin.f32 %v3403, %v2415
        %v3405 = vmin.f32 %v3404, %v2423
        %v3406 = vmin.f32 %v3405, %v2431
        %v3407 = vmin.f32 %v3406, %v2439
        %v3408 = vmin.f32 %v3407, %v2447
        %v3409 = vmin.f32 %v3408, %v2455
        %v3410 = vmin.f32 %v3409, %v2463
        %v3411 = vmin.f32 %v3410, %v2471
        %v3412 = vmin.f32 %v3411, %v2479
        %v3413 = vmin.f32 %v3412, %v2487
        %v3414 = vmin.f32 %v3413, %v2495
        %v3415 = vmin.f32 %v3414, %v2503
        %v3416 = vmin.f32 %v3415, %v2511
        %v3417 = vmin.f32 %v3416, %v2519
        %v3418 = vrot.slane %v3417, 4
        %v3419 = vmin.f32 %v3417, %v3418
        %v3420 = vrot.slane %v3419, 2
        %v3421 = vmin.f32 %v3419, %v3420
        %v3422 = vrot.slane %v3421, 1
        %v3423 = vmin.f32 %v3421, %v3422
        %v3424 = vmin.f32 %v2400, %v2408
        %v3425 = vmin.f32 %v3424, %v2416
        %v3426 = vmin.f32 %v3425, %v2424
        %v3427 = vmin.f32 %v3426, %v2432
        %v3428 = vmin.f32 %v3427, %v2440
        %v3429 = vmin.f32 %v3428, %v2448
        %v3430 = vmin.f32 %v3429, %v2456
        %v3431 = vmin.f32 %v3430, %v2464
        %v3432 = vmin.f32 %v3431, %v2472
        %v3433 = vmin.f32 %v3432, %v2480
        %v3434 = vmin.f32 %v3433, %v2488
        %v3435 = vmin.f32 %v3434, %v2496
        %v3436 = vmin.f32 %v3435, %v2504
        %v3437 = vmin.f32 %v3436, %v2512
        %v3438 = vmin.f32 %v3437, %v2520
        %v3439 = vrot.slane %v3438, 4
        %v3440 = vmin.f32 %v3438, %v3439
        %v3441 = vrot.slane %v3440, 2
        %v3442 = vmin.f32 %v3440, %v3441
        %v3443 = vrot.slane %v3442, 1
        %v3444 = vmin.f32 %v3442, %v3443
        %v3445 = vmin.f32 %v2401, %v2409
        %v3446 = vmin.f32 %v3445, %v2417
        %v3447 = vmin.f32 %v3446, %v2425
        %v3448 = vmin.f32 %v3447, %v2433
        %v3449 = vmin.f32 %v3448, %v2441
        %v3450 = vmin.f32 %v3449, %v2449
        %v3451 = vmin.f32 %v3450, %v2457
        %v3452 = vmin.f32 %v3451, %v2465
        %v3453 = vmin.f32 %v3452, %v2473
        %v3454 = vmin.f32 %v3453, %v2481
        %v3455 = vmin.f32 %v3454, %v2489
        %v3456 = vmin.f32 %v3455, %v2497
        %v3457 = vmin.f32 %v3456, %v2505
        %v3458 = vmin.f32 %v3457, %v2513
        %v3459 = vmin.f32 %v3458, %v2521
        %v3460 = vrot.slane %v3459, 4
        %v3461 = vmin.f32 %v3459, %v3460
        %v3462 = vrot.slane %v3461, 2
        %v3463 = vmin.f32 %v3461, %v3462
        %v3464 = vrot.slane %v3463, 1
        %v3465 = vmin.f32 %v3463, %v3464
        %v3466 = vmin.f32 %v2402, %v2410
        %v3467 = vmin.f32 %v3466, %v2418
        %v3468 = vmin.f32 %v3467, %v2426
        %v3469 = vmin.f32 %v3468, %v2434
        %v3470 = vmin.f32 %v3469, %v2442
        %v3471 = vmin.f32 %v3470, %v2450
        %v3472 = vmin.f32 %v3471, %v2458
        %v3473 = vmin.f32 %v3472, %v2466
        %v3474 = vmin.f32 %v3473, %v2474
        %v3475 = vmin.f32 %v3474, %v2482
        %v3476 = vmin.f32 %v3475, %v2490
        %v3477 = vmin.f32 %v3476, %v2498
        %v3478 = vmin.f32 %v3477, %v2506
        %v3479 = vmin.f32 %v3478, %v2514
        %v3480 = vmin.f32 %v3479, %v2522
        %v3481 = vrot.slane %v3480, 4
        %v3482 = vmin.f32 %v3480, %v3481
        %v3483 = vrot.slane %v3482, 2
        %v3484 = vmin.f32 %v3482, %v3483
        %v3485 = vrot.slane %v3484, 1
        %v3486 = vmin.f32 %v3484, %v3485
        %v3487 = vmin.f32 %v2403, %v2411
        %v3488 = vmin.f32 %v3487, %v2419
        %v3489 = vmin.f32 %v3488, %v2427
        %v3490 = vmin.f32 %v3489, %v2435
        %v3491 = vmin.f32 %v3490, %v2443
        %v3492 = vmin.f32 %v3491, %v2451
        %v3493 = vmin.f32 %v3492, %v2459
        %v3494 = vmin.f32 %v3493, %v2467
        %v3495 = vmin.f32 %v3494, %v2475
        %v3496 = vmin.f32 %v3495, %v2483
        %v3497 = vmin.f32 %v3496, %v2491
        %v3498 = vmin.f32 %v3497, %v2499
        %v3499 = vmin.f32 %v3498, %v2507
        %v3500 = vmin.f32 %v3499, %v2515
        %v3501 = vmin.f32 %v3500, %v2523
        %v3502 = vrot.slane %v3501, 4
        %v3503 = vmin.f32 %v3501, %v3502
        %v3504 = vrot.slane %v3503, 2
        %v3505 = vmin.f32 %v3503, %v3504
        %v3506 = vrot.slane %v3505, 1
        %v3507 = vmin.f32 %v3505, %v3506
        %v3516 = vcombine.low %v3360, %v3381
        %v3517 = vcombine.low %v3402, %v3423
        %v3518 = vcombine.low %v3444, %v3465
        %v3519 = vcombine.low %v3486, %v3507
        %v3521 = vunpack.c.l.s4 1966171168
        %v3522 = vunpack.c.0.s8 %v3521
        %v3523 = vlaneseq
        %v3524 = vshrl.u32 %v3523, 7
        %v3525 = vsub.s32 %v3522, %v3524
        %v3526 = vrot.slane %v3516, %v3525
        %v3528 = vunpack.c.l.s4 1966171168
        %v3529 = vunpack.c.0.s8 %v3528
        %v3530 = vlaneseq
        %v3531 = vshrl.u32 %v3530, 7
        %v3532 = vsub.s32 %v3529, %v3531
        %v3533 = vrot.slane %v3517, %v3532
        %v3535 = vunpack.c.l.s4 1966171168
        %v3536 = vunpack.c.0.s8 %v3535
        %v3537 = vlaneseq
        %v3538 = vshrl.u32 %v3537, 7
        %v3539 = vsub.s32 %v3536, %v3538
        %v3540 = vrot.slane %v3518, %v3539
        %v3542 = vunpack.c.l.s4 1966171168
        %v3543 = vunpack.c.0.s8 %v3542
        %v3544 = vlaneseq
        %v3545 = vshrl.u32 %v3544, 7
        %v3546 = vsub.s32 %v3543, %v3545
        %v3547 = vrot.slane %v3519, %v3546
        %v3548 = vcombine.low %v3526, %v3533
        %v3549 = vcombine.low %v3540, %v3547
        %v3551 = vunpack.c.l.s4 1966171168
        %v3552 = vunpack.c.0.s8 %v3551
        %v3553 = vlaneseq
        %v3554 = vshrl.u32 %v3553, 7
        %v3555 = vsub.s32 %v3552, %v3554
        %v3556 = vrot.slane %v3548, %v3555
        %v3558 = vunpack.c.l.s4 1966171168
        %v3559 = vunpack.c.0.s8 %v3558
        %v3560 = vlaneseq
        %v3561 = vshrl.u32 %v3560, 7
        %v3562 = vsub.s32 %v3559, %v3561
        %v3563 = vrot.slane %v3549, %v3562
        %v3564 = vcombine.low %v3556, %v3563
        %v3566 = vmin.f32 %v3339, %v3564
        %3567 = vst [vmem:[%s524] sm:$0xff] %v3566
      $region72: #{transform3d_forward.4} parent=63 // pred_fallthru
        _
      %p3568 = scmp.ne.s32.totalorder %s31, 3
      // Predicated region
      $region73: #{transform3d_forward.4} parent=63 // pred_check
        %p3569 = pneg %p3568
      $region74: #{transform3d_forward.4} parent=63 // pred_check_branch
        %3571 = sbr.rel (%p3569) target = $region76
      $region75: #{transform3d_forward.4} parent=63 // pred_region
        %v3572 = vld [vmem:[%s512] sm:$0xff]
        %v3573 = vadd.f32 %v1636, %v1640
        %v3574 = vadd.f32 %v3573, %v1646
        %v3575 = vadd.f32 %v3574, %v1650
        %v3576 = vadd.f32 %v3575, %v1656
        %v3577 = vadd.f32 %v3576, %v1660
        %v3578 = vadd.f32 %v3577, %v1666
        %v3579 = vadd.f32 %v3578, %v1670
        %v3580 = vadd.f32 %v3579, %v1676
        %v3581 = vadd.f32 %v3580, %v1680
        %v3582 = vadd.f32 %v3581, %v1686
        %v3583 = vadd.f32 %v3582, %v1690
        %v3584 = vadd.f32 %v3583, %v1696
        %v3585 = vadd.f32 %v3584, %v1700
        %v3586 = vadd.f32 %v3585, %v1706
        %v3587 = vadd.f32 %v3586, %v1710
        %v3588 = vrot.slane %v3587, 4
        %v3589 = vadd.f32 %v3587, %v3588
        %v3590 = vrot.slane %v3589, 2
        %v3591 = vadd.f32 %v3589, %v3590
        %v3592 = vrot.slane %v3591, 1
        %v3593 = vadd.f32 %v3591, %v3592
        %v3594 = vadd.f32 %v1638, %v1642
        %v3595 = vadd.f32 %v3594, %v1648
        %v3596 = vadd.f32 %v3595, %v1652
        %v3597 = vadd.f32 %v3596, %v1658
        %v3598 = vadd.f32 %v3597, %v1662
        %v3599 = vadd.f32 %v3598, %v1668
        %v3600 = vadd.f32 %v3599, %v1672
        %v3601 = vadd.f32 %v3600, %v1678
        %v3602 = vadd.f32 %v3601, %v1682
        %v3603 = vadd.f32 %v3602, %v1688
        %v3604 = vadd.f32 %v3603, %v1692
        %v3605 = vadd.f32 %v3604, %v1698
        %v3606 = vadd.f32 %v3605, %v1702
        %v3607 = vadd.f32 %v3606, %v1708
        %v3608 = vadd.f32 %v3607, %v1712
        %v3609 = vrot.slane %v3608, 4
        %v3610 = vadd.f32 %v3608, %v3609
        %v3611 = vrot.slane %v3610, 2
        %v3612 = vadd.f32 %v3610, %v3611
        %v3613 = vrot.slane %v3612, 1
        %v3614 = vadd.f32 %v3612, %v3613
        %v3615 = vadd.f32 %v1749, %v1753
        %v3616 = vadd.f32 %v3615, %v1759
        %v3617 = vadd.f32 %v3616, %v1763
        %v3618 = vadd.f32 %v3617, %v1769
        %v3619 = vadd.f32 %v3618, %v1773
        %v3620 = vadd.f32 %v3619, %v1779
        %v3621 = vadd.f32 %v3620, %v1783
        %v3622 = vadd.f32 %v3621, %v1789
        %v3623 = vadd.f32 %v3622, %v1793
        %v3624 = vadd.f32 %v3623, %v1799
        %v3625 = vadd.f32 %v3624, %v1803
        %v3626 = vadd.f32 %v3625, %v1809
        %v3627 = vadd.f32 %v3626, %v1813
        %v3628 = vadd.f32 %v3627, %v1819
        %v3629 = vadd.f32 %v3628, %v1823
        %v3630 = vrot.slane %v3629, 4
        %v3631 = vadd.f32 %v3629, %v3630
        %v3632 = vrot.slane %v3631, 2
        %v3633 = vadd.f32 %v3631, %v3632
        %v3634 = vrot.slane %v3633, 1
        %v3635 = vadd.f32 %v3633, %v3634
        %v3636 = vadd.f32 %v1751, %v1755
        %v3637 = vadd.f32 %v3636, %v1761
        %v3638 = vadd.f32 %v3637, %v1765
        %v3639 = vadd.f32 %v3638, %v1771
        %v3640 = vadd.f32 %v3639, %v1775
        %v3641 = vadd.f32 %v3640, %v1781
        %v3642 = vadd.f32 %v3641, %v1785
        %v3643 = vadd.f32 %v3642, %v1791
        %v3644 = vadd.f32 %v3643, %v1795
        %v3645 = vadd.f32 %v3644, %v1801
        %v3646 = vadd.f32 %v3645, %v1805
        %v3647 = vadd.f32 %v3646, %v1811
        %v3648 = vadd.f32 %v3647, %v1815
        %v3649 = vadd.f32 %v3648, %v1821
        %v3650 = vadd.f32 %v3649, %v1825
        %v3651 = vrot.slane %v3650, 4
        %v3652 = vadd.f32 %v3650, %v3651
        %v3653 = vrot.slane %v3652, 2
        %v3654 = vadd.f32 %v3652, %v3653
        %v3655 = vrot.slane %v3654, 1
        %v3656 = vadd.f32 %v3654, %v3655
        %v3657 = vadd.f32 %v1862, %v1866
        %v3658 = vadd.f32 %v3657, %v1872
        %v3659 = vadd.f32 %v3658, %v1876
        %v3660 = vadd.f32 %v3659, %v1882
        %v3661 = vadd.f32 %v3660, %v1886
        %v3662 = vadd.f32 %v3661, %v1892
        %v3663 = vadd.f32 %v3662, %v1896
        %v3664 = vadd.f32 %v3663, %v1902
        %v3665 = vadd.f32 %v3664, %v1906
        %v3666 = vadd.f32 %v3665, %v1912
        %v3667 = vadd.f32 %v3666, %v1916
        %v3668 = vadd.f32 %v3667, %v1922
        %v3669 = vadd.f32 %v3668, %v1926
        %v3670 = vadd.f32 %v3669, %v1932
        %v3671 = vadd.f32 %v3670, %v1936
        %v3672 = vrot.slane %v3671, 4
        %v3673 = vadd.f32 %v3671, %v3672
        %v3674 = vrot.slane %v3673, 2
        %v3675 = vadd.f32 %v3673, %v3674
        %v3676 = vrot.slane %v3675, 1
        %v3677 = vadd.f32 %v3675, %v3676
        %v3678 = vadd.f32 %v1864, %v1868
        %v3679 = vadd.f32 %v3678, %v1874
        %v3680 = vadd.f32 %v3679, %v1878
        %v3681 = vadd.f32 %v3680, %v1884
        %v3682 = vadd.f32 %v3681, %v1888
        %v3683 = vadd.f32 %v3682, %v1894
        %v3684 = vadd.f32 %v3683, %v1898
        %v3685 = vadd.f32 %v3684, %v1904
        %v3686 = vadd.f32 %v3685, %v1908
        %v3687 = vadd.f32 %v3686, %v1914
        %v3688 = vadd.f32 %v3687, %v1918
        %v3689 = vadd.f32 %v3688, %v1924
        %v3690 = vadd.f32 %v3689, %v1928
        %v3691 = vadd.f32 %v3690, %v1934
        %v3692 = vadd.f32 %v3691, %v1938
        %v3693 = vrot.slane %v3692, 4
        %v3694 = vadd.f32 %v3692, %v3693
        %v3695 = vrot.slane %v3694, 2
        %v3696 = vadd.f32 %v3694, %v3695
        %v3697 = vrot.slane %v3696, 1
        %v3698 = vadd.f32 %v3696, %v3697
        %v3699 = vadd.f32 %v1975, %v1979
        %v3700 = vadd.f32 %v3699, %v1985
        %v3701 = vadd.f32 %v3700, %v1989
        %v3702 = vadd.f32 %v3701, %v1995
        %v3703 = vadd.f32 %v3702, %v1999
        %v3704 = vadd.f32 %v3703, %v2005
        %v3705 = vadd.f32 %v3704, %v2009
        %v3706 = vadd.f32 %v3705, %v2015
        %v3707 = vadd.f32 %v3706, %v2019
        %v3708 = vadd.f32 %v3707, %v2025
        %v3709 = vadd.f32 %v3708, %v2029
        %v3710 = vadd.f32 %v3709, %v2035
        %v3711 = vadd.f32 %v3710, %v2039
        %v3712 = vadd.f32 %v3711, %v2045
        %v3713 = vadd.f32 %v3712, %v2049
        %v3714 = vrot.slane %v3713, 4
        %v3715 = vadd.f32 %v3713, %v3714
        %v3716 = vrot.slane %v3715, 2
        %v3717 = vadd.f32 %v3715, %v3716
        %v3718 = vrot.slane %v3717, 1
        %v3719 = vadd.f32 %v3717, %v3718
        %v3720 = vadd.f32 %v1977, %v1981
        %v3721 = vadd.f32 %v3720, %v1987
        %v3722 = vadd.f32 %v3721, %v1991
        %v3723 = vadd.f32 %v3722, %v1997
        %v3724 = vadd.f32 %v3723, %v2001
        %v3725 = vadd.f32 %v3724, %v2007
        %v3726 = vadd.f32 %v3725, %v2011
        %v3727 = vadd.f32 %v3726, %v2017
        %v3728 = vadd.f32 %v3727, %v2021
        %v3729 = vadd.f32 %v3728, %v2027
        %v3730 = vadd.f32 %v3729, %v2031
        %v3731 = vadd.f32 %v3730, %v2037
        %v3732 = vadd.f32 %v3731, %v2041
        %v3733 = vadd.f32 %v3732, %v2047
        %v3734 = vadd.f32 %v3733, %v2051
        %v3735 = vrot.slane %v3734, 4
        %v3736 = vadd.f32 %v3734, %v3735
        %v3737 = vrot.slane %v3736, 2
        %v3738 = vadd.f32 %v3736, %v3737
        %v3739 = vrot.slane %v3738, 1
        %v3740 = vadd.f32 %v3738, %v3739
        %v3749 = vcombine.low %v3593, %v3614
        %v3750 = vcombine.low %v3635, %v3656
        %v3751 = vcombine.low %v3677, %v3698
        %v3752 = vcombine.low %v3719, %v3740
        %v3754 = vunpack.c.l.s4 1966171168
        %v3755 = vunpack.c.0.s8 %v3754
        %v3756 = vlaneseq
        %v3757 = vshrl.u32 %v3756, 7
        %v3758 = vsub.s32 %v3755, %v3757
        %v3759 = vrot.slane %v3749, %v3758
        %v3761 = vunpack.c.l.s4 1966171168
        %v3762 = vunpack.c.0.s8 %v3761
        %v3763 = vlaneseq
        %v3764 = vshrl.u32 %v3763, 7
        %v3765 = vsub.s32 %v3762, %v3764
        %v3766 = vrot.slane %v3750, %v3765
        %v3768 = vunpack.c.l.s4 1966171168
        %v3769 = vunpack.c.0.s8 %v3768
        %v3770 = vlaneseq
        %v3771 = vshrl.u32 %v3770, 7
        %v3772 = vsub.s32 %v3769, %v3771
        %v3773 = vrot.slane %v3751, %v3772
        %v3775 = vunpack.c.l.s4 1966171168
        %v3776 = vunpack.c.0.s8 %v3775
        %v3777 = vlaneseq
        %v3778 = vshrl.u32 %v3777, 7
        %v3779 = vsub.s32 %v3776, %v3778
        %v3780 = vrot.slane %v3752, %v3779
        %v3781 = vcombine.low %v3759, %v3766
        %v3782 = vcombine.low %v3773, %v3780
        %v3784 = vunpack.c.l.s4 1966171168
        %v3785 = vunpack.c.0.s8 %v3784
        %v3786 = vlaneseq
        %v3787 = vshrl.u32 %v3786, 7
        %v3788 = vsub.s32 %v3785, %v3787
        %v3789 = vrot.slane %v3781, %v3788
        %v3791 = vunpack.c.l.s4 1966171168
        %v3792 = vunpack.c.0.s8 %v3791
        %v3793 = vlaneseq
        %v3794 = vshrl.u32 %v3793, 7
        %v3795 = vsub.s32 %v3792, %v3794
        %v3796 = vrot.slane %v3782, %v3795
        %v3797 = vcombine.low %v3789, %v3796
        %v3799 = vadd.f32 %v3572, %v3797
        %3800 = vst [vmem:[%s512] sm:$0xff] %v3799
        %v3801 = vld [vmem:[%s516] sm:$0xff]
        %v3802 = vmul.f32 %v1636, %v1636
        %v3803 = vmul.f32 %v1638, %v1638
        %v3804 = vmul.f32 %v1749, %v1749
        %v3805 = vmul.f32 %v1751, %v1751
        %v3806 = vmul.f32 %v1862, %v1862
        %v3807 = vmul.f32 %v1864, %v1864
        %v3808 = vmul.f32 %v1975, %v1975
        %v3809 = vmul.f32 %v1977, %v1977
        %v3810 = vmul.f32 %v1640, %v1640
        %v3811 = vmul.f32 %v1642, %v1642
        %v3812 = vmul.f32 %v1753, %v1753
        %v3813 = vmul.f32 %v1755, %v1755
        %v3814 = vmul.f32 %v1866, %v1866
        %v3815 = vmul.f32 %v1868, %v1868
        %v3816 = vmul.f32 %v1979, %v1979
        %v3817 = vmul.f32 %v1981, %v1981
        %v3818 = vmul.f32 %v1646, %v1646
        %v3819 = vmul.f32 %v1648, %v1648
        %v3820 = vmul.f32 %v1759, %v1759
        %v3821 = vmul.f32 %v1761, %v1761
        %v3822 = vmul.f32 %v1872, %v1872
        %v3823 = vmul.f32 %v1874, %v1874
        %v3824 = vmul.f32 %v1985, %v1985
        %v3825 = vmul.f32 %v1987, %v1987
        %v3826 = vmul.f32 %v1650, %v1650
        %v3827 = vmul.f32 %v1652, %v1652
        %v3828 = vmul.f32 %v1763, %v1763
        %v3829 = vmul.f32 %v1765, %v1765
        %v3830 = vmul.f32 %v1876, %v1876
        %v3831 = vmul.f32 %v1878, %v1878
        %v3832 = vmul.f32 %v1989, %v1989
        %v3833 = vmul.f32 %v1991, %v1991
        %v3834 = vmul.f32 %v1656, %v1656
        %v3835 = vmul.f32 %v1658, %v1658
        %v3836 = vmul.f32 %v1769, %v1769
        %v3837 = vmul.f32 %v1771, %v1771
        %v3838 = vmul.f32 %v1882, %v1882
        %v3839 = vmul.f32 %v1884, %v1884
        %v3840 = vmul.f32 %v1995, %v1995
        %v3841 = vmul.f32 %v1997, %v1997
        %v3842 = vmul.f32 %v1660, %v1660
        %v3843 = vmul.f32 %v1662, %v1662
        %v3844 = vmul.f32 %v1773, %v1773
        %v3845 = vmul.f32 %v1775, %v1775
        %v3846 = vmul.f32 %v1886, %v1886
        %v3847 = vmul.f32 %v1888, %v1888
        %v3848 = vmul.f32 %v1999, %v1999
        %v3849 = vmul.f32 %v2001, %v2001
        %v3850 = vmul.f32 %v1666, %v1666
        %v3851 = vmul.f32 %v1668, %v1668
        %v3852 = vmul.f32 %v1779, %v1779
        %v3853 = vmul.f32 %v1781, %v1781
        %v3854 = vmul.f32 %v1892, %v1892
        %v3855 = vmul.f32 %v1894, %v1894
        %v3856 = vmul.f32 %v2005, %v2005
        %v3857 = vmul.f32 %v2007, %v2007
        %v3858 = vmul.f32 %v1670, %v1670
        %v3859 = vmul.f32 %v1672, %v1672
        %v3860 = vmul.f32 %v1783, %v1783
        %v3861 = vmul.f32 %v1785, %v1785
        %v3862 = vmul.f32 %v1896, %v1896
        %v3863 = vmul.f32 %v1898, %v1898
        %v3864 = vmul.f32 %v2009, %v2009
        %v3865 = vmul.f32 %v2011, %v2011
        %v3866 = vmul.f32 %v1676, %v1676
        %v3867 = vmul.f32 %v1678, %v1678
        %v3868 = vmul.f32 %v1789, %v1789
        %v3869 = vmul.f32 %v1791, %v1791
        %v3870 = vmul.f32 %v1902, %v1902
        %v3871 = vmul.f32 %v1904, %v1904
        %v3872 = vmul.f32 %v2015, %v2015
        %v3873 = vmul.f32 %v2017, %v2017
        %v3874 = vmul.f32 %v1680, %v1680
        %v3875 = vmul.f32 %v1682, %v1682
        %v3876 = vmul.f32 %v1793, %v1793
        %v3877 = vmul.f32 %v1795, %v1795
        %v3878 = vmul.f32 %v1906, %v1906
        %v3879 = vmul.f32 %v1908, %v1908
        %v3880 = vmul.f32 %v2019, %v2019
        %v3881 = vmul.f32 %v2021, %v2021
        %v3882 = vmul.f32 %v1686, %v1686
        %v3883 = vmul.f32 %v1688, %v1688
        %v3884 = vmul.f32 %v1799, %v1799
        %v3885 = vmul.f32 %v1801, %v1801
        %v3886 = vmul.f32 %v1912, %v1912
        %v3887 = vmul.f32 %v1914, %v1914
        %v3888 = vmul.f32 %v2025, %v2025
        %v3889 = vmul.f32 %v2027, %v2027
        %v3890 = vmul.f32 %v1690, %v1690
        %v3891 = vmul.f32 %v1692, %v1692
        %v3892 = vmul.f32 %v1803, %v1803
        %v3893 = vmul.f32 %v1805, %v1805
        %v3894 = vmul.f32 %v1916, %v1916
        %v3895 = vmul.f32 %v1918, %v1918
        %v3896 = vmul.f32 %v2029, %v2029
        %v3897 = vmul.f32 %v2031, %v2031
        %v3898 = vmul.f32 %v1696, %v1696
        %v3899 = vmul.f32 %v1698, %v1698
        %v3900 = vmul.f32 %v1809, %v1809
        %v3901 = vmul.f32 %v1811, %v1811
        %v3902 = vmul.f32 %v1922, %v1922
        %v3903 = vmul.f32 %v1924, %v1924
        %v3904 = vmul.f32 %v2035, %v2035
        %v3905 = vmul.f32 %v2037, %v2037
        %v3906 = vmul.f32 %v1700, %v1700
        %v3907 = vmul.f32 %v1702, %v1702
        %v3908 = vmul.f32 %v1813, %v1813
        %v3909 = vmul.f32 %v1815, %v1815
        %v3910 = vmul.f32 %v1926, %v1926
        %v3911 = vmul.f32 %v1928, %v1928
        %v3912 = vmul.f32 %v2039, %v2039
        %v3913 = vmul.f32 %v2041, %v2041
        %v3914 = vmul.f32 %v1706, %v1706
        %v3915 = vmul.f32 %v1708, %v1708
        %v3916 = vmul.f32 %v1819, %v1819
        %v3917 = vmul.f32 %v1821, %v1821
        %v3918 = vmul.f32 %v1932, %v1932
        %v3919 = vmul.f32 %v1934, %v1934
        %v3920 = vmul.f32 %v2045, %v2045
        %v3921 = vmul.f32 %v2047, %v2047
        %v3922 = vmul.f32 %v1710, %v1710
        %v3923 = vmul.f32 %v1712, %v1712
        %v3924 = vmul.f32 %v1823, %v1823
        %v3925 = vmul.f32 %v1825, %v1825
        %v3926 = vmul.f32 %v1936, %v1936
        %v3927 = vmul.f32 %v1938, %v1938
        %v3928 = vmul.f32 %v2049, %v2049
        %v3929 = vmul.f32 %v2051, %v2051
        %v3930 = vadd.f32 %v3802, %v3810
        %v3931 = vadd.f32 %v3930, %v3818
        %v3932 = vadd.f32 %v3931, %v3826
        %v3933 = vadd.f32 %v3932, %v3834
        %v3934 = vadd.f32 %v3933, %v3842
        %v3935 = vadd.f32 %v3934, %v3850
        %v3936 = vadd.f32 %v3935, %v3858
        %v3937 = vadd.f32 %v3936, %v3866
        %v3938 = vadd.f32 %v3937, %v3874
        %v3939 = vadd.f32 %v3938, %v3882
        %v3940 = vadd.f32 %v3939, %v3890
        %v3941 = vadd.f32 %v3940, %v3898
        %v3942 = vadd.f32 %v3941, %v3906
        %v3943 = vadd.f32 %v3942, %v3914
        %v3944 = vadd.f32 %v3943, %v3922
        %v3945 = vrot.slane %v3944, 4
        %v3946 = vadd.f32 %v3944, %v3945
        %v3947 = vrot.slane %v3946, 2
        %v3948 = vadd.f32 %v3946, %v3947
        %v3949 = vrot.slane %v3948, 1
        %v3950 = vadd.f32 %v3948, %v3949
        %v3951 = vadd.f32 %v3803, %v3811
        %v3952 = vadd.f32 %v3951, %v3819
        %v3953 = vadd.f32 %v3952, %v3827
        %v3954 = vadd.f32 %v3953, %v3835
        %v3955 = vadd.f32 %v3954, %v3843
        %v3956 = vadd.f32 %v3955, %v3851
        %v3957 = vadd.f32 %v3956, %v3859
        %v3958 = vadd.f32 %v3957, %v3867
        %v3959 = vadd.f32 %v3958, %v3875
        %v3960 = vadd.f32 %v3959, %v3883
        %v3961 = vadd.f32 %v3960, %v3891
        %v3962 = vadd.f32 %v3961, %v3899
        %v3963 = vadd.f32 %v3962, %v3907
        %v3964 = vadd.f32 %v3963, %v3915
        %v3965 = vadd.f32 %v3964, %v3923
        %v3966 = vrot.slane %v3965, 4
        %v3967 = vadd.f32 %v3965, %v3966
        %v3968 = vrot.slane %v3967, 2
        %v3969 = vadd.f32 %v3967, %v3968
        %v3970 = vrot.slane %v3969, 1
        %v3971 = vadd.f32 %v3969, %v3970
        %v3972 = vadd.f32 %v3804, %v3812
        %v3973 = vadd.f32 %v3972, %v3820
        %v3974 = vadd.f32 %v3973, %v3828
        %v3975 = vadd.f32 %v3974, %v3836
        %v3976 = vadd.f32 %v3975, %v3844
        %v3977 = vadd.f32 %v3976, %v3852
        %v3978 = vadd.f32 %v3977, %v3860
        %v3979 = vadd.f32 %v3978, %v3868
        %v3980 = vadd.f32 %v3979, %v3876
        %v3981 = vadd.f32 %v3980, %v3884
        %v3982 = vadd.f32 %v3981, %v3892
        %v3983 = vadd.f32 %v3982, %v3900
        %v3984 = vadd.f32 %v3983, %v3908
        %v3985 = vadd.f32 %v3984, %v3916
        %v3986 = vadd.f32 %v3985, %v3924
        %v3987 = vrot.slane %v3986, 4
        %v3988 = vadd.f32 %v3986, %v3987
        %v3989 = vrot.slane %v3988, 2
        %v3990 = vadd.f32 %v3988, %v3989
        %v3991 = vrot.slane %v3990, 1
        %v3992 = vadd.f32 %v3990, %v3991
        %v3993 = vadd.f32 %v3805, %v3813
        %v3994 = vadd.f32 %v3993, %v3821
        %v3995 = vadd.f32 %v3994, %v3829
        %v3996 = vadd.f32 %v3995, %v3837
        %v3997 = vadd.f32 %v3996, %v3845
        %v3998 = vadd.f32 %v3997, %v3853
        %v3999 = vadd.f32 %v3998, %v3861
        %v4000 = vadd.f32 %v3999, %v3869
        %v4001 = vadd.f32 %v4000, %v3877
        %v4002 = vadd.f32 %v4001, %v3885
        %v4003 = vadd.f32 %v4002, %v3893
        %v4004 = vadd.f32 %v4003, %v3901
        %v4005 = vadd.f32 %v4004, %v3909
        %v4006 = vadd.f32 %v4005, %v3917
        %v4007 = vadd.f32 %v4006, %v3925
        %v4008 = vrot.slane %v4007, 4
        %v4009 = vadd.f32 %v4007, %v4008
        %v4010 = vrot.slane %v4009, 2
        %v4011 = vadd.f32 %v4009, %v4010
        %v4012 = vrot.slane %v4011, 1
        %v4013 = vadd.f32 %v4011, %v4012
        %v4014 = vadd.f32 %v3806, %v3814
        %v4015 = vadd.f32 %v4014, %v3822
        %v4016 = vadd.f32 %v4015, %v3830
        %v4017 = vadd.f32 %v4016, %v3838
        %v4018 = vadd.f32 %v4017, %v3846
        %v4019 = vadd.f32 %v4018, %v3854
        %v4020 = vadd.f32 %v4019, %v3862
        %v4021 = vadd.f32 %v4020, %v3870
        %v4022 = vadd.f32 %v4021, %v3878
        %v4023 = vadd.f32 %v4022, %v3886
        %v4024 = vadd.f32 %v4023, %v3894
        %v4025 = vadd.f32 %v4024, %v3902
        %v4026 = vadd.f32 %v4025, %v3910
        %v4027 = vadd.f32 %v4026, %v3918
        %v4028 = vadd.f32 %v4027, %v3926
        %v4029 = vrot.slane %v4028, 4
        %v4030 = vadd.f32 %v4028, %v4029
        %v4031 = vrot.slane %v4030, 2
        %v4032 = vadd.f32 %v4030, %v4031
        %v4033 = vrot.slane %v4032, 1
        %v4034 = vadd.f32 %v4032, %v4033
        %v4035 = vadd.f32 %v3807, %v3815
        %v4036 = vadd.f32 %v4035, %v3823
        %v4037 = vadd.f32 %v4036, %v3831
        %v4038 = vadd.f32 %v4037, %v3839
        %v4039 = vadd.f32 %v4038, %v3847
        %v4040 = vadd.f32 %v4039, %v3855
        %v4041 = vadd.f32 %v4040, %v3863
        %v4042 = vadd.f32 %v4041, %v3871
        %v4043 = vadd.f32 %v4042, %v3879
        %v4044 = vadd.f32 %v4043, %v3887
        %v4045 = vadd.f32 %v4044, %v3895
        %v4046 = vadd.f32 %v4045, %v3903
        %v4047 = vadd.f32 %v4046, %v3911
        %v4048 = vadd.f32 %v4047, %v3919
        %v4049 = vadd.f32 %v4048, %v3927
        %v4050 = vrot.slane %v4049, 4
        %v4051 = vadd.f32 %v4049, %v4050
        %v4052 = vrot.slane %v4051, 2
        %v4053 = vadd.f32 %v4051, %v4052
        %v4054 = vrot.slane %v4053, 1
        %v4055 = vadd.f32 %v4053, %v4054
        %v4056 = vadd.f32 %v3808, %v3816
        %v4057 = vadd.f32 %v4056, %v3824
        %v4058 = vadd.f32 %v4057, %v3832
        %v4059 = vadd.f32 %v4058, %v3840
        %v4060 = vadd.f32 %v4059, %v3848
        %v4061 = vadd.f32 %v4060, %v3856
        %v4062 = vadd.f32 %v4061, %v3864
        %v4063 = vadd.f32 %v4062, %v3872
        %v4064 = vadd.f32 %v4063, %v3880
        %v4065 = vadd.f32 %v4064, %v3888
        %v4066 = vadd.f32 %v4065, %v3896
        %v4067 = vadd.f32 %v4066, %v3904
        %v4068 = vadd.f32 %v4067, %v3912
        %v4069 = vadd.f32 %v4068, %v3920
        %v4070 = vadd.f32 %v4069, %v3928
        %v4071 = vrot.slane %v4070, 4
        %v4072 = vadd.f32 %v4070, %v4071
        %v4073 = vrot.slane %v4072, 2
        %v4074 = vadd.f32 %v4072, %v4073
        %v4075 = vrot.slane %v4074, 1
        %v4076 = vadd.f32 %v4074, %v4075
        %v4077 = vadd.f32 %v3809, %v3817
        %v4078 = vadd.f32 %v4077, %v3825
        %v4079 = vadd.f32 %v4078, %v3833
        %v4080 = vadd.f32 %v4079, %v3841
        %v4081 = vadd.f32 %v4080, %v3849
        %v4082 = vadd.f32 %v4081, %v3857
        %v4083 = vadd.f32 %v4082, %v3865
        %v4084 = vadd.f32 %v4083, %v3873
        %v4085 = vadd.f32 %v4084, %v3881
        %v4086 = vadd.f32 %v4085, %v3889
        %v4087 = vadd.f32 %v4086, %v3897
        %v4088 = vadd.f32 %v4087, %v3905
        %v4089 = vadd.f32 %v4088, %v3913
        %v4090 = vadd.f32 %v4089, %v3921
        %v4091 = vadd.f32 %v4090, %v3929
        %v4092 = vrot.slane %v4091, 4
        %v4093 = vadd.f32 %v4091, %v4092
        %v4094 = vrot.slane %v4093, 2
        %v4095 = vadd.f32 %v4093, %v4094
        %v4096 = vrot.slane %v4095, 1
        %v4097 = vadd.f32 %v4095, %v4096
        %v4106 = vcombine.low %v3950, %v3971
        %v4107 = vcombine.low %v3992, %v4013
        %v4108 = vcombine.low %v4034, %v4055
        %v4109 = vcombine.low %v4076, %v4097
        %v4111 = vunpack.c.l.s4 1966171168
        %v4112 = vunpack.c.0.s8 %v4111
        %v4113 = vlaneseq
        %v4114 = vshrl.u32 %v4113, 7
        %v4115 = vsub.s32 %v4112, %v4114
        %v4116 = vrot.slane %v4106, %v4115
        %v4118 = vunpack.c.l.s4 1966171168
        %v4119 = vunpack.c.0.s8 %v4118
        %v4120 = vlaneseq
        %v4121 = vshrl.u32 %v4120, 7
        %v4122 = vsub.s32 %v4119, %v4121
        %v4123 = vrot.slane %v4107, %v4122
        %v4125 = vunpack.c.l.s4 1966171168
        %v4126 = vunpack.c.0.s8 %v4125
        %v4127 = vlaneseq
        %v4128 = vshrl.u32 %v4127, 7
        %v4129 = vsub.s32 %v4126, %v4128
        %v4130 = vrot.slane %v4108, %v4129
        %v4132 = vunpack.c.l.s4 1966171168
        %v4133 = vunpack.c.0.s8 %v4132
        %v4134 = vlaneseq
        %v4135 = vshrl.u32 %v4134, 7
        %v4136 = vsub.s32 %v4133, %v4135
        %v4137 = vrot.slane %v4109, %v4136
        %v4138 = vcombine.low %v4116, %v4123
        %v4139 = vcombine.low %v4130, %v4137
        %v4141 = vunpack.c.l.s4 1966171168
        %v4142 = vunpack.c.0.s8 %v4141
        %v4143 = vlaneseq
        %v4144 = vshrl.u32 %v4143, 7
        %v4145 = vsub.s32 %v4142, %v4144
        %v4146 = vrot.slane %v4138, %v4145
        %v4148 = vunpack.c.l.s4 1966171168
        %v4149 = vunpack.c.0.s8 %v4148
        %v4150 = vlaneseq
        %v4151 = vshrl.u32 %v4150, 7
        %v4152 = vsub.s32 %v4149, %v4151
        %v4153 = vrot.slane %v4139, %v4152
        %v4154 = vcombine.low %v4146, %v4153
        %v4156 = vadd.f32 %v3801, %v4154
        %4157 = vst [vmem:[%s516] sm:$0xff] %v4156
        %v4158 = vld [vmem:[%s520] sm:$0xff]
        %v4159 = vmax.f32 %v1636, %v1640
        %v4160 = vmax.f32 %v4159, %v1646
        %v4161 = vmax.f32 %v4160, %v1650
        %v4162 = vmax.f32 %v4161, %v1656
        %v4163 = vmax.f32 %v4162, %v1660
        %v4164 = vmax.f32 %v4163, %v1666
        %v4165 = vmax.f32 %v4164, %v1670
        %v4166 = vmax.f32 %v4165, %v1676
        %v4167 = vmax.f32 %v4166, %v1680
        %v4168 = vmax.f32 %v4167, %v1686
        %v4169 = vmax.f32 %v4168, %v1690
        %v4170 = vmax.f32 %v4169, %v1696
        %v4171 = vmax.f32 %v4170, %v1700
        %v4172 = vmax.f32 %v4171, %v1706
        %v4173 = vmax.f32 %v4172, %v1710
        %v4174 = vrot.slane %v4173, 4
        %v4175 = vmax.f32 %v4173, %v4174
        %v4176 = vrot.slane %v4175, 2
        %v4177 = vmax.f32 %v4175, %v4176
        %v4178 = vrot.slane %v4177, 1
        %v4179 = vmax.f32 %v4177, %v4178
        %v4180 = vmax.f32 %v1638, %v1642
        %v4181 = vmax.f32 %v4180, %v1648
        %v4182 = vmax.f32 %v4181, %v1652
        %v4183 = vmax.f32 %v4182, %v1658
        %v4184 = vmax.f32 %v4183, %v1662
        %v4185 = vmax.f32 %v4184, %v1668
        %v4186 = vmax.f32 %v4185, %v1672
        %v4187 = vmax.f32 %v4186, %v1678
        %v4188 = vmax.f32 %v4187, %v1682
        %v4189 = vmax.f32 %v4188, %v1688
        %v4190 = vmax.f32 %v4189, %v1692
        %v4191 = vmax.f32 %v4190, %v1698
        %v4192 = vmax.f32 %v4191, %v1702
        %v4193 = vmax.f32 %v4192, %v1708
        %v4194 = vmax.f32 %v4193, %v1712
        %v4195 = vrot.slane %v4194, 4
        %v4196 = vmax.f32 %v4194, %v4195
        %v4197 = vrot.slane %v4196, 2
        %v4198 = vmax.f32 %v4196, %v4197
        %v4199 = vrot.slane %v4198, 1
        %v4200 = vmax.f32 %v4198, %v4199
        %v4201 = vmax.f32 %v1749, %v1753
        %v4202 = vmax.f32 %v4201, %v1759
        %v4203 = vmax.f32 %v4202, %v1763
        %v4204 = vmax.f32 %v4203, %v1769
        %v4205 = vmax.f32 %v4204, %v1773
        %v4206 = vmax.f32 %v4205, %v1779
        %v4207 = vmax.f32 %v4206, %v1783
        %v4208 = vmax.f32 %v4207, %v1789
        %v4209 = vmax.f32 %v4208, %v1793
        %v4210 = vmax.f32 %v4209, %v1799
        %v4211 = vmax.f32 %v4210, %v1803
        %v4212 = vmax.f32 %v4211, %v1809
        %v4213 = vmax.f32 %v4212, %v1813
        %v4214 = vmax.f32 %v4213, %v1819
        %v4215 = vmax.f32 %v4214, %v1823
        %v4216 = vrot.slane %v4215, 4
        %v4217 = vmax.f32 %v4215, %v4216
        %v4218 = vrot.slane %v4217, 2
        %v4219 = vmax.f32 %v4217, %v4218
        %v4220 = vrot.slane %v4219, 1
        %v4221 = vmax.f32 %v4219, %v4220
        %v4222 = vmax.f32 %v1751, %v1755
        %v4223 = vmax.f32 %v4222, %v1761
        %v4224 = vmax.f32 %v4223, %v1765
        %v4225 = vmax.f32 %v4224, %v1771
        %v4226 = vmax.f32 %v4225, %v1775
        %v4227 = vmax.f32 %v4226, %v1781
        %v4228 = vmax.f32 %v4227, %v1785
        %v4229 = vmax.f32 %v4228, %v1791
        %v4230 = vmax.f32 %v4229, %v1795
        %v4231 = vmax.f32 %v4230, %v1801
        %v4232 = vmax.f32 %v4231, %v1805
        %v4233 = vmax.f32 %v4232, %v1811
        %v4234 = vmax.f32 %v4233, %v1815
        %v4235 = vmax.f32 %v4234, %v1821
        %v4236 = vmax.f32 %v4235, %v1825
        %v4237 = vrot.slane %v4236, 4
        %v4238 = vmax.f32 %v4236, %v4237
        %v4239 = vrot.slane %v4238, 2
        %v4240 = vmax.f32 %v4238, %v4239
        %v4241 = vrot.slane %v4240, 1
        %v4242 = vmax.f32 %v4240, %v4241
        %v4243 = vmax.f32 %v1862, %v1866
        %v4244 = vmax.f32 %v4243, %v1872
        %v4245 = vmax.f32 %v4244, %v1876
        %v4246 = vmax.f32 %v4245, %v1882
        %v4247 = vmax.f32 %v4246, %v1886
        %v4248 = vmax.f32 %v4247, %v1892
        %v4249 = vmax.f32 %v4248, %v1896
        %v4250 = vmax.f32 %v4249, %v1902
        %v4251 = vmax.f32 %v4250, %v1906
        %v4252 = vmax.f32 %v4251, %v1912
        %v4253 = vmax.f32 %v4252, %v1916
        %v4254 = vmax.f32 %v4253, %v1922
        %v4255 = vmax.f32 %v4254, %v1926
        %v4256 = vmax.f32 %v4255, %v1932
        %v4257 = vmax.f32 %v4256, %v1936
        %v4258 = vrot.slane %v4257, 4
        %v4259 = vmax.f32 %v4257, %v4258
        %v4260 = vrot.slane %v4259, 2
        %v4261 = vmax.f32 %v4259, %v4260
        %v4262 = vrot.slane %v4261, 1
        %v4263 = vmax.f32 %v4261, %v4262
        %v4264 = vmax.f32 %v1864, %v1868
        %v4265 = vmax.f32 %v4264, %v1874
        %v4266 = vmax.f32 %v4265, %v1878
        %v4267 = vmax.f32 %v4266, %v1884
        %v4268 = vmax.f32 %v4267, %v1888
        %v4269 = vmax.f32 %v4268, %v1894
        %v4270 = vmax.f32 %v4269, %v1898
        %v4271 = vmax.f32 %v4270, %v1904
        %v4272 = vmax.f32 %v4271, %v1908
        %v4273 = vmax.f32 %v4272, %v1914
        %v4274 = vmax.f32 %v4273, %v1918
        %v4275 = vmax.f32 %v4274, %v1924
        %v4276 = vmax.f32 %v4275, %v1928
        %v4277 = vmax.f32 %v4276, %v1934
        %v4278 = vmax.f32 %v4277, %v1938
        %v4279 = vrot.slane %v4278, 4
        %v4280 = vmax.f32 %v4278, %v4279
        %v4281 = vrot.slane %v4280, 2
        %v4282 = vmax.f32 %v4280, %v4281
        %v4283 = vrot.slane %v4282, 1
        %v4284 = vmax.f32 %v4282, %v4283
        %v4285 = vmax.f32 %v1975, %v1979
        %v4286 = vmax.f32 %v4285, %v1985
        %v4287 = vmax.f32 %v4286, %v1989
        %v4288 = vmax.f32 %v4287, %v1995
        %v4289 = vmax.f32 %v4288, %v1999
        %v4290 = vmax.f32 %v4289, %v2005
        %v4291 = vmax.f32 %v4290, %v2009
        %v4292 = vmax.f32 %v4291, %v2015
        %v4293 = vmax.f32 %v4292, %v2019
        %v4294 = vmax.f32 %v4293, %v2025
        %v4295 = vmax.f32 %v4294, %v2029
        %v4296 = vmax.f32 %v4295, %v2035
        %v4297 = vmax.f32 %v4296, %v2039
        %v4298 = vmax.f32 %v4297, %v2045
        %v4299 = vmax.f32 %v4298, %v2049
        %v4300 = vrot.slane %v4299, 4
        %v4301 = vmax.f32 %v4299, %v4300
        %v4302 = vrot.slane %v4301, 2
        %v4303 = vmax.f32 %v4301, %v4302
        %v4304 = vrot.slane %v4303, 1
        %v4305 = vmax.f32 %v4303, %v4304
        %v4306 = vmax.f32 %v1977, %v1981
        %v4307 = vmax.f32 %v4306, %v1987
        %v4308 = vmax.f32 %v4307, %v1991
        %v4309 = vmax.f32 %v4308, %v1997
        %v4310 = vmax.f32 %v4309, %v2001
        %v4311 = vmax.f32 %v4310, %v2007
        %v4312 = vmax.f32 %v4311, %v2011
        %v4313 = vmax.f32 %v4312, %v2017
        %v4314 = vmax.f32 %v4313, %v2021
        %v4315 = vmax.f32 %v4314, %v2027
        %v4316 = vmax.f32 %v4315, %v2031
        %v4317 = vmax.f32 %v4316, %v2037
        %v4318 = vmax.f32 %v4317, %v2041
        %v4319 = vmax.f32 %v4318, %v2047
        %v4320 = vmax.f32 %v4319, %v2051
        %v4321 = vrot.slane %v4320, 4
        %v4322 = vmax.f32 %v4320, %v4321
        %v4323 = vrot.slane %v4322, 2
        %v4324 = vmax.f32 %v4322, %v4323
        %v4325 = vrot.slane %v4324, 1
        %v4326 = vmax.f32 %v4324, %v4325
        %v4335 = vcombine.low %v4179, %v4200
        %v4336 = vcombine.low %v4221, %v4242
        %v4337 = vcombine.low %v4263, %v4284
        %v4338 = vcombine.low %v4305, %v4326
        %v4340 = vunpack.c.l.s4 1966171168
        %v4341 = vunpack.c.0.s8 %v4340
        %v4342 = vlaneseq
        %v4343 = vshrl.u32 %v4342, 7
        %v4344 = vsub.s32 %v4341, %v4343
        %v4345 = vrot.slane %v4335, %v4344
        %v4347 = vunpack.c.l.s4 1966171168
        %v4348 = vunpack.c.0.s8 %v4347
        %v4349 = vlaneseq
        %v4350 = vshrl.u32 %v4349, 7
        %v4351 = vsub.s32 %v4348, %v4350
        %v4352 = vrot.slane %v4336, %v4351
        %v4354 = vunpack.c.l.s4 1966171168
        %v4355 = vunpack.c.0.s8 %v4354
        %v4356 = vlaneseq
        %v4357 = vshrl.u32 %v4356, 7
        %v4358 = vsub.s32 %v4355, %v4357
        %v4359 = vrot.slane %v4337, %v4358
        %v4361 = vunpack.c.l.s4 1966171168
        %v4362 = vunpack.c.0.s8 %v4361
        %v4363 = vlaneseq
        %v4364 = vshrl.u32 %v4363, 7
        %v4365 = vsub.s32 %v4362, %v4364
        %v4366 = vrot.slane %v4338, %v4365
        %v4367 = vcombine.low %v4345, %v4352
        %v4368 = vcombine.low %v4359, %v4366
        %v4370 = vunpack.c.l.s4 1966171168
        %v4371 = vunpack.c.0.s8 %v4370
        %v4372 = vlaneseq
        %v4373 = vshrl.u32 %v4372, 7
        %v4374 = vsub.s32 %v4371, %v4373
        %v4375 = vrot.slane %v4367, %v4374
        %v4377 = vunpack.c.l.s4 1966171168
        %v4378 = vunpack.c.0.s8 %v4377
        %v4379 = vlaneseq
        %v4380 = vshrl.u32 %v4379, 7
        %v4381 = vsub.s32 %v4378, %v4380
        %v4382 = vrot.slane %v4368, %v4381
        %v4383 = vcombine.low %v4375, %v4382
        %v4385 = vmax.f32 %v4158, %v4383
        %4386 = vst [vmem:[%s520] sm:$0xff] %v4385
        %v4387 = vld [vmem:[%s524] sm:$0xff]
        %v4388 = vmin.f32 %v1636, %v1640
        %v4389 = vmin.f32 %v4388, %v1646
        %v4390 = vmin.f32 %v4389, %v1650
        %v4391 = vmin.f32 %v4390, %v1656
        %v4392 = vmin.f32 %v4391, %v1660
        %v4393 = vmin.f32 %v4392, %v1666
        %v4394 = vmin.f32 %v4393, %v1670
        %v4395 = vmin.f32 %v4394, %v1676
        %v4396 = vmin.f32 %v4395, %v1680
        %v4397 = vmin.f32 %v4396, %v1686
        %v4398 = vmin.f32 %v4397, %v1690
        %v4399 = vmin.f32 %v4398, %v1696
        %v4400 = vmin.f32 %v4399, %v1700
        %v4401 = vmin.f32 %v4400, %v1706
        %v4402 = vmin.f32 %v4401, %v1710
        %v4403 = vrot.slane %v4402, 4
        %v4404 = vmin.f32 %v4402, %v4403
        %v4405 = vrot.slane %v4404, 2
        %v4406 = vmin.f32 %v4404, %v4405
        %v4407 = vrot.slane %v4406, 1
        %v4408 = vmin.f32 %v4406, %v4407
        %v4409 = vmin.f32 %v1638, %v1642
        %v4410 = vmin.f32 %v4409, %v1648
        %v4411 = vmin.f32 %v4410, %v1652
        %v4412 = vmin.f32 %v4411, %v1658
        %v4413 = vmin.f32 %v4412, %v1662
        %v4414 = vmin.f32 %v4413, %v1668
        %v4415 = vmin.f32 %v4414, %v1672
        %v4416 = vmin.f32 %v4415, %v1678
        %v4417 = vmin.f32 %v4416, %v1682
        %v4418 = vmin.f32 %v4417, %v1688
        %v4419 = vmin.f32 %v4418, %v1692
        %v4420 = vmin.f32 %v4419, %v1698
        %v4421 = vmin.f32 %v4420, %v1702
        %v4422 = vmin.f32 %v4421, %v1708
        %v4423 = vmin.f32 %v4422, %v1712
        %v4424 = vrot.slane %v4423, 4
        %v4425 = vmin.f32 %v4423, %v4424
        %v4426 = vrot.slane %v4425, 2
        %v4427 = vmin.f32 %v4425, %v4426
        %v4428 = vrot.slane %v4427, 1
        %v4429 = vmin.f32 %v4427, %v4428
        %v4430 = vmin.f32 %v1749, %v1753
        %v4431 = vmin.f32 %v4430, %v1759
        %v4432 = vmin.f32 %v4431, %v1763
        %v4433 = vmin.f32 %v4432, %v1769
        %v4434 = vmin.f32 %v4433, %v1773
        %v4435 = vmin.f32 %v4434, %v1779
        %v4436 = vmin.f32 %v4435, %v1783
        %v4437 = vmin.f32 %v4436, %v1789
        %v4438 = vmin.f32 %v4437, %v1793
        %v4439 = vmin.f32 %v4438, %v1799
        %v4440 = vmin.f32 %v4439, %v1803
        %v4441 = vmin.f32 %v4440, %v1809
        %v4442 = vmin.f32 %v4441, %v1813
        %v4443 = vmin.f32 %v4442, %v1819
        %v4444 = vmin.f32 %v4443, %v1823
        %v4445 = vrot.slane %v4444, 4
        %v4446 = vmin.f32 %v4444, %v4445
        %v4447 = vrot.slane %v4446, 2
        %v4448 = vmin.f32 %v4446, %v4447
        %v4449 = vrot.slane %v4448, 1
        %v4450 = vmin.f32 %v4448, %v4449
        %v4451 = vmin.f32 %v1751, %v1755
        %v4452 = vmin.f32 %v4451, %v1761
        %v4453 = vmin.f32 %v4452, %v1765
        %v4454 = vmin.f32 %v4453, %v1771
        %v4455 = vmin.f32 %v4454, %v1775
        %v4456 = vmin.f32 %v4455, %v1781
        %v4457 = vmin.f32 %v4456, %v1785
        %v4458 = vmin.f32 %v4457, %v1791
        %v4459 = vmin.f32 %v4458, %v1795
        %v4460 = vmin.f32 %v4459, %v1801
        %v4461 = vmin.f32 %v4460, %v1805
        %v4462 = vmin.f32 %v4461, %v1811
        %v4463 = vmin.f32 %v4462, %v1815
        %v4464 = vmin.f32 %v4463, %v1821
        %v4465 = vmin.f32 %v4464, %v1825
        %v4466 = vrot.slane %v4465, 4
        %v4467 = vmin.f32 %v4465, %v4466
        %v4468 = vrot.slane %v4467, 2
        %v4469 = vmin.f32 %v4467, %v4468
        %v4470 = vrot.slane %v4469, 1
        %v4471 = vmin.f32 %v4469, %v4470
        %v4472 = vmin.f32 %v1862, %v1866
        %v4473 = vmin.f32 %v4472, %v1872
        %v4474 = vmin.f32 %v4473, %v1876
        %v4475 = vmin.f32 %v4474, %v1882
        %v4476 = vmin.f32 %v4475, %v1886
        %v4477 = vmin.f32 %v4476, %v1892
        %v4478 = vmin.f32 %v4477, %v1896
        %v4479 = vmin.f32 %v4478, %v1902
        %v4480 = vmin.f32 %v4479, %v1906
        %v4481 = vmin.f32 %v4480, %v1912
        %v4482 = vmin.f32 %v4481, %v1916
        %v4483 = vmin.f32 %v4482, %v1922
        %v4484 = vmin.f32 %v4483, %v1926
        %v4485 = vmin.f32 %v4484, %v1932
        %v4486 = vmin.f32 %v4485, %v1936
        %v4487 = vrot.slane %v4486, 4
        %v4488 = vmin.f32 %v4486, %v4487
        %v4489 = vrot.slane %v4488, 2
        %v4490 = vmin.f32 %v4488, %v4489
        %v4491 = vrot.slane %v4490, 1
        %v4492 = vmin.f32 %v4490, %v4491
        %v4493 = vmin.f32 %v1864, %v1868
        %v4494 = vmin.f32 %v4493, %v1874
        %v4495 = vmin.f32 %v4494, %v1878
        %v4496 = vmin.f32 %v4495, %v1884
        %v4497 = vmin.f32 %v4496, %v1888
        %v4498 = vmin.f32 %v4497, %v1894
        %v4499 = vmin.f32 %v4498, %v1898
        %v4500 = vmin.f32 %v4499, %v1904
        %v4501 = vmin.f32 %v4500, %v1908
        %v4502 = vmin.f32 %v4501, %v1914
        %v4503 = vmin.f32 %v4502, %v1918
        %v4504 = vmin.f32 %v4503, %v1924
        %v4505 = vmin.f32 %v4504, %v1928
        %v4506 = vmin.f32 %v4505, %v1934
        %v4507 = vmin.f32 %v4506, %v1938
        %v4508 = vrot.slane %v4507, 4
        %v4509 = vmin.f32 %v4507, %v4508
        %v4510 = vrot.slane %v4509, 2
        %v4511 = vmin.f32 %v4509, %v4510
        %v4512 = vrot.slane %v4511, 1
        %v4513 = vmin.f32 %v4511, %v4512
        %v4514 = vmin.f32 %v1975, %v1979
        %v4515 = vmin.f32 %v4514, %v1985
        %v4516 = vmin.f32 %v4515, %v1989
        %v4517 = vmin.f32 %v4516, %v1995
        %v4518 = vmin.f32 %v4517, %v1999
        %v4519 = vmin.f32 %v4518, %v2005
        %v4520 = vmin.f32 %v4519, %v2009
        %v4521 = vmin.f32 %v4520, %v2015
        %v4522 = vmin.f32 %v4521, %v2019
        %v4523 = vmin.f32 %v4522, %v2025
        %v4524 = vmin.f32 %v4523, %v2029
        %v4525 = vmin.f32 %v4524, %v2035
        %v4526 = vmin.f32 %v4525, %v2039
        %v4527 = vmin.f32 %v4526, %v2045
        %v4528 = vmin.f32 %v4527, %v2049
        %v4529 = vrot.slane %v4528, 4
        %v4530 = vmin.f32 %v4528, %v4529
        %v4531 = vrot.slane %v4530, 2
        %v4532 = vmin.f32 %v4530, %v4531
        %v4533 = vrot.slane %v4532, 1
        %v4534 = vmin.f32 %v4532, %v4533
        %v4535 = vmin.f32 %v1977, %v1981
        %v4536 = vmin.f32 %v4535, %v1987
        %v4537 = vmin.f32 %v4536, %v1991
        %v4538 = vmin.f32 %v4537, %v1997
        %v4539 = vmin.f32 %v4538, %v2001
        %v4540 = vmin.f32 %v4539, %v2007
        %v4541 = vmin.f32 %v4540, %v2011
        %v4542 = vmin.f32 %v4541, %v2017
        %v4543 = vmin.f32 %v4542, %v2021
        %v4544 = vmin.f32 %v4543, %v2027
        %v4545 = vmin.f32 %v4544, %v2031
        %v4546 = vmin.f32 %v4545, %v2037
        %v4547 = vmin.f32 %v4546, %v2041
        %v4548 = vmin.f32 %v4547, %v2047
        %v4549 = vmin.f32 %v4548, %v2051
        %v4550 = vrot.slane %v4549, 4
        %v4551 = vmin.f32 %v4549, %v4550
        %v4552 = vrot.slane %v4551, 2
        %v4553 = vmin.f32 %v4551, %v4552
        %v4554 = vrot.slane %v4553, 1
        %v4555 = vmin.f32 %v4553, %v4554
        %v4564 = vcombine.low %v4408, %v4429
        %v4565 = vcombine.low %v4450, %v4471
        %v4566 = vcombine.low %v4492, %v4513
        %v4567 = vcombine.low %v4534, %v4555
        %v4569 = vunpack.c.l.s4 1966171168
        %v4570 = vunpack.c.0.s8 %v4569
        %v4571 = vlaneseq
        %v4572 = vshrl.u32 %v4571, 7
        %v4573 = vsub.s32 %v4570, %v4572
        %v4574 = vrot.slane %v4564, %v4573
        %v4576 = vunpack.c.l.s4 1966171168
        %v4577 = vunpack.c.0.s8 %v4576
        %v4578 = vlaneseq
        %v4579 = vshrl.u32 %v4578, 7
        %v4580 = vsub.s32 %v4577, %v4579
        %v4581 = vrot.slane %v4565, %v4580
        %v4583 = vunpack.c.l.s4 1966171168
        %v4584 = vunpack.c.0.s8 %v4583
        %v4585 = vlaneseq
        %v4586 = vshrl.u32 %v4585, 7
        %v4587 = vsub.s32 %v4584, %v4586
        %v4588 = vrot.slane %v4566, %v4587
        %v4590 = vunpack.c.l.s4 1966171168
        %v4591 = vunpack.c.0.s8 %v4590
        %v4592 = vlaneseq
        %v4593 = vshrl.u32 %v4592, 7
        %v4594 = vsub.s32 %v4591, %v4593
        %v4595 = vrot.slane %v4567, %v4594
        %v4596 = vcombine.low %v4574, %v4581
        %v4597 = vcombine.low %v4588, %v4595
        %v4599 = vunpack.c.l.s4 1966171168
        %v4600 = vunpack.c.0.s8 %v4599
        %v4601 = vlaneseq
        %v4602 = vshrl.u32 %v4601, 7
        %v4603 = vsub.s32 %v4600, %v4602
        %v4604 = vrot.slane %v4596, %v4603
        %v4606 = vunpack.c.l.s4 1966171168
        %v4607 = vunpack.c.0.s8 %v4606
        %v4608 = vlaneseq
        %v4609 = vshrl.u32 %v4608, 7
        %v4610 = vsub.s32 %v4607, %v4609
        %v4611 = vrot.slane %v4597, %v4610
        %v4612 = vcombine.low %v4604, %v4611
        %v4614 = vmin.f32 %v4387, %v4612
        %4615 = vst [vmem:[%s524] sm:$0xff] %v4614
      $region76: #{transform3d_forward.4} parent=63 // pred_fallthru
        _
      %p4616 = scmp.lt.s32.totalorder %s30, 3
      %s4617 = scalar_select %p4616, %s30, 3
      %s4618 = smul.addr %s4617, 8
      %s4619 = scalar_lea.vmem %s11, %s4618
      %p4620 = scmp.lt.s32.totalorder %s30, 3
      %s4621 = scalar_select %p4620, %s30, 3
      %s4622 = smul.addr %s4621, 8
      %s4623 = scalar_lea.vmem %s12, %s4622
      %p4624 = scmp.lt.s32.totalorder %s30, 3
      %s4625 = scalar_select %p4624, %s30, 3
      %s4626 = smul.addr %s4625, 8
      %s4627 = scalar_lea.vmem %s13, %s4626
      %p4628 = scmp.lt.s32.totalorder %s30, 3
      %s4629 = scalar_select %p4628, %s30, 3
      %s4630 = smul.addr %s4629, 8
      %s4631 = scalar_lea.vmem %s14, %s4630
      // Predicated region
      $region77: #{transform3d_forward.4} parent=63 // pred_check
        %p4632 = pneg %p294
      $region78: #{transform3d_forward.4} parent=63 // pred_check_branch
        %4634 = sbr.rel (%p4632) target = $region80
      $region79: #{transform3d_forward.4} parent=63 // pred_region
        _
      $region80: #{transform3d_forward.4} parent=63 // pred_fallthru
        _
      // Predicated region
      $region81: #{transform3d_forward.4} parent=63 // pred_check
        %p4635 = pneg %p320
      $region82: #{transform3d_forward.4} parent=63 // pred_check_branch
        %4637 = sbr.rel (%p4635) target = $region84
      $region83: #{transform3d_forward.4} parent=63 // pred_region
        _
      $region84: #{transform3d_forward.4} parent=63 // pred_fallthru
        _
      // Predicated region
      $region85: #{transform3d_forward.4} parent=63 // pred_check
        %p4638 = pneg %p346
      $region86: #{transform3d_forward.4} parent=63 // pred_check_branch
        %4640 = sbr.rel (%p4638) target = $region88
      $region87: #{transform3d_forward.4} parent=63 // pred_region
        _
      $region88: #{transform3d_forward.4} parent=63 // pred_fallthru
        _
      // Predicated region
      $region89: #{transform3d_forward.4} parent=63 // pred_check
        %p4641 = pneg %p372
      $region90: #{transform3d_forward.4} parent=63 // pred_check_branch
        %4643 = sbr.rel (%p4641) target = $region92
      $region91: #{transform3d_forward.4} parent=63 // pred_region
        _
      $region92: #{transform3d_forward.4} parent=63 // pred_fallthru
        _
    $region64: #{transform3d_forward.4} parent=5 // pred_fallthru
      _
    %p4644 = scmp.le.s32.totalorder 2, %s21
    // Predicated region
    $region93: #{transform3d_forward.4} parent=5 // pred_check
      %p4645 = pneg %p4644
    $region94: #{transform3d_forward.4} parent=5 // pred_check_branch
      %4647 = sbr.rel (%p4645) target = $region96
    $region95: #{transform3d_forward.4} parent=5 // pred_region
      %s4648 = ssub.s32 %s21, 2
      // Predicated region
      $region97: #{transform3d_forward.4} parent=95 // pred_check
        %p4649 = pneg %p300
      $region98: #{transform3d_forward.4} parent=95 // pred_check_branch
        %4651 = sbr.rel (%p4649) target = $region100
      $region99: #{transform3d_forward.4} parent=95 // pred_region
        %p4652 = scmp.lt.s32.totalorder %s32, 3
        %s4653 = scalar_select %p4652, %s32, 3
        %s4654 = smul.addr %s4653, 8
        %s4655 = scalar_lea.vmem %s11, %s4654
      $region100: #{transform3d_forward.4} parent=95 // pred_fallthru
        _
      // Predicated region
      $region101: #{transform3d_forward.4} parent=95 // pred_check
        %p4656 = pneg %p326
      $region102: #{transform3d_forward.4} parent=95 // pred_check_branch
        %4658 = sbr.rel (%p4656) target = $region104
      $region103: #{transform3d_forward.4} parent=95 // pred_region
        %p4659 = scmp.lt.s32.totalorder %s32, 3
        %s4660 = scalar_select %p4659, %s32, 3
        %s4661 = smul.addr %s4660, 8
        %s4662 = scalar_lea.vmem %s12, %s4661
      $region104: #{transform3d_forward.4} parent=95 // pred_fallthru
        _
      // Predicated region
      $region105: #{transform3d_forward.4} parent=95 // pred_check
        %p4663 = pneg %p352
      $region106: #{transform3d_forward.4} parent=95 // pred_check_branch
        %4665 = sbr.rel (%p4663) target = $region108
      $region107: #{transform3d_forward.4} parent=95 // pred_region
        %p4666 = scmp.lt.s32.totalorder %s32, 3
        %s4667 = scalar_select %p4666, %s32, 3
        %s4668 = smul.addr %s4667, 8
        %s4669 = scalar_lea.vmem %s13, %s4668
      $region108: #{transform3d_forward.4} parent=95 // pred_fallthru
        _
      // Predicated region
      $region109: #{transform3d_forward.4} parent=95 // pred_check
        %p4670 = pneg %p378
      $region110: #{transform3d_forward.4} parent=95 // pred_check_branch
        %4672 = sbr.rel (%p4670) target = $region112
      $region111: #{transform3d_forward.4} parent=95 // pred_region
        %p4673 = scmp.lt.s32.totalorder %s32, 3
        %s4674 = scalar_select %p4673, %s32, 3
        %s4675 = smul.addr %s4674, 8
        %s4676 = scalar_lea.vmem %s14, %s4675
      $region112: #{transform3d_forward.4} parent=95 // pred_fallthru
        _
    $region96: #{transform3d_forward.4} parent=5 // pred_fallthru
      _
  $region6: #{transform3d_forward.4} parent=0 // loop_footer
    %s25 = sadd.s32 1, %s21
  $region7: #{transform3d_forward.4} parent=0 // loop_footer_branch
    %20 = sbr.rel target = $region3
  $region8: #{transform3d_forward.4} parent=0 // loop_exit
    _

// kernel: transform3d_forward.5
$region0: #{transform3d_forward.5}
  #allocation0 [shape = 'u32[]', space=smem, size = 0x4, offset = 0x4, fixed_abs, tag = 'smem constant byte address 0x4 - core index']
  #allocation1 [shape = 'u32[144,128]{1,0:T(1,128)}', space=vmem, size = 0x12000, scoped, tag = 'internal scratch']
  %s0 = inlined_call_operand.vmem [shape: f32[4,1024], index: 0, kind: input, shape index: {}]
  %s1 = inlined_call_operand.vmem [shape: f32[4,1024], index: 1, kind: input, shape index: {}]
  %s2 = inlined_call_operand.vmem [shape: f32[1,1024], index: 2, kind: input, shape index: {}]
  %s3 = inlined_call_operand.vmem [shape: f32[1,1024], index: 3, kind: input, shape index: {}]
  %s4 = inlined_call_operand.vmem [shape: bf16[1024,512], index: 4, kind: input, shape index: {}]
  %s5 = inlined_call_operand.vmem [shape: f32[1,512], index: 5, kind: input, shape index: {}]
  %s6 = inlined_call_operand.vmem [shape: f32[1,512], index: 6, kind: input, shape index: {}]
  %s7 = inlined_call_operand.vmem [shape: f32[1,512], index: 7, kind: input, shape index: {}]
  %s8 = inlined_call_operand.vmem [shape: bf16[512,256], index: 8, kind: input, shape index: {}]
  %s9 = inlined_call_operand.vmem [shape: f32[1,256], index: 9, kind: input, shape index: {}]
  %s10 = inlined_call_operand.vmem [shape: f32[1,256], index: 10, kind: input, shape index: {}]
  %s11 = inlined_call_operand.vmem [shape: f32[1,256], index: 11, kind: input, shape index: {}]
  %s12 = inlined_call_operand.vmem [shape: f32[256,9], index: 12, kind: input, shape index: {}]
  %s13 = inlined_call_operand.vmem [shape: f32[1,9], index: 13, kind: input, shape index: {}]
  %s14 = inlined_call_operand.vmem [shape: f32[1,9], index: 14, kind: input, shape index: {}]
  %s15 = inlined_call_operand.vmem [shape: f32[4,9], index: 15, kind: output, shape index: {}]
  %s16 = sld [smem:[#allocation0]]
  $region70: #{transform3d_forward.5} parent=0
    _
  %s18 = ssub.s32 1, %s16
  %s19 = scalar_select 0, %s18, %s16
  // Predicated region
  $region2: #{transform3d_forward.5} parent=0 // pred_check
    _
  $region3: #{transform3d_forward.5} parent=0 // pred_check_branch
    %21 = sbr.rel (0) target = $region5
  $region4: #{transform3d_forward.5} parent=0 // pred_region
    _
  $region5: #{transform3d_forward.5} parent=0 // pred_fallthru
    _
  // Predicated region
  $region6: #{transform3d_forward.5} parent=0 // pred_check
    _
  $region7: #{transform3d_forward.5} parent=0 // pred_check_branch
    %23 = sbr.rel (0) target = $region9
  $region8: #{transform3d_forward.5} parent=0 // pred_region
    _
  $region9: #{transform3d_forward.5} parent=0 // pred_fallthru
    _
  // Predicated region
  $region10: #{transform3d_forward.5} parent=0 // pred_check
    _
  $region11: #{transform3d_forward.5} parent=0 // pred_check_branch
    %25 = sbr.rel (0) target = $region13
  $region12: #{transform3d_forward.5} parent=0 // pred_region
    _
  $region13: #{transform3d_forward.5} parent=0 // pred_fallthru
    _
  // Predicated region
  $region14: #{transform3d_forward.5} parent=0 // pred_check
    _
  $region15: #{transform3d_forward.5} parent=0 // pred_check_branch
    %27 = sbr.rel (0) target = $region17
  $region16: #{transform3d_forward.5} parent=0 // pred_region
    _
  $region17: #{transform3d_forward.5} parent=0 // pred_fallthru
    _
  // Predicated region
  $region18: #{transform3d_forward.5} parent=0 // pred_check
    _
  $region19: #{transform3d_forward.5} parent=0 // pred_check_branch
    %29 = sbr.rel (0) target = $region21
  $region20: #{transform3d_forward.5} parent=0 // pred_region
    _
  $region21: #{transform3d_forward.5} parent=0 // pred_fallthru
    _
  // Predicated region
  $region22: #{transform3d_forward.5} parent=0 // pred_check
    _
  $region23: #{transform3d_forward.5} parent=0 // pred_check_branch
    %31 = sbr.rel (0) target = $region25
  $region24: #{transform3d_forward.5} parent=0 // pred_region
    _
  $region25: #{transform3d_forward.5} parent=0 // pred_fallthru
    _
  // Predicated region
  $region26: #{transform3d_forward.5} parent=0 // pred_check
    _
  $region27: #{transform3d_forward.5} parent=0 // pred_check_branch
    %33 = sbr.rel (0) target = $region29
  $region28: #{transform3d_forward.5} parent=0 // pred_region
    _
  $region29: #{transform3d_forward.5} parent=0 // pred_fallthru
    _
  // Predicated region
  $region30: #{transform3d_forward.5} parent=0 // pred_check
    _
  $region31: #{transform3d_forward.5} parent=0 // pred_check_branch
    %35 = sbr.rel (0) target = $region33
  $region32: #{transform3d_forward.5} parent=0 // pred_region
    _
  $region33: #{transform3d_forward.5} parent=0 // pred_fallthru
    _
  // Predicated region
  $region34: #{transform3d_forward.5} parent=0 // pred_check
    _
  $region35: #{transform3d_forward.5} parent=0 // pred_check_branch
    %37 = sbr.rel (0) target = $region37
  $region36: #{transform3d_forward.5} parent=0 // pred_region
    _
  $region37: #{transform3d_forward.5} parent=0 // pred_fallthru
    _
  // Predicated region
  $region38: #{transform3d_forward.5} parent=0 // pred_check
    _
  $region39: #{transform3d_forward.5} parent=0 // pred_check_branch
    %39 = sbr.rel (0) target = $region41
  $region40: #{transform3d_forward.5} parent=0 // pred_region
    _
  $region41: #{transform3d_forward.5} parent=0 // pred_fallthru
    _
  // Predicated region
  $region42: #{transform3d_forward.5} parent=0 // pred_check
    _
  $region43: #{transform3d_forward.5} parent=0 // pred_check_branch
    %41 = sbr.rel (0) target = $region45
  $region44: #{transform3d_forward.5} parent=0 // pred_region
    _
  $region45: #{transform3d_forward.5} parent=0 // pred_fallthru
    _
  // Predicated region
  $region46: #{transform3d_forward.5} parent=0 // pred_check
    _
  $region47: #{transform3d_forward.5} parent=0 // pred_check_branch
    %43 = sbr.rel (0) target = $region49
  $region48: #{transform3d_forward.5} parent=0 // pred_region
    _
  $region49: #{transform3d_forward.5} parent=0 // pred_fallthru
    _
  // Predicated region
  $region50: #{transform3d_forward.5} parent=0 // pred_check
    _
  $region51: #{transform3d_forward.5} parent=0 // pred_check_branch
    %45 = sbr.rel (0) target = $region53
  $region52: #{transform3d_forward.5} parent=0 // pred_region
    _
  $region53: #{transform3d_forward.5} parent=0 // pred_fallthru
    _
  // Predicated region
  $region54: #{transform3d_forward.5} parent=0 // pred_check
    _
  $region55: #{transform3d_forward.5} parent=0 // pred_check_branch
    %47 = sbr.rel (0) target = $region57
  $region56: #{transform3d_forward.5} parent=0 // pred_region
    _
  $region57: #{transform3d_forward.5} parent=0 // pred_fallthru
    _
  // Predicated region
  $region58: #{transform3d_forward.5} parent=0 // pred_check
    _
  $region59: #{transform3d_forward.5} parent=0 // pred_check_branch
    %49 = sbr.rel (0) target = $region61
  $region60: #{transform3d_forward.5} parent=0 // pred_region
    _
  $region61: #{transform3d_forward.5} parent=0 // pred_fallthru
    _
  %v50 = vld [vmem:[%s2] sm:$0xff]
  %vm51 = vcmp.ge.f32.partialorder %v50, 0.0
  %v52 = vld [vmem:[%s0] sm:$0xff]
  %v53 = vld [vmem:[%s0 + $0x8] sm:$0xff]
  %v54 = vld [vmem:[%s0 + $0x10] sm:$0xff]
  %v55 = vld [vmem:[%s0 + $0x18] sm:$0xff]
  %v57 = vlaneseq
  %v58 = vshrl.u32 %v57, 7
  %v59 = vsub.s32 0, %v58
  %v60 = vrot.slane %v50, %v59
  %v61 = vlaneseq
  %v62 = vshrl.u32 %v61, 7
  %v63 = vsub.s32 1, %v62
  %v64 = vrot.slane %v50, %v63
  %v65 = vlaneseq
  %v66 = vshrl.u32 %v65, 7
  %v67 = vsub.s32 2, %v66
  %v68 = vrot.slane %v50, %v67
  %v69 = vlaneseq
  %v70 = vshrl.u32 %v69, 7
  %v71 = vsub.s32 3, %v70
  %v72 = vrot.slane %v50, %v71
  %v73 = vlaneseq
  %v74 = vshrl.u32 %v73, 7
  %v75 = vsub.s32 4, %v74
  %v76 = vrot.slane %v50, %v75
  %v77 = vlaneseq
  %v78 = vshrl.u32 %v77, 7
  %v79 = vsub.s32 5, %v78
  %v80 = vrot.slane %v50, %v79
  %v81 = vlaneseq
  %v82 = vshrl.u32 %v81, 7
  %v83 = vsub.s32 6, %v82
  %v84 = vrot.slane %v50, %v83
  %v85 = vlaneseq
  %v86 = vshrl.u32 %v85, 7
  %v87 = vsub.s32 7, %v86
  %v88 = vrot.slane %v50, %v87
  %v89 = vcombine.low %v60, %v64
  %v90 = vcombine.low %v68, %v72
  %v91 = vcombine.low %v76, %v80
  %v92 = vcombine.low %v84, %v88
  %v97 = vmul.f32 %v52, %v89
  %v98 = vmul.f32 %v53, %v90
  %v99 = vmul.f32 %v54, %v91
  %v100 = vmul.f32 %v55, %v92
  %v101 = vld [vmem:[%s1] sm:$0xff]
  %v102 = vld [vmem:[%s1 + $0x8] sm:$0xff]
  %v103 = vld [vmem:[%s1 + $0x10] sm:$0xff]
  %v104 = vld [vmem:[%s1 + $0x18] sm:$0xff]
  %v105 = vmul.f32 %v101, %v89
  %v106 = vmul.f32 %v102, %v90
  %v107 = vmul.f32 %v103, %v91
  %v108 = vmul.f32 %v104, %v92
  %v109 = vsel %vm51, 1, 0
  %v110 = vlaneseq
  %v111 = vshrl.u32 %v110, 7
  %v112 = vsub.s32 0, %v111
  %v113 = vrot.slane %v109, %v112
  %v114 = vlaneseq
  %v115 = vshrl.u32 %v114, 7
  %v116 = vsub.s32 1, %v115
  %v117 = vrot.slane %v109, %v116
  %v118 = vlaneseq
  %v119 = vshrl.u32 %v118, 7
  %v120 = vsub.s32 2, %v119
  %v121 = vrot.slane %v109, %v120
  %v122 = vlaneseq
  %v123 = vshrl.u32 %v122, 7
  %v124 = vsub.s32 3, %v123
  %v125 = vrot.slane %v109, %v124
  %v126 = vlaneseq
  %v127 = vshrl.u32 %v126, 7
  %v128 = vsub.s32 4, %v127
  %v129 = vrot.slane %v109, %v128
  %v130 = vlaneseq
  %v131 = vshrl.u32 %v130, 7
  %v132 = vsub.s32 5, %v131
  %v133 = vrot.slane %v109, %v132
  %v134 = vlaneseq
  %v135 = vshrl.u32 %v134, 7
  %v136 = vsub.s32 6, %v135
  %v137 = vrot.slane %v109, %v136
  %v138 = vlaneseq
  %v139 = vshrl.u32 %v138, 7
  %v140 = vsub.s32 7, %v139
  %v141 = vrot.slane %v109, %v140
  %vm142 = vcmp.eq.s32.totalorder %v113, 1
  %vm143 = vcmp.eq.s32.totalorder %v117, 1
  %vm144 = vcmp.eq.s32.totalorder %v121, 1
  %vm145 = vcmp.eq.s32.totalorder %v125, 1
  %vm146 = vcmp.eq.s32.totalorder %v129, 1
  %vm147 = vcmp.eq.s32.totalorder %v133, 1
  %vm148 = vcmp.eq.s32.totalorder %v137, 1
  %vm149 = vcmp.eq.s32.totalorder %v141, 1
  %v154 = vcombine.high %v97, %v97
  %v155 = vcombine.high %v98, %v98
  %v156 = vcombine.high %v99, %v99
  %v157 = vcombine.high %v100, %v100
  %v166 = vcombine.high %v105, %v105
  %v167 = vcombine.high %v106, %v106
  %v168 = vcombine.high %v107, %v107
  %v169 = vcombine.high %v108, %v108
  %v174 = vsel %vm142, %v97, %v105
  %v175 = vsel %vm143, %v154, %v166
  %v176 = vsel %vm144, %v98, %v106
  %v177 = vsel %vm145, %v155, %v167
  %v178 = vsel %vm146, %v99, %v107
  %v179 = vsel %vm147, %v156, %v168
  %v180 = vsel %vm148, %v100, %v108
  %v181 = vsel %vm149, %v157, %v169
  %v182 = vld [vmem:[%s3] sm:$0xff]
  %v184 = vlaneseq
  %v185 = vshrl.u32 %v184, 7
  %v186 = vsub.s32 0, %v185
  %v187 = vrot.slane %v182, %v186
  %v188 = vlaneseq
  %v189 = vshrl.u32 %v188, 7
  %v190 = vsub.s32 1, %v189
  %v191 = vrot.slane %v182, %v190
  %v192 = vlaneseq
  %v193 = vshrl.u32 %v192, 7
  %v194 = vsub.s32 2, %v193
  %v195 = vrot.slane %v182, %v194
  %v196 = vlaneseq
  %v197 = vshrl.u32 %v196, 7
  %v198 = vsub.s32 3, %v197
  %v199 = vrot.slane %v182, %v198
  %v200 = vlaneseq
  %v201 = vshrl.u32 %v200, 7
  %v202 = vsub.s32 4, %v201
  %v203 = vrot.slane %v182, %v202
  %v204 = vlaneseq
  %v205 = vshrl.u32 %v204, 7
  %v206 = vsub.s32 5, %v205
  %v207 = vrot.slane %v182, %v206
  %v208 = vlaneseq
  %v209 = vshrl.u32 %v208, 7
  %v210 = vsub.s32 6, %v209
  %v211 = vrot.slane %v182, %v210
  %v212 = vlaneseq
  %v213 = vshrl.u32 %v212, 7
  %v214 = vsub.s32 7, %v213
  %v215 = vrot.slane %v182, %v214
  %v224 = vadd.f32 %v174, %v187
  %v225 = vadd.f32 %v175, %v191
  %v226 = vadd.f32 %v176, %v195
  %v227 = vadd.f32 %v177, %v199
  %v228 = vadd.f32 %v178, %v203
  %v229 = vadd.f32 %v179, %v207
  %v230 = vadd.f32 %v180, %v211
  %v231 = vadd.f32 %v181, %v215
  %v232 = vmax.f32 %v224, 0.0
  %v233 = vmax.f32 %v225, 0.0
  %v234 = vmax.f32 %v226, 0.0
  %v235 = vmax.f32 %v227, 0.0
  %v236 = vmax.f32 %v228, 0.0
  %v237 = vmax.f32 %v229, 0.0
  %v238 = vmax.f32 %v230, 0.0
  %v239 = vmax.f32 %v231, 0.0
  %v240 = vpack.c.bf16 %v232, %v232
  %v241 = vpack.c.bf16 %v233, %v233
  %v242 = vpack.c.bf16 %v234, %v234
  %v243 = vpack.c.bf16 %v235, %v235
  %v244 = vpack.c.bf16 %v236, %v236
  %v245 = vpack.c.bf16 %v237, %v237
  %v246 = vpack.c.bf16 %v238, %v238
  %v247 = vpack.c.bf16 %v239, %v239
  %v248 = vld [vmem:[%s4] sm:$0xff]
  %v249 = vld [vmem:[%s4 + $0x8] sm:$0xff]
  %v250 = vld [vmem:[%s4 + $0x10] sm:$0xff]
  %v251 = vld [vmem:[%s4 + $0x18] sm:$0xff]
  %v252 = vld [vmem:[%s4 + $0x20] sm:$0xff]
  %v253 = vld [vmem:[%s4 + $0x28] sm:$0xff]
  %v254 = vld [vmem:[%s4 + $0x30] sm:$0xff]
  %v255 = vld [vmem:[%s4 + $0x38] sm:$0xff]
  %v256 = vld [vmem:[%s4 + $0x40] sm:$0xff]
  %v257 = vld [vmem:[%s4 + $0x48] sm:$0xff]
  %v258 = vld [vmem:[%s4 + $0x50] sm:$0xff]
  %v259 = vld [vmem:[%s4 + $0x58] sm:$0xff]
  %v260 = vld [vmem:[%s4 + $0x60] sm:$0xff]
  %v261 = vld [vmem:[%s4 + $0x68] sm:$0xff]
  %v262 = vld [vmem:[%s4 + $0x70] sm:$0xff]
  %v263 = vld [vmem:[%s4 + $0x78] sm:$0xff]
  %v264 = vld [vmem:[%s4 + $0x80] sm:$0xff]
  %v265 = vld [vmem:[%s4 + $0x88] sm:$0xff]
  %v266 = vld [vmem:[%s4 + $0x90] sm:$0xff]
  %v267 = vld [vmem:[%s4 + $0x98] sm:$0xff]
  %v268 = vld [vmem:[%s4 + $0xa0] sm:$0xff]
  %v269 = vld [vmem:[%s4 + $0xa8] sm:$0xff]
  %v270 = vld [vmem:[%s4 + $0xb0] sm:$0xff]
  %v271 = vld [vmem:[%s4 + $0xb8] sm:$0xff]
  %v272 = vld [vmem:[%s4 + $0xc0] sm:$0xff]
  %v273 = vld [vmem:[%s4 + $0xc8] sm:$0xff]
  %v274 = vld [vmem:[%s4 + $0xd0] sm:$0xff]
  %v275 = vld [vmem:[%s4 + $0xd8] sm:$0xff]
  %v276 = vld [vmem:[%s4 + $0xe0] sm:$0xff]
  %v277 = vld [vmem:[%s4 + $0xe8] sm:$0xff]
  %v278 = vld [vmem:[%s4 + $0xf0] sm:$0xff]
  %v279 = vld [vmem:[%s4 + $0xf8] sm:$0xff]
  %v280 = vld [vmem:[%s4 + $0x100] sm:$0xff]
  %v281 = vld [vmem:[%s4 + $0x108] sm:$0xff]
  %v282 = vld [vmem:[%s4 + $0x110] sm:$0xff]
  %v283 = vld [vmem:[%s4 + $0x118] sm:$0xff]
  %v284 = vld [vmem:[%s4 + $0x120] sm:$0xff]
  %v285 = vld [vmem:[%s4 + $0x128] sm:$0xff]
  %v286 = vld [vmem:[%s4 + $0x130] sm:$0xff]
  %v287 = vld [vmem:[%s4 + $0x138] sm:$0xff]
  %v288 = vld [vmem:[%s4 + $0x140] sm:$0xff]
  %v289 = vld [vmem:[%s4 + $0x148] sm:$0xff]
  %v290 = vld [vmem:[%s4 + $0x150] sm:$0xff]
  %v291 = vld [vmem:[%s4 + $0x158] sm:$0xff]
  %v292 = vld [vmem:[%s4 + $0x160] sm:$0xff]
  %v293 = vld [vmem:[%s4 + $0x168] sm:$0xff]
  %v294 = vld [vmem:[%s4 + $0x170] sm:$0xff]
  %v295 = vld [vmem:[%s4 + $0x178] sm:$0xff]
  %v296 = vld [vmem:[%s4 + $0x180] sm:$0xff]
  %v297 = vld [vmem:[%s4 + $0x188] sm:$0xff]
  %v298 = vld [vmem:[%s4 + $0x190] sm:$0xff]
  %v299 = vld [vmem:[%s4 + $0x198] sm:$0xff]
  %v300 = vld [vmem:[%s4 + $0x1a0] sm:$0xff]
  %v301 = vld [vmem:[%s4 + $0x1a8] sm:$0xff]
  %v302 = vld [vmem:[%s4 + $0x1b0] sm:$0xff]
  %v303 = vld [vmem:[%s4 + $0x1b8] sm:$0xff]
  %v304 = vld [vmem:[%s4 + $0x1c0] sm:$0xff]
  %v305 = vld [vmem:[%s4 + $0x1c8] sm:$0xff]
  %v306 = vld [vmem:[%s4 + $0x1d0] sm:$0xff]
  %v307 = vld [vmem:[%s4 + $0x1d8] sm:$0xff]
  %v308 = vld [vmem:[%s4 + $0x1e0] sm:$0xff]
  %v309 = vld [vmem:[%s4 + $0x1e8] sm:$0xff]
  %v310 = vld [vmem:[%s4 + $0x1f0] sm:$0xff]
  %v311 = vld [vmem:[%s4 + $0x1f8] sm:$0xff]
  %v312 = vld [vmem:[%s4 + $0x200] sm:$0xff]
  %v313 = vld [vmem:[%s4 + $0x208] sm:$0xff]
  %v314 = vld [vmem:[%s4 + $0x210] sm:$0xff]
  %v315 = vld [vmem:[%s4 + $0x218] sm:$0xff]
  %v316 = vld [vmem:[%s4 + $0x220] sm:$0xff]
  %v317 = vld [vmem:[%s4 + $0x228] sm:$0xff]
  %v318 = vld [vmem:[%s4 + $0x230] sm:$0xff]
  %v319 = vld [vmem:[%s4 + $0x238] sm:$0xff]
  %v320 = vld [vmem:[%s4 + $0x240] sm:$0xff]
  %v321 = vld [vmem:[%s4 + $0x248] sm:$0xff]
  %v322 = vld [vmem:[%s4 + $0x250] sm:$0xff]
  %v323 = vld [vmem:[%s4 + $0x258] sm:$0xff]
  %v324 = vld [vmem:[%s4 + $0x260] sm:$0xff]
  %v325 = vld [vmem:[%s4 + $0x268] sm:$0xff]
  %v326 = vld [vmem:[%s4 + $0x270] sm:$0xff]
  %v327 = vld [vmem:[%s4 + $0x278] sm:$0xff]
  %v328 = vld [vmem:[%s4 + $0x280] sm:$0xff]
  %v329 = vld [vmem:[%s4 + $0x288] sm:$0xff]
  %v330 = vld [vmem:[%s4 + $0x290] sm:$0xff]
  %v331 = vld [vmem:[%s4 + $0x298] sm:$0xff]
  %v332 = vld [vmem:[%s4 + $0x2a0] sm:$0xff]
  %v333 = vld [vmem:[%s4 + $0x2a8] sm:$0xff]
  %v334 = vld [vmem:[%s4 + $0x2b0] sm:$0xff]
  %v335 = vld [vmem:[%s4 + $0x2b8] sm:$0xff]
  %v336 = vld [vmem:[%s4 + $0x2c0] sm:$0xff]
  %v337 = vld [vmem:[%s4 + $0x2c8] sm:$0xff]
  %v338 = vld [vmem:[%s4 + $0x2d0] sm:$0xff]
  %v339 = vld [vmem:[%s4 + $0x2d8] sm:$0xff]
  %v340 = vld [vmem:[%s4 + $0x2e0] sm:$0xff]
  %v341 = vld [vmem:[%s4 + $0x2e8] sm:$0xff]
  %v342 = vld [vmem:[%s4 + $0x2f0] sm:$0xff]
  %v343 = vld [vmem:[%s4 + $0x2f8] sm:$0xff]
  %v344 = vld [vmem:[%s4 + $0x300] sm:$0xff]
  %v345 = vld [vmem:[%s4 + $0x308] sm:$0xff]
  %v346 = vld [vmem:[%s4 + $0x310] sm:$0xff]
  %v347 = vld [vmem:[%s4 + $0x318] sm:$0xff]
  %v348 = vld [vmem:[%s4 + $0x320] sm:$0xff]
  %v349 = vld [vmem:[%s4 + $0x328] sm:$0xff]
  %v350 = vld [vmem:[%s4 + $0x330] sm:$0xff]
  %v351 = vld [vmem:[%s4 + $0x338] sm:$0xff]
  %v352 = vld [vmem:[%s4 + $0x340] sm:$0xff]
  %v353 = vld [vmem:[%s4 + $0x348] sm:$0xff]
  %v354 = vld [vmem:[%s4 + $0x350] sm:$0xff]
  %v355 = vld [vmem:[%s4 + $0x358] sm:$0xff]
  %v356 = vld [vmem:[%s4 + $0x360] sm:$0xff]
  %v357 = vld [vmem:[%s4 + $0x368] sm:$0xff]
  %v358 = vld [vmem:[%s4 + $0x370] sm:$0xff]
  %v359 = vld [vmem:[%s4 + $0x378] sm:$0xff]
  %v360 = vld [vmem:[%s4 + $0x380] sm:$0xff]
  %v361 = vld [vmem:[%s4 + $0x388] sm:$0xff]
  %v362 = vld [vmem:[%s4 + $0x390] sm:$0xff]
  %v363 = vld [vmem:[%s4 + $0x398] sm:$0xff]
  %v364 = vld [vmem:[%s4 + $0x3a0] sm:$0xff]
  %v365 = vld [vmem:[%s4 + $0x3a8] sm:$0xff]
  %v366 = vld [vmem:[%s4 + $0x3b0] sm:$0xff]
  %v367 = vld [vmem:[%s4 + $0x3b8] sm:$0xff]
  %v368 = vld [vmem:[%s4 + $0x3c0] sm:$0xff]
  %v369 = vld [vmem:[%s4 + $0x3c8] sm:$0xff]
  %v370 = vld [vmem:[%s4 + $0x3d0] sm:$0xff]
  %v371 = vld [vmem:[%s4 + $0x3d8] sm:$0xff]
  %v372 = vld [vmem:[%s4 + $0x3e0] sm:$0xff]
  %v373 = vld [vmem:[%s4 + $0x3e8] sm:$0xff]
  %v374 = vld [vmem:[%s4 + $0x3f0] sm:$0xff]
  %v375 = vld [vmem:[%s4 + $0x3f8] sm:$0xff]
  %v376 = vld [vmem:[%s4 + $0x400] sm:$0xff]
  %v377 = vld [vmem:[%s4 + $0x408] sm:$0xff]
  %v378 = vld [vmem:[%s4 + $0x410] sm:$0xff]
  %v379 = vld [vmem:[%s4 + $0x418] sm:$0xff]
  %v380 = vld [vmem:[%s4 + $0x420] sm:$0xff]
  %v381 = vld [vmem:[%s4 + $0x428] sm:$0xff]
  %v382 = vld [vmem:[%s4 + $0x430] sm:$0xff]
  %v383 = vld [vmem:[%s4 + $0x438] sm:$0xff]
  %v384 = vld [vmem:[%s4 + $0x440] sm:$0xff]
  %v385 = vld [vmem:[%s4 + $0x448] sm:$0xff]
  %v386 = vld [vmem:[%s4 + $0x450] sm:$0xff]
  %v387 = vld [vmem:[%s4 + $0x458] sm:$0xff]
  %v388 = vld [vmem:[%s4 + $0x460] sm:$0xff]
  %v389 = vld [vmem:[%s4 + $0x468] sm:$0xff]
  %v390 = vld [vmem:[%s4 + $0x470] sm:$0xff]
  %v391 = vld [vmem:[%s4 + $0x478] sm:$0xff]
  %v392 = vld [vmem:[%s4 + $0x480] sm:$0xff]
  %v393 = vld [vmem:[%s4 + $0x488] sm:$0xff]
  %v394 = vld [vmem:[%s4 + $0x490] sm:$0xff]
  %v395 = vld [vmem:[%s4 + $0x498] sm:$0xff]
  %v396 = vld [vmem:[%s4 + $0x4a0] sm:$0xff]
  %v397 = vld [vmem:[%s4 + $0x4a8] sm:$0xff]
  %v398 = vld [vmem:[%s4 + $0x4b0] sm:$0xff]
  %v399 = vld [vmem:[%s4 + $0x4b8] sm:$0xff]
  %v400 = vld [vmem:[%s4 + $0x4c0] sm:$0xff]
  %v401 = vld [vmem:[%s4 + $0x4c8] sm:$0xff]
  %v402 = vld [vmem:[%s4 + $0x4d0] sm:$0xff]
  %v403 = vld [vmem:[%s4 + $0x4d8] sm:$0xff]
  %v404 = vld [vmem:[%s4 + $0x4e0] sm:$0xff]
  %v405 = vld [vmem:[%s4 + $0x4e8] sm:$0xff]
  %v406 = vld [vmem:[%s4 + $0x4f0] sm:$0xff]
  %v407 = vld [vmem:[%s4 + $0x4f8] sm:$0xff]
  %v408 = vld [vmem:[%s4 + $0x500] sm:$0xff]
  %v409 = vld [vmem:[%s4 + $0x508] sm:$0xff]
  %v410 = vld [vmem:[%s4 + $0x510] sm:$0xff]
  %v411 = vld [vmem:[%s4 + $0x518] sm:$0xff]
  %v412 = vld [vmem:[%s4 + $0x520] sm:$0xff]
  %v413 = vld [vmem:[%s4 + $0x528] sm:$0xff]
  %v414 = vld [vmem:[%s4 + $0x530] sm:$0xff]
  %v415 = vld [vmem:[%s4 + $0x538] sm:$0xff]
  %v416 = vld [vmem:[%s4 + $0x540] sm:$0xff]
  %v417 = vld [vmem:[%s4 + $0x548] sm:$0xff]
  %v418 = vld [vmem:[%s4 + $0x550] sm:$0xff]
  %v419 = vld [vmem:[%s4 + $0x558] sm:$0xff]
  %v420 = vld [vmem:[%s4 + $0x560] sm:$0xff]
  %v421 = vld [vmem:[%s4 + $0x568] sm:$0xff]
  %v422 = vld [vmem:[%s4 + $0x570] sm:$0xff]
  %v423 = vld [vmem:[%s4 + $0x578] sm:$0xff]
  %v424 = vld [vmem:[%s4 + $0x580] sm:$0xff]
  %v425 = vld [vmem:[%s4 + $0x588] sm:$0xff]
  %v426 = vld [vmem:[%s4 + $0x590] sm:$0xff]
  %v427 = vld [vmem:[%s4 + $0x598] sm:$0xff]
  %v428 = vld [vmem:[%s4 + $0x5a0] sm:$0xff]
  %v429 = vld [vmem:[%s4 + $0x5a8] sm:$0xff]
  %v430 = vld [vmem:[%s4 + $0x5b0] sm:$0xff]
  %v431 = vld [vmem:[%s4 + $0x5b8] sm:$0xff]
  %v432 = vld [vmem:[%s4 + $0x5c0] sm:$0xff]
  %v433 = vld [vmem:[%s4 + $0x5c8] sm:$0xff]
  %v434 = vld [vmem:[%s4 + $0x5d0] sm:$0xff]
  %v435 = vld [vmem:[%s4 + $0x5d8] sm:$0xff]
  %v436 = vld [vmem:[%s4 + $0x5e0] sm:$0xff]
  %v437 = vld [vmem:[%s4 + $0x5e8] sm:$0xff]
  %v438 = vld [vmem:[%s4 + $0x5f0] sm:$0xff]
  %v439 = vld [vmem:[%s4 + $0x5f8] sm:$0xff]
  %v440 = vld [vmem:[%s4 + $0x600] sm:$0xff]
  %v441 = vld [vmem:[%s4 + $0x608] sm:$0xff]
  %v442 = vld [vmem:[%s4 + $0x610] sm:$0xff]
  %v443 = vld [vmem:[%s4 + $0x618] sm:$0xff]
  %v444 = vld [vmem:[%s4 + $0x620] sm:$0xff]
  %v445 = vld [vmem:[%s4 + $0x628] sm:$0xff]
  %v446 = vld [vmem:[%s4 + $0x630] sm:$0xff]
  %v447 = vld [vmem:[%s4 + $0x638] sm:$0xff]
  %v448 = vld [vmem:[%s4 + $0x640] sm:$0xff]
  %v449 = vld [vmem:[%s4 + $0x648] sm:$0xff]
  %v450 = vld [vmem:[%s4 + $0x650] sm:$0xff]
  %v451 = vld [vmem:[%s4 + $0x658] sm:$0xff]
  %v452 = vld [vmem:[%s4 + $0x660] sm:$0xff]
  %v453 = vld [vmem:[%s4 + $0x668] sm:$0xff]
  %v454 = vld [vmem:[%s4 + $0x670] sm:$0xff]
  %v455 = vld [vmem:[%s4 + $0x678] sm:$0xff]
  %v456 = vld [vmem:[%s4 + $0x680] sm:$0xff]
  %v457 = vld [vmem:[%s4 + $0x688] sm:$0xff]
  %v458 = vld [vmem:[%s4 + $0x690] sm:$0xff]
  %v459 = vld [vmem:[%s4 + $0x698] sm:$0xff]
  %v460 = vld [vmem:[%s4 + $0x6a0] sm:$0xff]
  %v461 = vld [vmem:[%s4 + $0x6a8] sm:$0xff]
  %v462 = vld [vmem:[%s4 + $0x6b0] sm:$0xff]
  %v463 = vld [vmem:[%s4 + $0x6b8] sm:$0xff]
  %v464 = vld [vmem:[%s4 + $0x6c0] sm:$0xff]
  %v465 = vld [vmem:[%s4 + $0x6c8] sm:$0xff]
  %v466 = vld [vmem:[%s4 + $0x6d0] sm:$0xff]
  %v467 = vld [vmem:[%s4 + $0x6d8] sm:$0xff]
  %v468 = vld [vmem:[%s4 + $0x6e0] sm:$0xff]
  %v469 = vld [vmem:[%s4 + $0x6e8] sm:$0xff]
  %v470 = vld [vmem:[%s4 + $0x6f0] sm:$0xff]
  %v471 = vld [vmem:[%s4 + $0x6f8] sm:$0xff]
  %v472 = vld [vmem:[%s4 + $0x700] sm:$0xff]
  %v473 = vld [vmem:[%s4 + $0x708] sm:$0xff]
  %v474 = vld [vmem:[%s4 + $0x710] sm:$0xff]
  %v475 = vld [vmem:[%s4 + $0x718] sm:$0xff]
  %v476 = vld [vmem:[%s4 + $0x720] sm:$0xff]
  %v477 = vld [vmem:[%s4 + $0x728] sm:$0xff]
  %v478 = vld [vmem:[%s4 + $0x730] sm:$0xff]
  %v479 = vld [vmem:[%s4 + $0x738] sm:$0xff]
  %v480 = vld [vmem:[%s4 + $0x740] sm:$0xff]
  %v481 = vld [vmem:[%s4 + $0x748] sm:$0xff]
  %v482 = vld [vmem:[%s4 + $0x750] sm:$0xff]
  %v483 = vld [vmem:[%s4 + $0x758] sm:$0xff]
  %v484 = vld [vmem:[%s4 + $0x760] sm:$0xff]
  %v485 = vld [vmem:[%s4 + $0x768] sm:$0xff]
  %v486 = vld [vmem:[%s4 + $0x770] sm:$0xff]
  %v487 = vld [vmem:[%s4 + $0x778] sm:$0xff]
  %v488 = vld [vmem:[%s4 + $0x780] sm:$0xff]
  %v489 = vld [vmem:[%s4 + $0x788] sm:$0xff]
  %v490 = vld [vmem:[%s4 + $0x790] sm:$0xff]
  %v491 = vld [vmem:[%s4 + $0x798] sm:$0xff]
  %v492 = vld [vmem:[%s4 + $0x7a0] sm:$0xff]
  %v493 = vld [vmem:[%s4 + $0x7a8] sm:$0xff]
  %v494 = vld [vmem:[%s4 + $0x7b0] sm:$0xff]
  %v495 = vld [vmem:[%s4 + $0x7b8] sm:$0xff]
  %v496 = vld [vmem:[%s4 + $0x7c0] sm:$0xff]
  %v497 = vld [vmem:[%s4 + $0x7c8] sm:$0xff]
  %v498 = vld [vmem:[%s4 + $0x7d0] sm:$0xff]
  %v499 = vld [vmem:[%s4 + $0x7d8] sm:$0xff]
  %v500 = vld [vmem:[%s4 + $0x7e0] sm:$0xff]
  %v501 = vld [vmem:[%s4 + $0x7e8] sm:$0xff]
  %v502 = vld [vmem:[%s4 + $0x7f0] sm:$0xff]
  %v503 = vld [vmem:[%s4 + $0x7f8] sm:$0xff]
  %v504 = vld [vmem:[%s5] sm:$0xf]
  %v506 = vlaneseq
  %v507 = vshrl.u32 %v506, 7
  %v508 = vsub.s32 0, %v507
  %v509 = vrot.slane %v504, %v508
  %v510 = vlaneseq
  %v511 = vshrl.u32 %v510, 7
  %v512 = vsub.s32 1, %v511
  %v513 = vrot.slane %v504, %v512
  %v514 = vlaneseq
  %v515 = vshrl.u32 %v514, 7
  %v516 = vsub.s32 2, %v515
  %v517 = vrot.slane %v504, %v516
  %v518 = vlaneseq
  %v519 = vshrl.u32 %v518, 7
  %v520 = vsub.s32 3, %v519
  %v521 = vrot.slane %v504, %v520
  %v782 = vunpack.c.l.b16 %v248
  %v783 = vunpack.c.h.b16 %v248
  %v784 = vunpack.c.l.b16 %v249
  %v785 = vunpack.c.h.b16 %v249
  %v786 = vunpack.c.l.b16 %v250
  %v787 = vunpack.c.h.b16 %v250
  %v788 = vunpack.c.l.b16 %v251
  %v789 = vunpack.c.h.b16 %v251
  %v790 = vunpack.c.l.b16 %v252
  %v791 = vunpack.c.h.b16 %v252
  %v792 = vunpack.c.l.b16 %v253
  %v793 = vunpack.c.h.b16 %v253
  %v794 = vunpack.c.l.b16 %v254
  %v795 = vunpack.c.h.b16 %v254
  %v796 = vunpack.c.l.b16 %v255
  %v797 = vunpack.c.h.b16 %v255
  %v798 = vunpack.c.l.b16 %v256
  %v799 = vunpack.c.h.b16 %v256
  %v800 = vunpack.c.l.b16 %v257
  %v801 = vunpack.c.h.b16 %v257
  %v802 = vunpack.c.l.b16 %v258
  %v803 = vunpack.c.h.b16 %v258
  %v804 = vunpack.c.l.b16 %v259
  %v805 = vunpack.c.h.b16 %v259
  %v806 = vunpack.c.l.b16 %v260
  %v807 = vunpack.c.h.b16 %v260
  %v808 = vunpack.c.l.b16 %v261
  %v809 = vunpack.c.h.b16 %v261
  %v810 = vunpack.c.l.b16 %v262
  %v811 = vunpack.c.h.b16 %v262
  %v812 = vunpack.c.l.b16 %v263
  %v813 = vunpack.c.h.b16 %v263
  %v814 = vunpack.c.l.b16 %v264
  %v815 = vunpack.c.h.b16 %v264
  %v816 = vunpack.c.l.b16 %v265
  %v817 = vunpack.c.h.b16 %v265
  %v818 = vunpack.c.l.b16 %v266
  %v819 = vunpack.c.h.b16 %v266
  %v820 = vunpack.c.l.b16 %v267
  %v821 = vunpack.c.h.b16 %v267
  %v822 = vunpack.c.l.b16 %v268
  %v823 = vunpack.c.h.b16 %v268
  %v824 = vunpack.c.l.b16 %v269
  %v825 = vunpack.c.h.b16 %v269
  %v826 = vunpack.c.l.b16 %v270
  %v827 = vunpack.c.h.b16 %v270
  %v828 = vunpack.c.l.b16 %v271
  %v829 = vunpack.c.h.b16 %v271
  %v830 = vunpack.c.l.b16 %v272
  %v831 = vunpack.c.h.b16 %v272
  %v832 = vunpack.c.l.b16 %v273
  %v833 = vunpack.c.h.b16 %v273
  %v834 = vunpack.c.l.b16 %v274
  %v835 = vunpack.c.h.b16 %v274
  %v836 = vunpack.c.l.b16 %v275
  %v837 = vunpack.c.h.b16 %v275
  %v838 = vunpack.c.l.b16 %v276
  %v839 = vunpack.c.h.b16 %v276
  %v840 = vunpack.c.l.b16 %v277
  %v841 = vunpack.c.h.b16 %v277
  %v842 = vunpack.c.l.b16 %v278
  %v843 = vunpack.c.h.b16 %v278
  %v844 = vunpack.c.l.b16 %v279
  %v845 = vunpack.c.h.b16 %v279
  %v846 = vunpack.c.l.b16 %v280
  %v847 = vunpack.c.h.b16 %v280
  %v848 = vunpack.c.l.b16 %v281
  %v849 = vunpack.c.h.b16 %v281
  %v850 = vunpack.c.l.b16 %v282
  %v851 = vunpack.c.h.b16 %v282
  %v852 = vunpack.c.l.b16 %v283
  %v853 = vunpack.c.h.b16 %v283
  %v854 = vunpack.c.l.b16 %v284
  %v855 = vunpack.c.h.b16 %v284
  %v856 = vunpack.c.l.b16 %v285
  %v857 = vunpack.c.h.b16 %v285
  %v858 = vunpack.c.l.b16 %v286
  %v859 = vunpack.c.h.b16 %v286
  %v860 = vunpack.c.l.b16 %v287
  %v861 = vunpack.c.h.b16 %v287
  %v862 = vunpack.c.l.b16 %v288
  %v863 = vunpack.c.h.b16 %v288
  %v864 = vunpack.c.l.b16 %v289
  %v865 = vunpack.c.h.b16 %v289
  %v866 = vunpack.c.l.b16 %v290
  %v867 = vunpack.c.h.b16 %v290
  %v868 = vunpack.c.l.b16 %v291
  %v869 = vunpack.c.h.b16 %v291
  %v870 = vunpack.c.l.b16 %v292
  %v871 = vunpack.c.h.b16 %v292
  %v872 = vunpack.c.l.b16 %v293
  %v873 = vunpack.c.h.b16 %v293
  %v874 = vunpack.c.l.b16 %v294
  %v875 = vunpack.c.h.b16 %v294
  %v876 = vunpack.c.l.b16 %v295
  %v877 = vunpack.c.h.b16 %v295
  %v878 = vunpack.c.l.b16 %v296
  %v879 = vunpack.c.h.b16 %v296
  %v880 = vunpack.c.l.b16 %v297
  %v881 = vunpack.c.h.b16 %v297
  %v882 = vunpack.c.l.b16 %v298
  %v883 = vunpack.c.h.b16 %v298
  %v884 = vunpack.c.l.b16 %v299
  %v885 = vunpack.c.h.b16 %v299
  %v886 = vunpack.c.l.b16 %v300
  %v887 = vunpack.c.h.b16 %v300
  %v888 = vunpack.c.l.b16 %v301
  %v889 = vunpack.c.h.b16 %v301
  %v890 = vunpack.c.l.b16 %v302
  %v891 = vunpack.c.h.b16 %v302
  %v892 = vunpack.c.l.b16 %v303
  %v893 = vunpack.c.h.b16 %v303
  %v894 = vunpack.c.l.b16 %v304
  %v895 = vunpack.c.h.b16 %v304
  %v896 = vunpack.c.l.b16 %v305
  %v897 = vunpack.c.h.b16 %v305
  %v898 = vunpack.c.l.b16 %v306
  %v899 = vunpack.c.h.b16 %v306
  %v900 = vunpack.c.l.b16 %v307
  %v901 = vunpack.c.h.b16 %v307
  %v902 = vunpack.c.l.b16 %v308
  %v903 = vunpack.c.h.b16 %v308
  %v904 = vunpack.c.l.b16 %v309
  %v905 = vunpack.c.h.b16 %v309
  %v906 = vunpack.c.l.b16 %v310
  %v907 = vunpack.c.h.b16 %v310
  %v908 = vunpack.c.l.b16 %v311
  %v909 = vunpack.c.h.b16 %v311
  %v910 = vunpack.c.l.b16 %v312
  %v911 = vunpack.c.h.b16 %v312
  %v912 = vunpack.c.l.b16 %v313
  %v913 = vunpack.c.h.b16 %v313
  %v914 = vunpack.c.l.b16 %v314
  %v915 = vunpack.c.h.b16 %v314
  %v916 = vunpack.c.l.b16 %v315
  %v917 = vunpack.c.h.b16 %v315
  %v918 = vunpack.c.l.b16 %v316
  %v919 = vunpack.c.h.b16 %v316
  %v920 = vunpack.c.l.b16 %v317
  %v921 = vunpack.c.h.b16 %v317
  %v922 = vunpack.c.l.b16 %v318
  %v923 = vunpack.c.h.b16 %v318
  %v924 = vunpack.c.l.b16 %v319
  %v925 = vunpack.c.h.b16 %v319
  %v926 = vunpack.c.l.b16 %v320
  %v927 = vunpack.c.h.b16 %v320
  %v928 = vunpack.c.l.b16 %v321
  %v929 = vunpack.c.h.b16 %v321
  %v930 = vunpack.c.l.b16 %v322
  %v931 = vunpack.c.h.b16 %v322
  %v932 = vunpack.c.l.b16 %v323
  %v933 = vunpack.c.h.b16 %v323
  %v934 = vunpack.c.l.b16 %v324
  %v935 = vunpack.c.h.b16 %v324
  %v936 = vunpack.c.l.b16 %v325
  %v937 = vunpack.c.h.b16 %v325
  %v938 = vunpack.c.l.b16 %v326
  %v939 = vunpack.c.h.b16 %v326
  %v940 = vunpack.c.l.b16 %v327
  %v941 = vunpack.c.h.b16 %v327
  %v942 = vunpack.c.l.b16 %v328
  %v943 = vunpack.c.h.b16 %v328
  %v944 = vunpack.c.l.b16 %v329
  %v945 = vunpack.c.h.b16 %v329
  %v946 = vunpack.c.l.b16 %v330
  %v947 = vunpack.c.h.b16 %v330
  %v948 = vunpack.c.l.b16 %v331
  %v949 = vunpack.c.h.b16 %v331
  %v950 = vunpack.c.l.b16 %v332
  %v951 = vunpack.c.h.b16 %v332
  %v952 = vunpack.c.l.b16 %v333
  %v953 = vunpack.c.h.b16 %v333
  %v954 = vunpack.c.l.b16 %v334
  %v955 = vunpack.c.h.b16 %v334
  %v956 = vunpack.c.l.b16 %v335
  %v957 = vunpack.c.h.b16 %v335
  %v958 = vunpack.c.l.b16 %v336
  %v959 = vunpack.c.h.b16 %v336
  %v960 = vunpack.c.l.b16 %v337
  %v961 = vunpack.c.h.b16 %v337
  %v962 = vunpack.c.l.b16 %v338
  %v963 = vunpack.c.h.b16 %v338
  %v964 = vunpack.c.l.b16 %v339
  %v965 = vunpack.c.h.b16 %v339
  %v966 = vunpack.c.l.b16 %v340
  %v967 = vunpack.c.h.b16 %v340
  %v968 = vunpack.c.l.b16 %v341
  %v969 = vunpack.c.h.b16 %v341
  %v970 = vunpack.c.l.b16 %v342
  %v971 = vunpack.c.h.b16 %v342
  %v972 = vunpack.c.l.b16 %v343
  %v973 = vunpack.c.h.b16 %v343
  %v974 = vunpack.c.l.b16 %v344
  %v975 = vunpack.c.h.b16 %v344
  %v976 = vunpack.c.l.b16 %v345
  %v977 = vunpack.c.h.b16 %v345
  %v978 = vunpack.c.l.b16 %v346
  %v979 = vunpack.c.h.b16 %v346
  %v980 = vunpack.c.l.b16 %v347
  %v981 = vunpack.c.h.b16 %v347
  %v982 = vunpack.c.l.b16 %v348
  %v983 = vunpack.c.h.b16 %v348
  %v984 = vunpack.c.l.b16 %v349
  %v985 = vunpack.c.h.b16 %v349
  %v986 = vunpack.c.l.b16 %v350
  %v987 = vunpack.c.h.b16 %v350
  %v988 = vunpack.c.l.b16 %v351
  %v989 = vunpack.c.h.b16 %v351
  %v990 = vunpack.c.l.b16 %v352
  %v991 = vunpack.c.h.b16 %v352
  %v992 = vunpack.c.l.b16 %v353
  %v993 = vunpack.c.h.b16 %v353
  %v994 = vunpack.c.l.b16 %v354
  %v995 = vunpack.c.h.b16 %v354
  %v996 = vunpack.c.l.b16 %v355
  %v997 = vunpack.c.h.b16 %v355
  %v998 = vunpack.c.l.b16 %v356
  %v999 = vunpack.c.h.b16 %v356
  %v1000 = vunpack.c.l.b16 %v357
  %v1001 = vunpack.c.h.b16 %v357
  %v1002 = vunpack.c.l.b16 %v358
  %v1003 = vunpack.c.h.b16 %v358
  %v1004 = vunpack.c.l.b16 %v359
  %v1005 = vunpack.c.h.b16 %v359
  %v1006 = vunpack.c.l.b16 %v360
  %v1007 = vunpack.c.h.b16 %v360
  %v1008 = vunpack.c.l.b16 %v361
  %v1009 = vunpack.c.h.b16 %v361
  %v1010 = vunpack.c.l.b16 %v362
  %v1011 = vunpack.c.h.b16 %v362
  %v1012 = vunpack.c.l.b16 %v363
  %v1013 = vunpack.c.h.b16 %v363
  %v1014 = vunpack.c.l.b16 %v364
  %v1015 = vunpack.c.h.b16 %v364
  %v1016 = vunpack.c.l.b16 %v365
  %v1017 = vunpack.c.h.b16 %v365
  %v1018 = vunpack.c.l.b16 %v366
  %v1019 = vunpack.c.h.b16 %v366
  %v1020 = vunpack.c.l.b16 %v367
  %v1021 = vunpack.c.h.b16 %v367
  %v1022 = vunpack.c.l.b16 %v368
  %v1023 = vunpack.c.h.b16 %v368
  %v1024 = vunpack.c.l.b16 %v369
  %v1025 = vunpack.c.h.b16 %v369
  %v1026 = vunpack.c.l.b16 %v370
  %v1027 = vunpack.c.h.b16 %v370
  %v1028 = vunpack.c.l.b16 %v371
  %v1029 = vunpack.c.h.b16 %v371
  %v1030 = vunpack.c.l.b16 %v372
  %v1031 = vunpack.c.h.b16 %v372
  %v1032 = vunpack.c.l.b16 %v373
  %v1033 = vunpack.c.h.b16 %v373
  %v1034 = vunpack.c.l.b16 %v374
  %v1035 = vunpack.c.h.b16 %v374
  %v1036 = vunpack.c.l.b16 %v375
  %v1037 = vunpack.c.h.b16 %v375
  %v1038 = vunpack.c.l.b16 %v376
  %v1039 = vunpack.c.h.b16 %v376
  %v1040 = vunpack.c.l.b16 %v377
  %v1041 = vunpack.c.h.b16 %v377
  %v1042 = vunpack.c.l.b16 %v378
  %v1043 = vunpack.c.h.b16 %v378
  %v1044 = vunpack.c.l.b16 %v379
  %v1045 = vunpack.c.h.b16 %v379
  %v1046 = vunpack.c.l.b16 %v380
  %v1047 = vunpack.c.h.b16 %v380
  %v1048 = vunpack.c.l.b16 %v381
  %v1049 = vunpack.c.h.b16 %v381
  %v1050 = vunpack.c.l.b16 %v382
  %v1051 = vunpack.c.h.b16 %v382
  %v1052 = vunpack.c.l.b16 %v383
  %v1053 = vunpack.c.h.b16 %v383
  %v1054 = vunpack.c.l.b16 %v384
  %v1055 = vunpack.c.h.b16 %v384
  %v1056 = vunpack.c.l.b16 %v385
  %v1057 = vunpack.c.h.b16 %v385
  %v1058 = vunpack.c.l.b16 %v386
  %v1059 = vunpack.c.h.b16 %v386
  %v1060 = vunpack.c.l.b16 %v387
  %v1061 = vunpack.c.h.b16 %v387
  %v1062 = vunpack.c.l.b16 %v388
  %v1063 = vunpack.c.h.b16 %v388
  %v1064 = vunpack.c.l.b16 %v389
  %v1065 = vunpack.c.h.b16 %v389
  %v1066 = vunpack.c.l.b16 %v390
  %v1067 = vunpack.c.h.b16 %v390
  %v1068 = vunpack.c.l.b16 %v391
  %v1069 = vunpack.c.h.b16 %v391
  %v1070 = vunpack.c.l.b16 %v392
  %v1071 = vunpack.c.h.b16 %v392
  %v1072 = vunpack.c.l.b16 %v393
  %v1073 = vunpack.c.h.b16 %v393
  %v1074 = vunpack.c.l.b16 %v394
  %v1075 = vunpack.c.h.b16 %v394
  %v1076 = vunpack.c.l.b16 %v395
  %v1077 = vunpack.c.h.b16 %v395
  %v1078 = vunpack.c.l.b16 %v396
  %v1079 = vunpack.c.h.b16 %v396
  %v1080 = vunpack.c.l.b16 %v397
  %v1081 = vunpack.c.h.b16 %v397
  %v1082 = vunpack.c.l.b16 %v398
  %v1083 = vunpack.c.h.b16 %v398
  %v1084 = vunpack.c.l.b16 %v399
  %v1085 = vunpack.c.h.b16 %v399
  %v1086 = vunpack.c.l.b16 %v400
  %v1087 = vunpack.c.h.b16 %v400
  %v1088 = vunpack.c.l.b16 %v401
  %v1089 = vunpack.c.h.b16 %v401
  %v1090 = vunpack.c.l.b16 %v402
  %v1091 = vunpack.c.h.b16 %v402
  %v1092 = vunpack.c.l.b16 %v403
  %v1093 = vunpack.c.h.b16 %v403
  %v1094 = vunpack.c.l.b16 %v404
  %v1095 = vunpack.c.h.b16 %v404
  %v1096 = vunpack.c.l.b16 %v405
  %v1097 = vunpack.c.h.b16 %v405
  %v1098 = vunpack.c.l.b16 %v406
  %v1099 = vunpack.c.h.b16 %v406
  %v1100 = vunpack.c.l.b16 %v407
  %v1101 = vunpack.c.h.b16 %v407
  %v1102 = vunpack.c.l.b16 %v408
  %v1103 = vunpack.c.h.b16 %v408
  %v1104 = vunpack.c.l.b16 %v409
  %v1105 = vunpack.c.h.b16 %v409
  %v1106 = vunpack.c.l.b16 %v410
  %v1107 = vunpack.c.h.b16 %v410
  %v1108 = vunpack.c.l.b16 %v411
  %v1109 = vunpack.c.h.b16 %v411
  %v1110 = vunpack.c.l.b16 %v412
  %v1111 = vunpack.c.h.b16 %v412
  %v1112 = vunpack.c.l.b16 %v413
  %v1113 = vunpack.c.h.b16 %v413
  %v1114 = vunpack.c.l.b16 %v414
  %v1115 = vunpack.c.h.b16 %v414
  %v1116 = vunpack.c.l.b16 %v415
  %v1117 = vunpack.c.h.b16 %v415
  %v1118 = vunpack.c.l.b16 %v416
  %v1119 = vunpack.c.h.b16 %v416
  %v1120 = vunpack.c.l.b16 %v417
  %v1121 = vunpack.c.h.b16 %v417
  %v1122 = vunpack.c.l.b16 %v418
  %v1123 = vunpack.c.h.b16 %v418
  %v1124 = vunpack.c.l.b16 %v419
  %v1125 = vunpack.c.h.b16 %v419
  %v1126 = vunpack.c.l.b16 %v420
  %v1127 = vunpack.c.h.b16 %v420
  %v1128 = vunpack.c.l.b16 %v421
  %v1129 = vunpack.c.h.b16 %v421
  %v1130 = vunpack.c.l.b16 %v422
  %v1131 = vunpack.c.h.b16 %v422
  %v1132 = vunpack.c.l.b16 %v423
  %v1133 = vunpack.c.h.b16 %v423
  %v1134 = vunpack.c.l.b16 %v424
  %v1135 = vunpack.c.h.b16 %v424
  %v1136 = vunpack.c.l.b16 %v425
  %v1137 = vunpack.c.h.b16 %v425
  %v1138 = vunpack.c.l.b16 %v426
  %v1139 = vunpack.c.h.b16 %v426
  %v1140 = vunpack.c.l.b16 %v427
  %v1141 = vunpack.c.h.b16 %v427
  %v1142 = vunpack.c.l.b16 %v428
  %v1143 = vunpack.c.h.b16 %v428
  %v1144 = vunpack.c.l.b16 %v429
  %v1145 = vunpack.c.h.b16 %v429
  %v1146 = vunpack.c.l.b16 %v430
  %v1147 = vunpack.c.h.b16 %v430
  %v1148 = vunpack.c.l.b16 %v431
  %v1149 = vunpack.c.h.b16 %v431
  %v1150 = vunpack.c.l.b16 %v432
  %v1151 = vunpack.c.h.b16 %v432
  %v1152 = vunpack.c.l.b16 %v433
  %v1153 = vunpack.c.h.b16 %v433
  %v1154 = vunpack.c.l.b16 %v434
  %v1155 = vunpack.c.h.b16 %v434
  %v1156 = vunpack.c.l.b16 %v435
  %v1157 = vunpack.c.h.b16 %v435
  %v1158 = vunpack.c.l.b16 %v436
  %v1159 = vunpack.c.h.b16 %v436
  %v1160 = vunpack.c.l.b16 %v437
  %v1161 = vunpack.c.h.b16 %v437
  %v1162 = vunpack.c.l.b16 %v438
  %v1163 = vunpack.c.h.b16 %v438
  %v1164 = vunpack.c.l.b16 %v439
  %v1165 = vunpack.c.h.b16 %v439
  %v1166 = vunpack.c.l.b16 %v440
  %v1167 = vunpack.c.h.b16 %v440
  %v1168 = vunpack.c.l.b16 %v441
  %v1169 = vunpack.c.h.b16 %v441
  %v1170 = vunpack.c.l.b16 %v442
  %v1171 = vunpack.c.h.b16 %v442
  %v1172 = vunpack.c.l.b16 %v443
  %v1173 = vunpack.c.h.b16 %v443
  %v1174 = vunpack.c.l.b16 %v444
  %v1175 = vunpack.c.h.b16 %v444
  %v1176 = vunpack.c.l.b16 %v445
  %v1177 = vunpack.c.h.b16 %v445
  %v1178 = vunpack.c.l.b16 %v446
  %v1179 = vunpack.c.h.b16 %v446
  %v1180 = vunpack.c.l.b16 %v447
  %v1181 = vunpack.c.h.b16 %v447
  %v1182 = vunpack.c.l.b16 %v448
  %v1183 = vunpack.c.h.b16 %v448
  %v1184 = vunpack.c.l.b16 %v449
  %v1185 = vunpack.c.h.b16 %v449
  %v1186 = vunpack.c.l.b16 %v450
  %v1187 = vunpack.c.h.b16 %v450
  %v1188 = vunpack.c.l.b16 %v451
  %v1189 = vunpack.c.h.b16 %v451
  %v1190 = vunpack.c.l.b16 %v452
  %v1191 = vunpack.c.h.b16 %v452
  %v1192 = vunpack.c.l.b16 %v453
  %v1193 = vunpack.c.h.b16 %v453
  %v1194 = vunpack.c.l.b16 %v454
  %v1195 = vunpack.c.h.b16 %v454
  %v1196 = vunpack.c.l.b16 %v455
  %v1197 = vunpack.c.h.b16 %v455
  %v1198 = vunpack.c.l.b16 %v456
  %v1199 = vunpack.c.h.b16 %v456
  %v1200 = vunpack.c.l.b16 %v457
  %v1201 = vunpack.c.h.b16 %v457
  %v1202 = vunpack.c.l.b16 %v458
  %v1203 = vunpack.c.h.b16 %v458
  %v1204 = vunpack.c.l.b16 %v459
  %v1205 = vunpack.c.h.b16 %v459
  %v1206 = vunpack.c.l.b16 %v460
  %v1207 = vunpack.c.h.b16 %v460
  %v1208 = vunpack.c.l.b16 %v461
  %v1209 = vunpack.c.h.b16 %v461
  %v1210 = vunpack.c.l.b16 %v462
  %v1211 = vunpack.c.h.b16 %v462
  %v1212 = vunpack.c.l.b16 %v463
  %v1213 = vunpack.c.h.b16 %v463
  %v1214 = vunpack.c.l.b16 %v464
  %v1215 = vunpack.c.h.b16 %v464
  %v1216 = vunpack.c.l.b16 %v465
  %v1217 = vunpack.c.h.b16 %v465
  %v1218 = vunpack.c.l.b16 %v466
  %v1219 = vunpack.c.h.b16 %v466
  %v1220 = vunpack.c.l.b16 %v467
  %v1221 = vunpack.c.h.b16 %v467
  %v1222 = vunpack.c.l.b16 %v468
  %v1223 = vunpack.c.h.b16 %v468
  %v1224 = vunpack.c.l.b16 %v469
  %v1225 = vunpack.c.h.b16 %v469
  %v1226 = vunpack.c.l.b16 %v470
  %v1227 = vunpack.c.h.b16 %v470
  %v1228 = vunpack.c.l.b16 %v471
  %v1229 = vunpack.c.h.b16 %v471
  %v1230 = vunpack.c.l.b16 %v472
  %v1231 = vunpack.c.h.b16 %v472
  %v1232 = vunpack.c.l.b16 %v473
  %v1233 = vunpack.c.h.b16 %v473
  %v1234 = vunpack.c.l.b16 %v474
  %v1235 = vunpack.c.h.b16 %v474
  %v1236 = vunpack.c.l.b16 %v475
  %v1237 = vunpack.c.h.b16 %v475
  %v1238 = vunpack.c.l.b16 %v476
  %v1239 = vunpack.c.h.b16 %v476
  %v1240 = vunpack.c.l.b16 %v477
  %v1241 = vunpack.c.h.b16 %v477
  %v1242 = vunpack.c.l.b16 %v478
  %v1243 = vunpack.c.h.b16 %v478
  %v1244 = vunpack.c.l.b16 %v479
  %v1245 = vunpack.c.h.b16 %v479
  %v1246 = vunpack.c.l.b16 %v480
  %v1247 = vunpack.c.h.b16 %v480
  %v1248 = vunpack.c.l.b16 %v481
  %v1249 = vunpack.c.h.b16 %v481
  %v1250 = vunpack.c.l.b16 %v482
  %v1251 = vunpack.c.h.b16 %v482
  %v1252 = vunpack.c.l.b16 %v483
  %v1253 = vunpack.c.h.b16 %v483
  %v1254 = vunpack.c.l.b16 %v484
  %v1255 = vunpack.c.h.b16 %v484
  %v1256 = vunpack.c.l.b16 %v485
  %v1257 = vunpack.c.h.b16 %v485
  %v1258 = vunpack.c.l.b16 %v486
  %v1259 = vunpack.c.h.b16 %v486
  %v1260 = vunpack.c.l.b16 %v487
  %v1261 = vunpack.c.h.b16 %v487
  %v1262 = vunpack.c.l.b16 %v488
  %v1263 = vunpack.c.h.b16 %v488
  %v1264 = vunpack.c.l.b16 %v489
  %v1265 = vunpack.c.h.b16 %v489
  %v1266 = vunpack.c.l.b16 %v490
  %v1267 = vunpack.c.h.b16 %v490
  %v1268 = vunpack.c.l.b16 %v491
  %v1269 = vunpack.c.h.b16 %v491
  %v1270 = vunpack.c.l.b16 %v492
  %v1271 = vunpack.c.h.b16 %v492
  %v1272 = vunpack.c.l.b16 %v493
  %v1273 = vunpack.c.h.b16 %v493
  %v1274 = vunpack.c.l.b16 %v494
  %v1275 = vunpack.c.h.b16 %v494
  %v1276 = vunpack.c.l.b16 %v495
  %v1277 = vunpack.c.h.b16 %v495
  %v1278 = vunpack.c.l.b16 %v496
  %v1279 = vunpack.c.h.b16 %v496
  %v1280 = vunpack.c.l.b16 %v497
  %v1281 = vunpack.c.h.b16 %v497
  %v1282 = vunpack.c.l.b16 %v498
  %v1283 = vunpack.c.h.b16 %v498
  %v1284 = vunpack.c.l.b16 %v499
  %v1285 = vunpack.c.h.b16 %v499
  %v1286 = vunpack.c.l.b16 %v500
  %v1287 = vunpack.c.h.b16 %v500
  %v1288 = vunpack.c.l.b16 %v501
  %v1289 = vunpack.c.h.b16 %v501
  %v1290 = vunpack.c.l.b16 %v502
  %v1291 = vunpack.c.h.b16 %v502
  %v1292 = vunpack.c.l.b16 %v503
  %v1293 = vunpack.c.h.b16 %v503
  %v1294 = vpack.c.b16 %v786, %v782
  %v1295 = vpack.c.b16 %v787, %v783
  %v1296 = vpack.c.b16 %v788, %v784
  %v1297 = vpack.c.b16 %v789, %v785
  %v1298 = vpack.c.b16 %v794, %v790
  %v1299 = vpack.c.b16 %v795, %v791
  %v1300 = vpack.c.b16 %v796, %v792
  %v1301 = vpack.c.b16 %v797, %v793
  %v1302 = vpack.c.b16 %v802, %v798
  %v1303 = vpack.c.b16 %v803, %v799
  %v1304 = vpack.c.b16 %v804, %v800
  %v1305 = vpack.c.b16 %v805, %v801
  %v1306 = vpack.c.b16 %v810, %v806
  %v1307 = vpack.c.b16 %v811, %v807
  %v1308 = vpack.c.b16 %v812, %v808
  %v1309 = vpack.c.b16 %v813, %v809
  %v1310 = vpack.c.b16 %v818, %v814
  %v1311 = vpack.c.b16 %v819, %v815
  %v1312 = vpack.c.b16 %v820, %v816
  %v1313 = vpack.c.b16 %v821, %v817
  %v1314 = vpack.c.b16 %v826, %v822
  %v1315 = vpack.c.b16 %v827, %v823
  %v1316 = vpack.c.b16 %v828, %v824
  %v1317 = vpack.c.b16 %v829, %v825
  %v1318 = vpack.c.b16 %v834, %v830
  %v1319 = vpack.c.b16 %v835, %v831
  %v1320 = vpack.c.b16 %v836, %v832
  %v1321 = vpack.c.b16 %v837, %v833
  %v1322 = vpack.c.b16 %v842, %v838
  %v1323 = vpack.c.b16 %v843, %v839
  %v1324 = vpack.c.b16 %v844, %v840
  %v1325 = vpack.c.b16 %v845, %v841
  %v1326 = vpack.c.b16 %v850, %v846
  %v1327 = vpack.c.b16 %v851, %v847
  %v1328 = vpack.c.b16 %v852, %v848
  %v1329 = vpack.c.b16 %v853, %v849
  %v1330 = vpack.c.b16 %v858, %v854
  %v1331 = vpack.c.b16 %v859, %v855
  %v1332 = vpack.c.b16 %v860, %v856
  %v1333 = vpack.c.b16 %v861, %v857
  %v1334 = vpack.c.b16 %v866, %v862
  %v1335 = vpack.c.b16 %v867, %v863
  %v1336 = vpack.c.b16 %v868, %v864
  %v1337 = vpack.c.b16 %v869, %v865
  %v1338 = vpack.c.b16 %v874, %v870
  %v1339 = vpack.c.b16 %v875, %v871
  %v1340 = vpack.c.b16 %v876, %v872
  %v1341 = vpack.c.b16 %v877, %v873
  %v1342 = vpack.c.b16 %v882, %v878
  %v1343 = vpack.c.b16 %v883, %v879
  %v1344 = vpack.c.b16 %v884, %v880
  %v1345 = vpack.c.b16 %v885, %v881
  %v1346 = vpack.c.b16 %v890, %v886
  %v1347 = vpack.c.b16 %v891, %v887
  %v1348 = vpack.c.b16 %v892, %v888
  %v1349 = vpack.c.b16 %v893, %v889
  %v1350 = vpack.c.b16 %v898, %v894
  %v1351 = vpack.c.b16 %v899, %v895
  %v1352 = vpack.c.b16 %v900, %v896
  %v1353 = vpack.c.b16 %v901, %v897
  %v1354 = vpack.c.b16 %v906, %v902
  %v1355 = vpack.c.b16 %v907, %v903
  %v1356 = vpack.c.b16 %v908, %v904
  %v1357 = vpack.c.b16 %v909, %v905
  %v1358 = vpack.c.b16 %v914, %v910
  %v1359 = vpack.c.b16 %v915, %v911
  %v1360 = vpack.c.b16 %v916, %v912
  %v1361 = vpack.c.b16 %v917, %v913
  %v1362 = vpack.c.b16 %v922, %v918
  %v1363 = vpack.c.b16 %v923, %v919
  %v1364 = vpack.c.b16 %v924, %v920
  %v1365 = vpack.c.b16 %v925, %v921
  %v1366 = vpack.c.b16 %v930, %v926
  %v1367 = vpack.c.b16 %v931, %v927
  %v1368 = vpack.c.b16 %v932, %v928
  %v1369 = vpack.c.b16 %v933, %v929
  %v1370 = vpack.c.b16 %v938, %v934
  %v1371 = vpack.c.b16 %v939, %v935
  %v1372 = vpack.c.b16 %v940, %v936
  %v1373 = vpack.c.b16 %v941, %v937
  %v1374 = vpack.c.b16 %v946, %v942
  %v1375 = vpack.c.b16 %v947, %v943
  %v1376 = vpack.c.b16 %v948, %v944
  %v1377 = vpack.c.b16 %v949, %v945
  %v1378 = vpack.c.b16 %v954, %v950
  %v1379 = vpack.c.b16 %v955, %v951
  %v1380 = vpack.c.b16 %v956, %v952
  %v1381 = vpack.c.b16 %v957, %v953
  %v1382 = vpack.c.b16 %v962, %v958
  %v1383 = vpack.c.b16 %v963, %v959
  %v1384 = vpack.c.b16 %v964, %v960
  %v1385 = vpack.c.b16 %v965, %v961
  %v1386 = vpack.c.b16 %v970, %v966
  %v1387 = vpack.c.b16 %v971, %v967
  %v1388 = vpack.c.b16 %v972, %v968
  %v1389 = vpack.c.b16 %v973, %v969
  %v1390 = vpack.c.b16 %v978, %v974
  %v1391 = vpack.c.b16 %v979, %v975
  %v1392 = vpack.c.b16 %v980, %v976
  %v1393 = vpack.c.b16 %v981, %v977
  %v1394 = vpack.c.b16 %v986, %v982
  %v1395 = vpack.c.b16 %v987, %v983
  %v1396 = vpack.c.b16 %v988, %v984
  %v1397 = vpack.c.b16 %v989, %v985
  %v1398 = vpack.c.b16 %v994, %v990
  %v1399 = vpack.c.b16 %v995, %v991
  %v1400 = vpack.c.b16 %v996, %v992
  %v1401 = vpack.c.b16 %v997, %v993
  %v1402 = vpack.c.b16 %v1002, %v998
  %v1403 = vpack.c.b16 %v1003, %v999
  %v1404 = vpack.c.b16 %v1004, %v1000
  %v1405 = vpack.c.b16 %v1005, %v1001
  %v1406 = vpack.c.b16 %v1010, %v1006
  %v1407 = vpack.c.b16 %v1011, %v1007
  %v1408 = vpack.c.b16 %v1012, %v1008
  %v1409 = vpack.c.b16 %v1013, %v1009
  %v1410 = vpack.c.b16 %v1018, %v1014
  %v1411 = vpack.c.b16 %v1019, %v1015
  %v1412 = vpack.c.b16 %v1020, %v1016
  %v1413 = vpack.c.b16 %v1021, %v1017
  %v1414 = vpack.c.b16 %v1026, %v1022
  %v1415 = vpack.c.b16 %v1027, %v1023
  %v1416 = vpack.c.b16 %v1028, %v1024
  %v1417 = vpack.c.b16 %v1029, %v1025
  %v1418 = vpack.c.b16 %v1034, %v1030
  %v1419 = vpack.c.b16 %v1035, %v1031
  %v1420 = vpack.c.b16 %v1036, %v1032
  %v1421 = vpack.c.b16 %v1037, %v1033
  %v1422 = vpack.c.b16 %v1042, %v1038
  %v1423 = vpack.c.b16 %v1043, %v1039
  %v1424 = vpack.c.b16 %v1044, %v1040
  %v1425 = vpack.c.b16 %v1045, %v1041
  %v1426 = vpack.c.b16 %v1050, %v1046
  %v1427 = vpack.c.b16 %v1051, %v1047
  %v1428 = vpack.c.b16 %v1052, %v1048
  %v1429 = vpack.c.b16 %v1053, %v1049
  %v1430 = vpack.c.b16 %v1058, %v1054
  %v1431 = vpack.c.b16 %v1059, %v1055
  %v1432 = vpack.c.b16 %v1060, %v1056
  %v1433 = vpack.c.b16 %v1061, %v1057
  %v1434 = vpack.c.b16 %v1066, %v1062
  %v1435 = vpack.c.b16 %v1067, %v1063
  %v1436 = vpack.c.b16 %v1068, %v1064
  %v1437 = vpack.c.b16 %v1069, %v1065
  %v1438 = vpack.c.b16 %v1074, %v1070
  %v1439 = vpack.c.b16 %v1075, %v1071
  %v1440 = vpack.c.b16 %v1076, %v1072
  %v1441 = vpack.c.b16 %v1077, %v1073
  %v1442 = vpack.c.b16 %v1082, %v1078
  %v1443 = vpack.c.b16 %v1083, %v1079
  %v1444 = vpack.c.b16 %v1084, %v1080
  %v1445 = vpack.c.b16 %v1085, %v1081
  %v1446 = vpack.c.b16 %v1090, %v1086
  %v1447 = vpack.c.b16 %v1091, %v1087
  %v1448 = vpack.c.b16 %v1092, %v1088
  %v1449 = vpack.c.b16 %v1093, %v1089
  %v1450 = vpack.c.b16 %v1098, %v1094
  %v1451 = vpack.c.b16 %v1099, %v1095
  %v1452 = vpack.c.b16 %v1100, %v1096
  %v1453 = vpack.c.b16 %v1101, %v1097
  %v1454 = vpack.c.b16 %v1106, %v1102
  %v1455 = vpack.c.b16 %v1107, %v1103
  %v1456 = vpack.c.b16 %v1108, %v1104
  %v1457 = vpack.c.b16 %v1109, %v1105
  %v1458 = vpack.c.b16 %v1114, %v1110
  %v1459 = vpack.c.b16 %v1115, %v1111
  %v1460 = vpack.c.b16 %v1116, %v1112
  %v1461 = vpack.c.b16 %v1117, %v1113
  %v1462 = vpack.c.b16 %v1122, %v1118
  %v1463 = vpack.c.b16 %v1123, %v1119
  %v1464 = vpack.c.b16 %v1124, %v1120
  %v1465 = vpack.c.b16 %v1125, %v1121
  %v1466 = vpack.c.b16 %v1130, %v1126
  %v1467 = vpack.c.b16 %v1131, %v1127
  %v1468 = vpack.c.b16 %v1132, %v1128
  %v1469 = vpack.c.b16 %v1133, %v1129
  %v1470 = vpack.c.b16 %v1138, %v1134
  %v1471 = vpack.c.b16 %v1139, %v1135
  %v1472 = vpack.c.b16 %v1140, %v1136
  %v1473 = vpack.c.b16 %v1141, %v1137
  %v1474 = vpack.c.b16 %v1146, %v1142
  %v1475 = vpack.c.b16 %v1147, %v1143
  %v1476 = vpack.c.b16 %v1148, %v1144
  %v1477 = vpack.c.b16 %v1149, %v1145
  %v1478 = vpack.c.b16 %v1154, %v1150
  %v1479 = vpack.c.b16 %v1155, %v1151
  %v1480 = vpack.c.b16 %v1156, %v1152
  %v1481 = vpack.c.b16 %v1157, %v1153
  %v1482 = vpack.c.b16 %v1162, %v1158
  %v1483 = vpack.c.b16 %v1163, %v1159
  %v1484 = vpack.c.b16 %v1164, %v1160
  %v1485 = vpack.c.b16 %v1165, %v1161
  %v1486 = vpack.c.b16 %v1170, %v1166
  %v1487 = vpack.c.b16 %v1171, %v1167
  %v1488 = vpack.c.b16 %v1172, %v1168
  %v1489 = vpack.c.b16 %v1173, %v1169
  %v1490 = vpack.c.b16 %v1178, %v1174
  %v1491 = vpack.c.b16 %v1179, %v1175
  %v1492 = vpack.c.b16 %v1180, %v1176
  %v1493 = vpack.c.b16 %v1181, %v1177
  %v1494 = vpack.c.b16 %v1186, %v1182
  %v1495 = vpack.c.b16 %v1187, %v1183
  %v1496 = vpack.c.b16 %v1188, %v1184
  %v1497 = vpack.c.b16 %v1189, %v1185
  %v1498 = vpack.c.b16 %v1194, %v1190
  %v1499 = vpack.c.b16 %v1195, %v1191
  %v1500 = vpack.c.b16 %v1196, %v1192
  %v1501 = vpack.c.b16 %v1197, %v1193
  %v1502 = vpack.c.b16 %v1202, %v1198
  %v1503 = vpack.c.b16 %v1203, %v1199
  %v1504 = vpack.c.b16 %v1204, %v1200
  %v1505 = vpack.c.b16 %v1205, %v1201
  %v1506 = vpack.c.b16 %v1210, %v1206
  %v1507 = vpack.c.b16 %v1211, %v1207
  %v1508 = vpack.c.b16 %v1212, %v1208
  %v1509 = vpack.c.b16 %v1213, %v1209
  %v1510 = vpack.c.b16 %v1218, %v1214
  %v1511 = vpack.c.b16 %v1219, %v1215
  %v1512 = vpack.c.b16 %v1220, %v1216
  %v1513 = vpack.c.b16 %v1221, %v1217
  %v1514 = vpack.c.b16 %v1226, %v1222
  %v1515 = vpack.c.b16 %v1227, %v1223
  %v1516 = vpack.c.b16 %v1228, %v1224
  %v1517 = vpack.c.b16 %v1229, %v1225
  %v1518 = vpack.c.b16 %v1234, %v1230
  %v1519 = vpack.c.b16 %v1235, %v1231
  %v1520 = vpack.c.b16 %v1236, %v1232
  %v1521 = vpack.c.b16 %v1237, %v1233
  %v1522 = vpack.c.b16 %v1242, %v1238
  %v1523 = vpack.c.b16 %v1243, %v1239
  %v1524 = vpack.c.b16 %v1244, %v1240
  %v1525 = vpack.c.b16 %v1245, %v1241
  %v1526 = vpack.c.b16 %v1250, %v1246
  %v1527 = vpack.c.b16 %v1251, %v1247
  %v1528 = vpack.c.b16 %v1252, %v1248
  %v1529 = vpack.c.b16 %v1253, %v1249
  %v1530 = vpack.c.b16 %v1258, %v1254
  %v1531 = vpack.c.b16 %v1259, %v1255
  %v1532 = vpack.c.b16 %v1260, %v1256
  %v1533 = vpack.c.b16 %v1261, %v1257
  %v1534 = vpack.c.b16 %v1266, %v1262
  %v1535 = vpack.c.b16 %v1267, %v1263
  %v1536 = vpack.c.b16 %v1268, %v1264
  %v1537 = vpack.c.b16 %v1269, %v1265
  %v1538 = vpack.c.b16 %v1274, %v1270
  %v1539 = vpack.c.b16 %v1275, %v1271
  %v1540 = vpack.c.b16 %v1276, %v1272
  %v1541 = vpack.c.b16 %v1277, %v1273
  %v1542 = vpack.c.b16 %v1282, %v1278
  %v1543 = vpack.c.b16 %v1283, %v1279
  %v1544 = vpack.c.b16 %v1284, %v1280
  %v1545 = vpack.c.b16 %v1285, %v1281
  %v1546 = vpack.c.b16 %v1290, %v1286
  %v1547 = vpack.c.b16 %v1291, %v1287
  %v1548 = vpack.c.b16 %v1292, %v1288
  %v1549 = vpack.c.b16 %v1293, %v1289
  %1806 = vmatprep.subr.bf16.mxu0 %v1295
  %1807 = vmatpush1.bf16.msra.mxu0 %v1294
  %1808 = vmatprep.subr.bf16.mxu0 %v1299
  %1809 = vmatpush1.bf16.msra.mxu0 %v1298
  %1810 = vmatprep.subr.bf16.mxu0 %v1303
  %1811 = vmatpush1.bf16.msra.mxu0 %v1302
  %1812 = vmatprep.subr.bf16.mxu0 %v1307
  %1813 = vmatpush1.bf16.msra.mxu0 %v1306
  %1814 = vmatprep.subr.bf16.mxu0 %v1311
  %1815 = vmatpush1.bf16.msra.mxu0 %v1310
  %1816 = vmatprep.subr.bf16.mxu0 %v1315
  %1817 = vmatpush1.bf16.msra.mxu0 %v1314
  %1818 = vmatprep.subr.bf16.mxu0 %v1319
  %1819 = vmatpush1.bf16.msra.mxu0 %v1318
  %1820 = vmatprep.subr.bf16.mxu0 %v1323
  %1821 = vmatpush1.bf16.msra.mxu0 %v1322
  %1822 = vmatprep.subr.bf16.mxu0 %v1327
  %1823 = vmatpush1.bf16.msra.mxu0 %v1326
  %1824 = vmatprep.subr.bf16.mxu0 %v1331
  %1825 = vmatpush1.bf16.msra.mxu0 %v1330
  %1826 = vmatprep.subr.bf16.mxu0 %v1335
  %1827 = vmatpush1.bf16.msra.mxu0 %v1334
  %1828 = vmatprep.subr.bf16.mxu0 %v1339
  %1829 = vmatpush1.bf16.msra.mxu0 %v1338
  %1830 = vmatprep.subr.bf16.mxu0 %v1343
  %1831 = vmatpush1.bf16.msra.mxu0 %v1342
  %1832 = vmatprep.subr.bf16.mxu0 %v1347
  %1833 = vmatpush1.bf16.msra.mxu0 %v1346
  %1834 = vmatprep.subr.bf16.mxu0 %v1351
  %1835 = vmatpush1.bf16.msra.mxu0 %v1350
  %1836 = vmatprep.subr.bf16.mxu0 %v1355
  %1837 = vmatpush1.bf16.msra.mxu0 %v1354
  %1838 = vmatprep.mubr.bf16.mxu0 %v241
  %1839 = vmatmul.mubr.bf16.gmra.mrb[0].mxu0 %v240
  %v1840 = vpop.f32.mrb[0].mxu0
  %v1841 = vadd.f32 %v509, %v1840
  %v1842 = vpop.f32.mrb[0].mxu0
  %v1843 = vadd.f32 %v513, %v1842
  %v1844 = vpop.f32.mrb[0].mxu0
  %v1845 = vpop.f32.mrb[0].mxu0
  %1846 = vdwg.mxu0
  %1847 = vmatprep.subr.bf16.mxu0 %v1359
  %1848 = vmatpush1.bf16.msra.mxu0 %v1358
  %1849 = vmatprep.subr.bf16.mxu0 %v1363
  %1850 = vmatpush1.bf16.msra.mxu0 %v1362
  %1851 = vmatprep.subr.bf16.mxu0 %v1367
  %1852 = vmatpush1.bf16.msra.mxu0 %v1366
  %1853 = vmatprep.subr.bf16.mxu0 %v1371
  %1854 = vmatpush1.bf16.msra.mxu0 %v1370
  %1855 = vmatprep.subr.bf16.mxu0 %v1375
  %1856 = vmatpush1.bf16.msra.mxu0 %v1374
  %1857 = vmatprep.subr.bf16.mxu0 %v1379
  %1858 = vmatpush1.bf16.msra.mxu0 %v1378
  %1859 = vmatprep.subr.bf16.mxu0 %v1383
  %1860 = vmatpush1.bf16.msra.mxu0 %v1382
  %1861 = vmatprep.subr.bf16.mxu0 %v1387
  %1862 = vmatpush1.bf16.msra.mxu0 %v1386
  %1863 = vmatprep.subr.bf16.mxu0 %v1391
  %1864 = vmatpush1.bf16.msra.mxu0 %v1390
  %1865 = vmatprep.subr.bf16.mxu0 %v1395
  %1866 = vmatpush1.bf16.msra.mxu0 %v1394
  %1867 = vmatprep.subr.bf16.mxu0 %v1399
  %1868 = vmatpush1.bf16.msra.mxu0 %v1398
  %1869 = vmatprep.subr.bf16.mxu0 %v1403
  %1870 = vmatpush1.bf16.msra.mxu0 %v1402
  %1871 = vmatprep.subr.bf16.mxu0 %v1407
  %1872 = vmatpush1.bf16.msra.mxu0 %v1406
  %1873 = vmatprep.subr.bf16.mxu0 %v1411
  %1874 = vmatpush1.bf16.msra.mxu0 %v1410
  %1875 = vmatprep.subr.bf16.mxu0 %v1415
  %1876 = vmatpush1.bf16.msra.mxu0 %v1414
  %1877 = vmatprep.subr.bf16.mxu0 %v1419
  %1878 = vmatpush1.bf16.msra.mxu0 %v1418
  %1879 = vmatprep.mubr.bf16.mxu0 %v243
  %1880 = vmatmul.mubr.bf16.gmra.mrb[0].mxu0 %v242
  %v1881 = vpop.f32.mrb[0].mxu0
  %v1882 = vadd.f32 %v1841, %v1881
  %v1883 = vpop.f32.mrb[0].mxu0
  %v1884 = vadd.f32 %v1843, %v1883
  %v1885 = vpop.f32.mrb[0].mxu0
  %v1886 = vpop.f32.mrb[0].mxu0
  %1887 = vdwg.mxu0
  %1888 = vmatprep.subr.bf16.mxu0 %v1423
  %1889 = vmatpush1.bf16.msra.mxu0 %v1422
  %1890 = vmatprep.subr.bf16.mxu0 %v1427
  %1891 = vmatpush1.bf16.msra.mxu0 %v1426
  %1892 = vmatprep.subr.bf16.mxu0 %v1431
  %1893 = vmatpush1.bf16.msra.mxu0 %v1430
  %1894 = vmatprep.subr.bf16.mxu0 %v1435
  %1895 = vmatpush1.bf16.msra.mxu0 %v1434
  %1896 = vmatprep.subr.bf16.mxu0 %v1439
  %1897 = vmatpush1.bf16.msra.mxu0 %v1438
  %1898 = vmatprep.subr.bf16.mxu0 %v1443
  %1899 = vmatpush1.bf16.msra.mxu0 %v1442
  %1900 = vmatprep.subr.bf16.mxu0 %v1447
  %1901 = vmatpush1.bf16.msra.mxu0 %v1446
  %1902 = vmatprep.subr.bf16.mxu0 %v1451
  %1903 = vmatpush1.bf16.msra.mxu0 %v1450
  %1904 = vmatprep.subr.bf16.mxu0 %v1455
  %1905 = vmatpush1.bf16.msra.mxu0 %v1454
  %1906 = vmatprep.subr.bf16.mxu0 %v1459
  %1907 = vmatpush1.bf16.msra.mxu0 %v1458
  %1908 = vmatprep.subr.bf16.mxu0 %v1463
  %1909 = vmatpush1.bf16.msra.mxu0 %v1462
  %1910 = vmatprep.subr.bf16.mxu0 %v1467
  %1911 = vmatpush1.bf16.msra.mxu0 %v1466
  %1912 = vmatprep.subr.bf16.mxu0 %v1471
  %1913 = vmatpush1.bf16.msra.mxu0 %v1470
  %1914 = vmatprep.subr.bf16.mxu0 %v1475
  %1915 = vmatpush1.bf16.msra.mxu0 %v1474
  %1916 = vmatprep.subr.bf16.mxu0 %v1479
  %1917 = vmatpush1.bf16.msra.mxu0 %v1478
  %1918 = vmatprep.subr.bf16.mxu0 %v1483
  %1919 = vmatpush1.bf16.msra.mxu0 %v1482
  %1920 = vmatprep.mubr.bf16.mxu0 %v245
  %1921 = vmatmul.mubr.bf16.gmra.mrb[0].mxu0 %v244
  %v1922 = vpop.f32.mrb[0].mxu0
  %v1923 = vadd.f32 %v1882, %v1922
  %v1924 = vpop.f32.mrb[0].mxu0
  %v1925 = vadd.f32 %v1884, %v1924
  %v1926 = vpop.f32.mrb[0].mxu0
  %v1927 = vpop.f32.mrb[0].mxu0
  %1928 = vdwg.mxu0
  %1929 = vmatprep.subr.bf16.mxu0 %v1487
  %1930 = vmatpush1.bf16.msra.mxu0 %v1486
  %1931 = vmatprep.subr.bf16.mxu0 %v1491
  %1932 = vmatpush1.bf16.msra.mxu0 %v1490
  %1933 = vmatprep.subr.bf16.mxu0 %v1495
  %1934 = vmatpush1.bf16.msra.mxu0 %v1494
  %1935 = vmatprep.subr.bf16.mxu0 %v1499
  %1936 = vmatpush1.bf16.msra.mxu0 %v1498
  %1937 = vmatprep.subr.bf16.mxu0 %v1503
  %1938 = vmatpush1.bf16.msra.mxu0 %v1502
  %1939 = vmatprep.subr.bf16.mxu0 %v1507
  %1940 = vmatpush1.bf16.msra.mxu0 %v1506
  %1941 = vmatprep.subr.bf16.mxu0 %v1511
  %1942 = vmatpush1.bf16.msra.mxu0 %v1510
  %1943 = vmatprep.subr.bf16.mxu0 %v1515
  %1944 = vmatpush1.bf16.msra.mxu0 %v1514
  %1945 = vmatprep.subr.bf16.mxu0 %v1519
  %1946 = vmatpush1.bf16.msra.mxu0 %v1518
  %1947 = vmatprep.subr.bf16.mxu0 %v1523
  %1948 = vmatpush1.bf16.msra.mxu0 %v1522
  %1949 = vmatprep.subr.bf16.mxu0 %v1527
  %1950 = vmatpush1.bf16.msra.mxu0 %v1526
  %1951 = vmatprep.subr.bf16.mxu0 %v1531
  %1952 = vmatpush1.bf16.msra.mxu0 %v1530
  %1953 = vmatprep.subr.bf16.mxu0 %v1535
  %1954 = vmatpush1.bf16.msra.mxu0 %v1534
  %1955 = vmatprep.subr.bf16.mxu0 %v1539
  %1956 = vmatpush1.bf16.msra.mxu0 %v1538
  %1957 = vmatprep.subr.bf16.mxu0 %v1543
  %1958 = vmatpush1.bf16.msra.mxu0 %v1542
  %1959 = vmatprep.subr.bf16.mxu0 %v1547
  %1960 = vmatpush1.bf16.msra.mxu0 %v1546
  %1961 = vmatprep.mubr.bf16.mxu0 %v247
  %1962 = vmatmul.mubr.bf16.gmra.mrb[0].mxu0 %v246
  %v1963 = vpop.f32.mrb[0].mxu0
  %v1964 = vadd.f32 %v1923, %v1963
  %v1965 = vpop.f32.mrb[0].mxu0
  %v1966 = vadd.f32 %v1925, %v1965
  %v1967 = vpop.f32.mrb[0].mxu0
  %v1968 = vpop.f32.mrb[0].mxu0
  %1969 = vdwg.mxu0
  %1970 = vmatprep.subr.bf16.mxu0 %v1297
  %1971 = vmatpush1.bf16.msra.mxu0 %v1296
  %1972 = vmatprep.subr.bf16.mxu0 %v1301
  %1973 = vmatpush1.bf16.msra.mxu0 %v1300
  %1974 = vmatprep.subr.bf16.mxu0 %v1305
  %1975 = vmatpush1.bf16.msra.mxu0 %v1304
  %1976 = vmatprep.subr.bf16.mxu0 %v1309
  %1977 = vmatpush1.bf16.msra.mxu0 %v1308
  %1978 = vmatprep.subr.bf16.mxu0 %v1313
  %1979 = vmatpush1.bf16.msra.mxu0 %v1312
  %1980 = vmatprep.subr.bf16.mxu0 %v1317
  %1981 = vmatpush1.bf16.msra.mxu0 %v1316
  %1982 = vmatprep.subr.bf16.mxu0 %v1321
  %1983 = vmatpush1.bf16.msra.mxu0 %v1320
  %1984 = vmatprep.subr.bf16.mxu0 %v1325
  %1985 = vmatpush1.bf16.msra.mxu0 %v1324
  %1986 = vmatprep.subr.bf16.mxu0 %v1329
  %1987 = vmatpush1.bf16.msra.mxu0 %v1328
  %1988 = vmatprep.subr.bf16.mxu0 %v1333
  %1989 = vmatpush1.bf16.msra.mxu0 %v1332
  %1990 = vmatprep.subr.bf16.mxu0 %v1337
  %1991 = vmatpush1.bf16.msra.mxu0 %v1336
  %1992 = vmatprep.subr.bf16.mxu0 %v1341
  %1993 = vmatpush1.bf16.msra.mxu0 %v1340
  %1994 = vmatprep.subr.bf16.mxu0 %v1345
  %1995 = vmatpush1.bf16.msra.mxu0 %v1344
  %1996 = vmatprep.subr.bf16.mxu0 %v1349
  %1997 = vmatpush1.bf16.msra.mxu0 %v1348
  %1998 = vmatprep.subr.bf16.mxu0 %v1353
  %1999 = vmatpush1.bf16.msra.mxu0 %v1352
  %2000 = vmatprep.subr.bf16.mxu0 %v1357
  %2001 = vmatpush1.bf16.msra.mxu0 %v1356
  %2002 = vmatprep.mubr.bf16.mxu0 %v241
  %2003 = vmatmul.mubr.bf16.gmra.mrb[0].mxu0 %v240
  %v2004 = vpop.f32.mrb[0].mxu0
  %v2005 = vadd.f32 %v517, %v2004
  %v2006 = vpop.f32.mrb[0].mxu0
  %v2007 = vadd.f32 %v521, %v2006
  %v2008 = vpop.f32.mrb[0].mxu0
  %v2009 = vpop.f32.mrb[0].mxu0
  %2010 = vdwg.mxu0
  %2011 = vmatprep.subr.bf16.mxu0 %v1361
  %2012 = vmatpush1.bf16.msra.mxu0 %v1360
  %2013 = vmatprep.subr.bf16.mxu0 %v1365
  %2014 = vmatpush1.bf16.msra.mxu0 %v1364
  %2015 = vmatprep.subr.bf16.mxu0 %v1369
  %2016 = vmatpush1.bf16.msra.mxu0 %v1368
  %2017 = vmatprep.subr.bf16.mxu0 %v1373
  %2018 = vmatpush1.bf16.msra.mxu0 %v1372
  %2019 = vmatprep.subr.bf16.mxu0 %v1377
  %2020 = vmatpush1.bf16.msra.mxu0 %v1376
  %2021 = vmatprep.subr.bf16.mxu0 %v1381
  %2022 = vmatpush1.bf16.msra.mxu0 %v1380
  %2023 = vmatprep.subr.bf16.mxu0 %v1385
  %2024 = vmatpush1.bf16.msra.mxu0 %v1384
  %2025 = vmatprep.subr.bf16.mxu0 %v1389
  %2026 = vmatpush1.bf16.msra.mxu0 %v1388
  %2027 = vmatprep.subr.bf16.mxu0 %v1393
  %2028 = vmatpush1.bf16.msra.mxu0 %v1392
  %2029 = vmatprep.subr.bf16.mxu0 %v1397
  %2030 = vmatpush1.bf16.msra.mxu0 %v1396
  %2031 = vmatprep.subr.bf16.mxu0 %v1401
  %2032 = vmatpush1.bf16.msra.mxu0 %v1400
  %2033 = vmatprep.subr.bf16.mxu0 %v1405
  %2034 = vmatpush1.bf16.msra.mxu0 %v1404
  %2035 = vmatprep.subr.bf16.mxu0 %v1409
  %2036 = vmatpush1.bf16.msra.mxu0 %v1408
  %2037 = vmatprep.subr.bf16.mxu0 %v1413
  %2038 = vmatpush1.bf16.msra.mxu0 %v1412
  %2039 = vmatprep.subr.bf16.mxu0 %v1417
  %2040 = vmatpush1.bf16.msra.mxu0 %v1416
  %2041 = vmatprep.subr.bf16.mxu0 %v1421
  %2042 = vmatpush1.bf16.msra.mxu0 %v1420
  %2043 = vmatprep.mubr.bf16.mxu0 %v243
  %2044 = vmatmul.mubr.bf16.gmra.mrb[0].mxu0 %v242
  %v2045 = vpop.f32.mrb[0].mxu0
  %v2046 = vadd.f32 %v2005, %v2045
  %v2047 = vpop.f32.mrb[0].mxu0
  %v2048 = vadd.f32 %v2007, %v2047
  %v2049 = vpop.f32.mrb[0].mxu0
  %v2050 = vpop.f32.mrb[0].mxu0
  %2051 = vdwg.mxu0
  %2052 = vmatprep.subr.bf16.mxu0 %v1425
  %2053 = vmatpush1.bf16.msra.mxu0 %v1424
  %2054 = vmatprep.subr.bf16.mxu0 %v1429
  %2055 = vmatpush1.bf16.msra.mxu0 %v1428
  %2056 = vmatprep.subr.bf16.mxu0 %v1433
  %2057 = vmatpush1.bf16.msra.mxu0 %v1432
  %2058 = vmatprep.subr.bf16.mxu0 %v1437
  %2059 = vmatpush1.bf16.msra.mxu0 %v1436
  %2060 = vmatprep.subr.bf16.mxu0 %v1441
  %2061 = vmatpush1.bf16.msra.mxu0 %v1440
  %2062 = vmatprep.subr.bf16.mxu0 %v1445
  %2063 = vmatpush1.bf16.msra.mxu0 %v1444
  %2064 = vmatprep.subr.bf16.mxu0 %v1449
  %2065 = vmatpush1.bf16.msra.mxu0 %v1448
  %2066 = vmatprep.subr.bf16.mxu0 %v1453
  %2067 = vmatpush1.bf16.msra.mxu0 %v1452
  %2068 = vmatprep.subr.bf16.mxu0 %v1457
  %2069 = vmatpush1.bf16.msra.mxu0 %v1456
  %2070 = vmatprep.subr.bf16.mxu0 %v1461
  %2071 = vmatpush1.bf16.msra.mxu0 %v1460
  %2072 = vmatprep.subr.bf16.mxu0 %v1465
  %2073 = vmatpush1.bf16.msra.mxu0 %v1464
  %2074 = vmatprep.subr.bf16.mxu0 %v1469
  %2075 = vmatpush1.bf16.msra.mxu0 %v1468
  %2076 = vmatprep.subr.bf16.mxu0 %v1473
  %2077 = vmatpush1.bf16.msra.mxu0 %v1472
  %2078 = vmatprep.subr.bf16.mxu0 %v1477
  %2079 = vmatpush1.bf16.msra.mxu0 %v1476
  %2080 = vmatprep.subr.bf16.mxu0 %v1481
  %2081 = vmatpush1.bf16.msra.mxu0 %v1480
  %2082 = vmatprep.subr.bf16.mxu0 %v1485
  %2083 = vmatpush1.bf16.msra.mxu0 %v1484
  %2084 = vmatprep.mubr.bf16.mxu0 %v245
  %2085 = vmatmul.mubr.bf16.gmra.mrb[0].mxu0 %v244
  %v2086 = vpop.f32.mrb[0].mxu0
  %v2087 = vadd.f32 %v2046, %v2086
  %v2088 = vpop.f32.mrb[0].mxu0
  %v2089 = vadd.f32 %v2048, %v2088
  %v2090 = vpop.f32.mrb[0].mxu0
  %v2091 = vpop.f32.mrb[0].mxu0
  %2092 = vdwg.mxu0
  %2093 = vmatprep.subr.bf16.mxu0 %v1489
  %2094 = vmatpush1.bf16.msra.mxu0 %v1488
  %2095 = vmatprep.subr.bf16.mxu0 %v1493
  %2096 = vmatpush1.bf16.msra.mxu0 %v1492
  %2097 = vmatprep.subr.bf16.mxu0 %v1497
  %2098 = vmatpush1.bf16.msra.mxu0 %v1496
  %2099 = vmatprep.subr.bf16.mxu0 %v1501
  %2100 = vmatpush1.bf16.msra.mxu0 %v1500
  %2101 = vmatprep.subr.bf16.mxu0 %v1505
  %2102 = vmatpush1.bf16.msra.mxu0 %v1504
  %2103 = vmatprep.subr.bf16.mxu0 %v1509
  %2104 = vmatpush1.bf16.msra.mxu0 %v1508
  %2105 = vmatprep.subr.bf16.mxu0 %v1513
  %2106 = vmatpush1.bf16.msra.mxu0 %v1512
  %2107 = vmatprep.subr.bf16.mxu0 %v1517
  %2108 = vmatpush1.bf16.msra.mxu0 %v1516
  %2109 = vmatprep.subr.bf16.mxu0 %v1521
  %2110 = vmatpush1.bf16.msra.mxu0 %v1520
  %2111 = vmatprep.subr.bf16.mxu0 %v1525
  %2112 = vmatpush1.bf16.msra.mxu0 %v1524
  %2113 = vmatprep.subr.bf16.mxu0 %v1529
  %2114 = vmatpush1.bf16.msra.mxu0 %v1528
  %2115 = vmatprep.subr.bf16.mxu0 %v1533
  %2116 = vmatpush1.bf16.msra.mxu0 %v1532
  %2117 = vmatprep.subr.bf16.mxu0 %v1537
  %2118 = vmatpush1.bf16.msra.mxu0 %v1536
  %2119 = vmatprep.subr.bf16.mxu0 %v1541
  %2120 = vmatpush1.bf16.msra.mxu0 %v1540
  %2121 = vmatprep.subr.bf16.mxu0 %v1545
  %2122 = vmatpush1.bf16.msra.mxu0 %v1544
  %2123 = vmatprep.subr.bf16.mxu0 %v1549
  %2124 = vmatpush1.bf16.msra.mxu0 %v1548
  %2125 = vmatprep.mubr.bf16.mxu0 %v247
  %2126 = vmatmul.mubr.bf16.gmra.mrb[0].mxu0 %v246
  %v2127 = vpop.f32.mrb[0].mxu0
  %v2128 = vadd.f32 %v2087, %v2127
  %v2129 = vpop.f32.mrb[0].mxu0
  %v2130 = vadd.f32 %v2089, %v2129
  %v2131 = vpop.f32.mrb[0].mxu0
  %v2132 = vpop.f32.mrb[0].mxu0
  %2133 = vdwg.mxu0
  %v2134 = vld [vmem:[%s6] sm:$0xf]
  %v2135 = vld [vmem:[%s7] sm:$0xf]
  %vm2136 = vcmask 1043456
  %v2137 = vsel %vm2136, %v1964, 0.0
  %v2138 = vrot.slane %v2137, 4
  %v2139 = vadd.f32 %v2137, %v2138
  %v2140 = vrot.slane %v2139, 2
  %v2141 = vadd.f32 %v2139, %v2140
  %v2142 = vrot.slane %v2141, 1
  %v2143 = vadd.f32 %v2141, %v2142
  %v2144 = vsel %vm2136, %v1966, 0.0
  %v2145 = vrot.slane %v2144, 4
  %v2146 = vadd.f32 %v2144, %v2145
  %v2147 = vrot.slane %v2146, 2
  %v2148 = vadd.f32 %v2146, %v2147
  %v2149 = vrot.slane %v2148, 1
  %v2150 = vadd.f32 %v2148, %v2149
  %v2151 = vsel %vm2136, %v2128, 0.0
  %v2152 = vrot.slane %v2151, 4
  %v2153 = vadd.f32 %v2151, %v2152
  %v2154 = vrot.slane %v2153, 2
  %v2155 = vadd.f32 %v2153, %v2154
  %v2156 = vrot.slane %v2155, 1
  %v2157 = vadd.f32 %v2155, %v2156
  %v2158 = vsel %vm2136, %v2130, 0.0
  %v2159 = vrot.slane %v2158, 4
  %v2160 = vadd.f32 %v2158, %v2159
  %v2161 = vrot.slane %v2160, 2
  %v2162 = vadd.f32 %v2160, %v2161
  %v2163 = vrot.slane %v2162, 1
  %v2164 = vadd.f32 %v2162, %v2163
  %v2165 = vrcp.pop 4.0
  %v2166 = vmul.f32 %v2143, %v2165
  %v2167 = vmul.f32 %v2150, %v2165
  %v2168 = vmul.f32 %v2157, %v2165
  %v2169 = vmul.f32 %v2164, %v2165
  %v2170 = vsub.f32 %v1964, %v2166
  %v2171 = vsub.f32 %v1966, %v2167
  %v2172 = vsub.f32 %v2128, %v2168
  %v2173 = vsub.f32 %v2130, %v2169
  %v2174 = vmul.f32 %v2170, %v2170
  %v2175 = vmul.f32 %v2171, %v2171
  %v2176 = vmul.f32 %v2172, %v2172
  %v2177 = vmul.f32 %v2173, %v2173
  %v2178 = vsel %vm2136, %v2174, 0.0
  %v2179 = vrot.slane %v2178, 4
  %v2180 = vadd.f32 %v2178, %v2179
  %v2181 = vrot.slane %v2180, 2
  %v2182 = vadd.f32 %v2180, %v2181
  %v2183 = vrot.slane %v2182, 1
  %v2184 = vadd.f32 %v2182, %v2183
  %v2185 = vsel %vm2136, %v2175, 0.0
  %v2186 = vrot.slane %v2185, 4
  %v2187 = vadd.f32 %v2185, %v2186
  %v2188 = vrot.slane %v2187, 2
  %v2189 = vadd.f32 %v2187, %v2188
  %v2190 = vrot.slane %v2189, 1
  %v2191 = vadd.f32 %v2189, %v2190
  %v2192 = vsel %vm2136, %v2176, 0.0
  %v2193 = vrot.slane %v2192, 4
  %v2194 = vadd.f32 %v2192, %v2193
  %v2195 = vrot.slane %v2194, 2
  %v2196 = vadd.f32 %v2194, %v2195
  %v2197 = vrot.slane %v2196, 1
  %v2198 = vadd.f32 %v2196, %v2197
  %v2199 = vsel %vm2136, %v2177, 0.0
  %v2200 = vrot.slane %v2199, 4
  %v2201 = vadd.f32 %v2199, %v2200
  %v2202 = vrot.slane %v2201, 2
  %v2203 = vadd.f32 %v2201, %v2202
  %v2204 = vrot.slane %v2203, 1
  %v2205 = vadd.f32 %v2203, %v2204
  %v2206 = vmul.f32 %v2184, %v2165
  %v2207 = vmul.f32 %v2191, %v2165
  %v2208 = vmul.f32 %v2198, %v2165
  %v2209 = vmul.f32 %v2205, %v2165
  %v2210 = vadd.f32 %v2206, 1e-05
  %v2211 = vadd.f32 %v2207, 1e-05
  %v2212 = vadd.f32 %v2208, 1e-05
  %v2213 = vadd.f32 %v2209, 1e-05
  %v2214 = vrsqrt.pop %v2210
  %v2215 = vrsqrt.pop %v2211
  %v2216 = vrsqrt.pop %v2212
  %v2217 = vrsqrt.pop %v2213
  %v2218 = vmul.f32 %v2170, %v2214
  %v2219 = vmul.f32 %v2171, %v2215
  %v2220 = vmul.f32 %v2172, %v2216
  %v2221 = vmul.f32 %v2173, %v2217
  %v2223 = vlaneseq
  %v2224 = vshrl.u32 %v2223, 7
  %v2225 = vsub.s32 0, %v2224
  %v2226 = vrot.slane %v2134, %v2225
  %v2227 = vlaneseq
  %v2228 = vshrl.u32 %v2227, 7
  %v2229 = vsub.s32 1, %v2228
  %v2230 = vrot.slane %v2134, %v2229
  %v2231 = vlaneseq
  %v2232 = vshrl.u32 %v2231, 7
  %v2233 = vsub.s32 2, %v2232
  %v2234 = vrot.slane %v2134, %v2233
  %v2235 = vlaneseq
  %v2236 = vshrl.u32 %v2235, 7
  %v2237 = vsub.s32 3, %v2236
  %v2238 = vrot.slane %v2134, %v2237
  %v2243 = vmul.f32 %v2218, %v2226
  %v2244 = vmul.f32 %v2219, %v2230
  %v2245 = vmul.f32 %v2220, %v2234
  %v2246 = vmul.f32 %v2221, %v2238
  %v2248 = vlaneseq
  %v2249 = vshrl.u32 %v2248, 7
  %v2250 = vsub.s32 0, %v2249
  %v2251 = vrot.slane %v2135, %v2250
  %v2252 = vlaneseq
  %v2253 = vshrl.u32 %v2252, 7
  %v2254 = vsub.s32 1, %v2253
  %v2255 = vrot.slane %v2135, %v2254
  %v2256 = vlaneseq
  %v2257 = vshrl.u32 %v2256, 7
  %v2258 = vsub.s32 2, %v2257
  %v2259 = vrot.slane %v2135, %v2258
  %v2260 = vlaneseq
  %v2261 = vshrl.u32 %v2260, 7
  %v2262 = vsub.s32 3, %v2261
  %v2263 = vrot.slane %v2135, %v2262
  %v2268 = vadd.f32 %v2243, %v2251
  %v2269 = vadd.f32 %v2244, %v2255
  %v2270 = vadd.f32 %v2245, %v2259
  %v2271 = vadd.f32 %v2246, %v2263
  %v2272 = vmax.f32 %v2268, 0.0
  %v2273 = vmax.f32 %v2269, 0.0
  %v2274 = vmax.f32 %v2270, 0.0
  %v2275 = vmax.f32 %v2271, 0.0
  %v2276 = vpack.c.bf16 %v2272, %v2272
  %v2277 = vpack.c.bf16 %v2273, %v2273
  %v2278 = vpack.c.bf16 %v2274, %v2274
  %v2279 = vpack.c.bf16 %v2275, %v2275
  %v2280 = vld [vmem:[%s8] sm:$0xff]
  %v2281 = vld [vmem:[%s8 + $0x8] sm:$0xff]
  %v2282 = vld [vmem:[%s8 + $0x10] sm:$0xff]
  %v2283 = vld [vmem:[%s8 + $0x18] sm:$0xff]
  %v2284 = vld [vmem:[%s8 + $0x20] sm:$0xff]
  %v2285 = vld [vmem:[%s8 + $0x28] sm:$0xff]
  %v2286 = vld [vmem:[%s8 + $0x30] sm:$0xff]
  %v2287 = vld [vmem:[%s8 + $0x38] sm:$0xff]
  %v2288 = vld [vmem:[%s8 + $0x40] sm:$0xff]
  %v2289 = vld [vmem:[%s8 + $0x48] sm:$0xff]
  %v2290 = vld [vmem:[%s8 + $0x50] sm:$0xff]
  %v2291 = vld [vmem:[%s8 + $0x58] sm:$0xff]
  %v2292 = vld [vmem:[%s8 + $0x60] sm:$0xff]
  %v2293 = vld [vmem:[%s8 + $0x68] sm:$0xff]
  %v2294 = vld [vmem:[%s8 + $0x70] sm:$0xff]
  %v2295 = vld [vmem:[%s8 + $0x78] sm:$0xff]
  %v2296 = vld [vmem:[%s8 + $0x80] sm:$0xff]
  %v2297 = vld [vmem:[%s8 + $0x88] sm:$0xff]
  %v2298 = vld [vmem:[%s8 + $0x90] sm:$0xff]
  %v2299 = vld [vmem:[%s8 + $0x98] sm:$0xff]
  %v2300 = vld [vmem:[%s8 + $0xa0] sm:$0xff]
  %v2301 = vld [vmem:[%s8 + $0xa8] sm:$0xff]
  %v2302 = vld [vmem:[%s8 + $0xb0] sm:$0xff]
  %v2303 = vld [vmem:[%s8 + $0xb8] sm:$0xff]
  %v2304 = vld [vmem:[%s8 + $0xc0] sm:$0xff]
  %v2305 = vld [vmem:[%s8 + $0xc8] sm:$0xff]
  %v2306 = vld [vmem:[%s8 + $0xd0] sm:$0xff]
  %v2307 = vld [vmem:[%s8 + $0xd8] sm:$0xff]
  %v2308 = vld [vmem:[%s8 + $0xe0] sm:$0xff]
  %v2309 = vld [vmem:[%s8 + $0xe8] sm:$0xff]
  %v2310 = vld [vmem:[%s8 + $0xf0] sm:$0xff]
  %v2311 = vld [vmem:[%s8 + $0xf8] sm:$0xff]
  %v2312 = vld [vmem:[%s8 + $0x100] sm:$0xff]
  %v2313 = vld [vmem:[%s8 + $0x108] sm:$0xff]
  %v2314 = vld [vmem:[%s8 + $0x110] sm:$0xff]
  %v2315 = vld [vmem:[%s8 + $0x118] sm:$0xff]
  %v2316 = vld [vmem:[%s8 + $0x120] sm:$0xff]
  %v2317 = vld [vmem:[%s8 + $0x128] sm:$0xff]
  %v2318 = vld [vmem:[%s8 + $0x130] sm:$0xff]
  %v2319 = vld [vmem:[%s8 + $0x138] sm:$0xff]
  %v2320 = vld [vmem:[%s8 + $0x140] sm:$0xff]
  %v2321 = vld [vmem:[%s8 + $0x148] sm:$0xff]
  %v2322 = vld [vmem:[%s8 + $0x150] sm:$0xff]
  %v2323 = vld [vmem:[%s8 + $0x158] sm:$0xff]
  %v2324 = vld [vmem:[%s8 + $0x160] sm:$0xff]
  %v2325 = vld [vmem:[%s8 + $0x168] sm:$0xff]
  %v2326 = vld [vmem:[%s8 + $0x170] sm:$0xff]
  %v2327 = vld [vmem:[%s8 + $0x178] sm:$0xff]
  %v2328 = vld [vmem:[%s8 + $0x180] sm:$0xff]
  %v2329 = vld [vmem:[%s8 + $0x188] sm:$0xff]
  %v2330 = vld [vmem:[%s8 + $0x190] sm:$0xff]
  %v2331 = vld [vmem:[%s8 + $0x198] sm:$0xff]
  %v2332 = vld [vmem:[%s8 + $0x1a0] sm:$0xff]
  %v2333 = vld [vmem:[%s8 + $0x1a8] sm:$0xff]
  %v2334 = vld [vmem:[%s8 + $0x1b0] sm:$0xff]
  %v2335 = vld [vmem:[%s8 + $0x1b8] sm:$0xff]
  %v2336 = vld [vmem:[%s8 + $0x1c0] sm:$0xff]
  %v2337 = vld [vmem:[%s8 + $0x1c8] sm:$0xff]
  %v2338 = vld [vmem:[%s8 + $0x1d0] sm:$0xff]
  %v2339 = vld [vmem:[%s8 + $0x1d8] sm:$0xff]
  %v2340 = vld [vmem:[%s8 + $0x1e0] sm:$0xff]
  %v2341 = vld [vmem:[%s8 + $0x1e8] sm:$0xff]
  %v2342 = vld [vmem:[%s8 + $0x1f0] sm:$0xff]
  %v2343 = vld [vmem:[%s8 + $0x1f8] sm:$0xff]
  %v2344 = vld [vmem:[%s9] sm:$0x3]
  %v2346 = vlaneseq
  %v2347 = vshrl.u32 %v2346, 7
  %v2348 = vsub.s32 0, %v2347
  %v2349 = vrot.slane %v2344, %v2348
  %v2350 = vlaneseq
  %v2351 = vshrl.u32 %v2350, 7
  %v2352 = vsub.s32 1, %v2351
  %v2353 = vrot.slane %v2344, %v2352
  %v2420 = vunpack.c.l.b16 %v2280
  %v2421 = vunpack.c.h.b16 %v2280
  %v2422 = vunpack.c.l.b16 %v2281
  %v2423 = vunpack.c.h.b16 %v2281
  %v2424 = vunpack.c.l.b16 %v2282
  %v2425 = vunpack.c.h.b16 %v2282
  %v2426 = vunpack.c.l.b16 %v2283
  %v2427 = vunpack.c.h.b16 %v2283
  %v2428 = vunpack.c.l.b16 %v2284
  %v2429 = vunpack.c.h.b16 %v2284
  %v2430 = vunpack.c.l.b16 %v2285
  %v2431 = vunpack.c.h.b16 %v2285
  %v2432 = vunpack.c.l.b16 %v2286
  %v2433 = vunpack.c.h.b16 %v2286
  %v2434 = vunpack.c.l.b16 %v2287
  %v2435 = vunpack.c.h.b16 %v2287
  %v2436 = vunpack.c.l.b16 %v2288
  %v2437 = vunpack.c.h.b16 %v2288
  %v2438 = vunpack.c.l.b16 %v2289
  %v2439 = vunpack.c.h.b16 %v2289
  %v2440 = vunpack.c.l.b16 %v2290
  %v2441 = vunpack.c.h.b16 %v2290
  %v2442 = vunpack.c.l.b16 %v2291
  %v2443 = vunpack.c.h.b16 %v2291
  %v2444 = vunpack.c.l.b16 %v2292
  %v2445 = vunpack.c.h.b16 %v2292
  %v2446 = vunpack.c.l.b16 %v2293
  %v2447 = vunpack.c.h.b16 %v2293
  %v2448 = vunpack.c.l.b16 %v2294
  %v2449 = vunpack.c.h.b16 %v2294
  %v2450 = vunpack.c.l.b16 %v2295
  %v2451 = vunpack.c.h.b16 %v2295
  %v2452 = vunpack.c.l.b16 %v2296
  %v2453 = vunpack.c.h.b16 %v2296
  %v2454 = vunpack.c.l.b16 %v2297
  %v2455 = vunpack.c.h.b16 %v2297
  %v2456 = vunpack.c.l.b16 %v2298
  %v2457 = vunpack.c.h.b16 %v2298
  %v2458 = vunpack.c.l.b16 %v2299
  %v2459 = vunpack.c.h.b16 %v2299
  %v2460 = vunpack.c.l.b16 %v2300
  %v2461 = vunpack.c.h.b16 %v2300
  %v2462 = vunpack.c.l.b16 %v2301
  %v2463 = vunpack.c.h.b16 %v2301
  %v2464 = vunpack.c.l.b16 %v2302
  %v2465 = vunpack.c.h.b16 %v2302
  %v2466 = vunpack.c.l.b16 %v2303
  %v2467 = vunpack.c.h.b16 %v2303
  %v2468 = vunpack.c.l.b16 %v2304
  %v2469 = vunpack.c.h.b16 %v2304
  %v2470 = vunpack.c.l.b16 %v2305
  %v2471 = vunpack.c.h.b16 %v2305
  %v2472 = vunpack.c.l.b16 %v2306
  %v2473 = vunpack.c.h.b16 %v2306
  %v2474 = vunpack.c.l.b16 %v2307
  %v2475 = vunpack.c.h.b16 %v2307
  %v2476 = vunpack.c.l.b16 %v2308
  %v2477 = vunpack.c.h.b16 %v2308
  %v2478 = vunpack.c.l.b16 %v2309
  %v2479 = vunpack.c.h.b16 %v2309
  %v2480 = vunpack.c.l.b16 %v2310
  %v2481 = vunpack.c.h.b16 %v2310
  %v2482 = vunpack.c.l.b16 %v2311
  %v2483 = vunpack.c.h.b16 %v2311
  %v2484 = vunpack.c.l.b16 %v2312
  %v2485 = vunpack.c.h.b16 %v2312
  %v2486 = vunpack.c.l.b16 %v2313
  %v2487 = vunpack.c.h.b16 %v2313
  %v2488 = vunpack.c.l.b16 %v2314
  %v2489 = vunpack.c.h.b16 %v2314
  %v2490 = vunpack.c.l.b16 %v2315
  %v2491 = vunpack.c.h.b16 %v2315
  %v2492 = vunpack.c.l.b16 %v2316
  %v2493 = vunpack.c.h.b16 %v2316
  %v2494 = vunpack.c.l.b16 %v2317
  %v2495 = vunpack.c.h.b16 %v2317
  %v2496 = vunpack.c.l.b16 %v2318
  %v2497 = vunpack.c.h.b16 %v2318
  %v2498 = vunpack.c.l.b16 %v2319
  %v2499 = vunpack.c.h.b16 %v2319
  %v2500 = vunpack.c.l.b16 %v2320
  %v2501 = vunpack.c.h.b16 %v2320
  %v2502 = vunpack.c.l.b16 %v2321
  %v2503 = vunpack.c.h.b16 %v2321
  %v2504 = vunpack.c.l.b16 %v2322
  %v2505 = vunpack.c.h.b16 %v2322
  %v2506 = vunpack.c.l.b16 %v2323
  %v2507 = vunpack.c.h.b16 %v2323
  %v2508 = vunpack.c.l.b16 %v2324
  %v2509 = vunpack.c.h.b16 %v2324
  %v2510 = vunpack.c.l.b16 %v2325
  %v2511 = vunpack.c.h.b16 %v2325
  %v2512 = vunpack.c.l.b16 %v2326
  %v2513 = vunpack.c.h.b16 %v2326
  %v2514 = vunpack.c.l.b16 %v2327
  %v2515 = vunpack.c.h.b16 %v2327
  %v2516 = vunpack.c.l.b16 %v2328
  %v2517 = vunpack.c.h.b16 %v2328
  %v2518 = vunpack.c.l.b16 %v2329
  %v2519 = vunpack.c.h.b16 %v2329
  %v2520 = vunpack.c.l.b16 %v2330
  %v2521 = vunpack.c.h.b16 %v2330
  %v2522 = vunpack.c.l.b16 %v2331
  %v2523 = vunpack.c.h.b16 %v2331
  %v2524 = vunpack.c.l.b16 %v2332
  %v2525 = vunpack.c.h.b16 %v2332
  %v2526 = vunpack.c.l.b16 %v2333
  %v2527 = vunpack.c.h.b16 %v2333
  %v2528 = vunpack.c.l.b16 %v2334
  %v2529 = vunpack.c.h.b16 %v2334
  %v2530 = vunpack.c.l.b16 %v2335
  %v2531 = vunpack.c.h.b16 %v2335
  %v2532 = vunpack.c.l.b16 %v2336
  %v2533 = vunpack.c.h.b16 %v2336
  %v2534 = vunpack.c.l.b16 %v2337
  %v2535 = vunpack.c.h.b16 %v2337
  %v2536 = vunpack.c.l.b16 %v2338
  %v2537 = vunpack.c.h.b16 %v2338
  %v2538 = vunpack.c.l.b16 %v2339
  %v2539 = vunpack.c.h.b16 %v2339
  %v2540 = vunpack.c.l.b16 %v2340
  %v2541 = vunpack.c.h.b16 %v2340
  %v2542 = vunpack.c.l.b16 %v2341
  %v2543 = vunpack.c.h.b16 %v2341
  %v2544 = vunpack.c.l.b16 %v2342
  %v2545 = vunpack.c.h.b16 %v2342
  %v2546 = vunpack.c.l.b16 %v2343
  %v2547 = vunpack.c.h.b16 %v2343
  %v2548 = vpack.c.b16 %v2422, %v2420
  %v2549 = vpack.c.b16 %v2423, %v2421
  %v2550 = vpack.c.b16 %v2426, %v2424
  %v2551 = vpack.c.b16 %v2427, %v2425
  %v2552 = vpack.c.b16 %v2430, %v2428
  %v2553 = vpack.c.b16 %v2431, %v2429
  %v2554 = vpack.c.b16 %v2434, %v2432
  %v2555 = vpack.c.b16 %v2435, %v2433
  %v2556 = vpack.c.b16 %v2438, %v2436
  %v2557 = vpack.c.b16 %v2439, %v2437
  %v2558 = vpack.c.b16 %v2442, %v2440
  %v2559 = vpack.c.b16 %v2443, %v2441
  %v2560 = vpack.c.b16 %v2446, %v2444
  %v2561 = vpack.c.b16 %v2447, %v2445
  %v2562 = vpack.c.b16 %v2450, %v2448
  %v2563 = vpack.c.b16 %v2451, %v2449
  %v2564 = vpack.c.b16 %v2454, %v2452
  %v2565 = vpack.c.b16 %v2455, %v2453
  %v2566 = vpack.c.b16 %v2458, %v2456
  %v2567 = vpack.c.b16 %v2459, %v2457
  %v2568 = vpack.c.b16 %v2462, %v2460
  %v2569 = vpack.c.b16 %v2463, %v2461
  %v2570 = vpack.c.b16 %v2466, %v2464
  %v2571 = vpack.c.b16 %v2467, %v2465
  %v2572 = vpack.c.b16 %v2470, %v2468
  %v2573 = vpack.c.b16 %v2471, %v2469
  %v2574 = vpack.c.b16 %v2474, %v2472
  %v2575 = vpack.c.b16 %v2475, %v2473
  %v2576 = vpack.c.b16 %v2478, %v2476
  %v2577 = vpack.c.b16 %v2479, %v2477
  %v2578 = vpack.c.b16 %v2482, %v2480
  %v2579 = vpack.c.b16 %v2483, %v2481
  %v2580 = vpack.c.b16 %v2486, %v2484
  %v2581 = vpack.c.b16 %v2487, %v2485
  %v2582 = vpack.c.b16 %v2490, %v2488
  %v2583 = vpack.c.b16 %v2491, %v2489
  %v2584 = vpack.c.b16 %v2494, %v2492
  %v2585 = vpack.c.b16 %v2495, %v2493
  %v2586 = vpack.c.b16 %v2498, %v2496
  %v2587 = vpack.c.b16 %v2499, %v2497
  %v2588 = vpack.c.b16 %v2502, %v2500
  %v2589 = vpack.c.b16 %v2503, %v2501
  %v2590 = vpack.c.b16 %v2506, %v2504
  %v2591 = vpack.c.b16 %v2507, %v2505
  %v2592 = vpack.c.b16 %v2510, %v2508
  %v2593 = vpack.c.b16 %v2511, %v2509
  %v2594 = vpack.c.b16 %v2514, %v2512
  %v2595 = vpack.c.b16 %v2515, %v2513
  %v2596 = vpack.c.b16 %v2518, %v2516
  %v2597 = vpack.c.b16 %v2519, %v2517
  %v2598 = vpack.c.b16 %v2522, %v2520
  %v2599 = vpack.c.b16 %v2523, %v2521
  %v2600 = vpack.c.b16 %v2526, %v2524
  %v2601 = vpack.c.b16 %v2527, %v2525
  %v2602 = vpack.c.b16 %v2530, %v2528
  %v2603 = vpack.c.b16 %v2531, %v2529
  %v2604 = vpack.c.b16 %v2534, %v2532
  %v2605 = vpack.c.b16 %v2535, %v2533
  %v2606 = vpack.c.b16 %v2538, %v2536
  %v2607 = vpack.c.b16 %v2539, %v2537
  %v2608 = vpack.c.b16 %v2542, %v2540
  %v2609 = vpack.c.b16 %v2543, %v2541
  %v2610 = vpack.c.b16 %v2546, %v2544
  %v2611 = vpack.c.b16 %v2547, %v2545
  %2676 = vmatprep.subr.bf16.mxu0 %v2549
  %2677 = vmatpush1.bf16.msra.mxu0 %v2548
  %2678 = vmatprep.subr.bf16.mxu0 %v2551
  %2679 = vmatpush1.bf16.msra.mxu0 %v2550
  %2680 = vmatprep.subr.bf16.mxu0 %v2553
  %2681 = vmatpush1.bf16.msra.mxu0 %v2552
  %2682 = vmatprep.subr.bf16.mxu0 %v2555
  %2683 = vmatpush1.bf16.msra.mxu0 %v2554
  %2684 = vmatprep.subr.bf16.mxu0 %v2557
  %2685 = vmatpush1.bf16.msra.mxu0 %v2556
  %2686 = vmatprep.subr.bf16.mxu0 %v2559
  %2687 = vmatpush1.bf16.msra.mxu0 %v2558
  %2688 = vmatprep.subr.bf16.mxu0 %v2561
  %2689 = vmatpush1.bf16.msra.mxu0 %v2560
  %2690 = vmatprep.subr.bf16.mxu0 %v2563
  %2691 = vmatpush1.bf16.msra.mxu0 %v2562
  %2692 = vmatprep.subr.bf16.mxu0 %v2565
  %2693 = vmatpush1.bf16.msra.mxu0 %v2564
  %2694 = vmatprep.subr.bf16.mxu0 %v2567
  %2695 = vmatpush1.bf16.msra.mxu0 %v2566
  %2696 = vmatprep.subr.bf16.mxu0 %v2569
  %2697 = vmatpush1.bf16.msra.mxu0 %v2568
  %2698 = vmatprep.subr.bf16.mxu0 %v2571
  %2699 = vmatpush1.bf16.msra.mxu0 %v2570
  %2700 = vmatprep.subr.bf16.mxu0 %v2573
  %2701 = vmatpush1.bf16.msra.mxu0 %v2572
  %2702 = vmatprep.subr.bf16.mxu0 %v2575
  %2703 = vmatpush1.bf16.msra.mxu0 %v2574
  %2704 = vmatprep.subr.bf16.mxu0 %v2577
  %2705 = vmatpush1.bf16.msra.mxu0 %v2576
  %2706 = vmatprep.subr.bf16.mxu0 %v2579
  %2707 = vmatpush1.bf16.msra.mxu0 %v2578
  %2708 = vmatprep.mubr.bf16.mxu0 %v2277
  %2709 = vmatmul.mubr.bf16.gmra.mrb[0].mxu0 %v2276
  %v2710 = vpop.f32.mrb[0].mxu0
  %v2711 = vadd.f32 %v2349, %v2710
  %v2712 = vpop.f32.mrb[0].mxu0
  %v2713 = vadd.f32 %v2353, %v2712
  %v2714 = vpop.f32.mrb[0].mxu0
  %v2715 = vpop.f32.mrb[0].mxu0
  %2716 = vdwg.mxu0
  %2717 = vmatprep.subr.bf16.mxu0 %v2581
  %2718 = vmatpush1.bf16.msra.mxu0 %v2580
  %2719 = vmatprep.subr.bf16.mxu0 %v2583
  %2720 = vmatpush1.bf16.msra.mxu0 %v2582
  %2721 = vmatprep.subr.bf16.mxu0 %v2585
  %2722 = vmatpush1.bf16.msra.mxu0 %v2584
  %2723 = vmatprep.subr.bf16.mxu0 %v2587
  %2724 = vmatpush1.bf16.msra.mxu0 %v2586
  %2725 = vmatprep.subr.bf16.mxu0 %v2589
  %2726 = vmatpush1.bf16.msra.mxu0 %v2588
  %2727 = vmatprep.subr.bf16.mxu0 %v2591
  %2728 = vmatpush1.bf16.msra.mxu0 %v2590
  %2729 = vmatprep.subr.bf16.mxu0 %v2593
  %2730 = vmatpush1.bf16.msra.mxu0 %v2592
  %2731 = vmatprep.subr.bf16.mxu0 %v2595
  %2732 = vmatpush1.bf16.msra.mxu0 %v2594
  %2733 = vmatprep.subr.bf16.mxu0 %v2597
  %2734 = vmatpush1.bf16.msra.mxu0 %v2596
  %2735 = vmatprep.subr.bf16.mxu0 %v2599
  %2736 = vmatpush1.bf16.msra.mxu0 %v2598
  %2737 = vmatprep.subr.bf16.mxu0 %v2601
  %2738 = vmatpush1.bf16.msra.mxu0 %v2600
  %2739 = vmatprep.subr.bf16.mxu0 %v2603
  %2740 = vmatpush1.bf16.msra.mxu0 %v2602
  %2741 = vmatprep.subr.bf16.mxu0 %v2605
  %2742 = vmatpush1.bf16.msra.mxu0 %v2604
  %2743 = vmatprep.subr.bf16.mxu0 %v2607
  %2744 = vmatpush1.bf16.msra.mxu0 %v2606
  %2745 = vmatprep.subr.bf16.mxu0 %v2609
  %2746 = vmatpush1.bf16.msra.mxu0 %v2608
  %2747 = vmatprep.subr.bf16.mxu0 %v2611
  %2748 = vmatpush1.bf16.msra.mxu0 %v2610
  %2749 = vmatprep.mubr.bf16.mxu0 %v2279
  %2750 = vmatmul.mubr.bf16.gmra.mrb[0].mxu0 %v2278
  %v2751 = vpop.f32.mrb[0].mxu0
  %v2752 = vadd.f32 %v2711, %v2751
  %v2753 = vpop.f32.mrb[0].mxu0
  %v2754 = vadd.f32 %v2713, %v2753
  %v2755 = vpop.f32.mrb[0].mxu0
  %v2756 = vpop.f32.mrb[0].mxu0
  %2757 = vdwg.mxu0
  %v2758 = vld [vmem:[%s10] sm:$0x3]
  %v2759 = vld [vmem:[%s11] sm:$0x3]
  %v2760 = vsel %vm2136, %v2752, 0.0
  %v2761 = vrot.slane %v2760, 4
  %v2762 = vadd.f32 %v2760, %v2761
  %v2763 = vrot.slane %v2762, 2
  %v2764 = vadd.f32 %v2762, %v2763
  %v2765 = vrot.slane %v2764, 1
  %v2766 = vadd.f32 %v2764, %v2765
  %v2767 = vsel %vm2136, %v2754, 0.0
  %v2768 = vrot.slane %v2767, 4
  %v2769 = vadd.f32 %v2767, %v2768
  %v2770 = vrot.slane %v2769, 2
  %v2771 = vadd.f32 %v2769, %v2770
  %v2772 = vrot.slane %v2771, 1
  %v2773 = vadd.f32 %v2771, %v2772
  %v2774 = vmul.f32 %v2766, %v2165
  %v2775 = vmul.f32 %v2773, %v2165
  %v2776 = vsub.f32 %v2752, %v2774
  %v2777 = vsub.f32 %v2754, %v2775
  %v2778 = vmul.f32 %v2776, %v2776
  %v2779 = vmul.f32 %v2777, %v2777
  %v2780 = vsel %vm2136, %v2778, 0.0
  %v2781 = vrot.slane %v2780, 4
  %v2782 = vadd.f32 %v2780, %v2781
  %v2783 = vrot.slane %v2782, 2
  %v2784 = vadd.f32 %v2782, %v2783
  %v2785 = vrot.slane %v2784, 1
  %v2786 = vadd.f32 %v2784, %v2785
  %v2787 = vsel %vm2136, %v2779, 0.0
  %v2788 = vrot.slane %v2787, 4
  %v2789 = vadd.f32 %v2787, %v2788
  %v2790 = vrot.slane %v2789, 2
  %v2791 = vadd.f32 %v2789, %v2790
  %v2792 = vrot.slane %v2791, 1
  %v2793 = vadd.f32 %v2791, %v2792
  %v2794 = vmul.f32 %v2786, %v2165
  %v2795 = vmul.f32 %v2793, %v2165
  %v2796 = vadd.f32 %v2794, 1e-05
  %v2797 = vadd.f32 %v2795, 1e-05
  %v2798 = vrsqrt.pop %v2796
  %v2799 = vrsqrt.pop %v2797
  %v2800 = vmul.f32 %v2776, %v2798
  %v2801 = vmul.f32 %v2777, %v2799
  %v2803 = vlaneseq
  %v2804 = vshrl.u32 %v2803, 7
  %v2805 = vsub.s32 0, %v2804
  %v2806 = vrot.slane %v2758, %v2805
  %v2807 = vlaneseq
  %v2808 = vshrl.u32 %v2807, 7
  %v2809 = vsub.s32 1, %v2808
  %v2810 = vrot.slane %v2758, %v2809
  %v2813 = vmul.f32 %v2800, %v2806
  %v2814 = vmul.f32 %v2801, %v2810
  %v2816 = vlaneseq
  %v2817 = vshrl.u32 %v2816, 7
  %v2818 = vsub.s32 0, %v2817
  %v2819 = vrot.slane %v2759, %v2818
  %v2820 = vlaneseq
  %v2821 = vshrl.u32 %v2820, 7
  %v2822 = vsub.s32 1, %v2821
  %v2823 = vrot.slane %v2759, %v2822
  %v2826 = vadd.f32 %v2813, %v2819
  %v2827 = vadd.f32 %v2814, %v2823
  %v2828 = vmax.f32 %v2826, 0.0
  %v2829 = vmax.f32 %v2827, 0.0
  %v2830 = vld [vmem:[%s12] sm:$0xff]
  %v2831 = vld [vmem:[%s12 + $0x8] sm:$0xff]
  %v2832 = vld [vmem:[%s12 + $0x10] sm:$0xff]
  %v2833 = vld [vmem:[%s12 + $0x18] sm:$0xff]
  %v2834 = vld [vmem:[%s12 + $0x20] sm:$0xff]
  %v2835 = vld [vmem:[%s12 + $0x28] sm:$0xff]
  %v2836 = vld [vmem:[%s12 + $0x30] sm:$0xff]
  %v2837 = vld [vmem:[%s12 + $0x38] sm:$0xff]
  %v2838 = vld [vmem:[%s12 + $0x40] sm:$0xff]
  %v2839 = vld [vmem:[%s12 + $0x48] sm:$0xff]
  %v2840 = vld [vmem:[%s12 + $0x50] sm:$0xff]
  %v2841 = vld [vmem:[%s12 + $0x58] sm:$0xff]
  %v2842 = vld [vmem:[%s12 + $0x60] sm:$0xff]
  %v2843 = vld [vmem:[%s12 + $0x68] sm:$0xff]
  %v2844 = vld [vmem:[%s12 + $0x70] sm:$0xff]
  %v2845 = vld [vmem:[%s12 + $0x78] sm:$0xff]
  %v2846 = vld [vmem:[%s12 + $0x80] sm:$0xff]
  %v2847 = vld [vmem:[%s12 + $0x88] sm:$0xff]
  %v2848 = vld [vmem:[%s12 + $0x90] sm:$0xff]
  %v2849 = vld [vmem:[%s12 + $0x98] sm:$0xff]
  %v2850 = vld [vmem:[%s12 + $0xa0] sm:$0xff]
  %v2851 = vld [vmem:[%s12 + $0xa8] sm:$0xff]
  %v2852 = vld [vmem:[%s12 + $0xb0] sm:$0xff]
  %v2853 = vld [vmem:[%s12 + $0xb8] sm:$0xff]
  %v2854 = vld [vmem:[%s12 + $0xc0] sm:$0xff]
  %v2855 = vld [vmem:[%s12 + $0xc8] sm:$0xff]
  %v2856 = vld [vmem:[%s12 + $0xd0] sm:$0xff]
  %v2857 = vld [vmem:[%s12 + $0xd8] sm:$0xff]
  %v2858 = vld [vmem:[%s12 + $0xe0] sm:$0xff]
  %v2859 = vld [vmem:[%s12 + $0xe8] sm:$0xff]
  %v2860 = vld [vmem:[%s12 + $0xf0] sm:$0xff]
  %v2861 = vld [vmem:[%s12 + $0xf8] sm:$0xff]
  %v2862 = vld [vmem:[%s13] sm:$0x1]
  %v2864 = vlaneseq
  %v2865 = vshrl.u32 %v2864, 7
  %v2866 = vsub.s32 0, %v2865
  %v2867 = vrot.slane %v2862, %v2866
  %2869 = vmatprep.subr.mxu0 0.0
  %2870 = vmatpush1.msra.mxu0 %v2830
  %2871 = vmatprep.subr.mxu0 0.0
  %2872 = vmatpush1.msra.mxu0 %v2831
  %2873 = vmatprep.subr.mxu0 0.0
  %2874 = vmatpush1.msra.mxu0 %v2832
  %2875 = vmatprep.subr.mxu0 0.0
  %2876 = vmatpush1.msra.mxu0 %v2833
  %2877 = vmatprep.subr.mxu0 0.0
  %2878 = vmatpush1.msra.mxu0 %v2834
  %2879 = vmatprep.subr.mxu0 0.0
  %2880 = vmatpush1.msra.mxu0 %v2835
  %2881 = vmatprep.subr.mxu0 0.0
  %2882 = vmatpush1.msra.mxu0 %v2836
  %2883 = vmatprep.subr.mxu0 0.0
  %2884 = vmatpush1.msra.mxu0 %v2837
  %2885 = vmatprep.subr.mxu0 0.0
  %2886 = vmatpush1.msra.mxu0 %v2838
  %2887 = vmatprep.subr.mxu0 0.0
  %2888 = vmatpush1.msra.mxu0 %v2839
  %2889 = vmatprep.subr.mxu0 0.0
  %2890 = vmatpush1.msra.mxu0 %v2840
  %2891 = vmatprep.subr.mxu0 0.0
  %2892 = vmatpush1.msra.mxu0 %v2841
  %2893 = vmatprep.subr.mxu0 0.0
  %2894 = vmatpush1.msra.mxu0 %v2842
  %2895 = vmatprep.subr.mxu0 0.0
  %2896 = vmatpush1.msra.mxu0 %v2843
  %2897 = vmatprep.subr.mxu0 0.0
  %2898 = vmatpush1.msra.mxu0 %v2844
  %2899 = vmatprep.subr.mxu0 0.0
  %2900 = vmatpush1.msra.mxu0 %v2845
  %2901 = vmatprep.subr.mxu0 0.0
  %2902 = vmatpush1.msra.mxu0 %v2846
  %2903 = vmatprep.subr.mxu0 0.0
  %2904 = vmatpush1.msra.mxu0 %v2847
  %2905 = vmatprep.subr.mxu0 0.0
  %2906 = vmatpush1.msra.mxu0 %v2848
  %2907 = vmatprep.subr.mxu0 0.0
  %2908 = vmatpush1.msra.mxu0 %v2849
  %2909 = vmatprep.subr.mxu0 0.0
  %2910 = vmatpush1.msra.mxu0 %v2850
  %2911 = vmatprep.subr.mxu0 0.0
  %2912 = vmatpush1.msra.mxu0 %v2851
  %2913 = vmatprep.subr.mxu0 0.0
  %2914 = vmatpush1.msra.mxu0 %v2852
  %2915 = vmatprep.subr.mxu0 0.0
  %2916 = vmatpush1.msra.mxu0 %v2853
  %2917 = vmatprep.subr.mxu0 0.0
  %2918 = vmatpush1.msra.mxu0 %v2854
  %2919 = vmatprep.subr.mxu0 0.0
  %2920 = vmatpush1.msra.mxu0 %v2855
  %2921 = vmatprep.subr.mxu0 0.0
  %2922 = vmatpush1.msra.mxu0 %v2856
  %2923 = vmatprep.subr.mxu0 0.0
  %2924 = vmatpush1.msra.mxu0 %v2857
  %2925 = vmatprep.subr.mxu0 0.0
  %2926 = vmatpush1.msra.mxu0 %v2858
  %2927 = vmatprep.subr.mxu0 0.0
  %2928 = vmatpush1.msra.mxu0 %v2859
  %2929 = vmatprep.subr.mxu0 0.0
  %2930 = vmatpush1.msra.mxu0 %v2860
  %2931 = vmatprep.subr.mxu0 0.0
  %2932 = vmatpush1.msra.mxu0 %v2861
  %2933 = vmatprep.mubr.f32.mxu0 %v2829
  %2934 = vmatmul.mubr.f32.gmra.mrb[0].mxu0 %v2828
  %v2935 = vpop.f32.mrb[0].mxu0
  %v2936 = vadd.f32 %v2867, %v2935
  %v2937 = vpop.f32.mrb[0].mxu0
  %2938 = vdwg.mxu0
  %v2939 = vld [vmem:[%s14] sm:$0x1]
  %v2941 = vlaneseq
  %v2942 = vshrl.u32 %v2941, 7
  %v2943 = vsub.s32 0, %v2942
  %v2944 = vrot.slane %v2939, %v2943
  %v2946 = vadd.f32 %v2936, %v2944
  %vm2947 = vcmask 68608
  %2948 = vst.msk [vmem:[%s15] sm:$0xf] %vm2947, %v2946
  // Predicated region
  $region62: #{transform3d_forward.5} parent=0 // pred_check
    _
  $region63: #{transform3d_forward.5} parent=0 // pred_check_branch
    %2950 = sbr.rel (0) target = $region65
  $region64: #{transform3d_forward.5} parent=0 // pred_region
    _
  $region65: #{transform3d_forward.5} parent=0 // pred_fallthru
    _
  // Predicated region
  $region66: #{transform3d_forward.5} parent=0 // pred_check
    _
  $region67: #{transform3d_forward.5} parent=0 // pred_check_branch
    %2952 = sbr.rel (0) target = $region69
  $region68: #{transform3d_forward.5} parent=0 // pred_region
    _
  $region69: #{transform3d_forward.5} parent=0 // pred_fallthru
    _

</llo_original>
